<compile_context>
chip_gen: v6e
topology: v6e:2x2x1
jax: 0.10.0
libtpu: 0.0.40
codegen_flags: <defaults>
</compile_context>

<pallas_src>
import functools

import jax
import jax.numpy as jnp
from jax.experimental import pallas as pl
from jax.experimental.pallas import tpu as pltpu

EPS = 1e-5
LANES = 128
MATMUL_DTYPE = jnp.bfloat16        # bf16 MXU inputs, f32 accumulation


def _tpu_vmem_bytes():
    try:
        return int(pltpu.get_tpu_info().vmem_capacity_bytes)
    except Exception:
        return 64 * 1024 * 1024    # conservative (v7x-sized) fallback


_VMEM_BYTES = _tpu_vmem_bytes()
if _VMEM_BYTES <= 80 * 1024 * 1024:            # v7x-class (64 MiB per core)
    TILE_CAP = 2 * 1024 * 1024
    VMEM_LIMIT = min(48 * 1024 * 1024, (_VMEM_BYTES * 3) // 4)
else:                                          # v5e / v6e (128 MiB)
    TILE_CAP = 6 * 1024 * 1024
    VMEM_LIMIT = 96 * 1024 * 1024


# ----------------------------------------------------------------------------
# Tiling helpers
# ----------------------------------------------------------------------------
def _round_up(x, m):
    return -(-x // m) * m


def _pick_h_tile(ho, wo, cout, bytes_per=4):
    """Largest divisor of `ho` whose output tile fits TILE_CAP (fallback 1)."""
    best = 1
    for t in range(1, ho + 1):
        if ho % t == 0 and t * wo * cout * bytes_per <= TILE_CAP:
            best = t
    return best


def _pick_row_tile(rows, lanes, bytes_per=4):
    """Largest multiple-of-8 divisor of `rows` whose tile fits TILE_CAP."""
    if rows % 8 != 0:
        return rows
    cap_rows = max(8, TILE_CAP // max(1, lanes * bytes_per))
    best = 8
    for t in range(8, rows + 1, 8):
        if rows % t == 0 and t <= cap_rows:
            best = t
    return best


# ----------------------------------------------------------------------------
# Kernels
# ----------------------------------------------------------------------------
def conv3x3_s2d_kernel(*refs, stride, fuse_sc):
    """3x3 conv (pad=1) on a phase-packed input: 9 accumulated tap matmuls.

    Inputs : x_ref (1, s*s, Hq, Wq, Cin) bf16 phase-packed zero-padded plane
             w_ref (9, Cin, Cout)        bf16 per-tap weights
             [wsc_ref (Cin, Cout)]       bf16 1x1 shortcut weights (fused)
    Outputs: y_ref (1, TH, Wo, Cout) f32 conv tile
             p_ref (1, 2, Cout)      f32 BN partials (sum / sumsq), resident
                                         across the H-tile axis
             [r_ref (1, TH, Wo, Cout), pr_ref (1, 2, Cout)]  shortcut branch
    """
    if fuse_sc:
        x_ref, w_ref, wsc_ref, y_ref, p_ref, r_ref, pr_ref = refs
    else:
        x_ref, w_ref, y_ref, p_ref = refs

    t = pl.program_id(1)
    _, th, wo, cout = y_ref.shape
    cin = x_ref.shape[-1]
    row0 = t * th

    @pl.when(t == 0)
    def _init():
        p_ref[...] = jnp.zeros_like(p_ref)
        if fuse_sc:
            pr_ref[...] = jnp.zeros_like(pr_ref)

    acc = jnp.zeros((th * wo, cout), jnp.float32)
    for ky in range(3):
        dy, py = divmod(ky, stride)
        for kx in range(3):
            dx, px = divmod(kx, stride)
            phase = py * stride + px
            xt = x_ref[0, phase, pl.ds(row0 + dy, th), pl.ds(dx, wo), :]
            xt = xt.astype(MATMUL_DTYPE).reshape(th * wo, cin)
            acc = acc + jnp.dot(xt, w_ref[3 * ky + kx],
                                preferred_element_type=jnp.float32)
            if fuse_sc and ky == 1 and kx == 1:
                # the 1x1 stride-s shortcut conv input is exactly this tap
                rr = jnp.dot(xt, wsc_ref[...],
                             preferred_element_type=jnp.float32)
                r_ref[0] = rr.reshape(th, wo, cout)
                pr_ref[0, 0:1, :] += jnp.sum(rr, axis=0, keepdims=True)
                pr_ref[0, 1:2, :] += jnp.sum(rr * rr, axis=0, keepdims=True)

    y_ref[0] = acc.reshape(th, wo, cout)
    p_ref[0, 0:1, :] += jnp.sum(acc, axis=0, keepdims=True)
    p_ref[0, 1:2, :] += jnp.sum(acc * acc, axis=0, keepdims=True)


def conv3x3_bnrelu_kernel(y1_ref, sc_ref, sh_ref, w_ref, o_ref, p_ref, pad_ref):
    """conv2: 3x3 stride-1 pad-1 conv of relu(BN1(y1)), fully fused.

    The BN1 affine + ReLU + zero-padding is done once per batch element into
    a bf16 VMEM scratch (at the first H-tile), so no padded intermediate ever
    touches HBM.  BN2 partials are accumulated in a resident output block.
    """
    t = pl.program_id(1)
    _, th, wo, cout = o_ref.shape
    ho = y1_ref.shape[1]
    row0 = t * th

    @pl.when(t == 0)
    def _init():
        p_ref[...] = jnp.zeros_like(p_ref)
        pad_ref[...] = jnp.zeros_like(pad_ref)
        a = jnp.maximum(y1_ref[0] * sc_ref[...] + sh_ref[...], 0.0)
        pad_ref[pl.ds(1, ho), pl.ds(1, wo), :] = a.astype(pad_ref.dtype)

    acc = jnp.zeros((th * wo, cout), jnp.float32)
    for ky in range(3):
        for kx in range(3):
            xt = pad_ref[pl.ds(row0 + ky, th), pl.ds(kx, wo), :]
            acc = acc + jnp.dot(xt.reshape(th * wo, cout), w_ref[3 * ky + kx],
                                preferred_element_type=jnp.float32)

    o_ref[0] = acc.reshape(th, wo, cout)
    p_ref[0, 0:1, :] += jnp.sum(acc, axis=0, keepdims=True)
    p_ref[0, 1:2, :] += jnp.sum(acc * acc, axis=0, keepdims=True)


def combine_kernel(y_ref, r_ref, ysc_ref, ysh_ref, rsc_ref, rsh_ref, o_ref):
    """relu(BN2(y) + BN_sc(shortcut)) over a lane-dense (rows, Cp) view."""
    o_ref[...] = jnp.maximum(
        y_ref[...] * ysc_ref[...] + ysh_ref[...]
        + r_ref[...] * rsc_ref[...] + rsh_ref[...], 0.0)


# ----------------------------------------------------------------------------
# pallas_call wrappers
# ----------------------------------------------------------------------------
def conv1(x_s2d, w_taps, wsc, *, stride, ho, wo):
    """conv1 (+ fused 1x1 shortcut conv when wsc is not None)."""
    n, nphase, hq, wq, cin_p = x_s2d.shape
    cout_p = w_taps.shape[-1]
    th = _pick_h_tile(ho, wo, cout_p)
    nt = ho // th
    fuse_sc = wsc is not None

    in_specs = [
        # full phase-packed plane resident per batch element (re-used over t)
        pl.BlockSpec((1, nphase, hq, wq, cin_p), lambda b, t: (b, 0, 0, 0, 0)),
        pl.BlockSpec((9, cin_p, cout_p), lambda b, t: (0, 0, 0)),
    ]
    operands = [x_s2d, w_taps]
    out_shape = [jax.ShapeDtypeStruct((n, ho, wo, cout_p), jnp.float32),
                 jax.ShapeDtypeStruct((n, 2, cout_p), jnp.float32)]
    out_specs = [pl.BlockSpec((1, th, wo, cout_p), lambda b, t: (b, t, 0, 0)),
                 pl.BlockSpec((1, 2, cout_p), lambda b, t: (b, 0, 0))]
    if fuse_sc:
        in_specs.append(pl.BlockSpec((cin_p, cout_p), lambda b, t: (0, 0)))
        operands.append(wsc)
        out_shape += [jax.ShapeDtypeStruct((n, ho, wo, cout_p), jnp.float32),
                      jax.ShapeDtypeStruct((n, 2, cout_p), jnp.float32)]
        out_specs += [pl.BlockSpec((1, th, wo, cout_p), lambda b, t: (b, t, 0, 0)),
                      pl.BlockSpec((1, 2, cout_p), lambda b, t: (b, 0, 0))]

    return pl.pallas_call(
        functools.partial(conv3x3_s2d_kernel, stride=stride, fuse_sc=fuse_sc),
        out_shape=tuple(out_shape),
        grid=(n, nt),
        in_specs=in_specs,
        out_specs=tuple(out_specs),
        compiler_params=pltpu.CompilerParams(
            dimension_semantics=("parallel", "arbitrary"),
            vmem_limit_bytes=VMEM_LIMIT),
    )(*operands)


def conv2(y1, sc1, sh1, w_taps, *, ho, wo):
    """conv2 with BN1-apply + ReLU + zero-pad fused in-kernel (VMEM scratch)."""
    n = y1.shape[0]
    cout_p = w_taps.shape[-1]
    th = _pick_h_tile(ho, wo, cout_p)
    nt = ho // th
    return pl.pallas_call(
        conv3x3_bnrelu_kernel,
        out_shape=(jax.ShapeDtypeStruct((n, ho, wo, cout_p), jnp.float32),
                   jax.ShapeDtypeStruct((n, 2, cout_p), jnp.float32)),
        grid=(n, nt),
        in_specs=[pl.BlockSpec((1, ho, wo, cout_p), lambda b, t: (b, 0, 0, 0)),
                  pl.BlockSpec((1, cout_p), lambda b, t: (0, 0)),
                  pl.BlockSpec((1, cout_p), lambda b, t: (0, 0)),
                  pl.BlockSpec((9, cout_p, cout_p), lambda b, t: (0, 0, 0))],
        out_specs=(pl.BlockSpec((1, th, wo, cout_p), lambda b, t: (b, t, 0, 0)),
                   pl.BlockSpec((1, 2, cout_p), lambda b, t: (b, 0, 0))),
        scratch_shapes=[pltpu.VMEM((ho + 2, wo + 2, cout_p), MATMUL_DTYPE)],
        compiler_params=pltpu.CompilerParams(
            dimension_semantics=("parallel", "arbitrary"),
            vmem_limit_bytes=VMEM_LIMIT),
    )(y1, sc1.reshape(1, cout_p), sh1.reshape(1, cout_p), w_taps)


def combine(y2, r, sc_y, sh_y, sc_r, sh_r):
    """relu(y2*sc_y+sh_y + r*sc_r+sh_r) over (rows, Cp), Cp multiple of 128."""
    m, c = y2.shape
    tile = _pick_row_tile(m, c)
    return pl.pallas_call(
        combine_kernel,
        out_shape=jax.ShapeDtypeStruct((m, c), jnp.float32),
        grid=(m // tile,),
        in_specs=[pl.BlockSpec((tile, c), lambda i: (i, 0)),
                  pl.BlockSpec((tile, c), lambda i: (i, 0))]
                 + [pl.BlockSpec((1, c), lambda i: (0, 0))] * 4,
        out_specs=pl.BlockSpec((tile, c), lambda i: (i, 0)),
        compiler_params=pltpu.CompilerParams(
            dimension_semantics=("parallel",),
            vmem_limit_bytes=VMEM_LIMIT),
    )(y2, r, sc_y.reshape(1, c), sh_y.reshape(1, c),
      sc_r.reshape(1, c), sh_r.reshape(1, c))


# ----------------------------------------------------------------------------
# Host-side helpers (tiny XLA ops)
# ----------------------------------------------------------------------------
def _pad_space_to_depth(x, s, dtype):
    """Zero-pad (pad=1) and phase-pack so a stride-s 3x3 conv only needs
    contiguous window loads.  Returns (N, s*s, Hq, Wq, C), Ho, Wo."""
    n, h, w, c = x.shape
    ho = (h - 1) // s + 1
    wo = (w - 1) // s + 1
    hp = _round_up(h + 2, s)
    wp = _round_up(w + 2, s)
    xp = jnp.pad(x, ((0, 0), (1, hp - h - 1), (1, wp - w - 1), (0, 0)))
    xr = xp.reshape(n, hp // s, s, wp // s, s, c)
    xr = jnp.transpose(xr, (0, 2, 4, 1, 3, 5)).reshape(n, s * s, hp // s, wp // s, c)
    return xr.astype(dtype), ho, wo


def _prep_w3x3(w, cin_p, cout_p):
    kh, kw, cin, cout = w.shape
    w = jnp.pad(w, ((0, 0), (0, 0), (0, cin_p - cin), (0, cout_p - cout)))
    return w.reshape(9, cin_p, cout_p).astype(MATMUL_DTYPE)


def _prep_w1x1(w, cin_p, cout_p):
    cin, cout = w.shape
    w = jnp.pad(w, ((0, cin_p - cin), (0, cout_p - cout)))
    return w.astype(MATMUL_DTYPE)


def _pad_c(v, cp):
    return jnp.pad(v.astype(jnp.float32), (0, cp - v.shape[0]))


def _bn_affine(partials, gamma, beta, count):
    """Finish training-mode BN from fused (sum, sumsq) partials (tiny JAX).

    Single-pass E[x^2]-E[x]^2 with f32 sums; the per-tile sums are accumulated
    in f32 VMEM inside the conv kernels, which keeps cancellation mild for the
    sizes targeted here."""
    tot = jnp.sum(partials, axis=0)                    # (2, Cp)
    mean = tot[0] / count
    var = jnp.maximum(tot[1] / count - mean * mean, 0.0)   # biased variance
    scale = gamma * jax.lax.rsqrt(var + EPS)
    shift = beta - mean * scale
    return scale, shift


# ----------------------------------------------------------------------------
# resblock forward
# ----------------------------------------------------------------------------
def resblock_forward(x_nchw, params, stride=1):
    x = jnp.transpose(x_nchw, (0, 2, 3, 1)).astype(jnp.float32)   # NCHW -> NHWC
    n, h, w, cin = x.shape
    cout = params["w1"].shape[-1]
    has_sc = "w_sc" in params
    if not has_sc:
        assert stride == 1 and cin == cout, (
            "identity shortcut requires stride == 1 and ch_in == ch_out")

    cin_p = _round_up(cin, LANES)
    cout_p = _round_up(cout, LANES)

    # channel-pad input once; padded channels are zero and matched by zero
    # weight rows, so the math is exact.
    if cin_p != cin:
        x = jnp.pad(x, ((0, 0), (0, 0), (0, 0), (0, cin_p - cin)))

    w1 = _prep_w3x3(params["w1"], cin_p, cout_p)
    w2 = _prep_w3x3(params["w2"], cout_p, cout_p)
    g1, b1 = _pad_c(params["g1"], cout_p), _pad_c(params["be1"], cout_p)
    g2, b2 = _pad_c(params["g2"], cout_p), _pad_c(params["be2"], cout_p)

    x_s2d, ho, wo = _pad_space_to_depth(x, stride, MATMUL_DTYPE)
    count = n * ho * wo

    # conv1 (+ fused 1x1 shortcut conv sharing the centre tap), fused BN stats
    if has_sc:
        wsc = _prep_w1x1(params["w_sc"], cin_p, cout_p)
        y1, p1, r, pr = conv1(x_s2d, w1, wsc, stride=stride, ho=ho, wo=wo)
        gsc = _pad_c(params["g_sc"], cout_p)
        bsc = _pad_c(params["be_sc"], cout_p)
        scr, shr = _bn_affine(pr, gsc, bsc, count)
        r = r.reshape(n * ho * wo, cout_p)
    else:
        y1, p1 = conv1(x_s2d, w1, None, stride=stride, ho=ho, wo=wo)
        r = x.reshape(n * ho * wo, cout_p)             # identity shortcut
        scr = jnp.ones((cout_p,), jnp.float32)
        shr = jnp.zeros((cout_p,), jnp.float32)

    sc1, sh1 = _bn_affine(p1, g1, b1, count)

    # conv2 with BN1-apply + ReLU + pad fused in-kernel, fused BN2 stats
    y2, p2 = conv2(y1, sc1, sh1, w2, ho=ho, wo=wo)
    sc2, sh2 = _bn_affine(p2, g2, b2, count)

    # BN2 + shortcut-BN + residual add + ReLU, lane-dense (rows, Cp)
    out = combine(y2.reshape(n * ho * wo, cout_p), r, sc2, sh2, scr, shr)
    out = out.reshape(n, ho, wo, cout_p)[..., :cout]
    return jnp.transpose(out, (0, 3, 1, 2))                        # NHWC -> NCHW


# ----------------------------------------------------------------------------
# Pure-JAX reference (faithful to the PyTorch module, including conv biases)
# ----------------------------------------------------------------------------
def _ref_bn(x, g, b):
    m = jnp.mean(x, axis=(0, 1, 2), keepdims=True)
    v = jnp.mean((x - m) ** 2, axis=(0, 1, 2), keepdims=True)
    return (x - m) * jax.lax.rsqrt(v + EPS) * g + b


def ref_resblock(x_nchw, params, stride=1):
    x = jnp.transpose(x_nchw, (0, 2, 3, 1))

    def conv(inp, w, b, s, pad):
        return jax.lax.conv_general_dilated(
            inp, w, (s, s), pad,
            dimension_numbers=("NHWC", "HWIO", "NHWC")) + b

    y = jax.nn.relu(_ref_bn(conv(x, params["w1"], params["b1"], stride,
                                 ((1, 1), (1, 1))),
                            params["g1"], params["be1"]))
    y = _ref_bn(conv(y, params["w2"], params["b2"], 1, ((1, 1), (1, 1))),
                params["g2"], params["be2"])
    if "w_sc" in params:
        w_sc4 = params["w_sc"].reshape(1, 1, *params["w_sc"].shape)
        sc = _ref_bn(conv(x, w_sc4, params["b_sc"], stride, ((0, 0), (0, 0))),
                     params["g_sc"], params["be_sc"])
    else:
        sc = x
    return jnp.transpose(jax.nn.relu(y + sc), (0, 3, 1, 2))


# ----------------------------------------------------------------------------
# Parameter init (deterministic, synthetic; matches the torch module's params)
# ----------------------------------------------------------------------------
def init_params(key, ch_in, ch_out):
    ks = jax.random.split(key, 6)
    params = {
        "w1": 0.1 * jax.random.normal(ks[0], (3, 3, ch_in, ch_out), jnp.float32),
        "b1": 0.1 * jax.random.normal(ks[1], (ch_out,), jnp.float32),
        "g1": jnp.ones((ch_out,), jnp.float32),
        "be1": jnp.zeros((ch_out,), jnp.float32),
        "w2": 0.1 * jax.random.normal(ks[2], (3, 3, ch_out, ch_out), jnp.float32),
        "b2": 0.1 * jax.random.normal(ks[3], (ch_out,), jnp.float32),
        "g2": jnp.ones((ch_out,), jnp.float32),
        "be2": jnp.zeros((ch_out,), jnp.float32),
    }
    if ch_in != ch_out:
        params["w_sc"] = 0.1 * jax.random.normal(ks[4], (ch_in, ch_out), jnp.float32)
        params["b_sc"] = 0.1 * jax.random.normal(ks[5], (ch_out,), jnp.float32)
        params["g_sc"] = jnp.ones((ch_out,), jnp.float32)
        params["be_sc"] = jnp.zeros((ch_out,), jnp.float32)
    return params


if __name__ == "__main__":
    key = jax.random.PRNGKey(0)
    configs = [
        dict(N=2, ch_in=4, ch_out=8, H=16, W=16, stride=1),   # ch_trans branch
        dict(N=2, ch_in=4, ch_out=8, H=16, W=16, stride=2),   # strided conv + 1x1 shortcut
        dict(N=2, ch_in=8, ch_out=8, H=16, W=16, stride=1),   # identity shortcut
    ]
    for i, cfg in enumerate(configs):
        key, kx, kp = jax.random.split(key, 3)
        x = jax.random.normal(kx, (cfg["N"], cfg["ch_in"], cfg["H"], cfg["W"]),
                              jnp.float32)                     # NCHW like PyTorch
        params = init_params(kp, cfg["ch_in"], cfg["ch_out"])

        fwd = jax.jit(functools.partial(resblock_forward, stride=cfg["stride"]))
        out = jax.block_until_ready(fwd(x, params))

        ref = ref_resblock(x, params, cfg["stride"])
        assert out.shape == ref.shape, (i, out.shape, ref.shape)
        err = float(jnp.max(jnp.abs(out - ref)))
        # bf16 MXU inputs (f32 accumulation): loosen tolerance accordingly.
        tol = 5e-2 + 2e-2 * float(jnp.max(jnp.abs(ref)))
        assert err < tol, (i, err, tol)

    print("KERNEL_OK")
</pallas_src>

<mosaic_0001>
module attributes {stable_mosaic.version = 11 : i64} {
  func.func @conv3x3_s2d_kernel(%arg0: i32, %arg1: i32, %arg2: memref<1x1x18x18x128xbf16, #tpu.memory_space<vmem>>, %arg3: memref<9x128x128xbf16, #tpu.memory_space<vmem>>, %arg4: memref<128x128xbf16, #tpu.memory_space<vmem>>, %arg5: memref<1x16x16x128xf32, #tpu.memory_space<vmem>>, %arg6: memref<1x2x128xf32, #tpu.memory_space<vmem>>, %arg7: memref<1x16x16x128xf32, #tpu.memory_space<vmem>>, %arg8: memref<1x2x128xf32, #tpu.memory_space<vmem>>) attributes {dimension_semantics = [#tpu.dimension_semantics<parallel>, #tpu.dimension_semantics<arbitrary>], iteration_bounds = array<i64: 2, 1>, scalar_prefetch = 0 : i64, scratch_operands = 0 : i64, tpu.core_type = #tpu.core_type<tc>, window_params = [{transform_indices = @transform_0, window_bounds = array<i64: 1, 1, 18, 18, 128>}, {pipeline_mode = #tpu.pipeline_mode<synchronous>, transform_indices = @transform_1, window_bounds = array<i64: 9, 128, 128>}, {pipeline_mode = #tpu.pipeline_mode<synchronous>, transform_indices = @transform_2, window_bounds = array<i64: 128, 128>}, {transform_indices = @transform_3, window_bounds = array<i64: 1, 16, 16, 128>}, {transform_indices = @transform_4, window_bounds = array<i64: 1, 2, 128>}, {transform_indices = @transform_5, window_bounds = array<i64: 1, 16, 16, 128>}, {transform_indices = @transform_6, window_bounds = array<i64: 1, 2, 128>}]} {
    %c16_i32 = arith.constant 16 : i32
    %0 = arith.muli %arg1, %c16_i32 : i32
    %c0_i32 = arith.constant 0 : i32
    %1 = arith.cmpi eq, %arg1, %c0_i32 : i32
    %2 = arith.extui %1 : i1 to i32
    %c0_i32_0 = arith.constant 0 : i32
    %3 = arith.cmpi ne, %2, %c0_i32_0 : i32
    scf.if %3 {
      %cst_110 = arith.constant 0.000000e+00 : f32
      %130 = vector.broadcast %cst_110 : f32 to vector<1x2x128xf32>
      %c0_111 = arith.constant 0 : index
      %c0_112 = arith.constant 0 : index
      %c0_113 = arith.constant 0 : index
      %131 = vector.load %arg6[%c0_111, %c0_112, %c0_113] : memref<1x2x128xf32, #tpu.memory_space<vmem>>, vector<1x2x128xf32>
      tpu.vector_store %arg6[%c0_111, %c0_112, %c0_113], %130 {strides = array<i32>} : memref<1x2x128xf32, #tpu.memory_space<vmem>>, vector<1x2x128xf32>,
      %cst_114 = arith.constant 0.000000e+00 : f32
      %132 = vector.broadcast %cst_114 : f32 to vector<1x2x128xf32>
      %c0_115 = arith.constant 0 : index
      %c0_116 = arith.constant 0 : index
      %c0_117 = arith.constant 0 : index
      %133 = vector.load %arg8[%c0_115, %c0_116, %c0_117] : memref<1x2x128xf32, #tpu.memory_space<vmem>>, vector<1x2x128xf32>
      tpu.vector_store %arg8[%c0_115, %c0_116, %c0_117], %132 {strides = array<i32>} : memref<1x2x128xf32, #tpu.memory_space<vmem>>, vector<1x2x128xf32>,
    } else {
    }
    %cst = arith.constant 0.000000e+00 : f32
    %4 = vector.broadcast %cst : f32 to vector<256x128xf32>
    %c0_i32_1 = arith.constant 0 : i32
    %5 = arith.addi %0, %c0_i32_1 : i32
    %c0 = arith.constant 0 : index
    %c0_2 = arith.constant 0 : index
    %6 = arith.index_cast %5 : i32 to index
    %c0_3 = arith.constant 0 : index
    %c0_4 = arith.constant 0 : index
    %7 = vector.load %arg2[%c0, %c0_2, %6, %c0_3, %c0_4] : memref<1x1x18x18x128xbf16, #tpu.memory_space<vmem>>, vector<1x1x16x16x128xbf16>
    %8 = vector.shape_cast %7 : vector<1x1x16x16x128xbf16> to vector<16x16x128xbf16>
    %9 = vector.shape_cast %8 : vector<16x16x128xbf16> to vector<256x128xbf16>
    %c0_5 = arith.constant 0 : index
    %c0_6 = arith.constant 0 : index
    %c0_7 = arith.constant 0 : index
    %10 = vector.load %arg3[%c0_5, %c0_6, %c0_7] : memref<9x128x128xbf16, #tpu.memory_space<vmem>>, vector<1x128x128xbf16>
    %11 = vector.shape_cast %10 : vector<1x128x128xbf16> to vector<128x128xbf16>
    %cst_8 = arith.constant dense<0.000000e+00> : vector<256x128xf32>
    %12 = tpu.matmul %9, %11, %cst_8 {dimension_numbers = #tpu.dot_dimension_numbers<[1], [0], [0], [1], [0, 0, 1, 1], [], []>} : vector<256x128xbf16>, vector<128x128xbf16>, vector<256x128xf32> -> vector<256x128xf32>
    %13 = arith.addf %4, %12 : vector<256x128xf32>
    %c0_i32_9 = arith.constant 0 : i32
    %14 = arith.addi %0, %c0_i32_9 : i32
    %c0_10 = arith.constant 0 : index
    %c0_11 = arith.constant 0 : index
    %15 = arith.index_cast %14 : i32 to index
    %c1 = arith.constant 1 : index
    %c0_12 = arith.constant 0 : index
    %16 = vector.load %arg2[%c0_10, %c0_11, %15, %c1, %c0_12] : memref<1x1x18x18x128xbf16, #tpu.memory_space<vmem>>, vector<1x1x16x16x128xbf16>
    %17 = vector.shape_cast %16 : vector<1x1x16x16x128xbf16> to vector<16x16x128xbf16>
    %18 = vector.shape_cast %17 : vector<16x16x128xbf16> to vector<256x128xbf16>
    %c1_13 = arith.constant 1 : index
    %c0_14 = arith.constant 0 : index
    %c0_15 = arith.constant 0 : index
    %19 = vector.load %arg3[%c1_13, %c0_14, %c0_15] : memref<9x128x128xbf16, #tpu.memory_space<vmem>>, vector<1x128x128xbf16>
    %20 = vector.shape_cast %19 : vector<1x128x128xbf16> to vector<128x128xbf16>
    %cst_16 = arith.constant dense<0.000000e+00> : vector<256x128xf32>
    %21 = tpu.matmul %18, %20, %cst_16 {dimension_numbers = #tpu.dot_dimension_numbers<[1], [0], [0], [1], [0, 0, 1, 1], [], []>} : vector<256x128xbf16>, vector<128x128xbf16>, vector<256x128xf32> -> vector<256x128xf32>
    %22 = arith.addf %13, %21 : vector<256x128xf32>
    %c0_i32_17 = arith.constant 0 : i32
    %23 = arith.addi %0, %c0_i32_17 : i32
    %c0_18 = arith.constant 0 : index
    %c0_19 = arith.constant 0 : index
    %24 = arith.index_cast %23 : i32 to index
    %c2 = arith.constant 2 : index
    %c0_20 = arith.constant 0 : index
    %25 = vector.load %arg2[%c0_18, %c0_19, %24, %c2, %c0_20] : memref<1x1x18x18x128xbf16, #tpu.memory_space<vmem>>, vector<1x1x16x16x128xbf16>
    %26 = vector.shape_cast %25 : vector<1x1x16x16x128xbf16> to vector<16x16x128xbf16>
    %27 = vector.shape_cast %26 : vector<16x16x128xbf16> to vector<256x128xbf16>
    %c2_21 = arith.constant 2 : index
    %c0_22 = arith.constant 0 : index
    %c0_23 = arith.constant 0 : index
    %28 = vector.load %arg3[%c2_21, %c0_22, %c0_23] : memref<9x128x128xbf16, #tpu.memory_space<vmem>>, vector<1x128x128xbf16>
    %29 = vector.shape_cast %28 : vector<1x128x128xbf16> to vector<128x128xbf16>
    %cst_24 = arith.constant dense<0.000000e+00> : vector<256x128xf32>
    %30 = tpu.matmul %27, %29, %cst_24 {dimension_numbers = #tpu.dot_dimension_numbers<[1], [0], [0], [1], [0, 0, 1, 1], [], []>} : vector<256x128xbf16>, vector<128x128xbf16>, vector<256x128xf32> -> vector<256x128xf32>
    %31 = arith.addf %22, %30 : vector<256x128xf32>
    %c1_i32 = arith.constant 1 : i32
    %32 = arith.addi %0, %c1_i32 : i32
    %c0_25 = arith.constant 0 : index
    %c0_26 = arith.constant 0 : index
    %33 = arith.index_cast %32 : i32 to index
    %c0_27 = arith.constant 0 : index
    %c0_28 = arith.constant 0 : index
    %34 = vector.load %arg2[%c0_25, %c0_26, %33, %c0_27, %c0_28] : memref<1x1x18x18x128xbf16, #tpu.memory_space<vmem>>, vector<1x1x16x16x128xbf16>
    %35 = vector.shape_cast %34 : vector<1x1x16x16x128xbf16> to vector<16x16x128xbf16>
    %36 = vector.shape_cast %35 : vector<16x16x128xbf16> to vector<256x128xbf16>
    %c3 = arith.constant 3 : index
    %c0_29 = arith.constant 0 : index
    %c0_30 = arith.constant 0 : index
    %37 = vector.load %arg3[%c3, %c0_29, %c0_30] : memref<9x128x128xbf16, #tpu.memory_space<vmem>>, vector<1x128x128xbf16>
    %38 = vector.shape_cast %37 : vector<1x128x128xbf16> to vector<128x128xbf16>
    %cst_31 = arith.constant dense<0.000000e+00> : vector<256x128xf32>
    %39 = tpu.matmul %36, %38, %cst_31 {dimension_numbers = #tpu.dot_dimension_numbers<[1], [0], [0], [1], [0, 0, 1, 1], [], []>} : vector<256x128xbf16>, vector<128x128xbf16>, vector<256x128xf32> -> vector<256x128xf32>
    %40 = arith.addf %31, %39 : vector<256x128xf32>
    %c1_i32_32 = arith.constant 1 : i32
    %41 = arith.addi %0, %c1_i32_32 : i32
    %c0_33 = arith.constant 0 : index
    %c0_34 = arith.constant 0 : index
    %42 = arith.index_cast %41 : i32 to index
    %c1_35 = arith.constant 1 : index
    %c0_36 = arith.constant 0 : index
    %43 = vector.load %arg2[%c0_33, %c0_34, %42, %c1_35, %c0_36] : memref<1x1x18x18x128xbf16, #tpu.memory_space<vmem>>, vector<1x1x16x16x128xbf16>
    %44 = vector.shape_cast %43 : vector<1x1x16x16x128xbf16> to vector<16x16x128xbf16>
    %45 = vector.shape_cast %44 : vector<16x16x128xbf16> to vector<256x128xbf16>
    %c4 = arith.constant 4 : index
    %c0_37 = arith.constant 0 : index
    %c0_38 = arith.constant 0 : index
    %46 = vector.load %arg3[%c4, %c0_37, %c0_38] : memref<9x128x128xbf16, #tpu.memory_space<vmem>>, vector<1x128x128xbf16>
    %47 = vector.shape_cast %46 : vector<1x128x128xbf16> to vector<128x128xbf16>
    %cst_39 = arith.constant dense<0.000000e+00> : vector<256x128xf32>
    %48 = tpu.matmul %45, %47, %cst_39 {dimension_numbers = #tpu.dot_dimension_numbers<[1], [0], [0], [1], [0, 0, 1, 1], [], []>} : vector<256x128xbf16>, vector<128x128xbf16>, vector<256x128xf32> -> vector<256x128xf32>
    %49 = arith.addf %40, %48 : vector<256x128xf32>
    %c0_40 = arith.constant 0 : index
    %c0_41 = arith.constant 0 : index
    %50 = vector.load %arg4[%c0_40, %c0_41] : memref<128x128xbf16, #tpu.memory_space<vmem>>, vector<128x128xbf16>
    %cst_42 = arith.constant dense<0.000000e+00> : vector<256x128xf32>
    %51 = tpu.matmul %45, %50, %cst_42 {dimension_numbers = #tpu.dot_dimension_numbers<[1], [0], [0], [1], [0, 0, 1, 1], [], []>} : vector<256x128xbf16>, vector<128x128xbf16>, vector<256x128xf32> -> vector<256x128xf32>
    %52 = vector.shape_cast %51 : vector<256x128xf32> to vector<16x16x128xf32>
    %c0_43 = arith.constant 0 : index
    %c0_44 = arith.constant 0 : index
    %c0_45 = arith.constant 0 : index
    %c0_46 = arith.constant 0 : index
    %53 = vector.load %arg7[%c0_43, %c0_44, %c0_45, %c0_46] : memref<1x16x16x128xf32, #tpu.memory_space<vmem>>, vector<1x16x16x128xf32>
    %54 = vector.shape_cast %53 : vector<1x16x16x128xf32> to vector<16x16x128xf32>
    %55 = vector.shape_cast %52 : vector<16x16x128xf32> to vector<1x16x16x128xf32>
    tpu.vector_store %arg7[%c0_43, %c0_44, %c0_45, %c0_46], %55 {strides = array<i32>} : memref<1x16x16x128xf32, #tpu.memory_space<vmem>>, vector<1x16x16x128xf32>,
    %c0_47 = arith.constant 0 : index
    %c0_48 = arith.constant 0 : index
    %c0_49 = arith.constant 0 : index
    %56 = vector.load %arg8[%c0_47, %c0_48, %c0_49] : memref<1x2x128xf32, #tpu.memory_space<vmem>>, vector<1x1x128xf32>
    %57 = vector.shape_cast %56 : vector<1x1x128xf32> to vector<1x128xf32>
    %cst_50 = arith.constant dense<0.000000e+00> : vector<128xf32>
    %58 = vector.multi_reduction <add>, %51, %cst_50 [0] : vector<256x128xf32> to vector<128xf32>
    %59 = vector.shape_cast %58 : vector<128xf32> to vector<1x128xf32>
    %60 = arith.addf %57, %59 : vector<1x128xf32>
    %c0_51 = arith.constant 0 : index
    %c0_52 = arith.constant 0 : index
    %c0_53 = arith.constant 0 : index
    %61 = vector.load %arg8[%c0_51, %c0_52, %c0_53] : memref<1x2x128xf32, #tpu.memory_space<vmem>>, vector<1x1x128xf32>
    %62 = vector.shape_cast %61 : vector<1x1x128xf32> to vector<1x128xf32>
    %63 = vector.shape_cast %60 : vector<1x128xf32> to vector<1x1x128xf32>
    tpu.vector_store %arg8[%c0_51, %c0_52, %c0_53], %63 {strides = array<i32>} : memref<1x2x128xf32, #tpu.memory_space<vmem>>, vector<1x1x128xf32>,
    %c0_54 = arith.constant 0 : index
    %c1_55 = arith.constant 1 : index
    %c0_56 = arith.constant 0 : index
    %64 = vector.load %arg8[%c0_54, %c1_55, %c0_56] : memref<1x2x128xf32, #tpu.memory_space<vmem>>, vector<1x1x128xf32>
    %65 = vector.shape_cast %64 : vector<1x1x128xf32> to vector<1x128xf32>
    %66 = arith.mulf %51, %51 : vector<256x128xf32>
    %cst_57 = arith.constant dense<0.000000e+00> : vector<128xf32>
    %67 = vector.multi_reduction <add>, %66, %cst_57 [0] : vector<256x128xf32> to vector<128xf32>
    %68 = vector.shape_cast %67 : vector<128xf32> to vector<1x128xf32>
    %69 = arith.addf %65, %68 : vector<1x128xf32>
    %c0_58 = arith.constant 0 : index
    %c1_59 = arith.constant 1 : index
    %c0_60 = arith.constant 0 : index
    %70 = vector.load %arg8[%c0_58, %c1_59, %c0_60] : memref<1x2x128xf32, #tpu.memory_space<vmem>>, vector<1x1x128xf32>
    %71 = vector.shape_cast %70 : vector<1x1x128xf32> to vector<1x128xf32>
    %72 = vector.shape_cast %69 : vector<1x128xf32> to vector<1x1x128xf32>
    tpu.vector_store %arg8[%c0_58, %c1_59, %c0_60], %72 {strides = array<i32>} : memref<1x2x128xf32, #tpu.memory_space<vmem>>, vector<1x1x128xf32>,
    %c1_i32_61 = arith.constant 1 : i32
    %73 = arith.addi %0, %c1_i32_61 : i32
    %c0_62 = arith.constant 0 : index
    %c0_63 = arith.constant 0 : index
    %74 = arith.index_cast %73 : i32 to index
    %c2_64 = arith.constant 2 : index
    %c0_65 = arith.constant 0 : index
    %75 = vector.load %arg2[%c0_62, %c0_63, %74, %c2_64, %c0_65] : memref<1x1x18x18x128xbf16, #tpu.memory_space<vmem>>, vector<1x1x16x16x128xbf16>
    %76 = vector.shape_cast %75 : vector<1x1x16x16x128xbf16> to vector<16x16x128xbf16>
    %77 = vector.shape_cast %76 : vector<16x16x128xbf16> to vector<256x128xbf16>
    %c5 = arith.constant 5 : index
    %c0_66 = arith.constant 0 : index
    %c0_67 = arith.constant 0 : index
    %78 = vector.load %arg3[%c5, %c0_66, %c0_67] : memref<9x128x128xbf16, #tpu.memory_space<vmem>>, vector<1x128x128xbf16>
    %79 = vector.shape_cast %78 : vector<1x128x128xbf16> to vector<128x128xbf16>
    %cst_68 = arith.constant dense<0.000000e+00> : vector<256x128xf32>
    %80 = tpu.matmul %77, %79, %cst_68 {dimension_numbers = #tpu.dot_dimension_numbers<[1], [0], [0], [1], [0, 0, 1, 1], [], []>} : vector<256x128xbf16>, vector<128x128xbf16>, vector<256x128xf32> -> vector<256x128xf32>
    %81 = arith.addf %49, %80 : vector<256x128xf32>
    %c2_i32 = arith.constant 2 : i32
    %82 = arith.addi %0, %c2_i32 : i32
    %c0_69 = arith.constant 0 : index
    %c0_70 = arith.constant 0 : index
    %83 = arith.index_cast %82 : i32 to index
    %c0_71 = arith.constant 0 : index
    %c0_72 = arith.constant 0 : index
    %84 = vector.load %arg2[%c0_69, %c0_70, %83, %c0_71, %c0_72] : memref<1x1x18x18x128xbf16, #tpu.memory_space<vmem>>, vector<1x1x16x16x128xbf16>
    %85 = vector.shape_cast %84 : vector<1x1x16x16x128xbf16> to vector<16x16x128xbf16>
    %86 = vector.shape_cast %85 : vector<16x16x128xbf16> to vector<256x128xbf16>
    %c6 = arith.constant 6 : index
    %c0_73 = arith.constant 0 : index
    %c0_74 = arith.constant 0 : index
    %87 = vector.load %arg3[%c6, %c0_73, %c0_74] : memref<9x128x128xbf16, #tpu.memory_space<vmem>>, vector<1x128x128xbf16>
    %88 = vector.shape_cast %87 : vector<1x128x128xbf16> to vector<128x128xbf16>
    %cst_75 = arith.constant dense<0.000000e+00> : vector<256x128xf32>
    %89 = tpu.matmul %86, %88, %cst_75 {dimension_numbers = #tpu.dot_dimension_numbers<[1], [0], [0], [1], [0, 0, 1, 1], [], []>} : vector<256x128xbf16>, vector<128x128xbf16>, vector<256x128xf32> -> vector<256x128xf32>
    %90 = arith.addf %81, %89 : vector<256x128xf32>
    %c2_i32_76 = arith.constant 2 : i32
    %91 = arith.addi %0, %c2_i32_76 : i32
    %c0_77 = arith.constant 0 : index
    %c0_78 = arith.constant 0 : index
    %92 = arith.index_cast %91 : i32 to index
    %c1_79 = arith.constant 1 : index
    %c0_80 = arith.constant 0 : index
    %93 = vector.load %arg2[%c0_77, %c0_78, %92, %c1_79, %c0_80] : memref<1x1x18x18x128xbf16, #tpu.memory_space<vmem>>, vector<1x1x16x16x128xbf16>
    %94 = vector.shape_cast %93 : vector<1x1x16x16x128xbf16> to vector<16x16x128xbf16>
    %95 = vector.shape_cast %94 : vector<16x16x128xbf16> to vector<256x128xbf16>
    %c7 = arith.constant 7 : index
    %c0_81 = arith.constant 0 : index
    %c0_82 = arith.constant 0 : index
    %96 = vector.load %arg3[%c7, %c0_81, %c0_82] : memref<9x128x128xbf16, #tpu.memory_space<vmem>>, vector<1x128x128xbf16>
    %97 = vector.shape_cast %96 : vector<1x128x128xbf16> to vector<128x128xbf16>
    %cst_83 = arith.constant dense<0.000000e+00> : vector<256x128xf32>
    %98 = tpu.matmul %95, %97, %cst_83 {dimension_numbers = #tpu.dot_dimension_numbers<[1], [0], [0], [1], [0, 0, 1, 1], [], []>} : vector<256x128xbf16>, vector<128x128xbf16>, vector<256x128xf32> -> vector<256x128xf32>
    %99 = arith.addf %90, %98 : vector<256x128xf32>
    %c2_i32_84 = arith.constant 2 : i32
    %100 = arith.addi %0, %c2_i32_84 : i32
    %c0_85 = arith.constant 0 : index
    %c0_86 = arith.constant 0 : index
    %101 = arith.index_cast %100 : i32 to index
    %c2_87 = arith.constant 2 : index
    %c0_88 = arith.constant 0 : index
    %102 = vector.load %arg2[%c0_85, %c0_86, %101, %c2_87, %c0_88] : memref<1x1x18x18x128xbf16, #tpu.memory_space<vmem>>, vector<1x1x16x16x128xbf16>
    %103 = vector.shape_cast %102 : vector<1x1x16x16x128xbf16> to vector<16x16x128xbf16>
    %104 = vector.shape_cast %103 : vector<16x16x128xbf16> to vector<256x128xbf16>
    %c8 = arith.constant 8 : index
    %c0_89 = arith.constant 0 : index
    %c0_90 = arith.constant 0 : index
    %105 = vector.load %arg3[%c8, %c0_89, %c0_90] : memref<9x128x128xbf16, #tpu.memory_space<vmem>>, vector<1x128x128xbf16>
    %106 = vector.shape_cast %105 : vector<1x128x128xbf16> to vector<128x128xbf16>
    %cst_91 = arith.constant dense<0.000000e+00> : vector<256x128xf32>
    %107 = tpu.matmul %104, %106, %cst_91 {dimension_numbers = #tpu.dot_dimension_numbers<[1], [0], [0], [1], [0, 0, 1, 1], [], []>} : vector<256x128xbf16>, vector<128x128xbf16>, vector<256x128xf32> -> vector<256x128xf32>
    %108 = arith.addf %99, %107 : vector<256x128xf32>
    %109 = vector.shape_cast %108 : vector<256x128xf32> to vector<16x16x128xf32>
    %c0_92 = arith.constant 0 : index
    %c0_93 = arith.constant 0 : index
    %c0_94 = arith.constant 0 : index
    %c0_95 = arith.constant 0 : index
    %110 = vector.load %arg5[%c0_92, %c0_93, %c0_94, %c0_95] : memref<1x16x16x128xf32, #tpu.memory_space<vmem>>, vector<1x16x16x128xf32>
    %111 = vector.shape_cast %110 : vector<1x16x16x128xf32> to vector<16x16x128xf32>
    %112 = vector.shape_cast %109 : vector<16x16x128xf32> to vector<1x16x16x128xf32>
    tpu.vector_store %arg5[%c0_92, %c0_93, %c0_94, %c0_95], %112 {strides = array<i32>} : memref<1x16x16x128xf32, #tpu.memory_space<vmem>>, vector<1x16x16x128xf32>,
    %c0_96 = arith.constant 0 : index
    %c0_97 = arith.constant 0 : index
    %c0_98 = arith.constant 0 : index
    %113 = vector.load %arg6[%c0_96, %c0_97, %c0_98] : memref<1x2x128xf32, #tpu.memory_space<vmem>>, vector<1x1x128xf32>
    %114 = vector.shape_cast %113 : vector<1x1x128xf32> to vector<1x128xf32>
    %cst_99 = arith.constant dense<0.000000e+00> : vector<128xf32>
    %115 = vector.multi_reduction <add>, %108, %cst_99 [0] : vector<256x128xf32> to vector<128xf32>
    %116 = vector.shape_cast %115 : vector<128xf32> to vector<1x128xf32>
    %117 = arith.addf %114, %116 : vector<1x128xf32>
    %c0_100 = arith.constant 0 : index
    %c0_101 = arith.constant 0 : index
    %c0_102 = arith.constant 0 : index
    %118 = vector.load %arg6[%c0_100, %c0_101, %c0_102] : memref<1x2x128xf32, #tpu.memory_space<vmem>>, vector<1x1x128xf32>
    %119 = vector.shape_cast %118 : vector<1x1x128xf32> to vector<1x128xf32>
    %120 = vector.shape_cast %117 : vector<1x128xf32> to vector<1x1x128xf32>
    tpu.vector_store %arg6[%c0_100, %c0_101, %c0_102], %120 {strides = array<i32>} : memref<1x2x128xf32, #tpu.memory_space<vmem>>, vector<1x1x128xf32>,
    %c0_103 = arith.constant 0 : index
    %c1_104 = arith.constant 1 : index
    %c0_105 = arith.constant 0 : index
    %121 = vector.load %arg6[%c0_103, %c1_104, %c0_105] : memref<1x2x128xf32, #tpu.memory_space<vmem>>, vector<1x1x128xf32>
    %122 = vector.shape_cast %121 : vector<1x1x128xf32> to vector<1x128xf32>
    %123 = arith.mulf %108, %108 : vector<256x128xf32>
    %cst_106 = arith.constant dense<0.000000e+00> : vector<128xf32>
    %124 = vector.multi_reduction <add>, %123, %cst_106 [0] : vector<256x128xf32> to vector<128xf32>
    %125 = vector.shape_cast %124 : vector<128xf32> to vector<1x128xf32>
    %126 = arith.addf %122, %125 : vector<1x128xf32>
    %c0_107 = arith.constant 0 : index
    %c1_108 = arith.constant 1 : index
    %c0_109 = arith.constant 0 : index
    %127 = vector.load %arg6[%c0_107, %c1_108, %c0_109] : memref<1x2x128xf32, #tpu.memory_space<vmem>>, vector<1x1x128xf32>
    %128 = vector.shape_cast %127 : vector<1x1x128xf32> to vector<1x128xf32>
    %129 = vector.shape_cast %126 : vector<1x128xf32> to vector<1x1x128xf32>
    tpu.vector_store %arg6[%c0_107, %c1_108, %c0_109], %129 {strides = array<i32>} : memref<1x2x128xf32, #tpu.memory_space<vmem>>, vector<1x1x128xf32>,
    return
  }
  func.func @transform_0(%arg0: i32, %arg1: i32) -> (i32, i32, i32, i32, i32) {
    %c0_i32 = arith.constant 0 : i32
    %c0_i32_0 = arith.constant 0 : i32
    %c0_i32_1 = arith.constant 0 : i32
    %c0_i32_2 = arith.constant 0 : i32
    %c0_i32_3 = arith.constant 0 : i32
    return %arg0, %c0_i32, %c0_i32_0, %c0_i32_1, %c0_i32_2 : i32, i32, i32, i32, i32
  }
  func.func @transform_1(%arg0: i32, %arg1: i32) -> (i32, i32, i32) {
    %c0_i32 = arith.constant 0 : i32
    %c0_i32_0 = arith.constant 0 : i32
    %c0_i32_1 = arith.constant 0 : i32
    %c0_i32_2 = arith.constant 0 : i32
    return %c0_i32, %c0_i32_0, %c0_i32_1 : i32, i32, i32
  }
  func.func @transform_2(%arg0: i32, %arg1: i32) -> (i32, i32) {
    %c0_i32 = arith.constant 0 : i32
    %c0_i32_0 = arith.constant 0 : i32
    %c0_i32_1 = arith.constant 0 : i32
    return %c0_i32, %c0_i32_0 : i32, i32
  }
  func.func @transform_3(%arg0: i32, %arg1: i32) -> (i32, i32, i32, i32) {
    %c0_i32 = arith.constant 0 : i32
    %c0_i32_0 = arith.constant 0 : i32
    %c0_i32_1 = arith.constant 0 : i32
    return %arg0, %arg1, %c0_i32, %c0_i32_0 : i32, i32, i32, i32
  }
  func.func @transform_4(%arg0: i32, %arg1: i32) -> (i32, i32, i32) {
    %c0_i32 = arith.constant 0 : i32
    %c0_i32_0 = arith.constant 0 : i32
    %c0_i32_1 = arith.constant 0 : i32
    return %arg0, %c0_i32, %c0_i32_0 : i32, i32, i32
  }
  func.func @transform_5(%arg0: i32, %arg1: i32) -> (i32, i32, i32, i32) {
    %c0_i32 = arith.constant 0 : i32
    %c0_i32_0 = arith.constant 0 : i32
    %c0_i32_1 = arith.constant 0 : i32
    return %arg0, %arg1, %c0_i32, %c0_i32_0 : i32, i32, i32, i32
  }
  func.func @transform_6(%arg0: i32, %arg1: i32) -> (i32, i32, i32) {
    %c0_i32 = arith.constant 0 : i32
    %c0_i32_0 = arith.constant 0 : i32
    %c0_i32_1 = arith.constant 0 : i32
    return %arg0, %c0_i32, %c0_i32_0 : i32, i32, i32
  }
}

module attributes {stable_mosaic.version = 11 : i64} {
  func.func @conv3x3_bnrelu_kernel(%arg0: i32, %arg1: i32, %arg2: memref<1x16x16x128xf32, #tpu.memory_space<vmem>>, %arg3: memref<1x128xf32, #tpu.memory_space<vmem>>, %arg4: memref<1x128xf32, #tpu.memory_space<vmem>>, %arg5: memref<9x128x128xbf16, #tpu.memory_space<vmem>>, %arg6: memref<1x16x16x128xf32, #tpu.memory_space<vmem>>, %arg7: memref<1x2x128xf32, #tpu.memory_space<vmem>>, %arg8: memref<18x18x128xbf16, #tpu.memory_space<vmem>>) attributes {dimension_semantics = [#tpu.dimension_semantics<parallel>, #tpu.dimension_semantics<arbitrary>], iteration_bounds = array<i64: 2, 1>, scalar_prefetch = 0 : i64, scratch_operands = 1 : i64, tpu.core_type = #tpu.core_type<tc>, window_params = [{transform_indices = @transform_0, window_bounds = array<i64: 1, 16, 16, 128>}, {pipeline_mode = #tpu.pipeline_mode<synchronous>, transform_indices = @transform_1, window_bounds = array<i64: 1, 128>}, {pipeline_mode = #tpu.pipeline_mode<synchronous>, transform_indices = @transform_2, window_bounds = array<i64: 1, 128>}, {pipeline_mode = #tpu.pipeline_mode<synchronous>, transform_indices = @transform_3, window_bounds = array<i64: 9, 128, 128>}, {transform_indices = @transform_4, window_bounds = array<i64: 1, 16, 16, 128>}, {transform_indices = @transform_5, window_bounds = array<i64: 1, 2, 128>}]} {
    %c16_i32 = arith.constant 16 : i32
    %0 = arith.muli %arg1, %c16_i32 : i32
    %c0_i32 = arith.constant 0 : i32
    %1 = arith.cmpi eq, %arg1, %c0_i32 : i32
    %2 = arith.extui %1 : i1 to i32
    %c0_i32_0 = arith.constant 0 : i32
    %3 = arith.cmpi ne, %2, %c0_i32_0 : i32
    scf.if %3 {
      %cst_71 = arith.constant 0.000000e+00 : f32
      %98 = vector.broadcast %cst_71 : f32 to vector<1x2x128xf32>
      %c0_72 = arith.constant 0 : index
      %c0_73 = arith.constant 0 : index
      %c0_74 = arith.constant 0 : index
      %99 = vector.load %arg7[%c0_72, %c0_73, %c0_74] : memref<1x2x128xf32, #tpu.memory_space<vmem>>, vector<1x2x128xf32>
      tpu.vector_store %arg7[%c0_72, %c0_73, %c0_74], %98 {strides = array<i32>} : memref<1x2x128xf32, #tpu.memory_space<vmem>>, vector<1x2x128xf32>,
      %cst_75 = arith.constant 0.000000e+00 : bf16
      %100 = vector.broadcast %cst_75 : bf16 to vector<18x18x128xbf16>
      %c0_76 = arith.constant 0 : index
      %c0_77 = arith.constant 0 : index
      %c0_78 = arith.constant 0 : index
      %101 = vector.load %arg8[%c0_76, %c0_77, %c0_78] : memref<18x18x128xbf16, #tpu.memory_space<vmem>>, vector<18x18x128xbf16>
      tpu.vector_store %arg8[%c0_76, %c0_77, %c0_78], %100 {strides = array<i32>} : memref<18x18x128xbf16, #tpu.memory_space<vmem>>, vector<18x18x128xbf16>,
      %c0_79 = arith.constant 0 : index
      %c0_80 = arith.constant 0 : index
      %c0_81 = arith.constant 0 : index
      %c0_82 = arith.constant 0 : index
      %102 = vector.load %arg2[%c0_79, %c0_80, %c0_81, %c0_82] : memref<1x16x16x128xf32, #tpu.memory_space<vmem>>, vector<1x16x16x128xf32>
      %103 = vector.shape_cast %102 : vector<1x16x16x128xf32> to vector<16x16x128xf32>
      %c0_83 = arith.constant 0 : index
      %c0_84 = arith.constant 0 : index
      %104 = vector.load %arg3[%c0_83, %c0_84] : memref<1x128xf32, #tpu.memory_space<vmem>>, vector<1x128xf32>
      %105 = vector.shape_cast %104 : vector<1x128xf32> to vector<1x1x128xf32>
      %106 = vector.broadcast %105 : vector<1x1x128xf32> to vector<16x16x128xf32>
      %107 = arith.mulf %103, %106 : vector<16x16x128xf32>
      %c0_85 = arith.constant 0 : index
      %c0_86 = arith.constant 0 : index
      %108 = vector.load %arg4[%c0_85, %c0_86] : memref<1x128xf32, #tpu.memory_space<vmem>>, vector<1x128xf32>
      %109 = vector.shape_cast %108 : vector<1x128xf32> to vector<1x1x128xf32>
      %110 = vector.broadcast %109 : vector<1x1x128xf32> to vector<16x16x128xf32>
      %111 = arith.addf %107, %110 : vector<16x16x128xf32>
      %cst_87 = arith.constant 0.000000e+00 : f32
      %112 = vector.broadcast %cst_87 : f32 to vector<16x16x128xf32>
      %113 = arith.maximumf %111, %112 : vector<16x16x128xf32>
      %114 = arith.truncf %113 : vector<16x16x128xf32> to vector<16x16x128xbf16>
      %c1_88 = arith.constant 1 : index
      %c1_89 = arith.constant 1 : index
      %c0_90 = arith.constant 0 : index
      %115 = vector.load %arg8[%c1_88, %c1_89, %c0_90] : memref<18x18x128xbf16, #tpu.memory_space<vmem>>, vector<16x16x128xbf16>
      tpu.vector_store %arg8[%c1_88, %c1_89, %c0_90], %114 {strides = array<i32>} : memref<18x18x128xbf16, #tpu.memory_space<vmem>>, vector<16x16x128xbf16>,
    } else {
    }
    %cst = arith.constant 0.000000e+00 : f32
    %4 = vector.broadcast %cst : f32 to vector<256x128xf32>
    %c0_i32_1 = arith.constant 0 : i32
    %5 = arith.addi %0, %c0_i32_1 : i32
    %6 = arith.index_cast %5 : i32 to index
    %c0 = arith.constant 0 : index
    %c0_2 = arith.constant 0 : index
    %7 = vector.load %arg8[%6, %c0, %c0_2] : memref<18x18x128xbf16, #tpu.memory_space<vmem>>, vector<16x16x128xbf16>
    %8 = vector.shape_cast %7 : vector<16x16x128xbf16> to vector<256x128xbf16>
    %c0_3 = arith.constant 0 : index
    %c0_4 = arith.constant 0 : index
    %c0_5 = arith.constant 0 : index
    %9 = vector.load %arg5[%c0_3, %c0_4, %c0_5] : memref<9x128x128xbf16, #tpu.memory_space<vmem>>, vector<1x128x128xbf16>
    %10 = vector.shape_cast %9 : vector<1x128x128xbf16> to vector<128x128xbf16>
    %cst_6 = arith.constant dense<0.000000e+00> : vector<256x128xf32>
    %11 = tpu.matmul %8, %10, %cst_6 {dimension_numbers = #tpu.dot_dimension_numbers<[1], [0], [0], [1], [0, 0, 1, 1], [], []>} : vector<256x128xbf16>, vector<128x128xbf16>, vector<256x128xf32> -> vector<256x128xf32>
    %12 = arith.addf %4, %11 : vector<256x128xf32>
    %c0_i32_7 = arith.constant 0 : i32
    %13 = arith.addi %0, %c0_i32_7 : i32
    %14 = arith.index_cast %13 : i32 to index
    %c1 = arith.constant 1 : index
    %c0_8 = arith.constant 0 : index
    %15 = vector.load %arg8[%14, %c1, %c0_8] : memref<18x18x128xbf16, #tpu.memory_space<vmem>>, vector<16x16x128xbf16>
    %16 = vector.shape_cast %15 : vector<16x16x128xbf16> to vector<256x128xbf16>
    %c1_9 = arith.constant 1 : index
    %c0_10 = arith.constant 0 : index
    %c0_11 = arith.constant 0 : index
    %17 = vector.load %arg5[%c1_9, %c0_10, %c0_11] : memref<9x128x128xbf16, #tpu.memory_space<vmem>>, vector<1x128x128xbf16>
    %18 = vector.shape_cast %17 : vector<1x128x128xbf16> to vector<128x128xbf16>
    %cst_12 = arith.constant dense<0.000000e+00> : vector<256x128xf32>
    %19 = tpu.matmul %16, %18, %cst_12 {dimension_numbers = #tpu.dot_dimension_numbers<[1], [0], [0], [1], [0, 0, 1, 1], [], []>} : vector<256x128xbf16>, vector<128x128xbf16>, vector<256x128xf32> -> vector<256x128xf32>
    %20 = arith.addf %12, %19 : vector<256x128xf32>
    %c0_i32_13 = arith.constant 0 : i32
    %21 = arith.addi %0, %c0_i32_13 : i32
    %22 = arith.index_cast %21 : i32 to index
    %c2 = arith.constant 2 : index
    %c0_14 = arith.constant 0 : index
    %23 = vector.load %arg8[%22, %c2, %c0_14] : memref<18x18x128xbf16, #tpu.memory_space<vmem>>, vector<16x16x128xbf16>
    %24 = vector.shape_cast %23 : vector<16x16x128xbf16> to vector<256x128xbf16>
    %c2_15 = arith.constant 2 : index
    %c0_16 = arith.constant 0 : index
    %c0_17 = arith.constant 0 : index
    %25 = vector.load %arg5[%c2_15, %c0_16, %c0_17] : memref<9x128x128xbf16, #tpu.memory_space<vmem>>, vector<1x128x128xbf16>
    %26 = vector.shape_cast %25 : vector<1x128x128xbf16> to vector<128x128xbf16>
    %cst_18 = arith.constant dense<0.000000e+00> : vector<256x128xf32>
    %27 = tpu.matmul %24, %26, %cst_18 {dimension_numbers = #tpu.dot_dimension_numbers<[1], [0], [0], [1], [0, 0, 1, 1], [], []>} : vector<256x128xbf16>, vector<128x128xbf16>, vector<256x128xf32> -> vector<256x128xf32>
    %28 = arith.addf %20, %27 : vector<256x128xf32>
    %c1_i32 = arith.constant 1 : i32
    %29 = arith.addi %0, %c1_i32 : i32
    %30 = arith.index_cast %29 : i32 to index
    %c0_19 = arith.constant 0 : index
    %c0_20 = arith.constant 0 : index
    %31 = vector.load %arg8[%30, %c0_19, %c0_20] : memref<18x18x128xbf16, #tpu.memory_space<vmem>>, vector<16x16x128xbf16>
    %32 = vector.shape_cast %31 : vector<16x16x128xbf16> to vector<256x128xbf16>
    %c3 = arith.constant 3 : index
    %c0_21 = arith.constant 0 : index
    %c0_22 = arith.constant 0 : index
    %33 = vector.load %arg5[%c3, %c0_21, %c0_22] : memref<9x128x128xbf16, #tpu.memory_space<vmem>>, vector<1x128x128xbf16>
    %34 = vector.shape_cast %33 : vector<1x128x128xbf16> to vector<128x128xbf16>
    %cst_23 = arith.constant dense<0.000000e+00> : vector<256x128xf32>
    %35 = tpu.matmul %32, %34, %cst_23 {dimension_numbers = #tpu.dot_dimension_numbers<[1], [0], [0], [1], [0, 0, 1, 1], [], []>} : vector<256x128xbf16>, vector<128x128xbf16>, vector<256x128xf32> -> vector<256x128xf32>
    %36 = arith.addf %28, %35 : vector<256x128xf32>
    %c1_i32_24 = arith.constant 1 : i32
    %37 = arith.addi %0, %c1_i32_24 : i32
    %38 = arith.index_cast %37 : i32 to index
    %c1_25 = arith.constant 1 : index
    %c0_26 = arith.constant 0 : index
    %39 = vector.load %arg8[%38, %c1_25, %c0_26] : memref<18x18x128xbf16, #tpu.memory_space<vmem>>, vector<16x16x128xbf16>
    %40 = vector.shape_cast %39 : vector<16x16x128xbf16> to vector<256x128xbf16>
    %c4 = arith.constant 4 : index
    %c0_27 = arith.constant 0 : index
    %c0_28 = arith.constant 0 : index
    %41 = vector.load %arg5[%c4, %c0_27, %c0_28] : memref<9x128x128xbf16, #tpu.memory_space<vmem>>, vector<1x128x128xbf16>
    %42 = vector.shape_cast %41 : vector<1x128x128xbf16> to vector<128x128xbf16>
    %cst_29 = arith.constant dense<0.000000e+00> : vector<256x128xf32>
    %43 = tpu.matmul %40, %42, %cst_29 {dimension_numbers = #tpu.dot_dimension_numbers<[1], [0], [0], [1], [0, 0, 1, 1], [], []>} : vector<256x128xbf16>, vector<128x128xbf16>, vector<256x128xf32> -> vector<256x128xf32>
    %44 = arith.addf %36, %43 : vector<256x128xf32>
    %c1_i32_30 = arith.constant 1 : i32
    %45 = arith.addi %0, %c1_i32_30 : i32
    %46 = arith.index_cast %45 : i32 to index
    %c2_31 = arith.constant 2 : index
    %c0_32 = arith.constant 0 : index
    %47 = vector.load %arg8[%46, %c2_31, %c0_32] : memref<18x18x128xbf16, #tpu.memory_space<vmem>>, vector<16x16x128xbf16>
    %48 = vector.shape_cast %47 : vector<16x16x128xbf16> to vector<256x128xbf16>
    %c5 = arith.constant 5 : index
    %c0_33 = arith.constant 0 : index
    %c0_34 = arith.constant 0 : index
    %49 = vector.load %arg5[%c5, %c0_33, %c0_34] : memref<9x128x128xbf16, #tpu.memory_space<vmem>>, vector<1x128x128xbf16>
    %50 = vector.shape_cast %49 : vector<1x128x128xbf16> to vector<128x128xbf16>
    %cst_35 = arith.constant dense<0.000000e+00> : vector<256x128xf32>
    %51 = tpu.matmul %48, %50, %cst_35 {dimension_numbers = #tpu.dot_dimension_numbers<[1], [0], [0], [1], [0, 0, 1, 1], [], []>} : vector<256x128xbf16>, vector<128x128xbf16>, vector<256x128xf32> -> vector<256x128xf32>
    %52 = arith.addf %44, %51 : vector<256x128xf32>
    %c2_i32 = arith.constant 2 : i32
    %53 = arith.addi %0, %c2_i32 : i32
    %54 = arith.index_cast %53 : i32 to index
    %c0_36 = arith.constant 0 : index
    %c0_37 = arith.constant 0 : index
    %55 = vector.load %arg8[%54, %c0_36, %c0_37] : memref<18x18x128xbf16, #tpu.memory_space<vmem>>, vector<16x16x128xbf16>
    %56 = vector.shape_cast %55 : vector<16x16x128xbf16> to vector<256x128xbf16>
    %c6 = arith.constant 6 : index
    %c0_38 = arith.constant 0 : index
    %c0_39 = arith.constant 0 : index
    %57 = vector.load %arg5[%c6, %c0_38, %c0_39] : memref<9x128x128xbf16, #tpu.memory_space<vmem>>, vector<1x128x128xbf16>
    %58 = vector.shape_cast %57 : vector<1x128x128xbf16> to vector<128x128xbf16>
    %cst_40 = arith.constant dense<0.000000e+00> : vector<256x128xf32>
    %59 = tpu.matmul %56, %58, %cst_40 {dimension_numbers = #tpu.dot_dimension_numbers<[1], [0], [0], [1], [0, 0, 1, 1], [], []>} : vector<256x128xbf16>, vector<128x128xbf16>, vector<256x128xf32> -> vector<256x128xf32>
    %60 = arith.addf %52, %59 : vector<256x128xf32>
    %c2_i32_41 = arith.constant 2 : i32
    %61 = arith.addi %0, %c2_i32_41 : i32
    %62 = arith.index_cast %61 : i32 to index
    %c1_42 = arith.constant 1 : index
    %c0_43 = arith.constant 0 : index
    %63 = vector.load %arg8[%62, %c1_42, %c0_43] : memref<18x18x128xbf16, #tpu.memory_space<vmem>>, vector<16x16x128xbf16>
    %64 = vector.shape_cast %63 : vector<16x16x128xbf16> to vector<256x128xbf16>
    %c7 = arith.constant 7 : index
    %c0_44 = arith.constant 0 : index
    %c0_45 = arith.constant 0 : index
    %65 = vector.load %arg5[%c7, %c0_44, %c0_45] : memref<9x128x128xbf16, #tpu.memory_space<vmem>>, vector<1x128x128xbf16>
    %66 = vector.shape_cast %65 : vector<1x128x128xbf16> to vector<128x128xbf16>
    %cst_46 = arith.constant dense<0.000000e+00> : vector<256x128xf32>
    %67 = tpu.matmul %64, %66, %cst_46 {dimension_numbers = #tpu.dot_dimension_numbers<[1], [0], [0], [1], [0, 0, 1, 1], [], []>} : vector<256x128xbf16>, vector<128x128xbf16>, vector<256x128xf32> -> vector<256x128xf32>
    %68 = arith.addf %60, %67 : vector<256x128xf32>
    %c2_i32_47 = arith.constant 2 : i32
    %69 = arith.addi %0, %c2_i32_47 : i32
    %70 = arith.index_cast %69 : i32 to index
    %c2_48 = arith.constant 2 : index
    %c0_49 = arith.constant 0 : index
    %71 = vector.load %arg8[%70, %c2_48, %c0_49] : memref<18x18x128xbf16, #tpu.memory_space<vmem>>, vector<16x16x128xbf16>
    %72 = vector.shape_cast %71 : vector<16x16x128xbf16> to vector<256x128xbf16>
    %c8 = arith.constant 8 : index
    %c0_50 = arith.constant 0 : index
    %c0_51 = arith.constant 0 : index
    %73 = vector.load %arg5[%c8, %c0_50, %c0_51] : memref<9x128x128xbf16, #tpu.memory_space<vmem>>, vector<1x128x128xbf16>
    %74 = vector.shape_cast %73 : vector<1x128x128xbf16> to vector<128x128xbf16>
    %cst_52 = arith.constant dense<0.000000e+00> : vector<256x128xf32>
    %75 = tpu.matmul %72, %74, %cst_52 {dimension_numbers = #tpu.dot_dimension_numbers<[1], [0], [0], [1], [0, 0, 1, 1], [], []>} : vector<256x128xbf16>, vector<128x128xbf16>, vector<256x128xf32> -> vector<256x128xf32>
    %76 = arith.addf %68, %75 : vector<256x128xf32>
    %77 = vector.shape_cast %76 : vector<256x128xf32> to vector<16x16x128xf32>
    %c0_53 = arith.constant 0 : index
    %c0_54 = arith.constant 0 : index
    %c0_55 = arith.constant 0 : index
    %c0_56 = arith.constant 0 : index
    %78 = vector.load %arg6[%c0_53, %c0_54, %c0_55, %c0_56] : memref<1x16x16x128xf32, #tpu.memory_space<vmem>>, vector<1x16x16x128xf32>
    %79 = vector.shape_cast %78 : vector<1x16x16x128xf32> to vector<16x16x128xf32>
    %80 = vector.shape_cast %77 : vector<16x16x128xf32> to vector<1x16x16x128xf32>
    tpu.vector_store %arg6[%c0_53, %c0_54, %c0_55, %c0_56], %80 {strides = array<i32>} : memref<1x16x16x128xf32, #tpu.memory_space<vmem>>, vector<1x16x16x128xf32>,
    %c0_57 = arith.constant 0 : index
    %c0_58 = arith.constant 0 : index
    %c0_59 = arith.constant 0 : index
    %81 = vector.load %arg7[%c0_57, %c0_58, %c0_59] : memref<1x2x128xf32, #tpu.memory_space<vmem>>, vector<1x1x128xf32>
    %82 = vector.shape_cast %81 : vector<1x1x128xf32> to vector<1x128xf32>
    %cst_60 = arith.constant dense<0.000000e+00> : vector<128xf32>
    %83 = vector.multi_reduction <add>, %76, %cst_60 [0] : vector<256x128xf32> to vector<128xf32>
    %84 = vector.shape_cast %83 : vector<128xf32> to vector<1x128xf32>
    %85 = arith.addf %82, %84 : vector<1x128xf32>
    %c0_61 = arith.constant 0 : index
    %c0_62 = arith.constant 0 : index
    %c0_63 = arith.constant 0 : index
    %86 = vector.load %arg7[%c0_61, %c0_62, %c0_63] : memref<1x2x128xf32, #tpu.memory_space<vmem>>, vector<1x1x128xf32>
    %87 = vector.shape_cast %86 : vector<1x1x128xf32> to vector<1x128xf32>
    %88 = vector.shape_cast %85 : vector<1x128xf32> to vector<1x1x128xf32>
    tpu.vector_store %arg7[%c0_61, %c0_62, %c0_63], %88 {strides = array<i32>} : memref<1x2x128xf32, #tpu.memory_space<vmem>>, vector<1x1x128xf32>,
    %c0_64 = arith.constant 0 : index
    %c1_65 = arith.constant 1 : index
    %c0_66 = arith.constant 0 : index
    %89 = vector.load %arg7[%c0_64, %c1_65, %c0_66] : memref<1x2x128xf32, #tpu.memory_space<vmem>>, vector<1x1x128xf32>
    %90 = vector.shape_cast %89 : vector<1x1x128xf32> to vector<1x128xf32>
    %91 = arith.mulf %76, %76 : vector<256x128xf32>
    %cst_67 = arith.constant dense<0.000000e+00> : vector<128xf32>
    %92 = vector.multi_reduction <add>, %91, %cst_67 [0] : vector<256x128xf32> to vector<128xf32>
    %93 = vector.shape_cast %92 : vector<128xf32> to vector<1x128xf32>
    %94 = arith.addf %90, %93 : vector<1x128xf32>
    %c0_68 = arith.constant 0 : index
    %c1_69 = arith.constant 1 : index
    %c0_70 = arith.constant 0 : index
    %95 = vector.load %arg7[%c0_68, %c1_69, %c0_70] : memref<1x2x128xf32, #tpu.memory_space<vmem>>, vector<1x1x128xf32>
    %96 = vector.shape_cast %95 : vector<1x1x128xf32> to vector<1x128xf32>
    %97 = vector.shape_cast %94 : vector<1x128xf32> to vector<1x1x128xf32>
    tpu.vector_store %arg7[%c0_68, %c1_69, %c0_70], %97 {strides = array<i32>} : memref<1x2x128xf32, #tpu.memory_space<vmem>>, vector<1x1x128xf32>,
    return
  }
  func.func @transform_0(%arg0: i32, %arg1: i32) -> (i32, i32, i32, i32) {
    %c0_i32 = arith.constant 0 : i32
    %c0_i32_0 = arith.constant 0 : i32
    %c0_i32_1 = arith.constant 0 : i32
    %c0_i32_2 = arith.constant 0 : i32
    return %arg0, %c0_i32, %c0_i32_0, %c0_i32_1 : i32, i32, i32, i32
  }
  func.func @transform_1(%arg0: i32, %arg1: i32) -> (i32, i32) {
    %c0_i32 = arith.constant 0 : i32
    %c0_i32_0 = arith.constant 0 : i32
    %c0_i32_1 = arith.constant 0 : i32
    return %c0_i32, %c0_i32_0 : i32, i32
  }
  func.func @transform_2(%arg0: i32, %arg1: i32) -> (i32, i32) {
    %c0_i32 = arith.constant 0 : i32
    %c0_i32_0 = arith.constant 0 : i32
    %c0_i32_1 = arith.constant 0 : i32
    return %c0_i32, %c0_i32_0 : i32, i32
  }
  func.func @transform_3(%arg0: i32, %arg1: i32) -> (i32, i32, i32) {
    %c0_i32 = arith.constant 0 : i32
    %c0_i32_0 = arith.constant 0 : i32
    %c0_i32_1 = arith.constant 0 : i32
    %c0_i32_2 = arith.constant 0 : i32
    return %c0_i32, %c0_i32_0, %c0_i32_1 : i32, i32, i32
  }
  func.func @transform_4(%arg0: i32, %arg1: i32) -> (i32, i32, i32, i32) {
    %c0_i32 = arith.constant 0 : i32
    %c0_i32_0 = arith.constant 0 : i32
    %c0_i32_1 = arith.constant 0 : i32
    return %arg0, %arg1, %c0_i32, %c0_i32_0 : i32, i32, i32, i32
  }
  func.func @transform_5(%arg0: i32, %arg1: i32) -> (i32, i32, i32) {
    %c0_i32 = arith.constant 0 : i32
    %c0_i32_0 = arith.constant 0 : i32
    %c0_i32_1 = arith.constant 0 : i32
    return %arg0, %c0_i32, %c0_i32_0 : i32, i32, i32
  }
}

module attributes {stable_mosaic.version = 11 : i64} {
  func.func @combine_kernel(%arg0: i32, %arg1: memref<512x128xf32, #tpu.memory_space<vmem>>, %arg2: memref<512x128xf32, #tpu.memory_space<vmem>>, %arg3: memref<1x128xf32, #tpu.memory_space<vmem>>, %arg4: memref<1x128xf32, #tpu.memory_space<vmem>>, %arg5: memref<1x128xf32, #tpu.memory_space<vmem>>, %arg6: memref<1x128xf32, #tpu.memory_space<vmem>>, %arg7: memref<512x128xf32, #tpu.memory_space<vmem>>) attributes {dimension_semantics = [#tpu.dimension_semantics<parallel>], iteration_bounds = array<i64: 1>, scalar_prefetch = 0 : i64, scratch_operands = 0 : i64, tpu.core_type = #tpu.core_type<tc>, window_params = [{transform_indices = @transform_0, window_bounds = array<i64: 512, 128>}, {transform_indices = @transform_1, window_bounds = array<i64: 512, 128>}, {pipeline_mode = #tpu.pipeline_mode<synchronous>, transform_indices = @transform_2, window_bounds = array<i64: 1, 128>}, {pipeline_mode = #tpu.pipeline_mode<synchronous>, transform_indices = @transform_3, window_bounds = array<i64: 1, 128>}, {pipeline_mode = #tpu.pipeline_mode<synchronous>, transform_indices = @transform_4, window_bounds = array<i64: 1, 128>}, {pipeline_mode = #tpu.pipeline_mode<synchronous>, transform_indices = @transform_5, window_bounds = array<i64: 1, 128>}, {transform_indices = @transform_6, window_bounds = array<i64: 512, 128>}]} {
    %c0 = arith.constant 0 : index
    %c0_0 = arith.constant 0 : index
    %0 = vector.load %arg1[%c0, %c0_0] : memref<512x128xf32, #tpu.memory_space<vmem>>, vector<512x128xf32>
    %c0_1 = arith.constant 0 : index
    %c0_2 = arith.constant 0 : index
    %1 = vector.load %arg3[%c0_1, %c0_2] : memref<1x128xf32, #tpu.memory_space<vmem>>, vector<1x128xf32>
    %2 = vector.broadcast %1 : vector<1x128xf32> to vector<512x128xf32>
    %3 = arith.mulf %0, %2 : vector<512x128xf32>
    %c0_3 = arith.constant 0 : index
    %c0_4 = arith.constant 0 : index
    %4 = vector.load %arg4[%c0_3, %c0_4] : memref<1x128xf32, #tpu.memory_space<vmem>>, vector<1x128xf32>
    %5 = vector.broadcast %4 : vector<1x128xf32> to vector<512x128xf32>
    %6 = arith.addf %3, %5 : vector<512x128xf32>
    %c0_5 = arith.constant 0 : index
    %c0_6 = arith.constant 0 : index
    %7 = vector.load %arg2[%c0_5, %c0_6] : memref<512x128xf32, #tpu.memory_space<vmem>>, vector<512x128xf32>
    %c0_7 = arith.constant 0 : index
    %c0_8 = arith.constant 0 : index
    %8 = vector.load %arg5[%c0_7, %c0_8] : memref<1x128xf32, #tpu.memory_space<vmem>>, vector<1x128xf32>
    %9 = vector.broadcast %8 : vector<1x128xf32> to vector<512x128xf32>
    %10 = arith.mulf %7, %9 : vector<512x128xf32>
    %11 = arith.addf %6, %10 : vector<512x128xf32>
    %c0_9 = arith.constant 0 : index
    %c0_10 = arith.constant 0 : index
    %12 = vector.load %arg6[%c0_9, %c0_10] : memref<1x128xf32, #tpu.memory_space<vmem>>, vector<1x128xf32>
    %13 = vector.broadcast %12 : vector<1x128xf32> to vector<512x128xf32>
    %14 = arith.addf %11, %13 : vector<512x128xf32>
    %cst = arith.constant 0.000000e+00 : f32
    %15 = vector.broadcast %cst : f32 to vector<512x128xf32>
    %16 = arith.maximumf %14, %15 : vector<512x128xf32>
    %c0_11 = arith.constant 0 : index
    %c0_12 = arith.constant 0 : index
    %17 = vector.load %arg7[%c0_11, %c0_12] : memref<512x128xf32, #tpu.memory_space<vmem>>, vector<512x128xf32>
    tpu.vector_store %arg7[%c0_11, %c0_12], %16 {strides = array<i32>} : memref<512x128xf32, #tpu.memory_space<vmem>>, vector<512x128xf32>,
    return
  }
  func.func @transform_0(%arg0: i32) -> (i32, i32) {
    %c0_i32 = arith.constant 0 : i32
    %c0_i32_0 = arith.constant 0 : i32
    return %arg0, %c0_i32 : i32, i32
  }
  func.func @transform_1(%arg0: i32) -> (i32, i32) {
    %c0_i32 = arith.constant 0 : i32
    %c0_i32_0 = arith.constant 0 : i32
    return %arg0, %c0_i32 : i32, i32
  }
  func.func @transform_2(%arg0: i32) -> (i32, i32) {
    %c0_i32 = arith.constant 0 : i32
    %c0_i32_0 = arith.constant 0 : i32
    %c0_i32_1 = arith.constant 0 : i32
    return %c0_i32, %c0_i32_0 : i32, i32
  }
  func.func @transform_3(%arg0: i32) -> (i32, i32) {
    %c0_i32 = arith.constant 0 : i32
    %c0_i32_0 = arith.constant 0 : i32
    %c0_i32_1 = arith.constant 0 : i32
    return %c0_i32, %c0_i32_0 : i32, i32
  }
  func.func @transform_4(%arg0: i32) -> (i32, i32) {
    %c0_i32 = arith.constant 0 : i32
    %c0_i32_0 = arith.constant 0 : i32
    %c0_i32_1 = arith.constant 0 : i32
    return %c0_i32, %c0_i32_0 : i32, i32
  }
  func.func @transform_5(%arg0: i32) -> (i32, i32) {
    %c0_i32 = arith.constant 0 : i32
    %c0_i32_0 = arith.constant 0 : i32
    %c0_i32_1 = arith.constant 0 : i32
    return %c0_i32, %c0_i32_0 : i32, i32
  }
  func.func @transform_6(%arg0: i32) -> (i32, i32) {
    %c0_i32 = arith.constant 0 : i32
    %c0_i32_0 = arith.constant 0 : i32
    return %arg0, %c0_i32 : i32, i32
  }
}

</mosaic_0001>

<llo_original>
// kernel: resblock_forward.5
$region0: #{resblock_forward.5}
  #allocation0 [shape = 'u32[]', space=smem, size = 0x4, offset = 0x4, fixed_abs, tag = 'smem constant byte address 0x4 - core index']
  #allocation1 [shape = 'u32[144,128]{1,0:T(1,128)}', space=vmem, size = 0x12000, scoped, tag = 'internal scratch']
  %s0 = inlined_call_operand.vmem [shape: f32[512,128], index: 0, kind: input, shape index: {}]
  %s1 = inlined_call_operand.vmem [shape: f32[512,128], index: 1, kind: input, shape index: {}]
  %s2 = inlined_call_operand.vmem [shape: f32[1,128], index: 2, kind: input, shape index: {}]
  %s3 = inlined_call_operand.vmem [shape: f32[1,128], index: 3, kind: input, shape index: {}]
  %s4 = inlined_call_operand.vmem [shape: f32[1,128], index: 4, kind: input, shape index: {}]
  %s5 = inlined_call_operand.vmem [shape: f32[1,128], index: 5, kind: input, shape index: {}]
  %s6 = inlined_call_operand.vmem [shape: f32[512,128], index: 6, kind: output, shape index: {}]
  %s7 = sld [smem:[#allocation0]]
  $region34: #{resblock_forward.5} parent=0
    _
  %s9 = ssub.s32 1, %s7
  %s10 = scalar_select 0, %s9, %s7
  // Predicated region
  $region2: #{resblock_forward.5} parent=0 // pred_check
    _
  $region3: #{resblock_forward.5} parent=0 // pred_check_branch
    %12 = sbr.rel (0) target = $region5
  $region4: #{resblock_forward.5} parent=0 // pred_region
    _
  $region5: #{resblock_forward.5} parent=0 // pred_fallthru
    _
  // Predicated region
  $region6: #{resblock_forward.5} parent=0 // pred_check
    _
  $region7: #{resblock_forward.5} parent=0 // pred_check_branch
    %14 = sbr.rel (0) target = $region9
  $region8: #{resblock_forward.5} parent=0 // pred_region
    _
  $region9: #{resblock_forward.5} parent=0 // pred_fallthru
    _
  // Predicated region
  $region10: #{resblock_forward.5} parent=0 // pred_check
    _
  $region11: #{resblock_forward.5} parent=0 // pred_check_branch
    %16 = sbr.rel (0) target = $region13
  $region12: #{resblock_forward.5} parent=0 // pred_region
    _
  $region13: #{resblock_forward.5} parent=0 // pred_fallthru
    _
  // Predicated region
  $region14: #{resblock_forward.5} parent=0 // pred_check
    _
  $region15: #{resblock_forward.5} parent=0 // pred_check_branch
    %18 = sbr.rel (0) target = $region17
  $region16: #{resblock_forward.5} parent=0 // pred_region
    _
  $region17: #{resblock_forward.5} parent=0 // pred_fallthru
    _
  // Predicated region
  $region18: #{resblock_forward.5} parent=0 // pred_check
    _
  $region19: #{resblock_forward.5} parent=0 // pred_check_branch
    %20 = sbr.rel (0) target = $region21
  $region20: #{resblock_forward.5} parent=0 // pred_region
    _
  $region21: #{resblock_forward.5} parent=0 // pred_fallthru
    _
  // Predicated region
  $region22: #{resblock_forward.5} parent=0 // pred_check
    _
  $region23: #{resblock_forward.5} parent=0 // pred_check_branch
    %22 = sbr.rel (0) target = $region25
  $region24: #{resblock_forward.5} parent=0 // pred_region
    _
  $region25: #{resblock_forward.5} parent=0 // pred_fallthru
    _
  %v23 = vld [vmem:[%s0] sm:$0xff]
  %v24 = vld [vmem:[%s0 + $0x8] sm:$0xff]
  %v25 = vld [vmem:[%s0 + $0x10] sm:$0xff]
  %v26 = vld [vmem:[%s0 + $0x18] sm:$0xff]
  %v27 = vld [vmem:[%s0 + $0x20] sm:$0xff]
  %v28 = vld [vmem:[%s0 + $0x28] sm:$0xff]
  %v29 = vld [vmem:[%s0 + $0x30] sm:$0xff]
  %v30 = vld [vmem:[%s0 + $0x38] sm:$0xff]
  %v31 = vld [vmem:[%s0 + $0x40] sm:$0xff]
  %v32 = vld [vmem:[%s0 + $0x48] sm:$0xff]
  %v33 = vld [vmem:[%s0 + $0x50] sm:$0xff]
  %v34 = vld [vmem:[%s0 + $0x58] sm:$0xff]
  %v35 = vld [vmem:[%s0 + $0x60] sm:$0xff]
  %v36 = vld [vmem:[%s0 + $0x68] sm:$0xff]
  %v37 = vld [vmem:[%s0 + $0x70] sm:$0xff]
  %v38 = vld [vmem:[%s0 + $0x78] sm:$0xff]
  %v39 = vld [vmem:[%s0 + $0x80] sm:$0xff]
  %v40 = vld [vmem:[%s0 + $0x88] sm:$0xff]
  %v41 = vld [vmem:[%s0 + $0x90] sm:$0xff]
  %v42 = vld [vmem:[%s0 + $0x98] sm:$0xff]
  %v43 = vld [vmem:[%s0 + $0xa0] sm:$0xff]
  %v44 = vld [vmem:[%s0 + $0xa8] sm:$0xff]
  %v45 = vld [vmem:[%s0 + $0xb0] sm:$0xff]
  %v46 = vld [vmem:[%s0 + $0xb8] sm:$0xff]
  %v47 = vld [vmem:[%s0 + $0xc0] sm:$0xff]
  %v48 = vld [vmem:[%s0 + $0xc8] sm:$0xff]
  %v49 = vld [vmem:[%s0 + $0xd0] sm:$0xff]
  %v50 = vld [vmem:[%s0 + $0xd8] sm:$0xff]
  %v51 = vld [vmem:[%s0 + $0xe0] sm:$0xff]
  %v52 = vld [vmem:[%s0 + $0xe8] sm:$0xff]
  %v53 = vld [vmem:[%s0 + $0xf0] sm:$0xff]
  %v54 = vld [vmem:[%s0 + $0xf8] sm:$0xff]
  %v55 = vld [vmem:[%s0 + $0x100] sm:$0xff]
  %v56 = vld [vmem:[%s0 + $0x108] sm:$0xff]
  %v57 = vld [vmem:[%s0 + $0x110] sm:$0xff]
  %v58 = vld [vmem:[%s0 + $0x118] sm:$0xff]
  %v59 = vld [vmem:[%s0 + $0x120] sm:$0xff]
  %v60 = vld [vmem:[%s0 + $0x128] sm:$0xff]
  %v61 = vld [vmem:[%s0 + $0x130] sm:$0xff]
  %v62 = vld [vmem:[%s0 + $0x138] sm:$0xff]
  %v63 = vld [vmem:[%s0 + $0x140] sm:$0xff]
  %v64 = vld [vmem:[%s0 + $0x148] sm:$0xff]
  %v65 = vld [vmem:[%s0 + $0x150] sm:$0xff]
  %v66 = vld [vmem:[%s0 + $0x158] sm:$0xff]
  %v67 = vld [vmem:[%s0 + $0x160] sm:$0xff]
  %v68 = vld [vmem:[%s0 + $0x168] sm:$0xff]
  %v69 = vld [vmem:[%s0 + $0x170] sm:$0xff]
  %v70 = vld [vmem:[%s0 + $0x178] sm:$0xff]
  %v71 = vld [vmem:[%s0 + $0x180] sm:$0xff]
  %v72 = vld [vmem:[%s0 + $0x188] sm:$0xff]
  %v73 = vld [vmem:[%s0 + $0x190] sm:$0xff]
  %v74 = vld [vmem:[%s0 + $0x198] sm:$0xff]
  %v75 = vld [vmem:[%s0 + $0x1a0] sm:$0xff]
  %v76 = vld [vmem:[%s0 + $0x1a8] sm:$0xff]
  %v77 = vld [vmem:[%s0 + $0x1b0] sm:$0xff]
  %v78 = vld [vmem:[%s0 + $0x1b8] sm:$0xff]
  %v79 = vld [vmem:[%s0 + $0x1c0] sm:$0xff]
  %v80 = vld [vmem:[%s0 + $0x1c8] sm:$0xff]
  %v81 = vld [vmem:[%s0 + $0x1d0] sm:$0xff]
  %v82 = vld [vmem:[%s0 + $0x1d8] sm:$0xff]
  %v83 = vld [vmem:[%s0 + $0x1e0] sm:$0xff]
  %v84 = vld [vmem:[%s0 + $0x1e8] sm:$0xff]
  %v85 = vld [vmem:[%s0 + $0x1f0] sm:$0xff]
  %v86 = vld [vmem:[%s0 + $0x1f8] sm:$0xff]
  %v87 = vld [vmem:[%s2] sm:$0x1]
  %v89 = vlaneseq
  %v90 = vshrl.u32 %v89, 7
  %v91 = vsub.s32 0, %v90
  %v92 = vrot.slane %v87, %v91
  %v94 = vmul.f32 %v23, %v92
  %v95 = vmul.f32 %v24, %v92
  %v96 = vmul.f32 %v25, %v92
  %v97 = vmul.f32 %v26, %v92
  %v98 = vmul.f32 %v27, %v92
  %v99 = vmul.f32 %v28, %v92
  %v100 = vmul.f32 %v29, %v92
  %v101 = vmul.f32 %v30, %v92
  %v102 = vmul.f32 %v31, %v92
  %v103 = vmul.f32 %v32, %v92
  %v104 = vmul.f32 %v33, %v92
  %v105 = vmul.f32 %v34, %v92
  %v106 = vmul.f32 %v35, %v92
  %v107 = vmul.f32 %v36, %v92
  %v108 = vmul.f32 %v37, %v92
  %v109 = vmul.f32 %v38, %v92
  %v110 = vmul.f32 %v39, %v92
  %v111 = vmul.f32 %v40, %v92
  %v112 = vmul.f32 %v41, %v92
  %v113 = vmul.f32 %v42, %v92
  %v114 = vmul.f32 %v43, %v92
  %v115 = vmul.f32 %v44, %v92
  %v116 = vmul.f32 %v45, %v92
  %v117 = vmul.f32 %v46, %v92
  %v118 = vmul.f32 %v47, %v92
  %v119 = vmul.f32 %v48, %v92
  %v120 = vmul.f32 %v49, %v92
  %v121 = vmul.f32 %v50, %v92
  %v122 = vmul.f32 %v51, %v92
  %v123 = vmul.f32 %v52, %v92
  %v124 = vmul.f32 %v53, %v92
  %v125 = vmul.f32 %v54, %v92
  %v126 = vmul.f32 %v55, %v92
  %v127 = vmul.f32 %v56, %v92
  %v128 = vmul.f32 %v57, %v92
  %v129 = vmul.f32 %v58, %v92
  %v130 = vmul.f32 %v59, %v92
  %v131 = vmul.f32 %v60, %v92
  %v132 = vmul.f32 %v61, %v92
  %v133 = vmul.f32 %v62, %v92
  %v134 = vmul.f32 %v63, %v92
  %v135 = vmul.f32 %v64, %v92
  %v136 = vmul.f32 %v65, %v92
  %v137 = vmul.f32 %v66, %v92
  %v138 = vmul.f32 %v67, %v92
  %v139 = vmul.f32 %v68, %v92
  %v140 = vmul.f32 %v69, %v92
  %v141 = vmul.f32 %v70, %v92
  %v142 = vmul.f32 %v71, %v92
  %v143 = vmul.f32 %v72, %v92
  %v144 = vmul.f32 %v73, %v92
  %v145 = vmul.f32 %v74, %v92
  %v146 = vmul.f32 %v75, %v92
  %v147 = vmul.f32 %v76, %v92
  %v148 = vmul.f32 %v77, %v92
  %v149 = vmul.f32 %v78, %v92
  %v150 = vmul.f32 %v79, %v92
  %v151 = vmul.f32 %v80, %v92
  %v152 = vmul.f32 %v81, %v92
  %v153 = vmul.f32 %v82, %v92
  %v154 = vmul.f32 %v83, %v92
  %v155 = vmul.f32 %v84, %v92
  %v156 = vmul.f32 %v85, %v92
  %v157 = vmul.f32 %v86, %v92
  %v158 = vld [vmem:[%s3] sm:$0x1]
  %v160 = vlaneseq
  %v161 = vshrl.u32 %v160, 7
  %v162 = vsub.s32 0, %v161
  %v163 = vrot.slane %v158, %v162
  %v165 = vadd.f32 %v94, %v163
  %v166 = vadd.f32 %v95, %v163
  %v167 = vadd.f32 %v96, %v163
  %v168 = vadd.f32 %v97, %v163
  %v169 = vadd.f32 %v98, %v163
  %v170 = vadd.f32 %v99, %v163
  %v171 = vadd.f32 %v100, %v163
  %v172 = vadd.f32 %v101, %v163
  %v173 = vadd.f32 %v102, %v163
  %v174 = vadd.f32 %v103, %v163
  %v175 = vadd.f32 %v104, %v163
  %v176 = vadd.f32 %v105, %v163
  %v177 = vadd.f32 %v106, %v163
  %v178 = vadd.f32 %v107, %v163
  %v179 = vadd.f32 %v108, %v163
  %v180 = vadd.f32 %v109, %v163
  %v181 = vadd.f32 %v110, %v163
  %v182 = vadd.f32 %v111, %v163
  %v183 = vadd.f32 %v112, %v163
  %v184 = vadd.f32 %v113, %v163
  %v185 = vadd.f32 %v114, %v163
  %v186 = vadd.f32 %v115, %v163
  %v187 = vadd.f32 %v116, %v163
  %v188 = vadd.f32 %v117, %v163
  %v189 = vadd.f32 %v118, %v163
  %v190 = vadd.f32 %v119, %v163
  %v191 = vadd.f32 %v120, %v163
  %v192 = vadd.f32 %v121, %v163
  %v193 = vadd.f32 %v122, %v163
  %v194 = vadd.f32 %v123, %v163
  %v195 = vadd.f32 %v124, %v163
  %v196 = vadd.f32 %v125, %v163
  %v197 = vadd.f32 %v126, %v163
  %v198 = vadd.f32 %v127, %v163
  %v199 = vadd.f32 %v128, %v163
  %v200 = vadd.f32 %v129, %v163
  %v201 = vadd.f32 %v130, %v163
  %v202 = vadd.f32 %v131, %v163
  %v203 = vadd.f32 %v132, %v163
  %v204 = vadd.f32 %v133, %v163
  %v205 = vadd.f32 %v134, %v163
  %v206 = vadd.f32 %v135, %v163
  %v207 = vadd.f32 %v136, %v163
  %v208 = vadd.f32 %v137, %v163
  %v209 = vadd.f32 %v138, %v163
  %v210 = vadd.f32 %v139, %v163
  %v211 = vadd.f32 %v140, %v163
  %v212 = vadd.f32 %v141, %v163
  %v213 = vadd.f32 %v142, %v163
  %v214 = vadd.f32 %v143, %v163
  %v215 = vadd.f32 %v144, %v163
  %v216 = vadd.f32 %v145, %v163
  %v217 = vadd.f32 %v146, %v163
  %v218 = vadd.f32 %v147, %v163
  %v219 = vadd.f32 %v148, %v163
  %v220 = vadd.f32 %v149, %v163
  %v221 = vadd.f32 %v150, %v163
  %v222 = vadd.f32 %v151, %v163
  %v223 = vadd.f32 %v152, %v163
  %v224 = vadd.f32 %v153, %v163
  %v225 = vadd.f32 %v154, %v163
  %v226 = vadd.f32 %v155, %v163
  %v227 = vadd.f32 %v156, %v163
  %v228 = vadd.f32 %v157, %v163
  %v229 = vld [vmem:[%s1] sm:$0xff]
  %v230 = vld [vmem:[%s1 + $0x8] sm:$0xff]
  %v231 = vld [vmem:[%s1 + $0x10] sm:$0xff]
  %v232 = vld [vmem:[%s1 + $0x18] sm:$0xff]
  %v233 = vld [vmem:[%s1 + $0x20] sm:$0xff]
  %v234 = vld [vmem:[%s1 + $0x28] sm:$0xff]
  %v235 = vld [vmem:[%s1 + $0x30] sm:$0xff]
  %v236 = vld [vmem:[%s1 + $0x38] sm:$0xff]
  %v237 = vld [vmem:[%s1 + $0x40] sm:$0xff]
  %v238 = vld [vmem:[%s1 + $0x48] sm:$0xff]
  %v239 = vld [vmem:[%s1 + $0x50] sm:$0xff]
  %v240 = vld [vmem:[%s1 + $0x58] sm:$0xff]
  %v241 = vld [vmem:[%s1 + $0x60] sm:$0xff]
  %v242 = vld [vmem:[%s1 + $0x68] sm:$0xff]
  %v243 = vld [vmem:[%s1 + $0x70] sm:$0xff]
  %v244 = vld [vmem:[%s1 + $0x78] sm:$0xff]
  %v245 = vld [vmem:[%s1 + $0x80] sm:$0xff]
  %v246 = vld [vmem:[%s1 + $0x88] sm:$0xff]
  %v247 = vld [vmem:[%s1 + $0x90] sm:$0xff]
  %v248 = vld [vmem:[%s1 + $0x98] sm:$0xff]
  %v249 = vld [vmem:[%s1 + $0xa0] sm:$0xff]
  %v250 = vld [vmem:[%s1 + $0xa8] sm:$0xff]
  %v251 = vld [vmem:[%s1 + $0xb0] sm:$0xff]
  %v252 = vld [vmem:[%s1 + $0xb8] sm:$0xff]
  %v253 = vld [vmem:[%s1 + $0xc0] sm:$0xff]
  %v254 = vld [vmem:[%s1 + $0xc8] sm:$0xff]
  %v255 = vld [vmem:[%s1 + $0xd0] sm:$0xff]
  %v256 = vld [vmem:[%s1 + $0xd8] sm:$0xff]
  %v257 = vld [vmem:[%s1 + $0xe0] sm:$0xff]
  %v258 = vld [vmem:[%s1 + $0xe8] sm:$0xff]
  %v259 = vld [vmem:[%s1 + $0xf0] sm:$0xff]
  %v260 = vld [vmem:[%s1 + $0xf8] sm:$0xff]
  %v261 = vld [vmem:[%s1 + $0x100] sm:$0xff]
  %v262 = vld [vmem:[%s1 + $0x108] sm:$0xff]
  %v263 = vld [vmem:[%s1 + $0x110] sm:$0xff]
  %v264 = vld [vmem:[%s1 + $0x118] sm:$0xff]
  %v265 = vld [vmem:[%s1 + $0x120] sm:$0xff]
  %v266 = vld [vmem:[%s1 + $0x128] sm:$0xff]
  %v267 = vld [vmem:[%s1 + $0x130] sm:$0xff]
  %v268 = vld [vmem:[%s1 + $0x138] sm:$0xff]
  %v269 = vld [vmem:[%s1 + $0x140] sm:$0xff]
  %v270 = vld [vmem:[%s1 + $0x148] sm:$0xff]
  %v271 = vld [vmem:[%s1 + $0x150] sm:$0xff]
  %v272 = vld [vmem:[%s1 + $0x158] sm:$0xff]
  %v273 = vld [vmem:[%s1 + $0x160] sm:$0xff]
  %v274 = vld [vmem:[%s1 + $0x168] sm:$0xff]
  %v275 = vld [vmem:[%s1 + $0x170] sm:$0xff]
  %v276 = vld [vmem:[%s1 + $0x178] sm:$0xff]
  %v277 = vld [vmem:[%s1 + $0x180] sm:$0xff]
  %v278 = vld [vmem:[%s1 + $0x188] sm:$0xff]
  %v279 = vld [vmem:[%s1 + $0x190] sm:$0xff]
  %v280 = vld [vmem:[%s1 + $0x198] sm:$0xff]
  %v281 = vld [vmem:[%s1 + $0x1a0] sm:$0xff]
  %v282 = vld [vmem:[%s1 + $0x1a8] sm:$0xff]
  %v283 = vld [vmem:[%s1 + $0x1b0] sm:$0xff]
  %v284 = vld [vmem:[%s1 + $0x1b8] sm:$0xff]
  %v285 = vld [vmem:[%s1 + $0x1c0] sm:$0xff]
  %v286 = vld [vmem:[%s1 + $0x1c8] sm:$0xff]
  %v287 = vld [vmem:[%s1 + $0x1d0] sm:$0xff]
  %v288 = vld [vmem:[%s1 + $0x1d8] sm:$0xff]
  %v289 = vld [vmem:[%s1 + $0x1e0] sm:$0xff]
  %v290 = vld [vmem:[%s1 + $0x1e8] sm:$0xff]
  %v291 = vld [vmem:[%s1 + $0x1f0] sm:$0xff]
  %v292 = vld [vmem:[%s1 + $0x1f8] sm:$0xff]
  %v293 = vld [vmem:[%s4] sm:$0x1]
  %v295 = vlaneseq
  %v296 = vshrl.u32 %v295, 7
  %v297 = vsub.s32 0, %v296
  %v298 = vrot.slane %v293, %v297
  %v300 = vmul.f32 %v229, %v298
  %v301 = vmul.f32 %v230, %v298
  %v302 = vmul.f32 %v231, %v298
  %v303 = vmul.f32 %v232, %v298
  %v304 = vmul.f32 %v233, %v298
  %v305 = vmul.f32 %v234, %v298
  %v306 = vmul.f32 %v235, %v298
  %v307 = vmul.f32 %v236, %v298
  %v308 = vmul.f32 %v237, %v298
  %v309 = vmul.f32 %v238, %v298
  %v310 = vmul.f32 %v239, %v298
  %v311 = vmul.f32 %v240, %v298
  %v312 = vmul.f32 %v241, %v298
  %v313 = vmul.f32 %v242, %v298
  %v314 = vmul.f32 %v243, %v298
  %v315 = vmul.f32 %v244, %v298
  %v316 = vmul.f32 %v245, %v298
  %v317 = vmul.f32 %v246, %v298
  %v318 = vmul.f32 %v247, %v298
  %v319 = vmul.f32 %v248, %v298
  %v320 = vmul.f32 %v249, %v298
  %v321 = vmul.f32 %v250, %v298
  %v322 = vmul.f32 %v251, %v298
  %v323 = vmul.f32 %v252, %v298
  %v324 = vmul.f32 %v253, %v298
  %v325 = vmul.f32 %v254, %v298
  %v326 = vmul.f32 %v255, %v298
  %v327 = vmul.f32 %v256, %v298
  %v328 = vmul.f32 %v257, %v298
  %v329 = vmul.f32 %v258, %v298
  %v330 = vmul.f32 %v259, %v298
  %v331 = vmul.f32 %v260, %v298
  %v332 = vmul.f32 %v261, %v298
  %v333 = vmul.f32 %v262, %v298
  %v334 = vmul.f32 %v263, %v298
  %v335 = vmul.f32 %v264, %v298
  %v336 = vmul.f32 %v265, %v298
  %v337 = vmul.f32 %v266, %v298
  %v338 = vmul.f32 %v267, %v298
  %v339 = vmul.f32 %v268, %v298
  %v340 = vmul.f32 %v269, %v298
  %v341 = vmul.f32 %v270, %v298
  %v342 = vmul.f32 %v271, %v298
  %v343 = vmul.f32 %v272, %v298
  %v344 = vmul.f32 %v273, %v298
  %v345 = vmul.f32 %v274, %v298
  %v346 = vmul.f32 %v275, %v298
  %v347 = vmul.f32 %v276, %v298
  %v348 = vmul.f32 %v277, %v298
  %v349 = vmul.f32 %v278, %v298
  %v350 = vmul.f32 %v279, %v298
  %v351 = vmul.f32 %v280, %v298
  %v352 = vmul.f32 %v281, %v298
  %v353 = vmul.f32 %v282, %v298
  %v354 = vmul.f32 %v283, %v298
  %v355 = vmul.f32 %v284, %v298
  %v356 = vmul.f32 %v285, %v298
  %v357 = vmul.f32 %v286, %v298
  %v358 = vmul.f32 %v287, %v298
  %v359 = vmul.f32 %v288, %v298
  %v360 = vmul.f32 %v289, %v298
  %v361 = vmul.f32 %v290, %v298
  %v362 = vmul.f32 %v291, %v298
  %v363 = vmul.f32 %v292, %v298
  %v364 = vadd.f32 %v165, %v300
  %v365 = vadd.f32 %v166, %v301
  %v366 = vadd.f32 %v167, %v302
  %v367 = vadd.f32 %v168, %v303
  %v368 = vadd.f32 %v169, %v304
  %v369 = vadd.f32 %v170, %v305
  %v370 = vadd.f32 %v171, %v306
  %v371 = vadd.f32 %v172, %v307
  %v372 = vadd.f32 %v173, %v308
  %v373 = vadd.f32 %v174, %v309
  %v374 = vadd.f32 %v175, %v310
  %v375 = vadd.f32 %v176, %v311
  %v376 = vadd.f32 %v177, %v312
  %v377 = vadd.f32 %v178, %v313
  %v378 = vadd.f32 %v179, %v314
  %v379 = vadd.f32 %v180, %v315
  %v380 = vadd.f32 %v181, %v316
  %v381 = vadd.f32 %v182, %v317
  %v382 = vadd.f32 %v183, %v318
  %v383 = vadd.f32 %v184, %v319
  %v384 = vadd.f32 %v185, %v320
  %v385 = vadd.f32 %v186, %v321
  %v386 = vadd.f32 %v187, %v322
  %v387 = vadd.f32 %v188, %v323
  %v388 = vadd.f32 %v189, %v324
  %v389 = vadd.f32 %v190, %v325
  %v390 = vadd.f32 %v191, %v326
  %v391 = vadd.f32 %v192, %v327
  %v392 = vadd.f32 %v193, %v328
  %v393 = vadd.f32 %v194, %v329
  %v394 = vadd.f32 %v195, %v330
  %v395 = vadd.f32 %v196, %v331
  %v396 = vadd.f32 %v197, %v332
  %v397 = vadd.f32 %v198, %v333
  %v398 = vadd.f32 %v199, %v334
  %v399 = vadd.f32 %v200, %v335
  %v400 = vadd.f32 %v201, %v336
  %v401 = vadd.f32 %v202, %v337
  %v402 = vadd.f32 %v203, %v338
  %v403 = vadd.f32 %v204, %v339
  %v404 = vadd.f32 %v205, %v340
  %v405 = vadd.f32 %v206, %v341
  %v406 = vadd.f32 %v207, %v342
  %v407 = vadd.f32 %v208, %v343
  %v408 = vadd.f32 %v209, %v344
  %v409 = vadd.f32 %v210, %v345
  %v410 = vadd.f32 %v211, %v346
  %v411 = vadd.f32 %v212, %v347
  %v412 = vadd.f32 %v213, %v348
  %v413 = vadd.f32 %v214, %v349
  %v414 = vadd.f32 %v215, %v350
  %v415 = vadd.f32 %v216, %v351
  %v416 = vadd.f32 %v217, %v352
  %v417 = vadd.f32 %v218, %v353
  %v418 = vadd.f32 %v219, %v354
  %v419 = vadd.f32 %v220, %v355
  %v420 = vadd.f32 %v221, %v356
  %v421 = vadd.f32 %v222, %v357
  %v422 = vadd.f32 %v223, %v358
  %v423 = vadd.f32 %v224, %v359
  %v424 = vadd.f32 %v225, %v360
  %v425 = vadd.f32 %v226, %v361
  %v426 = vadd.f32 %v227, %v362
  %v427 = vadd.f32 %v228, %v363
  %v428 = vld [vmem:[%s5] sm:$0x1]
  %v430 = vlaneseq
  %v431 = vshrl.u32 %v430, 7
  %v432 = vsub.s32 0, %v431
  %v433 = vrot.slane %v428, %v432
  %v435 = vadd.f32 %v364, %v433
  %v436 = vadd.f32 %v365, %v433
  %v437 = vadd.f32 %v366, %v433
  %v438 = vadd.f32 %v367, %v433
  %v439 = vadd.f32 %v368, %v433
  %v440 = vadd.f32 %v369, %v433
  %v441 = vadd.f32 %v370, %v433
  %v442 = vadd.f32 %v371, %v433
  %v443 = vadd.f32 %v372, %v433
  %v444 = vadd.f32 %v373, %v433
  %v445 = vadd.f32 %v374, %v433
  %v446 = vadd.f32 %v375, %v433
  %v447 = vadd.f32 %v376, %v433
  %v448 = vadd.f32 %v377, %v433
  %v449 = vadd.f32 %v378, %v433
  %v450 = vadd.f32 %v379, %v433
  %v451 = vadd.f32 %v380, %v433
  %v452 = vadd.f32 %v381, %v433
  %v453 = vadd.f32 %v382, %v433
  %v454 = vadd.f32 %v383, %v433
  %v455 = vadd.f32 %v384, %v433
  %v456 = vadd.f32 %v385, %v433
  %v457 = vadd.f32 %v386, %v433
  %v458 = vadd.f32 %v387, %v433
  %v459 = vadd.f32 %v388, %v433
  %v460 = vadd.f32 %v389, %v433
  %v461 = vadd.f32 %v390, %v433
  %v462 = vadd.f32 %v391, %v433
  %v463 = vadd.f32 %v392, %v433
  %v464 = vadd.f32 %v393, %v433
  %v465 = vadd.f32 %v394, %v433
  %v466 = vadd.f32 %v395, %v433
  %v467 = vadd.f32 %v396, %v433
  %v468 = vadd.f32 %v397, %v433
  %v469 = vadd.f32 %v398, %v433
  %v470 = vadd.f32 %v399, %v433
  %v471 = vadd.f32 %v400, %v433
  %v472 = vadd.f32 %v401, %v433
  %v473 = vadd.f32 %v402, %v433
  %v474 = vadd.f32 %v403, %v433
  %v475 = vadd.f32 %v404, %v433
  %v476 = vadd.f32 %v405, %v433
  %v477 = vadd.f32 %v406, %v433
  %v478 = vadd.f32 %v407, %v433
  %v479 = vadd.f32 %v408, %v433
  %v480 = vadd.f32 %v409, %v433
  %v481 = vadd.f32 %v410, %v433
  %v482 = vadd.f32 %v411, %v433
  %v483 = vadd.f32 %v412, %v433
  %v484 = vadd.f32 %v413, %v433
  %v485 = vadd.f32 %v414, %v433
  %v486 = vadd.f32 %v415, %v433
  %v487 = vadd.f32 %v416, %v433
  %v488 = vadd.f32 %v417, %v433
  %v489 = vadd.f32 %v418, %v433
  %v490 = vadd.f32 %v419, %v433
  %v491 = vadd.f32 %v420, %v433
  %v492 = vadd.f32 %v421, %v433
  %v493 = vadd.f32 %v422, %v433
  %v494 = vadd.f32 %v423, %v433
  %v495 = vadd.f32 %v424, %v433
  %v496 = vadd.f32 %v425, %v433
  %v497 = vadd.f32 %v426, %v433
  %v498 = vadd.f32 %v427, %v433
  %v499 = vmax.f32 %v435, 0.0
  %v500 = vmax.f32 %v436, 0.0
  %v501 = vmax.f32 %v437, 0.0
  %v502 = vmax.f32 %v438, 0.0
  %v503 = vmax.f32 %v439, 0.0
  %v504 = vmax.f32 %v440, 0.0
  %v505 = vmax.f32 %v441, 0.0
  %v506 = vmax.f32 %v442, 0.0
  %v507 = vmax.f32 %v443, 0.0
  %v508 = vmax.f32 %v444, 0.0
  %v509 = vmax.f32 %v445, 0.0
  %v510 = vmax.f32 %v446, 0.0
  %v511 = vmax.f32 %v447, 0.0
  %v512 = vmax.f32 %v448, 0.0
  %v513 = vmax.f32 %v449, 0.0
  %v514 = vmax.f32 %v450, 0.0
  %v515 = vmax.f32 %v451, 0.0
  %v516 = vmax.f32 %v452, 0.0
  %v517 = vmax.f32 %v453, 0.0
  %v518 = vmax.f32 %v454, 0.0
  %v519 = vmax.f32 %v455, 0.0
  %v520 = vmax.f32 %v456, 0.0
  %v521 = vmax.f32 %v457, 0.0
  %v522 = vmax.f32 %v458, 0.0
  %v523 = vmax.f32 %v459, 0.0
  %v524 = vmax.f32 %v460, 0.0
  %v525 = vmax.f32 %v461, 0.0
  %v526 = vmax.f32 %v462, 0.0
  %v527 = vmax.f32 %v463, 0.0
  %v528 = vmax.f32 %v464, 0.0
  %v529 = vmax.f32 %v465, 0.0
  %v530 = vmax.f32 %v466, 0.0
  %v531 = vmax.f32 %v467, 0.0
  %v532 = vmax.f32 %v468, 0.0
  %v533 = vmax.f32 %v469, 0.0
  %v534 = vmax.f32 %v470, 0.0
  %v535 = vmax.f32 %v471, 0.0
  %v536 = vmax.f32 %v472, 0.0
  %v537 = vmax.f32 %v473, 0.0
  %v538 = vmax.f32 %v474, 0.0
  %v539 = vmax.f32 %v475, 0.0
  %v540 = vmax.f32 %v476, 0.0
  %v541 = vmax.f32 %v477, 0.0
  %v542 = vmax.f32 %v478, 0.0
  %v543 = vmax.f32 %v479, 0.0
  %v544 = vmax.f32 %v480, 0.0
  %v545 = vmax.f32 %v481, 0.0
  %v546 = vmax.f32 %v482, 0.0
  %v547 = vmax.f32 %v483, 0.0
  %v548 = vmax.f32 %v484, 0.0
  %v549 = vmax.f32 %v485, 0.0
  %v550 = vmax.f32 %v486, 0.0
  %v551 = vmax.f32 %v487, 0.0
  %v552 = vmax.f32 %v488, 0.0
  %v553 = vmax.f32 %v489, 0.0
  %v554 = vmax.f32 %v490, 0.0
  %v555 = vmax.f32 %v491, 0.0
  %v556 = vmax.f32 %v492, 0.0
  %v557 = vmax.f32 %v493, 0.0
  %v558 = vmax.f32 %v494, 0.0
  %v559 = vmax.f32 %v495, 0.0
  %v560 = vmax.f32 %v496, 0.0
  %v561 = vmax.f32 %v497, 0.0
  %v562 = vmax.f32 %v498, 0.0
  %563 = vst [vmem:[%s6] sm:$0xff] %v499
  %564 = vst [vmem:[%s6 + $0x8] sm:$0xff] %v500
  %565 = vst [vmem:[%s6 + $0x10] sm:$0xff] %v501
  %566 = vst [vmem:[%s6 + $0x18] sm:$0xff] %v502
  %567 = vst [vmem:[%s6 + $0x20] sm:$0xff] %v503
  %568 = vst [vmem:[%s6 + $0x28] sm:$0xff] %v504
  %569 = vst [vmem:[%s6 + $0x30] sm:$0xff] %v505
  %570 = vst [vmem:[%s6 + $0x38] sm:$0xff] %v506
  %571 = vst [vmem:[%s6 + $0x40] sm:$0xff] %v507
  %572 = vst [vmem:[%s6 + $0x48] sm:$0xff] %v508
  %573 = vst [vmem:[%s6 + $0x50] sm:$0xff] %v509
  %574 = vst [vmem:[%s6 + $0x58] sm:$0xff] %v510
  %575 = vst [vmem:[%s6 + $0x60] sm:$0xff] %v511
  %576 = vst [vmem:[%s6 + $0x68] sm:$0xff] %v512
  %577 = vst [vmem:[%s6 + $0x70] sm:$0xff] %v513
  %578 = vst [vmem:[%s6 + $0x78] sm:$0xff] %v514
  %579 = vst [vmem:[%s6 + $0x80] sm:$0xff] %v515
  %580 = vst [vmem:[%s6 + $0x88] sm:$0xff] %v516
  %581 = vst [vmem:[%s6 + $0x90] sm:$0xff] %v517
  %582 = vst [vmem:[%s6 + $0x98] sm:$0xff] %v518
  %583 = vst [vmem:[%s6 + $0xa0] sm:$0xff] %v519
  %584 = vst [vmem:[%s6 + $0xa8] sm:$0xff] %v520
  %585 = vst [vmem:[%s6 + $0xb0] sm:$0xff] %v521
  %586 = vst [vmem:[%s6 + $0xb8] sm:$0xff] %v522
  %587 = vst [vmem:[%s6 + $0xc0] sm:$0xff] %v523
  %588 = vst [vmem:[%s6 + $0xc8] sm:$0xff] %v524
  %589 = vst [vmem:[%s6 + $0xd0] sm:$0xff] %v525
  %590 = vst [vmem:[%s6 + $0xd8] sm:$0xff] %v526
  %591 = vst [vmem:[%s6 + $0xe0] sm:$0xff] %v527
  %592 = vst [vmem:[%s6 + $0xe8] sm:$0xff] %v528
  %593 = vst [vmem:[%s6 + $0xf0] sm:$0xff] %v529
  %594 = vst [vmem:[%s6 + $0xf8] sm:$0xff] %v530
  %595 = vst [vmem:[%s6 + $0x100] sm:$0xff] %v531
  %596 = vst [vmem:[%s6 + $0x108] sm:$0xff] %v532
  %597 = vst [vmem:[%s6 + $0x110] sm:$0xff] %v533
  %598 = vst [vmem:[%s6 + $0x118] sm:$0xff] %v534
  %599 = vst [vmem:[%s6 + $0x120] sm:$0xff] %v535
  %600 = vst [vmem:[%s6 + $0x128] sm:$0xff] %v536
  %601 = vst [vmem:[%s6 + $0x130] sm:$0xff] %v537
  %602 = vst [vmem:[%s6 + $0x138] sm:$0xff] %v538
  %603 = vst [vmem:[%s6 + $0x140] sm:$0xff] %v539
  %604 = vst [vmem:[%s6 + $0x148] sm:$0xff] %v540
  %605 = vst [vmem:[%s6 + $0x150] sm:$0xff] %v541
  %606 = vst [vmem:[%s6 + $0x158] sm:$0xff] %v542
  %607 = vst [vmem:[%s6 + $0x160] sm:$0xff] %v543
  %608 = vst [vmem:[%s6 + $0x168] sm:$0xff] %v544
  %609 = vst [vmem:[%s6 + $0x170] sm:$0xff] %v545
  %610 = vst [vmem:[%s6 + $0x178] sm:$0xff] %v546
  %611 = vst [vmem:[%s6 + $0x180] sm:$0xff] %v547
  %612 = vst [vmem:[%s6 + $0x188] sm:$0xff] %v548
  %613 = vst [vmem:[%s6 + $0x190] sm:$0xff] %v549
  %614 = vst [vmem:[%s6 + $0x198] sm:$0xff] %v550
  %615 = vst [vmem:[%s6 + $0x1a0] sm:$0xff] %v551
  %616 = vst [vmem:[%s6 + $0x1a8] sm:$0xff] %v552
  %617 = vst [vmem:[%s6 + $0x1b0] sm:$0xff] %v553
  %618 = vst [vmem:[%s6 + $0x1b8] sm:$0xff] %v554
  %619 = vst [vmem:[%s6 + $0x1c0] sm:$0xff] %v555
  %620 = vst [vmem:[%s6 + $0x1c8] sm:$0xff] %v556
  %621 = vst [vmem:[%s6 + $0x1d0] sm:$0xff] %v557
  %622 = vst [vmem:[%s6 + $0x1d8] sm:$0xff] %v558
  %623 = vst [vmem:[%s6 + $0x1e0] sm:$0xff] %v559
  %624 = vst [vmem:[%s6 + $0x1e8] sm:$0xff] %v560
  %625 = vst [vmem:[%s6 + $0x1f0] sm:$0xff] %v561
  %626 = vst [vmem:[%s6 + $0x1f8] sm:$0xff] %v562
  // Predicated region
  $region26: #{resblock_forward.5} parent=0 // pred_check
    _
  $region27: #{resblock_forward.5} parent=0 // pred_check_branch
    %628 = sbr.rel (0) target = $region29
  $region28: #{resblock_forward.5} parent=0 // pred_region
    _
  $region29: #{resblock_forward.5} parent=0 // pred_fallthru
    _
  // Predicated region
  $region30: #{resblock_forward.5} parent=0 // pred_check
    _
  $region31: #{resblock_forward.5} parent=0 // pred_check_branch
    %630 = sbr.rel (0) target = $region33
  $region32: #{resblock_forward.5} parent=0 // pred_region
    _
  $region33: #{resblock_forward.5} parent=0 // pred_fallthru
    _

// kernel: resblock_forward.3
$region0: #{resblock_forward.3}
  #allocation0 [shape = 'u32[]', space=smem, size = 0x4, offset = 0x4, fixed_abs, tag = 'smem constant byte address 0x4 - core index']
  #allocation1 [shape = 'u32[144,128]{1,0:T(1,128)}', space=vmem, size = 0x12000, scoped, tag = 'internal scratch']
  %s0 = inlined_call_operand.vmem [shape: bf16[2,1,18,18,128], index: 0, kind: input, shape index: {}]
  %s1 = inlined_call_operand.vmem [shape: bf16[9,128,128], index: 1, kind: input, shape index: {}]
  %s2 = inlined_call_operand.vmem [shape: bf16[128,128], index: 2, kind: input, shape index: {}]
  %s3 = inlined_call_operand.vmem [shape: f32[2,16,16,128], index: 3, kind: output, shape index: {0}]
  %s4 = inlined_call_operand.vmem [shape: f32[2,2,128], index: 4, kind: output, shape index: {1}]
  %s5 = inlined_call_operand.vmem [shape: f32[2,16,16,128], index: 5, kind: output, shape index: {2}]
  %s6 = inlined_call_operand.vmem [shape: f32[2,2,128], index: 6, kind: output, shape index: {3}]
  %7 = xla_tuple %s3, %s4, %s5, %s6
  %s8 = sld [smem:[#allocation0]]
  $region73: #{resblock_forward.3} parent=0
    _
  %s10 = ssub.s32 1, %s8
  %s11 = scalar_select 0, %s10, %s8
  loop: start=0, step=1, limit=4
  $region2: #{resblock_forward.3} parent=0 // loop_pre_header
    _
  $region3: #{resblock_forward.3} parent=0 // loop_header
    %s13 = sphi 0, %s17
    %p14 = scmp.ge.s32.totalorder %s13, 4
    %s20 = sphi 0, %s32
    %s21 = sphi 0, %s28
    %s22 = sphi 0, %s20
    %s23 = sphi 0, %s21
    %s24 = sphi 0, %s22
    %s25 = sphi 0, %s23
    %s35 = sphi 0, %s37
    %s38 = sphi 0, %s35
    %s39 = sphi 0, %s38
    %s55 = sphi 0, %s39
    %s59 = sphi 0, %s59
    %s61 = sphi 0, %s59
    %s62 = sphi 0, %s61
    %s76 = sphi 0, %s62
    %s80 = sphi 0, %s80
    %s82 = sphi 0, %s80
    %s83 = sphi 0, %s82
    %s97 = sphi 0, %s83
    %s105 = sphi 0, %s107
    %s108 = sphi 0, %s105
    %s109 = sphi 0, %s108
    %s125 = sphi 0, %s109
    %s131 = sphi 0, %s133
    %s134 = sphi 0, %s131
    %s135 = sphi 0, %s134
    %s151 = sphi 0, %s135
    %s159 = sphi 0, %s161
    %s162 = sphi 0, %s159
    %s163 = sphi 0, %s162
    %s179 = sphi 0, %s163
    %s185 = sphi 0, %s187
    %s188 = sphi 0, %s185
    %s189 = sphi 0, %s188
    %s205 = sphi 0, %s189
  $region4: #{resblock_forward.3} parent=0 // loop_header_branch
    %16 = sbr.rel (%p14) target = $region8
  $region5: #{resblock_forward.3} parent=0 // loop_body
    %s18 = ssub.s32 %s13, 1
    %s19 = ssub.s32 %s13, 2
    %s26 = sadd.s32 1, %s21
    %p27 = scmp.ge.s32.totalorder %s26, 1
    %s28 = scalar_select %p27, 0, %s26
    %s29 = sadd.s32 1, %s20
    %s30 = scalar_select %p27, %s29, %s20
    %p31 = scmp.ge.s32.totalorder %s30, 2
    %s32 = scalar_select %p31, 0, %s30
    %s33 = ssub.s32 %s20, %s32
    %p34 = scmp.eq.s32.totalorder %s33, 0
    %s36 = sadd.s32 %s35, 1
    %s37 = scalar_select %p34, %s35, %s36
    %p40 = pneg %p34
    %p41 = scmp.eq.s32.totalorder %s13, 1
    %p42 = por %p40, %p41
    %p43 = scmp.ne.s32.totalorder %s35, %s38
    %p44 = scmp.eq.s32.totalorder %s13, 0
    %p45 = por %p43, %p44
    %p46 = scmp.ne.s32.totalorder %s35, %s38
    %p47 = scmp.eq.s32.totalorder %s18, 1
    %p48 = por %p46, %p47
    %p49 = scmp.ne.s32.totalorder %s38, %s39
    %p50 = scmp.eq.s32.totalorder %s18, 0
    %p51 = por %p49, %p50
    %p52 = scmp.ne.s32.totalorder %s38, %s39
    %p53 = scmp.eq.s32.totalorder %s19, 1
    %p54 = por %p52, %p53
    %p56 = scmp.ne.s32.totalorder %s39, %s55
    %p57 = scmp.eq.s32.totalorder %s19, 0
    %p58 = por %p56, %p57
    %s60 = sadd.s32 %s59, 1
    %p63 = scmp.eq.s32.totalorder %s13, 1
    %p64 = scmp.ne.s32.totalorder %s59, %s61
    %p65 = scmp.eq.s32.totalorder %s13, 0
    %p66 = por %p64, %p65
    %p67 = scmp.ne.s32.totalorder %s59, %s61
    %p68 = scmp.eq.s32.totalorder %s18, 1
    %p69 = por %p67, %p68
    %p70 = scmp.ne.s32.totalorder %s61, %s62
    %p71 = scmp.eq.s32.totalorder %s18, 0
    %p72 = por %p70, %p71
    %p73 = scmp.ne.s32.totalorder %s61, %s62
    %p74 = scmp.eq.s32.totalorder %s19, 1
    %p75 = por %p73, %p74
    %p77 = scmp.ne.s32.totalorder %s62, %s76
    %p78 = scmp.eq.s32.totalorder %s19, 0
    %p79 = por %p77, %p78
    %s81 = sadd.s32 %s80, 1
    %p84 = scmp.eq.s32.totalorder %s13, 1
    %p85 = scmp.ne.s32.totalorder %s80, %s82
    %p86 = scmp.eq.s32.totalorder %s13, 0
    %p87 = por %p85, %p86
    %p88 = scmp.ne.s32.totalorder %s80, %s82
    %p89 = scmp.eq.s32.totalorder %s18, 1
    %p90 = por %p88, %p89
    %p91 = scmp.ne.s32.totalorder %s82, %s83
    %p92 = scmp.eq.s32.totalorder %s18, 0
    %p93 = por %p91, %p92
    %p94 = scmp.ne.s32.totalorder %s82, %s83
    %p95 = scmp.eq.s32.totalorder %s19, 1
    %p96 = por %p94, %p95
    %p98 = scmp.ne.s32.totalorder %s83, %s97
    %p99 = scmp.eq.s32.totalorder %s19, 0
    %p100 = por %p98, %p99
    %s101 = ssub.s32 %s20, %s32
    %s102 = ssub.s32 %s21, %s28
    %s103 = sor.u32 %s101, %s102
    %p104 = scmp.eq.s32.totalorder %s103, 0
    %s106 = sadd.s32 %s105, 1
    %s107 = scalar_select %p104, %s105, %s106
    %p110 = pneg %p104
    %p111 = scmp.eq.s32.totalorder %s13, 1
    %p112 = por %p110, %p111
    %p113 = scmp.ne.s32.totalorder %s105, %s108
    %p114 = scmp.eq.s32.totalorder %s13, 0
    %p115 = por %p113, %p114
    %p116 = scmp.ne.s32.totalorder %s105, %s108
    %p117 = scmp.eq.s32.totalorder %s18, 1
    %p118 = por %p116, %p117
    %p119 = scmp.ne.s32.totalorder %s108, %s109
    %p120 = scmp.eq.s32.totalorder %s18, 0
    %p121 = por %p119, %p120
    %p122 = scmp.ne.s32.totalorder %s108, %s109
    %p123 = scmp.eq.s32.totalorder %s19, 1
    %p124 = por %p122, %p123
    %p126 = scmp.ne.s32.totalorder %s109, %s125
    %p127 = scmp.eq.s32.totalorder %s19, 0
    %p128 = por %p126, %p127
    %s129 = ssub.s32 %s20, %s32
    %p130 = scmp.eq.s32.totalorder %s129, 0
    %s132 = sadd.s32 %s131, 1
    %s133 = scalar_select %p130, %s131, %s132
    %p136 = pneg %p130
    %p137 = scmp.eq.s32.totalorder %s13, 1
    %p138 = por %p136, %p137
    %p139 = scmp.ne.s32.totalorder %s131, %s134
    %p140 = scmp.eq.s32.totalorder %s13, 0
    %p141 = por %p139, %p140
    %p142 = scmp.ne.s32.totalorder %s131, %s134
    %p143 = scmp.eq.s32.totalorder %s18, 1
    %p144 = por %p142, %p143
    %p145 = scmp.ne.s32.totalorder %s134, %s135
    %p146 = scmp.eq.s32.totalorder %s18, 0
    %p147 = por %p145, %p146
    %p148 = scmp.ne.s32.totalorder %s134, %s135
    %p149 = scmp.eq.s32.totalorder %s19, 1
    %p150 = por %p148, %p149
    %p152 = scmp.ne.s32.totalorder %s135, %s151
    %p153 = scmp.eq.s32.totalorder %s19, 0
    %p154 = por %p152, %p153
    %s155 = ssub.s32 %s20, %s32
    %s156 = ssub.s32 %s21, %s28
    %s157 = sor.u32 %s155, %s156
    %p158 = scmp.eq.s32.totalorder %s157, 0
    %s160 = sadd.s32 %s159, 1
    %s161 = scalar_select %p158, %s159, %s160
    %p164 = pneg %p158
    %p165 = scmp.eq.s32.totalorder %s13, 1
    %p166 = por %p164, %p165
    %p167 = scmp.ne.s32.totalorder %s159, %s162
    %p168 = scmp.eq.s32.totalorder %s13, 0
    %p169 = por %p167, %p168
    %p170 = scmp.ne.s32.totalorder %s159, %s162
    %p171 = scmp.eq.s32.totalorder %s18, 1
    %p172 = por %p170, %p171
    %p173 = scmp.ne.s32.totalorder %s162, %s163
    %p174 = scmp.eq.s32.totalorder %s18, 0
    %p175 = por %p173, %p174
    %p176 = scmp.ne.s32.totalorder %s162, %s163
    %p177 = scmp.eq.s32.totalorder %s19, 1
    %p178 = por %p176, %p177
    %p180 = scmp.ne.s32.totalorder %s163, %s179
    %p181 = scmp.eq.s32.totalorder %s19, 0
    %p182 = por %p180, %p181
    %s183 = ssub.s32 %s20, %s32
    %p184 = scmp.eq.s32.totalorder %s183, 0
    %s186 = sadd.s32 %s185, 1
    %s187 = scalar_select %p184, %s185, %s186
    %p190 = pneg %p184
    %p191 = scmp.eq.s32.totalorder %s13, 1
    %p192 = por %p190, %p191
    %p193 = scmp.ne.s32.totalorder %s185, %s188
    %p194 = scmp.eq.s32.totalorder %s13, 0
    %p195 = por %p193, %p194
    %p196 = scmp.ne.s32.totalorder %s185, %s188
    %p197 = scmp.eq.s32.totalorder %s18, 1
    %p198 = por %p196, %p197
    %p199 = scmp.ne.s32.totalorder %s188, %s189
    %p200 = scmp.eq.s32.totalorder %s18, 0
    %p201 = por %p199, %p200
    %p202 = scmp.ne.s32.totalorder %s188, %s189
    %p203 = scmp.eq.s32.totalorder %s19, 1
    %p204 = por %p202, %p203
    %p206 = scmp.ne.s32.totalorder %s189, %s205
    %p207 = scmp.eq.s32.totalorder %s19, 0
    %p208 = por %p206, %p207
    %p209 = scmp.le.s32.totalorder 1, %s13
    %p210 = scmp.lt.s32.totalorder %s13, 3
    %p211 = pnand %p209, %p210
    %p212 = pneg %p211
    // Predicated region
    $region9: #{resblock_forward.3} parent=5 // pred_check
      _
    $region10: #{resblock_forward.3} parent=5 // pred_check_branch
      %214 = sbr.rel (%p211) target = $region12
    $region11: #{resblock_forward.3} parent=5 // pred_region
      %s215 = ssub.s32 %s13, 1
      // Predicated region
      $region13: #{resblock_forward.3} parent=11 // pred_check
        %p216 = pneg %p72
      $region14: #{resblock_forward.3} parent=11 // pred_check_branch
        %218 = sbr.rel (%p216) target = $region16
      $region15: #{resblock_forward.3} parent=11 // pred_region
        _
      $region16: #{resblock_forward.3} parent=11 // pred_fallthru
        _
      // Predicated region
      $region17: #{resblock_forward.3} parent=11 // pred_check
        %p219 = pneg %p93
      $region18: #{resblock_forward.3} parent=11 // pred_check_branch
        %221 = sbr.rel (%p219) target = $region20
      $region19: #{resblock_forward.3} parent=11 // pred_region
        _
      $region20: #{resblock_forward.3} parent=11 // pred_fallthru
        _
    $region12: #{resblock_forward.3} parent=5 // pred_fallthru
      _
    %p222 = scmp.lt.s32.totalorder %s13, 2
    // Predicated region
    $region21: #{resblock_forward.3} parent=5 // pred_check
      %p223 = pneg %p222
    $region22: #{resblock_forward.3} parent=5 // pred_check_branch
      %225 = sbr.rel (%p223) target = $region24
    $region23: #{resblock_forward.3} parent=5 // pred_region
      // Predicated region
      $region25: #{resblock_forward.3} parent=23 // pred_check
        %p226 = pneg %p45
      $region26: #{resblock_forward.3} parent=23 // pred_check_branch
        %228 = sbr.rel (%p226) target = $region28
      $region27: #{resblock_forward.3} parent=23 // pred_region
        %p229 = scmp.lt.s32.totalorder %s20, 1
        %s230 = scalar_select %p229, %s20, 1
        %s231 = smul.addr %s230, 54
        %s232 = smul.addr %s231, 4
        %s233 = scalar_lea.vmem %s0, %s232
      $region28: #{resblock_forward.3} parent=23 // pred_fallthru
        _
    $region24: #{resblock_forward.3} parent=5 // pred_fallthru
      _
    %p234 = scmp.le.s32.totalorder 1, %s13
    %p235 = scmp.lt.s32.totalorder %s13, 3
    %p236 = pnand %p234, %p235
    %p237 = pneg %p236
    // Predicated region
    $region29: #{resblock_forward.3} parent=5 // pred_check
      _
    $region30: #{resblock_forward.3} parent=5 // pred_check_branch
      %239 = sbr.rel (%p236) target = $region32
    $region31: #{resblock_forward.3} parent=5 // pred_region
      %s240 = ssub.s32 %s13, 1
      %p241 = scmp.lt.s32.totalorder %s22, 1
      %s242 = scalar_select %p241, %s22, 1
      %s243 = smul.addr %s242, 54
      %s244 = smul.addr %s243, 4
      %s245 = scalar_lea.vmem %s0, %s244
      %p246 = pneg %p51
      %p247 = pneg %p48
      %p248 = pneg %p72
      %p249 = pneg %p69
      %p250 = pneg %p93
      %p251 = pneg %p90
      %p252 = pneg %p121
      %p253 = pneg %p118
      %s254 = smul.u32 16, %s23
      %p255 = scmp.lt.s32.totalorder %s22, 1
      %s256 = scalar_select %p255, %s22, 1
      %p257 = scmp.lt.s32.totalorder %s254, 15
      %s258 = scalar_select %p257, %s254, 15
      %s259 = smul.addr %s258, 2
      %s260 = smul.addr %s256, 32
      %s261 = sadd.s32 %s259, %s260
      %s262 = smul.addr %s261, 8
      %s263 = scalar_lea.vmem %s3, %s262
      %p264 = pneg %p147
      %p265 = pneg %p144
      %p266 = scmp.lt.s32.totalorder %s22, 1
      %s267 = scalar_select %p266, %s22, 1
      %s268 = smul.addr %s267, 2
      %s269 = scalar_lea.vmem %s4, %s268
      %p270 = pneg %p175
      %p271 = pneg %p172
      %s272 = smul.u32 16, %s23
      %p273 = scmp.lt.s32.totalorder %s22, 1
      %s274 = scalar_select %p273, %s22, 1
      %p275 = scmp.lt.s32.totalorder %s272, 15
      %s276 = scalar_select %p275, %s272, 15
      %s277 = smul.addr %s276, 2
      %s278 = smul.addr %s274, 32
      %s279 = sadd.s32 %s277, %s278
      %s280 = smul.addr %s279, 8
      %s281 = scalar_lea.vmem %s5, %s280
      %p282 = pneg %p201
      %p283 = pneg %p198
      %p284 = scmp.lt.s32.totalorder %s22, 1
      %s285 = scalar_select %p284, %s22, 1
      %s286 = smul.addr %s285, 2
      %s287 = scalar_lea.vmem %s6, %s286
      %p288 = scmp.lt.s32.totalorder %s22, 1
      %s289 = scalar_select %p288, %s22, 1
      %s290 = smul.addr %s289, 54
      %s291 = smul.addr %s290, 4
      %s292 = scalar_lea.vmem %s0, %s291
      %s293 = smul.u32 16, %s23
      %p294 = scmp.lt.s32.totalorder %s22, 1
      %s295 = scalar_select %p294, %s22, 1
      %p296 = scmp.lt.s32.totalorder %s293, 15
      %s297 = scalar_select %p296, %s293, 15
      %s298 = smul.addr %s297, 2
      %s299 = smul.addr %s295, 32
      %s300 = sadd.s32 %s298, %s299
      %s301 = smul.addr %s300, 8
      %s302 = scalar_lea.vmem %s3, %s301
      %s303 = smul.u32 16, %s23
      %p304 = scmp.lt.s32.totalorder %s22, 1
      %s305 = scalar_select %p304, %s22, 1
      %s306 = smul.addr %s305, 2
      %s307 = scalar_lea.vmem %s4, %s306
      %s308 = smul.u32 16, %s23
      %p309 = scmp.lt.s32.totalorder %s22, 1
      %s310 = scalar_select %p309, %s22, 1
      %p311 = scmp.lt.s32.totalorder %s308, 15
      %s312 = scalar_select %p311, %s308, 15
      %s313 = smul.addr %s312, 2
      %s314 = smul.addr %s310, 32
      %s315 = sadd.s32 %s313, %s314
      %s316 = smul.addr %s315, 8
      %s317 = scalar_lea.vmem %s5, %s316
      %s318 = smul.u32 16, %s23
      %p319 = scmp.lt.s32.totalorder %s22, 1
      %s320 = scalar_select %p319, %s22, 1
      %s321 = smul.addr %s320, 2
      %s322 = scalar_lea.vmem %s6, %s321
      %s324 = smul.u32 %s23, 16
      %p325 = scmp.eq.s32.totalorder %s23, 0
      // Predicated region
      $region33: #{resblock_forward.3} parent=31 // pred_check
        %p326 = pneg %p325
      $region34: #{resblock_forward.3} parent=31 // pred_check_branch
        %328 = sbr.rel (%p326) target = $region36
      $region35: #{resblock_forward.3} parent=31 // pred_region
        %329 = vst [vmem:[%s307] sm:$0x3] 0.0
        %330 = vst [vmem:[%s322] sm:$0x3] 0.0
      $region36: #{resblock_forward.3} parent=31 // pred_fallthru
        _
      %s331 = smul.u32 %s324, 3
      %s332 = smul.addr %s331, 4
      %s333 = scalar_lea.vmem %s292, %s332
      %v334 = vld [vmem:[%s333] sm:$0xf]
      %v335 = vld [vmem:[%s333 + $0x4] sm:$0xf]
      %v336 = vld [vmem:[%s333 + $0xc] sm:$0xf]
      %v337 = vld [vmem:[%s333 + $0x10] sm:$0xf]
      %v338 = vld [vmem:[%s333 + $0x18] sm:$0xf]
      %v339 = vld [vmem:[%s333 + $0x1c] sm:$0xf]
      %v340 = vld [vmem:[%s333 + $0x24] sm:$0xf]
      %v341 = vld [vmem:[%s333 + $0x28] sm:$0xf]
      %v342 = vld [vmem:[%s333 + $0x30] sm:$0xf]
      %v343 = vld [vmem:[%s333 + $0x34] sm:$0xf]
      %v344 = vld [vmem:[%s333 + $0x3c] sm:$0xf]
      %v345 = vld [vmem:[%s333 + $0x40] sm:$0xf]
      %v346 = vld [vmem:[%s333 + $0x48] sm:$0xf]
      %v347 = vld [vmem:[%s333 + $0x4c] sm:$0xf]
      %v348 = vld [vmem:[%s333 + $0x54] sm:$0xf]
      %v349 = vld [vmem:[%s333 + $0x58] sm:$0xf]
      %v350 = vld [vmem:[%s333 + $0x60] sm:$0xf]
      %v351 = vld [vmem:[%s333 + $0x64] sm:$0xf]
      %v352 = vld [vmem:[%s333 + $0x6c] sm:$0xf]
      %v353 = vld [vmem:[%s333 + $0x70] sm:$0xf]
      %v354 = vld [vmem:[%s333 + $0x78] sm:$0xf]
      %v355 = vld [vmem:[%s333 + $0x7c] sm:$0xf]
      %v356 = vld [vmem:[%s333 + $0x84] sm:$0xf]
      %v357 = vld [vmem:[%s333 + $0x88] sm:$0xf]
      %v358 = vld [vmem:[%s333 + $0x90] sm:$0xf]
      %v359 = vld [vmem:[%s333 + $0x94] sm:$0xf]
      %v360 = vld [vmem:[%s333 + $0x9c] sm:$0xf]
      %v361 = vld [vmem:[%s333 + $0xa0] sm:$0xf]
      %v362 = vld [vmem:[%s333 + $0xa8] sm:$0xf]
      %v363 = vld [vmem:[%s333 + $0xac] sm:$0xf]
      %v364 = vld [vmem:[%s333 + $0xb4] sm:$0xf]
      %v365 = vld [vmem:[%s333 + $0xb8] sm:$0xf]
      %v366 = vld [vmem:[%s1] sm:$0xf]
      %v367 = vld [vmem:[%s1 + $0x4] sm:$0xf]
      %v368 = vld [vmem:[%s1 + $0x8] sm:$0xf]
      %v369 = vld [vmem:[%s1 + $0xc] sm:$0xf]
      %v370 = vld [vmem:[%s1 + $0x10] sm:$0xf]
      %v371 = vld [vmem:[%s1 + $0x14] sm:$0xf]
      %v372 = vld [vmem:[%s1 + $0x18] sm:$0xf]
      %v373 = vld [vmem:[%s1 + $0x1c] sm:$0xf]
      %v374 = vld [vmem:[%s1 + $0x20] sm:$0xf]
      %v375 = vld [vmem:[%s1 + $0x24] sm:$0xf]
      %v376 = vld [vmem:[%s1 + $0x28] sm:$0xf]
      %v377 = vld [vmem:[%s1 + $0x2c] sm:$0xf]
      %v378 = vld [vmem:[%s1 + $0x30] sm:$0xf]
      %v379 = vld [vmem:[%s1 + $0x34] sm:$0xf]
      %v380 = vld [vmem:[%s1 + $0x38] sm:$0xf]
      %v381 = vld [vmem:[%s1 + $0x3c] sm:$0xf]
      %v382 = vld [vmem:[%s333 + $0x8] sm:$0x1]
      %v383 = vld [vmem:[%s333 + $0x14] sm:$0x1]
      %v384 = vld [vmem:[%s333 + $0x20] sm:$0x1]
      %v385 = vld [vmem:[%s333 + $0x2c] sm:$0x1]
      %v386 = vld [vmem:[%s333 + $0x38] sm:$0x1]
      %v387 = vld [vmem:[%s333 + $0x44] sm:$0x1]
      %v388 = vld [vmem:[%s333 + $0x50] sm:$0x1]
      %v389 = vld [vmem:[%s333 + $0x5c] sm:$0x1]
      %v390 = vld [vmem:[%s333 + $0x68] sm:$0x1]
      %v391 = vld [vmem:[%s333 + $0x74] sm:$0x1]
      %v392 = vld [vmem:[%s333 + $0x80] sm:$0x1]
      %v393 = vld [vmem:[%s333 + $0x8c] sm:$0x1]
      %v394 = vld [vmem:[%s333 + $0x98] sm:$0x1]
      %v395 = vld [vmem:[%s333 + $0xa4] sm:$0x1]
      %v396 = vld [vmem:[%s333 + $0xb0] sm:$0x1]
      %v397 = vld [vmem:[%s333 + $0xbc] sm:$0x1]
      %vm398 = vsmask.f32 3328
      %vm399 = vsmask.f32 7440
      %vm400 = vmor %vm398, %vm399
      %v402 = vshrl.u32 %v334, 16
      %v404 = vrot.slane %v402, 4
      %v405 = vshll.u32 %v334, 16
      %v407 = vrot.slane %v405, 5
      %v408 = vor.u32 %v404, %v407
      %v409 = vrot.slane %v408, 4
      %v411 = vshll.u32 %v335, 16
      %v413 = vrot.slane %v411, 5
      %v414 = vsel %vm400, %v409, %v413
      %v415 = vshrl.u32 %v335, 16
      %v417 = vrot.slane %v415, 4
      %v418 = vor.u32 %v417, %v413
      %v419 = vrot.slane %v418, 4
      %v421 = vshll.u32 %v382, 16
      %v423 = vrot.slane %v421, 5
      %v424 = vsel %vm400, %v419, %v423
      %v426 = vshrl.u32 %v336, 16
      %v428 = vrot.slane %v426, 4
      %v429 = vshll.u32 %v336, 16
      %v431 = vrot.slane %v429, 5
      %v432 = vor.u32 %v428, %v431
      %v433 = vrot.slane %v432, 4
      %v435 = vshll.u32 %v337, 16
      %v437 = vrot.slane %v435, 5
      %v438 = vsel %vm400, %v433, %v437
      %v439 = vshrl.u32 %v337, 16
      %v441 = vrot.slane %v439, 4
      %v442 = vor.u32 %v441, %v437
      %v443 = vrot.slane %v442, 4
      %v445 = vshll.u32 %v383, 16
      %v447 = vrot.slane %v445, 5
      %v448 = vsel %vm400, %v443, %v447
      %v450 = vshrl.u32 %v338, 16
      %v452 = vrot.slane %v450, 4
      %v453 = vshll.u32 %v338, 16
      %v455 = vrot.slane %v453, 5
      %v456 = vor.u32 %v452, %v455
      %v457 = vrot.slane %v456, 4
      %v459 = vshll.u32 %v339, 16
      %v461 = vrot.slane %v459, 5
      %v462 = vsel %vm400, %v457, %v461
      %v463 = vshrl.u32 %v339, 16
      %v465 = vrot.slane %v463, 4
      %v466 = vor.u32 %v465, %v461
      %v467 = vrot.slane %v466, 4
      %v469 = vshll.u32 %v384, 16
      %v471 = vrot.slane %v469, 5
      %v472 = vsel %vm400, %v467, %v471
      %v474 = vshrl.u32 %v340, 16
      %v476 = vrot.slane %v474, 4
      %v477 = vshll.u32 %v340, 16
      %v479 = vrot.slane %v477, 5
      %v480 = vor.u32 %v476, %v479
      %v481 = vrot.slane %v480, 4
      %v483 = vshll.u32 %v341, 16
      %v485 = vrot.slane %v483, 5
      %v486 = vsel %vm400, %v481, %v485
      %v487 = vshrl.u32 %v341, 16
      %v489 = vrot.slane %v487, 4
      %v490 = vor.u32 %v489, %v485
      %v491 = vrot.slane %v490, 4
      %v493 = vshll.u32 %v385, 16
      %v495 = vrot.slane %v493, 5
      %v496 = vsel %vm400, %v491, %v495
      %v498 = vshrl.u32 %v342, 16
      %v500 = vrot.slane %v498, 4
      %v501 = vshll.u32 %v342, 16
      %v503 = vrot.slane %v501, 5
      %v504 = vor.u32 %v500, %v503
      %v505 = vrot.slane %v504, 4
      %v507 = vshll.u32 %v343, 16
      %v509 = vrot.slane %v507, 5
      %v510 = vsel %vm400, %v505, %v509
      %v511 = vshrl.u32 %v343, 16
      %v513 = vrot.slane %v511, 4
      %v514 = vor.u32 %v513, %v509
      %v515 = vrot.slane %v514, 4
      %v517 = vshll.u32 %v386, 16
      %v519 = vrot.slane %v517, 5
      %v520 = vsel %vm400, %v515, %v519
      %v522 = vshrl.u32 %v344, 16
      %v524 = vrot.slane %v522, 4
      %v525 = vshll.u32 %v344, 16
      %v527 = vrot.slane %v525, 5
      %v528 = vor.u32 %v524, %v527
      %v529 = vrot.slane %v528, 4
      %v531 = vshll.u32 %v345, 16
      %v533 = vrot.slane %v531, 5
      %v534 = vsel %vm400, %v529, %v533
      %v535 = vshrl.u32 %v345, 16
      %v537 = vrot.slane %v535, 4
      %v538 = vor.u32 %v537, %v533
      %v539 = vrot.slane %v538, 4
      %v541 = vshll.u32 %v387, 16
      %v543 = vrot.slane %v541, 5
      %v544 = vsel %vm400, %v539, %v543
      %v546 = vshrl.u32 %v346, 16
      %v548 = vrot.slane %v546, 4
      %v549 = vshll.u32 %v346, 16
      %v551 = vrot.slane %v549, 5
      %v552 = vor.u32 %v548, %v551
      %v553 = vrot.slane %v552, 4
      %v555 = vshll.u32 %v347, 16
      %v557 = vrot.slane %v555, 5
      %v558 = vsel %vm400, %v553, %v557
      %v559 = vshrl.u32 %v347, 16
      %v561 = vrot.slane %v559, 4
      %v562 = vor.u32 %v561, %v557
      %v563 = vrot.slane %v562, 4
      %v565 = vshll.u32 %v388, 16
      %v567 = vrot.slane %v565, 5
      %v568 = vsel %vm400, %v563, %v567
      %v570 = vshrl.u32 %v348, 16
      %v572 = vrot.slane %v570, 4
      %v573 = vshll.u32 %v348, 16
      %v575 = vrot.slane %v573, 5
      %v576 = vor.u32 %v572, %v575
      %v577 = vrot.slane %v576, 4
      %v579 = vshll.u32 %v349, 16
      %v581 = vrot.slane %v579, 5
      %v582 = vsel %vm400, %v577, %v581
      %v583 = vshrl.u32 %v349, 16
      %v585 = vrot.slane %v583, 4
      %v586 = vor.u32 %v585, %v581
      %v587 = vrot.slane %v586, 4
      %v589 = vshll.u32 %v389, 16
      %v591 = vrot.slane %v589, 5
      %v592 = vsel %vm400, %v587, %v591
      %v594 = vshrl.u32 %v350, 16
      %v596 = vrot.slane %v594, 4
      %v597 = vshll.u32 %v350, 16
      %v599 = vrot.slane %v597, 5
      %v600 = vor.u32 %v596, %v599
      %v601 = vrot.slane %v600, 4
      %v603 = vshll.u32 %v351, 16
      %v605 = vrot.slane %v603, 5
      %v606 = vsel %vm400, %v601, %v605
      %v607 = vshrl.u32 %v351, 16
      %v609 = vrot.slane %v607, 4
      %v610 = vor.u32 %v609, %v605
      %v611 = vrot.slane %v610, 4
      %v613 = vshll.u32 %v390, 16
      %v615 = vrot.slane %v613, 5
      %v616 = vsel %vm400, %v611, %v615
      %v618 = vshrl.u32 %v352, 16
      %v620 = vrot.slane %v618, 4
      %v621 = vshll.u32 %v352, 16
      %v623 = vrot.slane %v621, 5
      %v624 = vor.u32 %v620, %v623
      %v625 = vrot.slane %v624, 4
      %v627 = vshll.u32 %v353, 16
      %v629 = vrot.slane %v627, 5
      %v630 = vsel %vm400, %v625, %v629
      %v631 = vshrl.u32 %v353, 16
      %v633 = vrot.slane %v631, 4
      %v634 = vor.u32 %v633, %v629
      %v635 = vrot.slane %v634, 4
      %v637 = vshll.u32 %v391, 16
      %v639 = vrot.slane %v637, 5
      %v640 = vsel %vm400, %v635, %v639
      %v642 = vshrl.u32 %v354, 16
      %v644 = vrot.slane %v642, 4
      %v645 = vshll.u32 %v354, 16
      %v647 = vrot.slane %v645, 5
      %v648 = vor.u32 %v644, %v647
      %v649 = vrot.slane %v648, 4
      %v651 = vshll.u32 %v355, 16
      %v653 = vrot.slane %v651, 5
      %v654 = vsel %vm400, %v649, %v653
      %v655 = vshrl.u32 %v355, 16
      %v657 = vrot.slane %v655, 4
      %v658 = vor.u32 %v657, %v653
      %v659 = vrot.slane %v658, 4
      %v661 = vshll.u32 %v392, 16
      %v663 = vrot.slane %v661, 5
      %v664 = vsel %vm400, %v659, %v663
      %v666 = vshrl.u32 %v356, 16
      %v668 = vrot.slane %v666, 4
      %v669 = vshll.u32 %v356, 16
      %v671 = vrot.slane %v669, 5
      %v672 = vor.u32 %v668, %v671
      %v673 = vrot.slane %v672, 4
      %v675 = vshll.u32 %v357, 16
      %v677 = vrot.slane %v675, 5
      %v678 = vsel %vm400, %v673, %v677
      %v679 = vshrl.u32 %v357, 16
      %v681 = vrot.slane %v679, 4
      %v682 = vor.u32 %v681, %v677
      %v683 = vrot.slane %v682, 4
      %v685 = vshll.u32 %v393, 16
      %v687 = vrot.slane %v685, 5
      %v688 = vsel %vm400, %v683, %v687
      %v690 = vshrl.u32 %v358, 16
      %v692 = vrot.slane %v690, 4
      %v693 = vshll.u32 %v358, 16
      %v695 = vrot.slane %v693, 5
      %v696 = vor.u32 %v692, %v695
      %v697 = vrot.slane %v696, 4
      %v699 = vshll.u32 %v359, 16
      %v701 = vrot.slane %v699, 5
      %v702 = vsel %vm400, %v697, %v701
      %v703 = vshrl.u32 %v359, 16
      %v705 = vrot.slane %v703, 4
      %v706 = vor.u32 %v705, %v701
      %v707 = vrot.slane %v706, 4
      %v709 = vshll.u32 %v394, 16
      %v711 = vrot.slane %v709, 5
      %v712 = vsel %vm400, %v707, %v711
      %v714 = vshrl.u32 %v360, 16
      %v716 = vrot.slane %v714, 4
      %v717 = vshll.u32 %v360, 16
      %v719 = vrot.slane %v717, 5
      %v720 = vor.u32 %v716, %v719
      %v721 = vrot.slane %v720, 4
      %v723 = vshll.u32 %v361, 16
      %v725 = vrot.slane %v723, 5
      %v726 = vsel %vm400, %v721, %v725
      %v727 = vshrl.u32 %v361, 16
      %v729 = vrot.slane %v727, 4
      %v730 = vor.u32 %v729, %v725
      %v731 = vrot.slane %v730, 4
      %v733 = vshll.u32 %v395, 16
      %v735 = vrot.slane %v733, 5
      %v736 = vsel %vm400, %v731, %v735
      %v738 = vshrl.u32 %v362, 16
      %v740 = vrot.slane %v738, 4
      %v741 = vshll.u32 %v362, 16
      %v743 = vrot.slane %v741, 5
      %v744 = vor.u32 %v740, %v743
      %v745 = vrot.slane %v744, 4
      %v747 = vshll.u32 %v363, 16
      %v749 = vrot.slane %v747, 5
      %v750 = vsel %vm400, %v745, %v749
      %v751 = vshrl.u32 %v363, 16
      %v753 = vrot.slane %v751, 4
      %v754 = vor.u32 %v753, %v749
      %v755 = vrot.slane %v754, 4
      %v757 = vshll.u32 %v396, 16
      %v759 = vrot.slane %v757, 5
      %v760 = vsel %vm400, %v755, %v759
      %v762 = vshrl.u32 %v364, 16
      %v764 = vrot.slane %v762, 4
      %v765 = vshll.u32 %v364, 16
      %v767 = vrot.slane %v765, 5
      %v768 = vor.u32 %v764, %v767
      %v769 = vrot.slane %v768, 4
      %v771 = vshll.u32 %v365, 16
      %v773 = vrot.slane %v771, 5
      %v774 = vsel %vm400, %v769, %v773
      %v775 = vshrl.u32 %v365, 16
      %v777 = vrot.slane %v775, 4
      %v778 = vor.u32 %v777, %v773
      %v779 = vrot.slane %v778, 4
      %v781 = vshll.u32 %v397, 16
      %v783 = vrot.slane %v781, 5
      %v784 = vsel %vm400, %v779, %v783
      %s785 = scalar_lea.vmem %s1, 64
      %v786 = vld [vmem:[%s785] sm:$0xf]
      %v787 = vld [vmem:[%s785 + $0x4] sm:$0xf]
      %v788 = vld [vmem:[%s785 + $0x8] sm:$0xf]
      %v789 = vld [vmem:[%s785 + $0xc] sm:$0xf]
      %v790 = vld [vmem:[%s785 + $0x10] sm:$0xf]
      %v791 = vld [vmem:[%s785 + $0x14] sm:$0xf]
      %v792 = vld [vmem:[%s785 + $0x18] sm:$0xf]
      %v793 = vld [vmem:[%s785 + $0x1c] sm:$0xf]
      %v794 = vld [vmem:[%s785 + $0x20] sm:$0xf]
      %v795 = vld [vmem:[%s785 + $0x24] sm:$0xf]
      %v796 = vld [vmem:[%s785 + $0x28] sm:$0xf]
      %v797 = vld [vmem:[%s785 + $0x2c] sm:$0xf]
      %v798 = vld [vmem:[%s785 + $0x30] sm:$0xf]
      %v799 = vld [vmem:[%s785 + $0x34] sm:$0xf]
      %v800 = vld [vmem:[%s785 + $0x38] sm:$0xf]
      %v801 = vld [vmem:[%s785 + $0x3c] sm:$0xf]
      %v802 = vunpack.c.l.b16 %v414
      %v803 = vunpack.c.l.b16 %v424
      %v804 = vunpack.c.l.b16 %v438
      %v805 = vunpack.c.l.b16 %v448
      %v806 = vunpack.c.l.b16 %v462
      %v807 = vunpack.c.l.b16 %v472
      %v808 = vunpack.c.l.b16 %v486
      %v809 = vunpack.c.l.b16 %v496
      %v810 = vunpack.c.l.b16 %v510
      %v811 = vunpack.c.l.b16 %v520
      %v812 = vunpack.c.l.b16 %v534
      %v813 = vunpack.c.l.b16 %v544
      %v814 = vunpack.c.l.b16 %v558
      %v815 = vunpack.c.l.b16 %v568
      %v816 = vunpack.c.l.b16 %v582
      %v817 = vunpack.c.l.b16 %v592
      %v818 = vunpack.c.l.b16 %v606
      %v819 = vunpack.c.l.b16 %v616
      %v820 = vunpack.c.l.b16 %v630
      %v821 = vunpack.c.l.b16 %v640
      %v822 = vunpack.c.l.b16 %v654
      %v823 = vunpack.c.l.b16 %v664
      %v824 = vunpack.c.l.b16 %v678
      %v825 = vunpack.c.l.b16 %v688
      %v826 = vunpack.c.l.b16 %v702
      %v827 = vunpack.c.l.b16 %v712
      %v828 = vunpack.c.l.b16 %v726
      %v829 = vunpack.c.l.b16 %v736
      %v830 = vunpack.c.l.b16 %v750
      %v831 = vunpack.c.l.b16 %v760
      %v832 = vunpack.c.l.b16 %v774
      %v833 = vunpack.c.l.b16 %v784
      %v834 = vpack.c.b16 %v803, %v802
      %v835 = vpack.c.b16 %v805, %v804
      %v836 = vpack.c.b16 %v807, %v806
      %v837 = vpack.c.b16 %v809, %v808
      %v838 = vpack.c.b16 %v811, %v810
      %v839 = vpack.c.b16 %v813, %v812
      %v840 = vpack.c.b16 %v815, %v814
      %v841 = vpack.c.b16 %v817, %v816
      %v842 = vpack.c.b16 %v819, %v818
      %v843 = vpack.c.b16 %v821, %v820
      %v844 = vpack.c.b16 %v823, %v822
      %v845 = vpack.c.b16 %v825, %v824
      %v846 = vpack.c.b16 %v827, %v826
      %v847 = vpack.c.b16 %v829, %v828
      %v848 = vpack.c.b16 %v831, %v830
      %v849 = vpack.c.b16 %v833, %v832
      %v882 = vunpack.c.l.b16 %v786
      %v883 = vunpack.c.l.b16 %v787
      %v884 = vunpack.c.l.b16 %v788
      %v885 = vunpack.c.l.b16 %v789
      %v886 = vunpack.c.l.b16 %v790
      %v887 = vunpack.c.l.b16 %v791
      %v888 = vunpack.c.l.b16 %v792
      %v889 = vunpack.c.l.b16 %v793
      %v890 = vunpack.c.l.b16 %v794
      %v891 = vunpack.c.l.b16 %v795
      %v892 = vunpack.c.l.b16 %v796
      %v893 = vunpack.c.l.b16 %v797
      %v894 = vunpack.c.l.b16 %v798
      %v895 = vunpack.c.l.b16 %v799
      %v896 = vunpack.c.l.b16 %v800
      %v897 = vunpack.c.l.b16 %v801
      %v898 = vpack.c.b16 %v883, %v882
      %v899 = vpack.c.b16 %v885, %v884
      %v900 = vpack.c.b16 %v887, %v886
      %v901 = vpack.c.b16 %v889, %v888
      %v902 = vpack.c.b16 %v891, %v890
      %v903 = vpack.c.b16 %v893, %v892
      %v904 = vpack.c.b16 %v895, %v894
      %v905 = vpack.c.b16 %v897, %v896
      %914 = vmatprep.subr.bf16.mxu0 0
      %915 = vmatpush1.bf16.msra.mxu0 %v905
      %916 = vmatprep.subr.bf16.mxu0 0
      %917 = vmatpush1.bf16.msra.mxu0 %v904
      %918 = vmatprep.subr.bf16.mxu0 0
      %919 = vmatpush1.bf16.msra.mxu0 %v903
      %920 = vmatprep.subr.bf16.mxu0 0
      %921 = vmatpush1.bf16.msra.mxu0 %v902
      %922 = vmatprep.subr.bf16.mxu0 0
      %923 = vmatpush1.bf16.msra.mxu0 %v901
      %924 = vmatprep.subr.bf16.mxu0 0
      %925 = vmatpush1.bf16.msra.mxu0 %v900
      %926 = vmatprep.subr.bf16.mxu0 0
      %927 = vmatpush1.bf16.msra.mxu0 %v899
      %928 = vmatprep.subr.bf16.mxu0 0
      %929 = vmatpush1.bf16.msra.mxu0 %v898
      %930 = vmatprep.subr.bf16.mxu0 0
      %931 = vmatpush2.bf16.msra.mxu0 0
      %932 = vmatprep.subr.bf16.mxu0 0
      %933 = vmatpush2.bf16.msra.mxu0 0
      %934 = vmatprep.subr.bf16.mxu0 0
      %935 = vmatpush2.bf16.msra.mxu0 0
      %936 = vmatprep.subr.bf16.mxu0 0
      %937 = vmatpush2.bf16.msra.mxu0 0
      %938 = vmatprep.subr.bf16.mxu0 0
      %939 = vmatpush2.bf16.msra.mxu0 0
      %940 = vmatprep.subr.bf16.mxu0 0
      %941 = vmatpush2.bf16.msra.mxu0 0
      %942 = vmatprep.subr.bf16.mxu0 0
      %943 = vmatpush2.bf16.msra.mxu0 0
      %944 = vmatprep.subr.bf16.mxu0 0
      %945 = vmatpush2.bf16.msra.mxu0 0
      %946 = vmatprep.mubr.bf16.mxu0 0
      %947 = vmatmul.mubr.bf16.gmra.mxu0 %v834
      %v948 = vpop.f32.mrf.mxu0
      %v949 = vadd.f32 0.0, %v948
      %v950 = vpop.f32.mrf.mxu0
      %v951 = vpop.f32.mrf.mxu0
      %v952 = vadd.f32 0.0, %v951
      %v953 = vpop.f32.mrf.mxu0
      %954 = vmatprep.mubr.bf16.mxu0 0
      %955 = vmatmul.mubr.bf16.gmra.mxu0 %v835
      %v956 = vpop.f32.mrf.mxu0
      %v957 = vadd.f32 0.0, %v956
      %v958 = vpop.f32.mrf.mxu0
      %v959 = vpop.f32.mrf.mxu0
      %v960 = vadd.f32 0.0, %v959
      %v961 = vpop.f32.mrf.mxu0
      %962 = vmatprep.mubr.bf16.mxu0 0
      %963 = vmatmul.mubr.bf16.gmra.mxu0 %v836
      %v964 = vpop.f32.mrf.mxu0
      %v965 = vadd.f32 0.0, %v964
      %v966 = vpop.f32.mrf.mxu0
      %v967 = vpop.f32.mrf.mxu0
      %v968 = vadd.f32 0.0, %v967
      %v969 = vpop.f32.mrf.mxu0
      %970 = vmatprep.mubr.bf16.mxu0 0
      %971 = vmatmul.mubr.bf16.gmra.mxu0 %v837
      %v972 = vpop.f32.mrf.mxu0
      %v973 = vadd.f32 0.0, %v972
      %v974 = vpop.f32.mrf.mxu0
      %v975 = vpop.f32.mrf.mxu0
      %v976 = vadd.f32 0.0, %v975
      %v977 = vpop.f32.mrf.mxu0
      %978 = vmatprep.mubr.bf16.mxu0 0
      %979 = vmatmul.mubr.bf16.gmra.mxu0 %v838
      %v980 = vpop.f32.mrf.mxu0
      %v981 = vadd.f32 0.0, %v980
      %v982 = vpop.f32.mrf.mxu0
      %v983 = vpop.f32.mrf.mxu0
      %v984 = vadd.f32 0.0, %v983
      %v985 = vpop.f32.mrf.mxu0
      %986 = vmatprep.mubr.bf16.mxu0 0
      %987 = vmatmul.mubr.bf16.gmra.mxu0 %v839
      %v988 = vpop.f32.mrf.mxu0
      %v989 = vadd.f32 0.0, %v988
      %v990 = vpop.f32.mrf.mxu0
      %v991 = vpop.f32.mrf.mxu0
      %v992 = vadd.f32 0.0, %v991
      %v993 = vpop.f32.mrf.mxu0
      %994 = vmatprep.mubr.bf16.mxu0 0
      %995 = vmatmul.mubr.bf16.gmra.mxu0 %v840
      %v996 = vpop.f32.mrf.mxu0
      %v997 = vadd.f32 0.0, %v996
      %v998 = vpop.f32.mrf.mxu0
      %v999 = vpop.f32.mrf.mxu0
      %v1000 = vadd.f32 0.0, %v999
      %v1001 = vpop.f32.mrf.mxu0
      %1002 = vmatprep.mubr.bf16.mxu0 0
      %1003 = vmatmul.mubr.bf16.gmra.mxu0 %v841
      %v1004 = vpop.f32.mrf.mxu0
      %v1005 = vadd.f32 0.0, %v1004
      %v1006 = vpop.f32.mrf.mxu0
      %v1007 = vpop.f32.mrf.mxu0
      %v1008 = vadd.f32 0.0, %v1007
      %v1009 = vpop.f32.mrf.mxu0
      %1010 = vmatprep.mubr.bf16.mxu0 0
      %1011 = vmatmul.mubr.bf16.gmra.mxu0 %v842
      %v1012 = vpop.f32.mrf.mxu0
      %v1013 = vadd.f32 0.0, %v1012
      %v1014 = vpop.f32.mrf.mxu0
      %v1015 = vpop.f32.mrf.mxu0
      %v1016 = vadd.f32 0.0, %v1015
      %v1017 = vpop.f32.mrf.mxu0
      %1018 = vmatprep.mubr.bf16.mxu0 0
      %1019 = vmatmul.mubr.bf16.gmra.mxu0 %v843
      %v1020 = vpop.f32.mrf.mxu0
      %v1021 = vadd.f32 0.0, %v1020
      %v1022 = vpop.f32.mrf.mxu0
      %v1023 = vpop.f32.mrf.mxu0
      %v1024 = vadd.f32 0.0, %v1023
      %v1025 = vpop.f32.mrf.mxu0
      %1026 = vmatprep.mubr.bf16.mxu0 0
      %1027 = vmatmul.mubr.bf16.gmra.mxu0 %v844
      %v1028 = vpop.f32.mrf.mxu0
      %v1029 = vadd.f32 0.0, %v1028
      %v1030 = vpop.f32.mrf.mxu0
      %v1031 = vpop.f32.mrf.mxu0
      %v1032 = vadd.f32 0.0, %v1031
      %v1033 = vpop.f32.mrf.mxu0
      %1034 = vmatprep.mubr.bf16.mxu0 0
      %1035 = vmatmul.mubr.bf16.gmra.mxu0 %v845
      %v1036 = vpop.f32.mrf.mxu0
      %v1037 = vadd.f32 0.0, %v1036
      %v1038 = vpop.f32.mrf.mxu0
      %v1039 = vpop.f32.mrf.mxu0
      %v1040 = vadd.f32 0.0, %v1039
      %v1041 = vpop.f32.mrf.mxu0
      %1042 = vmatprep.mubr.bf16.mxu0 0
      %1043 = vmatmul.mubr.bf16.gmra.mxu0 %v846
      %v1044 = vpop.f32.mrf.mxu0
      %v1045 = vadd.f32 0.0, %v1044
      %v1046 = vpop.f32.mrf.mxu0
      %v1047 = vpop.f32.mrf.mxu0
      %v1048 = vadd.f32 0.0, %v1047
      %v1049 = vpop.f32.mrf.mxu0
      %1050 = vmatprep.mubr.bf16.mxu0 0
      %1051 = vmatmul.mubr.bf16.gmra.mxu0 %v847
      %v1052 = vpop.f32.mrf.mxu0
      %v1053 = vadd.f32 0.0, %v1052
      %v1054 = vpop.f32.mrf.mxu0
      %v1055 = vpop.f32.mrf.mxu0
      %v1056 = vadd.f32 0.0, %v1055
      %v1057 = vpop.f32.mrf.mxu0
      %1058 = vmatprep.mubr.bf16.mxu0 0
      %1059 = vmatmul.mubr.bf16.gmra.mxu0 %v848
      %v1060 = vpop.f32.mrf.mxu0
      %v1061 = vadd.f32 0.0, %v1060
      %v1062 = vpop.f32.mrf.mxu0
      %v1063 = vpop.f32.mrf.mxu0
      %v1064 = vadd.f32 0.0, %v1063
      %v1065 = vpop.f32.mrf.mxu0
      %1066 = vmatprep.mubr.bf16.mxu0 0
      %1067 = vmatmul.mubr.bf16.gmra.mxu0 %v849
      %v1068 = vpop.f32.mrf.mxu0
      %v1069 = vadd.f32 0.0, %v1068
      %v1070 = vpop.f32.mrf.mxu0
      %v1071 = vpop.f32.mrf.mxu0
      %v1072 = vadd.f32 0.0, %v1071
      %v1073 = vpop.f32.mrf.mxu0
      %1074 = vdwg.mxu0
      %v1107 = vunpack.c.l.b16 %v334
      %v1108 = vunpack.c.l.b16 %v335
      %v1109 = vunpack.c.l.b16 %v336
      %v1110 = vunpack.c.l.b16 %v337
      %v1111 = vunpack.c.l.b16 %v338
      %v1112 = vunpack.c.l.b16 %v339
      %v1113 = vunpack.c.l.b16 %v340
      %v1114 = vunpack.c.l.b16 %v341
      %v1115 = vunpack.c.l.b16 %v342
      %v1116 = vunpack.c.l.b16 %v343
      %v1117 = vunpack.c.l.b16 %v344
      %v1118 = vunpack.c.l.b16 %v345
      %v1119 = vunpack.c.l.b16 %v346
      %v1120 = vunpack.c.l.b16 %v347
      %v1121 = vunpack.c.l.b16 %v348
      %v1122 = vunpack.c.l.b16 %v349
      %v1123 = vunpack.c.l.b16 %v350
      %v1124 = vunpack.c.l.b16 %v351
      %v1125 = vunpack.c.l.b16 %v352
      %v1126 = vunpack.c.l.b16 %v353
      %v1127 = vunpack.c.l.b16 %v354
      %v1128 = vunpack.c.l.b16 %v355
      %v1129 = vunpack.c.l.b16 %v356
      %v1130 = vunpack.c.l.b16 %v357
      %v1131 = vunpack.c.l.b16 %v358
      %v1132 = vunpack.c.l.b16 %v359
      %v1133 = vunpack.c.l.b16 %v360
      %v1134 = vunpack.c.l.b16 %v361
      %v1135 = vunpack.c.l.b16 %v362
      %v1136 = vunpack.c.l.b16 %v363
      %v1137 = vunpack.c.l.b16 %v364
      %v1138 = vunpack.c.l.b16 %v365
      %v1139 = vpack.c.b16 %v1108, %v1107
      %v1140 = vpack.c.b16 %v1110, %v1109
      %v1141 = vpack.c.b16 %v1112, %v1111
      %v1142 = vpack.c.b16 %v1114, %v1113
      %v1143 = vpack.c.b16 %v1116, %v1115
      %v1144 = vpack.c.b16 %v1118, %v1117
      %v1145 = vpack.c.b16 %v1120, %v1119
      %v1146 = vpack.c.b16 %v1122, %v1121
      %v1147 = vpack.c.b16 %v1124, %v1123
      %v1148 = vpack.c.b16 %v1126, %v1125
      %v1149 = vpack.c.b16 %v1128, %v1127
      %v1150 = vpack.c.b16 %v1130, %v1129
      %v1151 = vpack.c.b16 %v1132, %v1131
      %v1152 = vpack.c.b16 %v1134, %v1133
      %v1153 = vpack.c.b16 %v1136, %v1135
      %v1154 = vpack.c.b16 %v1138, %v1137
      %v1187 = vunpack.c.l.b16 %v366
      %v1188 = vunpack.c.l.b16 %v367
      %v1189 = vunpack.c.l.b16 %v368
      %v1190 = vunpack.c.l.b16 %v369
      %v1191 = vunpack.c.l.b16 %v370
      %v1192 = vunpack.c.l.b16 %v371
      %v1193 = vunpack.c.l.b16 %v372
      %v1194 = vunpack.c.l.b16 %v373
      %v1195 = vunpack.c.l.b16 %v374
      %v1196 = vunpack.c.l.b16 %v375
      %v1197 = vunpack.c.l.b16 %v376
      %v1198 = vunpack.c.l.b16 %v377
      %v1199 = vunpack.c.l.b16 %v378
      %v1200 = vunpack.c.l.b16 %v379
      %v1201 = vunpack.c.l.b16 %v380
      %v1202 = vunpack.c.l.b16 %v381
      %v1203 = vpack.c.b16 %v1188, %v1187
      %v1204 = vpack.c.b16 %v1190, %v1189
      %v1205 = vpack.c.b16 %v1192, %v1191
      %v1206 = vpack.c.b16 %v1194, %v1193
      %v1207 = vpack.c.b16 %v1196, %v1195
      %v1208 = vpack.c.b16 %v1198, %v1197
      %v1209 = vpack.c.b16 %v1200, %v1199
      %v1210 = vpack.c.b16 %v1202, %v1201
      %1219 = vmatprep.subr.bf16.mxu0 0
      %1220 = vmatpush1.bf16.msra.mxu0 %v1210
      %1221 = vmatprep.subr.bf16.mxu0 0
      %1222 = vmatpush1.bf16.msra.mxu0 %v1209
      %1223 = vmatprep.subr.bf16.mxu0 0
      %1224 = vmatpush1.bf16.msra.mxu0 %v1208
      %1225 = vmatprep.subr.bf16.mxu0 0
      %1226 = vmatpush1.bf16.msra.mxu0 %v1207
      %1227 = vmatprep.subr.bf16.mxu0 0
      %1228 = vmatpush1.bf16.msra.mxu0 %v1206
      %1229 = vmatprep.subr.bf16.mxu0 0
      %1230 = vmatpush1.bf16.msra.mxu0 %v1205
      %1231 = vmatprep.subr.bf16.mxu0 0
      %1232 = vmatpush1.bf16.msra.mxu0 %v1204
      %1233 = vmatprep.subr.bf16.mxu0 0
      %1234 = vmatpush1.bf16.msra.mxu0 %v1203
      %1235 = vmatprep.subr.bf16.mxu0 0
      %1236 = vmatpush2.bf16.msra.mxu0 0
      %1237 = vmatprep.subr.bf16.mxu0 0
      %1238 = vmatpush2.bf16.msra.mxu0 0
      %1239 = vmatprep.subr.bf16.mxu0 0
      %1240 = vmatpush2.bf16.msra.mxu0 0
      %1241 = vmatprep.subr.bf16.mxu0 0
      %1242 = vmatpush2.bf16.msra.mxu0 0
      %1243 = vmatprep.subr.bf16.mxu0 0
      %1244 = vmatpush2.bf16.msra.mxu0 0
      %1245 = vmatprep.subr.bf16.mxu0 0
      %1246 = vmatpush2.bf16.msra.mxu0 0
      %1247 = vmatprep.subr.bf16.mxu0 0
      %1248 = vmatpush2.bf16.msra.mxu0 0
      %1249 = vmatprep.subr.bf16.mxu0 0
      %1250 = vmatpush2.bf16.msra.mxu0 0
      %1251 = vmatprep.mubr.bf16.mxu0 0
      %1252 = vmatmul.mubr.bf16.gmra.mxu0 %v1139
      %v1253 = vpop.f32.mrf.mxu0
      %v1254 = vadd.f32 %v949, %v1253
      %v1255 = vpop.f32.mrf.mxu0
      %v1256 = vpop.f32.mrf.mxu0
      %v1257 = vadd.f32 %v952, %v1256
      %v1258 = vpop.f32.mrf.mxu0
      %1259 = vmatprep.mubr.bf16.mxu0 0
      %1260 = vmatmul.mubr.bf16.gmra.mxu0 %v1140
      %v1261 = vpop.f32.mrf.mxu0
      %v1262 = vadd.f32 %v957, %v1261
      %v1263 = vpop.f32.mrf.mxu0
      %v1264 = vpop.f32.mrf.mxu0
      %v1265 = vadd.f32 %v960, %v1264
      %v1266 = vpop.f32.mrf.mxu0
      %1267 = vmatprep.mubr.bf16.mxu0 0
      %1268 = vmatmul.mubr.bf16.gmra.mxu0 %v1141
      %v1269 = vpop.f32.mrf.mxu0
      %v1270 = vadd.f32 %v965, %v1269
      %v1271 = vpop.f32.mrf.mxu0
      %v1272 = vpop.f32.mrf.mxu0
      %v1273 = vadd.f32 %v968, %v1272
      %v1274 = vpop.f32.mrf.mxu0
      %1275 = vmatprep.mubr.bf16.mxu0 0
      %1276 = vmatmul.mubr.bf16.gmra.mxu0 %v1142
      %v1277 = vpop.f32.mrf.mxu0
      %v1278 = vadd.f32 %v973, %v1277
      %v1279 = vpop.f32.mrf.mxu0
      %v1280 = vpop.f32.mrf.mxu0
      %v1281 = vadd.f32 %v976, %v1280
      %v1282 = vpop.f32.mrf.mxu0
      %1283 = vmatprep.mubr.bf16.mxu0 0
      %1284 = vmatmul.mubr.bf16.gmra.mxu0 %v1143
      %v1285 = vpop.f32.mrf.mxu0
      %v1286 = vadd.f32 %v981, %v1285
      %v1287 = vpop.f32.mrf.mxu0
      %v1288 = vpop.f32.mrf.mxu0
      %v1289 = vadd.f32 %v984, %v1288
      %v1290 = vpop.f32.mrf.mxu0
      %1291 = vmatprep.mubr.bf16.mxu0 0
      %1292 = vmatmul.mubr.bf16.gmra.mxu0 %v1144
      %v1293 = vpop.f32.mrf.mxu0
      %v1294 = vadd.f32 %v989, %v1293
      %v1295 = vpop.f32.mrf.mxu0
      %v1296 = vpop.f32.mrf.mxu0
      %v1297 = vadd.f32 %v992, %v1296
      %v1298 = vpop.f32.mrf.mxu0
      %1299 = vmatprep.mubr.bf16.mxu0 0
      %1300 = vmatmul.mubr.bf16.gmra.mxu0 %v1145
      %v1301 = vpop.f32.mrf.mxu0
      %v1302 = vadd.f32 %v997, %v1301
      %v1303 = vpop.f32.mrf.mxu0
      %v1304 = vpop.f32.mrf.mxu0
      %v1305 = vadd.f32 %v1000, %v1304
      %v1306 = vpop.f32.mrf.mxu0
      %1307 = vmatprep.mubr.bf16.mxu0 0
      %1308 = vmatmul.mubr.bf16.gmra.mxu0 %v1146
      %v1309 = vpop.f32.mrf.mxu0
      %v1310 = vadd.f32 %v1005, %v1309
      %v1311 = vpop.f32.mrf.mxu0
      %v1312 = vpop.f32.mrf.mxu0
      %v1313 = vadd.f32 %v1008, %v1312
      %v1314 = vpop.f32.mrf.mxu0
      %1315 = vmatprep.mubr.bf16.mxu0 0
      %1316 = vmatmul.mubr.bf16.gmra.mxu0 %v1147
      %v1317 = vpop.f32.mrf.mxu0
      %v1318 = vadd.f32 %v1013, %v1317
      %v1319 = vpop.f32.mrf.mxu0
      %v1320 = vpop.f32.mrf.mxu0
      %v1321 = vadd.f32 %v1016, %v1320
      %v1322 = vpop.f32.mrf.mxu0
      %1323 = vmatprep.mubr.bf16.mxu0 0
      %1324 = vmatmul.mubr.bf16.gmra.mxu0 %v1148
      %v1325 = vpop.f32.mrf.mxu0
      %v1326 = vadd.f32 %v1021, %v1325
      %v1327 = vpop.f32.mrf.mxu0
      %v1328 = vpop.f32.mrf.mxu0
      %v1329 = vadd.f32 %v1024, %v1328
      %v1330 = vpop.f32.mrf.mxu0
      %1331 = vmatprep.mubr.bf16.mxu0 0
      %1332 = vmatmul.mubr.bf16.gmra.mxu0 %v1149
      %v1333 = vpop.f32.mrf.mxu0
      %v1334 = vadd.f32 %v1029, %v1333
      %v1335 = vpop.f32.mrf.mxu0
      %v1336 = vpop.f32.mrf.mxu0
      %v1337 = vadd.f32 %v1032, %v1336
      %v1338 = vpop.f32.mrf.mxu0
      %1339 = vmatprep.mubr.bf16.mxu0 0
      %1340 = vmatmul.mubr.bf16.gmra.mxu0 %v1150
      %v1341 = vpop.f32.mrf.mxu0
      %v1342 = vadd.f32 %v1037, %v1341
      %v1343 = vpop.f32.mrf.mxu0
      %v1344 = vpop.f32.mrf.mxu0
      %v1345 = vadd.f32 %v1040, %v1344
      %v1346 = vpop.f32.mrf.mxu0
      %1347 = vmatprep.mubr.bf16.mxu0 0
      %1348 = vmatmul.mubr.bf16.gmra.mxu0 %v1151
      %v1349 = vpop.f32.mrf.mxu0
      %v1350 = vadd.f32 %v1045, %v1349
      %v1351 = vpop.f32.mrf.mxu0
      %v1352 = vpop.f32.mrf.mxu0
      %v1353 = vadd.f32 %v1048, %v1352
      %v1354 = vpop.f32.mrf.mxu0
      %1355 = vmatprep.mubr.bf16.mxu0 0
      %1356 = vmatmul.mubr.bf16.gmra.mxu0 %v1152
      %v1357 = vpop.f32.mrf.mxu0
      %v1358 = vadd.f32 %v1053, %v1357
      %v1359 = vpop.f32.mrf.mxu0
      %v1360 = vpop.f32.mrf.mxu0
      %v1361 = vadd.f32 %v1056, %v1360
      %v1362 = vpop.f32.mrf.mxu0
      %1363 = vmatprep.mubr.bf16.mxu0 0
      %1364 = vmatmul.mubr.bf16.gmra.mxu0 %v1153
      %v1365 = vpop.f32.mrf.mxu0
      %v1366 = vadd.f32 %v1061, %v1365
      %v1367 = vpop.f32.mrf.mxu0
      %v1368 = vpop.f32.mrf.mxu0
      %v1369 = vadd.f32 %v1064, %v1368
      %v1370 = vpop.f32.mrf.mxu0
      %1371 = vmatprep.mubr.bf16.mxu0 0
      %1372 = vmatmul.mubr.bf16.gmra.mxu0 %v1154
      %v1373 = vpop.f32.mrf.mxu0
      %v1374 = vadd.f32 %v1069, %v1373
      %v1375 = vpop.f32.mrf.mxu0
      %v1376 = vpop.f32.mrf.mxu0
      %v1377 = vadd.f32 %v1072, %v1376
      %v1378 = vpop.f32.mrf.mxu0
      %1379 = vdwg.mxu0
      %v1380 = vld [vmem:[%s333] sm:$0xe]
      %v1381 = vld [vmem:[%s333 + $0xc] sm:$0xe]
      %v1382 = vld [vmem:[%s333 + $0x18] sm:$0xe]
      %v1383 = vld [vmem:[%s333 + $0x24] sm:$0xe]
      %v1384 = vld [vmem:[%s333 + $0x30] sm:$0xe]
      %v1385 = vld [vmem:[%s333 + $0x3c] sm:$0xe]
      %v1386 = vld [vmem:[%s333 + $0x48] sm:$0xe]
      %v1387 = vld [vmem:[%s333 + $0x54] sm:$0xe]
      %v1388 = vld [vmem:[%s333 + $0x60] sm:$0xe]
      %v1389 = vld [vmem:[%s333 + $0x6c] sm:$0xe]
      %v1390 = vld [vmem:[%s333 + $0x78] sm:$0xe]
      %v1391 = vld [vmem:[%s333 + $0x84] sm:$0xe]
      %v1392 = vld [vmem:[%s333 + $0x90] sm:$0xe]
      %v1393 = vld [vmem:[%s333 + $0x9c] sm:$0xe]
      %v1394 = vld [vmem:[%s333 + $0xa8] sm:$0xe]
      %v1395 = vld [vmem:[%s333 + $0xb4] sm:$0xe]
      %vm1428 = vcmask 1042432
      %vm1429 = vcmask 1046532
      %vm1430 = vmor %vm1428, %vm1429
      %v1431 = vrot.slane %v1380, 5
      %v1432 = vrot.slane %v1431, 4
      %v1433 = vrot.slane %v335, 5
      %v1434 = vsel %vm1430, %v1432, %v1433
      %v1435 = vrot.slane %v1433, 4
      %v1436 = vrot.slane %v382, 5
      %v1437 = vsel %vm1430, %v1435, %v1436
      %v1438 = vrot.slane %v1381, 5
      %v1439 = vrot.slane %v1438, 4
      %v1440 = vrot.slane %v337, 5
      %v1441 = vsel %vm1430, %v1439, %v1440
      %v1442 = vrot.slane %v1440, 4
      %v1443 = vrot.slane %v383, 5
      %v1444 = vsel %vm1430, %v1442, %v1443
      %v1445 = vrot.slane %v1382, 5
      %v1446 = vrot.slane %v1445, 4
      %v1447 = vrot.slane %v339, 5
      %v1448 = vsel %vm1430, %v1446, %v1447
      %v1449 = vrot.slane %v1447, 4
      %v1450 = vrot.slane %v384, 5
      %v1451 = vsel %vm1430, %v1449, %v1450
      %v1452 = vrot.slane %v1383, 5
      %v1453 = vrot.slane %v1452, 4
      %v1454 = vrot.slane %v341, 5
      %v1455 = vsel %vm1430, %v1453, %v1454
      %v1456 = vrot.slane %v1454, 4
      %v1457 = vrot.slane %v385, 5
      %v1458 = vsel %vm1430, %v1456, %v1457
      %v1459 = vrot.slane %v1384, 5
      %v1460 = vrot.slane %v1459, 4
      %v1461 = vrot.slane %v343, 5
      %v1462 = vsel %vm1430, %v1460, %v1461
      %v1463 = vrot.slane %v1461, 4
      %v1464 = vrot.slane %v386, 5
      %v1465 = vsel %vm1430, %v1463, %v1464
      %v1466 = vrot.slane %v1385, 5
      %v1467 = vrot.slane %v1466, 4
      %v1468 = vrot.slane %v345, 5
      %v1469 = vsel %vm1430, %v1467, %v1468
      %v1470 = vrot.slane %v1468, 4
      %v1471 = vrot.slane %v387, 5
      %v1472 = vsel %vm1430, %v1470, %v1471
      %v1473 = vrot.slane %v1386, 5
      %v1474 = vrot.slane %v1473, 4
      %v1475 = vrot.slane %v347, 5
      %v1476 = vsel %vm1430, %v1474, %v1475
      %v1477 = vrot.slane %v1475, 4
      %v1478 = vrot.slane %v388, 5
      %v1479 = vsel %vm1430, %v1477, %v1478
      %v1480 = vrot.slane %v1387, 5
      %v1481 = vrot.slane %v1480, 4
      %v1482 = vrot.slane %v349, 5
      %v1483 = vsel %vm1430, %v1481, %v1482
      %v1484 = vrot.slane %v1482, 4
      %v1485 = vrot.slane %v389, 5
      %v1486 = vsel %vm1430, %v1484, %v1485
      %v1487 = vrot.slane %v1388, 5
      %v1488 = vrot.slane %v1487, 4
      %v1489 = vrot.slane %v351, 5
      %v1490 = vsel %vm1430, %v1488, %v1489
      %v1491 = vrot.slane %v1489, 4
      %v1492 = vrot.slane %v390, 5
      %v1493 = vsel %vm1430, %v1491, %v1492
      %v1494 = vrot.slane %v1389, 5
      %v1495 = vrot.slane %v1494, 4
      %v1496 = vrot.slane %v353, 5
      %v1497 = vsel %vm1430, %v1495, %v1496
      %v1498 = vrot.slane %v1496, 4
      %v1499 = vrot.slane %v391, 5
      %v1500 = vsel %vm1430, %v1498, %v1499
      %v1501 = vrot.slane %v1390, 5
      %v1502 = vrot.slane %v1501, 4
      %v1503 = vrot.slane %v355, 5
      %v1504 = vsel %vm1430, %v1502, %v1503
      %v1505 = vrot.slane %v1503, 4
      %v1506 = vrot.slane %v392, 5
      %v1507 = vsel %vm1430, %v1505, %v1506
      %v1508 = vrot.slane %v1391, 5
      %v1509 = vrot.slane %v1508, 4
      %v1510 = vrot.slane %v357, 5
      %v1511 = vsel %vm1430, %v1509, %v1510
      %v1512 = vrot.slane %v1510, 4
      %v1513 = vrot.slane %v393, 5
      %v1514 = vsel %vm1430, %v1512, %v1513
      %v1515 = vrot.slane %v1392, 5
      %v1516 = vrot.slane %v1515, 4
      %v1517 = vrot.slane %v359, 5
      %v1518 = vsel %vm1430, %v1516, %v1517
      %v1519 = vrot.slane %v1517, 4
      %v1520 = vrot.slane %v394, 5
      %v1521 = vsel %vm1430, %v1519, %v1520
      %v1522 = vrot.slane %v1393, 5
      %v1523 = vrot.slane %v1522, 4
      %v1524 = vrot.slane %v361, 5
      %v1525 = vsel %vm1430, %v1523, %v1524
      %v1526 = vrot.slane %v1524, 4
      %v1527 = vrot.slane %v395, 5
      %v1528 = vsel %vm1430, %v1526, %v1527
      %v1529 = vrot.slane %v1394, 5
      %v1530 = vrot.slane %v1529, 4
      %v1531 = vrot.slane %v363, 5
      %v1532 = vsel %vm1430, %v1530, %v1531
      %v1533 = vrot.slane %v1531, 4
      %v1534 = vrot.slane %v396, 5
      %v1535 = vsel %vm1430, %v1533, %v1534
      %v1536 = vrot.slane %v1395, 5
      %v1537 = vrot.slane %v1536, 4
      %v1538 = vrot.slane %v365, 5
      %v1539 = vsel %vm1430, %v1537, %v1538
      %v1540 = vrot.slane %v1538, 4
      %v1541 = vrot.slane %v397, 5
      %v1542 = vsel %vm1430, %v1540, %v1541
      %s1543 = scalar_lea.vmem %s1, 128
      %v1544 = vld [vmem:[%s1543] sm:$0xf]
      %v1545 = vld [vmem:[%s1543 + $0x4] sm:$0xf]
      %v1546 = vld [vmem:[%s1543 + $0x8] sm:$0xf]
      %v1547 = vld [vmem:[%s1543 + $0xc] sm:$0xf]
      %v1548 = vld [vmem:[%s1543 + $0x10] sm:$0xf]
      %v1549 = vld [vmem:[%s1543 + $0x14] sm:$0xf]
      %v1550 = vld [vmem:[%s1543 + $0x18] sm:$0xf]
      %v1551 = vld [vmem:[%s1543 + $0x1c] sm:$0xf]
      %v1552 = vld [vmem:[%s1543 + $0x20] sm:$0xf]
      %v1553 = vld [vmem:[%s1543 + $0x24] sm:$0xf]
      %v1554 = vld [vmem:[%s1543 + $0x28] sm:$0xf]
      %v1555 = vld [vmem:[%s1543 + $0x2c] sm:$0xf]
      %v1556 = vld [vmem:[%s1543 + $0x30] sm:$0xf]
      %v1557 = vld [vmem:[%s1543 + $0x34] sm:$0xf]
      %v1558 = vld [vmem:[%s1543 + $0x38] sm:$0xf]
      %v1559 = vld [vmem:[%s1543 + $0x3c] sm:$0xf]
      %v1560 = vunpack.c.l.b16 %v1434
      %v1561 = vunpack.c.l.b16 %v1437
      %v1562 = vunpack.c.l.b16 %v1441
      %v1563 = vunpack.c.l.b16 %v1444
      %v1564 = vunpack.c.l.b16 %v1448
      %v1565 = vunpack.c.l.b16 %v1451
      %v1566 = vunpack.c.l.b16 %v1455
      %v1567 = vunpack.c.l.b16 %v1458
      %v1568 = vunpack.c.l.b16 %v1462
      %v1569 = vunpack.c.l.b16 %v1465
      %v1570 = vunpack.c.l.b16 %v1469
      %v1571 = vunpack.c.l.b16 %v1472
      %v1572 = vunpack.c.l.b16 %v1476
      %v1573 = vunpack.c.l.b16 %v1479
      %v1574 = vunpack.c.l.b16 %v1483
      %v1575 = vunpack.c.l.b16 %v1486
      %v1576 = vunpack.c.l.b16 %v1490
      %v1577 = vunpack.c.l.b16 %v1493
      %v1578 = vunpack.c.l.b16 %v1497
      %v1579 = vunpack.c.l.b16 %v1500
      %v1580 = vunpack.c.l.b16 %v1504
      %v1581 = vunpack.c.l.b16 %v1507
      %v1582 = vunpack.c.l.b16 %v1511
      %v1583 = vunpack.c.l.b16 %v1514
      %v1584 = vunpack.c.l.b16 %v1518
      %v1585 = vunpack.c.l.b16 %v1521
      %v1586 = vunpack.c.l.b16 %v1525
      %v1587 = vunpack.c.l.b16 %v1528
      %v1588 = vunpack.c.l.b16 %v1532
      %v1589 = vunpack.c.l.b16 %v1535
      %v1590 = vunpack.c.l.b16 %v1539
      %v1591 = vunpack.c.l.b16 %v1542
      %v1592 = vpack.c.b16 %v1561, %v1560
      %v1593 = vpack.c.b16 %v1563, %v1562
      %v1594 = vpack.c.b16 %v1565, %v1564
      %v1595 = vpack.c.b16 %v1567, %v1566
      %v1596 = vpack.c.b16 %v1569, %v1568
      %v1597 = vpack.c.b16 %v1571, %v1570
      %v1598 = vpack.c.b16 %v1573, %v1572
      %v1599 = vpack.c.b16 %v1575, %v1574
      %v1600 = vpack.c.b16 %v1577, %v1576
      %v1601 = vpack.c.b16 %v1579, %v1578
      %v1602 = vpack.c.b16 %v1581, %v1580
      %v1603 = vpack.c.b16 %v1583, %v1582
      %v1604 = vpack.c.b16 %v1585, %v1584
      %v1605 = vpack.c.b16 %v1587, %v1586
      %v1606 = vpack.c.b16 %v1589, %v1588
      %v1607 = vpack.c.b16 %v1591, %v1590
      %v1640 = vunpack.c.l.b16 %v1544
      %v1641 = vunpack.c.l.b16 %v1545
      %v1642 = vunpack.c.l.b16 %v1546
      %v1643 = vunpack.c.l.b16 %v1547
      %v1644 = vunpack.c.l.b16 %v1548
      %v1645 = vunpack.c.l.b16 %v1549
      %v1646 = vunpack.c.l.b16 %v1550
      %v1647 = vunpack.c.l.b16 %v1551
      %v1648 = vunpack.c.l.b16 %v1552
      %v1649 = vunpack.c.l.b16 %v1553
      %v1650 = vunpack.c.l.b16 %v1554
      %v1651 = vunpack.c.l.b16 %v1555
      %v1652 = vunpack.c.l.b16 %v1556
      %v1653 = vunpack.c.l.b16 %v1557
      %v1654 = vunpack.c.l.b16 %v1558
      %v1655 = vunpack.c.l.b16 %v1559
      %v1656 = vpack.c.b16 %v1641, %v1640
      %v1657 = vpack.c.b16 %v1643, %v1642
      %v1658 = vpack.c.b16 %v1645, %v1644
      %v1659 = vpack.c.b16 %v1647, %v1646
      %v1660 = vpack.c.b16 %v1649, %v1648
      %v1661 = vpack.c.b16 %v1651, %v1650
      %v1662 = vpack.c.b16 %v1653, %v1652
      %v1663 = vpack.c.b16 %v1655, %v1654
      %1672 = vmatprep.subr.bf16.mxu0 0
      %1673 = vmatpush1.bf16.msra.mxu0 %v1663
      %1674 = vmatprep.subr.bf16.mxu0 0
      %1675 = vmatpush1.bf16.msra.mxu0 %v1662
      %1676 = vmatprep.subr.bf16.mxu0 0
      %1677 = vmatpush1.bf16.msra.mxu0 %v1661
      %1678 = vmatprep.subr.bf16.mxu0 0
      %1679 = vmatpush1.bf16.msra.mxu0 %v1660
      %1680 = vmatprep.subr.bf16.mxu0 0
      %1681 = vmatpush1.bf16.msra.mxu0 %v1659
      %1682 = vmatprep.subr.bf16.mxu0 0
      %1683 = vmatpush1.bf16.msra.mxu0 %v1658
      %1684 = vmatprep.subr.bf16.mxu0 0
      %1685 = vmatpush1.bf16.msra.mxu0 %v1657
      %1686 = vmatprep.subr.bf16.mxu0 0
      %1687 = vmatpush1.bf16.msra.mxu0 %v1656
      %1688 = vmatprep.subr.bf16.mxu0 0
      %1689 = vmatpush2.bf16.msra.mxu0 0
      %1690 = vmatprep.subr.bf16.mxu0 0
      %1691 = vmatpush2.bf16.msra.mxu0 0
      %1692 = vmatprep.subr.bf16.mxu0 0
      %1693 = vmatpush2.bf16.msra.mxu0 0
      %1694 = vmatprep.subr.bf16.mxu0 0
      %1695 = vmatpush2.bf16.msra.mxu0 0
      %1696 = vmatprep.subr.bf16.mxu0 0
      %1697 = vmatpush2.bf16.msra.mxu0 0
      %1698 = vmatprep.subr.bf16.mxu0 0
      %1699 = vmatpush2.bf16.msra.mxu0 0
      %1700 = vmatprep.subr.bf16.mxu0 0
      %1701 = vmatpush2.bf16.msra.mxu0 0
      %1702 = vmatprep.subr.bf16.mxu0 0
      %1703 = vmatpush2.bf16.msra.mxu0 0
      %1704 = vmatprep.mubr.bf16.mxu0 0
      %1705 = vmatmul.mubr.bf16.gmra.mxu0 %v1592
      %v1706 = vpop.f32.mrf.mxu0
      %v1707 = vadd.f32 0.0, %v1706
      %v1708 = vpop.f32.mrf.mxu0
      %v1709 = vpop.f32.mrf.mxu0
      %v1710 = vadd.f32 0.0, %v1709
      %v1711 = vpop.f32.mrf.mxu0
      %1712 = vmatprep.mubr.bf16.mxu0 0
      %1713 = vmatmul.mubr.bf16.gmra.mxu0 %v1593
      %v1714 = vpop.f32.mrf.mxu0
      %v1715 = vadd.f32 0.0, %v1714
      %v1716 = vpop.f32.mrf.mxu0
      %v1717 = vpop.f32.mrf.mxu0
      %v1718 = vadd.f32 0.0, %v1717
      %v1719 = vpop.f32.mrf.mxu0
      %1720 = vmatprep.mubr.bf16.mxu0 0
      %1721 = vmatmul.mubr.bf16.gmra.mxu0 %v1594
      %v1722 = vpop.f32.mrf.mxu0
      %v1723 = vadd.f32 0.0, %v1722
      %v1724 = vpop.f32.mrf.mxu0
      %v1725 = vpop.f32.mrf.mxu0
      %v1726 = vadd.f32 0.0, %v1725
      %v1727 = vpop.f32.mrf.mxu0
      %1728 = vmatprep.mubr.bf16.mxu0 0
      %1729 = vmatmul.mubr.bf16.gmra.mxu0 %v1595
      %v1730 = vpop.f32.mrf.mxu0
      %v1731 = vadd.f32 0.0, %v1730
      %v1732 = vpop.f32.mrf.mxu0
      %v1733 = vpop.f32.mrf.mxu0
      %v1734 = vadd.f32 0.0, %v1733
      %v1735 = vpop.f32.mrf.mxu0
      %1736 = vmatprep.mubr.bf16.mxu0 0
      %1737 = vmatmul.mubr.bf16.gmra.mxu0 %v1596
      %v1738 = vpop.f32.mrf.mxu0
      %v1739 = vadd.f32 0.0, %v1738
      %v1740 = vpop.f32.mrf.mxu0
      %v1741 = vpop.f32.mrf.mxu0
      %v1742 = vadd.f32 0.0, %v1741
      %v1743 = vpop.f32.mrf.mxu0
      %1744 = vmatprep.mubr.bf16.mxu0 0
      %1745 = vmatmul.mubr.bf16.gmra.mxu0 %v1597
      %v1746 = vpop.f32.mrf.mxu0
      %v1747 = vadd.f32 0.0, %v1746
      %v1748 = vpop.f32.mrf.mxu0
      %v1749 = vpop.f32.mrf.mxu0
      %v1750 = vadd.f32 0.0, %v1749
      %v1751 = vpop.f32.mrf.mxu0
      %1752 = vmatprep.mubr.bf16.mxu0 0
      %1753 = vmatmul.mubr.bf16.gmra.mxu0 %v1598
      %v1754 = vpop.f32.mrf.mxu0
      %v1755 = vadd.f32 0.0, %v1754
      %v1756 = vpop.f32.mrf.mxu0
      %v1757 = vpop.f32.mrf.mxu0
      %v1758 = vadd.f32 0.0, %v1757
      %v1759 = vpop.f32.mrf.mxu0
      %1760 = vmatprep.mubr.bf16.mxu0 0
      %1761 = vmatmul.mubr.bf16.gmra.mxu0 %v1599
      %v1762 = vpop.f32.mrf.mxu0
      %v1763 = vadd.f32 0.0, %v1762
      %v1764 = vpop.f32.mrf.mxu0
      %v1765 = vpop.f32.mrf.mxu0
      %v1766 = vadd.f32 0.0, %v1765
      %v1767 = vpop.f32.mrf.mxu0
      %1768 = vmatprep.mubr.bf16.mxu0 0
      %1769 = vmatmul.mubr.bf16.gmra.mxu0 %v1600
      %v1770 = vpop.f32.mrf.mxu0
      %v1771 = vadd.f32 0.0, %v1770
      %v1772 = vpop.f32.mrf.mxu0
      %v1773 = vpop.f32.mrf.mxu0
      %v1774 = vadd.f32 0.0, %v1773
      %v1775 = vpop.f32.mrf.mxu0
      %1776 = vmatprep.mubr.bf16.mxu0 0
      %1777 = vmatmul.mubr.bf16.gmra.mxu0 %v1601
      %v1778 = vpop.f32.mrf.mxu0
      %v1779 = vadd.f32 0.0, %v1778
      %v1780 = vpop.f32.mrf.mxu0
      %v1781 = vpop.f32.mrf.mxu0
      %v1782 = vadd.f32 0.0, %v1781
      %v1783 = vpop.f32.mrf.mxu0
      %1784 = vmatprep.mubr.bf16.mxu0 0
      %1785 = vmatmul.mubr.bf16.gmra.mxu0 %v1602
      %v1786 = vpop.f32.mrf.mxu0
      %v1787 = vadd.f32 0.0, %v1786
      %v1788 = vpop.f32.mrf.mxu0
      %v1789 = vpop.f32.mrf.mxu0
      %v1790 = vadd.f32 0.0, %v1789
      %v1791 = vpop.f32.mrf.mxu0
      %1792 = vmatprep.mubr.bf16.mxu0 0
      %1793 = vmatmul.mubr.bf16.gmra.mxu0 %v1603
      %v1794 = vpop.f32.mrf.mxu0
      %v1795 = vadd.f32 0.0, %v1794
      %v1796 = vpop.f32.mrf.mxu0
      %v1797 = vpop.f32.mrf.mxu0
      %v1798 = vadd.f32 0.0, %v1797
      %v1799 = vpop.f32.mrf.mxu0
      %1800 = vmatprep.mubr.bf16.mxu0 0
      %1801 = vmatmul.mubr.bf16.gmra.mxu0 %v1604
      %v1802 = vpop.f32.mrf.mxu0
      %v1803 = vadd.f32 0.0, %v1802
      %v1804 = vpop.f32.mrf.mxu0
      %v1805 = vpop.f32.mrf.mxu0
      %v1806 = vadd.f32 0.0, %v1805
      %v1807 = vpop.f32.mrf.mxu0
      %1808 = vmatprep.mubr.bf16.mxu0 0
      %1809 = vmatmul.mubr.bf16.gmra.mxu0 %v1605
      %v1810 = vpop.f32.mrf.mxu0
      %v1811 = vadd.f32 0.0, %v1810
      %v1812 = vpop.f32.mrf.mxu0
      %v1813 = vpop.f32.mrf.mxu0
      %v1814 = vadd.f32 0.0, %v1813
      %v1815 = vpop.f32.mrf.mxu0
      %1816 = vmatprep.mubr.bf16.mxu0 0
      %1817 = vmatmul.mubr.bf16.gmra.mxu0 %v1606
      %v1818 = vpop.f32.mrf.mxu0
      %v1819 = vadd.f32 0.0, %v1818
      %v1820 = vpop.f32.mrf.mxu0
      %v1821 = vpop.f32.mrf.mxu0
      %v1822 = vadd.f32 0.0, %v1821
      %v1823 = vpop.f32.mrf.mxu0
      %1824 = vmatprep.mubr.bf16.mxu0 0
      %1825 = vmatmul.mubr.bf16.gmra.mxu0 %v1607
      %v1826 = vpop.f32.mrf.mxu0
      %v1827 = vadd.f32 0.0, %v1826
      %v1828 = vpop.f32.mrf.mxu0
      %v1829 = vpop.f32.mrf.mxu0
      %v1830 = vadd.f32 0.0, %v1829
      %v1831 = vpop.f32.mrf.mxu0
      %1832 = vdwg.mxu0
      %v1833 = vadd.f32 %v1254, %v1707
      %v1834 = vadd.f32 %v1257, %v1710
      %v1835 = vadd.f32 %v1262, %v1715
      %v1836 = vadd.f32 %v1265, %v1718
      %v1837 = vadd.f32 %v1270, %v1723
      %v1838 = vadd.f32 %v1273, %v1726
      %v1839 = vadd.f32 %v1278, %v1731
      %v1840 = vadd.f32 %v1281, %v1734
      %v1841 = vadd.f32 %v1286, %v1739
      %v1842 = vadd.f32 %v1289, %v1742
      %v1843 = vadd.f32 %v1294, %v1747
      %v1844 = vadd.f32 %v1297, %v1750
      %v1845 = vadd.f32 %v1302, %v1755
      %v1846 = vadd.f32 %v1305, %v1758
      %v1847 = vadd.f32 %v1310, %v1763
      %v1848 = vadd.f32 %v1313, %v1766
      %v1849 = vadd.f32 %v1318, %v1771
      %v1850 = vadd.f32 %v1321, %v1774
      %v1851 = vadd.f32 %v1326, %v1779
      %v1852 = vadd.f32 %v1329, %v1782
      %v1853 = vadd.f32 %v1334, %v1787
      %v1854 = vadd.f32 %v1337, %v1790
      %v1855 = vadd.f32 %v1342, %v1795
      %v1856 = vadd.f32 %v1345, %v1798
      %v1857 = vadd.f32 %v1350, %v1803
      %v1858 = vadd.f32 %v1353, %v1806
      %v1859 = vadd.f32 %v1358, %v1811
      %v1860 = vadd.f32 %v1361, %v1814
      %v1861 = vadd.f32 %v1366, %v1819
      %v1862 = vadd.f32 %v1369, %v1822
      %v1863 = vadd.f32 %v1374, %v1827
      %v1864 = vadd.f32 %v1377, %v1830
      %s1865 = sadd.s32 %s324, 1
      %s1866 = smul.u32 %s1865, 3
      %s1867 = smul.addr %s1866, 4
      %s1868 = scalar_lea.vmem %s292, %s1867
      %v1869 = vld [vmem:[%s1868] sm:$0xf]
      %v1870 = vld [vmem:[%s1868 + $0x4] sm:$0xf]
      %v1871 = vld [vmem:[%s1868 + $0xc] sm:$0xf]
      %v1872 = vld [vmem:[%s1868 + $0x10] sm:$0xf]
      %v1873 = vld [vmem:[%s1868 + $0x18] sm:$0xf]
      %v1874 = vld [vmem:[%s1868 + $0x1c] sm:$0xf]
      %v1875 = vld [vmem:[%s1868 + $0x24] sm:$0xf]
      %v1876 = vld [vmem:[%s1868 + $0x28] sm:$0xf]
      %v1877 = vld [vmem:[%s1868 + $0x30] sm:$0xf]
      %v1878 = vld [vmem:[%s1868 + $0x34] sm:$0xf]
      %v1879 = vld [vmem:[%s1868 + $0x3c] sm:$0xf]
      %v1880 = vld [vmem:[%s1868 + $0x40] sm:$0xf]
      %v1881 = vld [vmem:[%s1868 + $0x48] sm:$0xf]
      %v1882 = vld [vmem:[%s1868 + $0x4c] sm:$0xf]
      %v1883 = vld [vmem:[%s1868 + $0x54] sm:$0xf]
      %v1884 = vld [vmem:[%s1868 + $0x58] sm:$0xf]
      %v1885 = vld [vmem:[%s1868 + $0x60] sm:$0xf]
      %v1886 = vld [vmem:[%s1868 + $0x64] sm:$0xf]
      %v1887 = vld [vmem:[%s1868 + $0x6c] sm:$0xf]
      %v1888 = vld [vmem:[%s1868 + $0x70] sm:$0xf]
      %v1889 = vld [vmem:[%s1868 + $0x78] sm:$0xf]
      %v1890 = vld [vmem:[%s1868 + $0x7c] sm:$0xf]
      %v1891 = vld [vmem:[%s1868 + $0x84] sm:$0xf]
      %v1892 = vld [vmem:[%s1868 + $0x88] sm:$0xf]
      %v1893 = vld [vmem:[%s1868 + $0x90] sm:$0xf]
      %v1894 = vld [vmem:[%s1868 + $0x94] sm:$0xf]
      %v1895 = vld [vmem:[%s1868 + $0x9c] sm:$0xf]
      %v1896 = vld [vmem:[%s1868 + $0xa0] sm:$0xf]
      %v1897 = vld [vmem:[%s1868 + $0xa8] sm:$0xf]
      %v1898 = vld [vmem:[%s1868 + $0xac] sm:$0xf]
      %v1899 = vld [vmem:[%s1868 + $0xb4] sm:$0xf]
      %v1900 = vld [vmem:[%s1868 + $0xb8] sm:$0xf]
      %s1901 = scalar_lea.vmem %s1, 192
      %v1902 = vld [vmem:[%s1901] sm:$0xf]
      %v1903 = vld [vmem:[%s1901 + $0x4] sm:$0xf]
      %v1904 = vld [vmem:[%s1901 + $0x8] sm:$0xf]
      %v1905 = vld [vmem:[%s1901 + $0xc] sm:$0xf]
      %v1906 = vld [vmem:[%s1901 + $0x10] sm:$0xf]
      %v1907 = vld [vmem:[%s1901 + $0x14] sm:$0xf]
      %v1908 = vld [vmem:[%s1901 + $0x18] sm:$0xf]
      %v1909 = vld [vmem:[%s1901 + $0x1c] sm:$0xf]
      %v1910 = vld [vmem:[%s1901 + $0x20] sm:$0xf]
      %v1911 = vld [vmem:[%s1901 + $0x24] sm:$0xf]
      %v1912 = vld [vmem:[%s1901 + $0x28] sm:$0xf]
      %v1913 = vld [vmem:[%s1901 + $0x2c] sm:$0xf]
      %v1914 = vld [vmem:[%s1901 + $0x30] sm:$0xf]
      %v1915 = vld [vmem:[%s1901 + $0x34] sm:$0xf]
      %v1916 = vld [vmem:[%s1901 + $0x38] sm:$0xf]
      %v1917 = vld [vmem:[%s1901 + $0x3c] sm:$0xf]
      %v1950 = vunpack.c.l.b16 %v1869
      %v1951 = vunpack.c.l.b16 %v1870
      %v1952 = vunpack.c.l.b16 %v1871
      %v1953 = vunpack.c.l.b16 %v1872
      %v1954 = vunpack.c.l.b16 %v1873
      %v1955 = vunpack.c.l.b16 %v1874
      %v1956 = vunpack.c.l.b16 %v1875
      %v1957 = vunpack.c.l.b16 %v1876
      %v1958 = vunpack.c.l.b16 %v1877
      %v1959 = vunpack.c.l.b16 %v1878
      %v1960 = vunpack.c.l.b16 %v1879
      %v1961 = vunpack.c.l.b16 %v1880
      %v1962 = vunpack.c.l.b16 %v1881
      %v1963 = vunpack.c.l.b16 %v1882
      %v1964 = vunpack.c.l.b16 %v1883
      %v1965 = vunpack.c.l.b16 %v1884
      %v1966 = vunpack.c.l.b16 %v1885
      %v1967 = vunpack.c.l.b16 %v1886
      %v1968 = vunpack.c.l.b16 %v1887
      %v1969 = vunpack.c.l.b16 %v1888
      %v1970 = vunpack.c.l.b16 %v1889
      %v1971 = vunpack.c.l.b16 %v1890
      %v1972 = vunpack.c.l.b16 %v1891
      %v1973 = vunpack.c.l.b16 %v1892
      %v1974 = vunpack.c.l.b16 %v1893
      %v1975 = vunpack.c.l.b16 %v1894
      %v1976 = vunpack.c.l.b16 %v1895
      %v1977 = vunpack.c.l.b16 %v1896
      %v1978 = vunpack.c.l.b16 %v1897
      %v1979 = vunpack.c.l.b16 %v1898
      %v1980 = vunpack.c.l.b16 %v1899
      %v1981 = vunpack.c.l.b16 %v1900
      %v1982 = vpack.c.b16 %v1951, %v1950
      %v1983 = vpack.c.b16 %v1953, %v1952
      %v1984 = vpack.c.b16 %v1955, %v1954
      %v1985 = vpack.c.b16 %v1957, %v1956
      %v1986 = vpack.c.b16 %v1959, %v1958
      %v1987 = vpack.c.b16 %v1961, %v1960
      %v1988 = vpack.c.b16 %v1963, %v1962
      %v1989 = vpack.c.b16 %v1965, %v1964
      %v1990 = vpack.c.b16 %v1967, %v1966
      %v1991 = vpack.c.b16 %v1969, %v1968
      %v1992 = vpack.c.b16 %v1971, %v1970
      %v1993 = vpack.c.b16 %v1973, %v1972
      %v1994 = vpack.c.b16 %v1975, %v1974
      %v1995 = vpack.c.b16 %v1977, %v1976
      %v1996 = vpack.c.b16 %v1979, %v1978
      %v1997 = vpack.c.b16 %v1981, %v1980
      %v2030 = vunpack.c.l.b16 %v1902
      %v2031 = vunpack.c.l.b16 %v1903
      %v2032 = vunpack.c.l.b16 %v1904
      %v2033 = vunpack.c.l.b16 %v1905
      %v2034 = vunpack.c.l.b16 %v1906
      %v2035 = vunpack.c.l.b16 %v1907
      %v2036 = vunpack.c.l.b16 %v1908
      %v2037 = vunpack.c.l.b16 %v1909
      %v2038 = vunpack.c.l.b16 %v1910
      %v2039 = vunpack.c.l.b16 %v1911
      %v2040 = vunpack.c.l.b16 %v1912
      %v2041 = vunpack.c.l.b16 %v1913
      %v2042 = vunpack.c.l.b16 %v1914
      %v2043 = vunpack.c.l.b16 %v1915
      %v2044 = vunpack.c.l.b16 %v1916
      %v2045 = vunpack.c.l.b16 %v1917
      %v2046 = vpack.c.b16 %v2031, %v2030
      %v2047 = vpack.c.b16 %v2033, %v2032
      %v2048 = vpack.c.b16 %v2035, %v2034
      %v2049 = vpack.c.b16 %v2037, %v2036
      %v2050 = vpack.c.b16 %v2039, %v2038
      %v2051 = vpack.c.b16 %v2041, %v2040
      %v2052 = vpack.c.b16 %v2043, %v2042
      %v2053 = vpack.c.b16 %v2045, %v2044
      %2062 = vmatprep.subr.bf16.mxu0 0
      %2063 = vmatpush1.bf16.msra.mxu0 %v2053
      %2064 = vmatprep.subr.bf16.mxu0 0
      %2065 = vmatpush1.bf16.msra.mxu0 %v2052
      %2066 = vmatprep.subr.bf16.mxu0 0
      %2067 = vmatpush1.bf16.msra.mxu0 %v2051
      %2068 = vmatprep.subr.bf16.mxu0 0
      %2069 = vmatpush1.bf16.msra.mxu0 %v2050
      %2070 = vmatprep.subr.bf16.mxu0 0
      %2071 = vmatpush1.bf16.msra.mxu0 %v2049
      %2072 = vmatprep.subr.bf16.mxu0 0
      %2073 = vmatpush1.bf16.msra.mxu0 %v2048
      %2074 = vmatprep.subr.bf16.mxu0 0
      %2075 = vmatpush1.bf16.msra.mxu0 %v2047
      %2076 = vmatprep.subr.bf16.mxu0 0
      %2077 = vmatpush1.bf16.msra.mxu0 %v2046
      %2078 = vmatprep.subr.bf16.mxu0 0
      %2079 = vmatpush2.bf16.msra.mxu0 0
      %2080 = vmatprep.subr.bf16.mxu0 0
      %2081 = vmatpush2.bf16.msra.mxu0 0
      %2082 = vmatprep.subr.bf16.mxu0 0
      %2083 = vmatpush2.bf16.msra.mxu0 0
      %2084 = vmatprep.subr.bf16.mxu0 0
      %2085 = vmatpush2.bf16.msra.mxu0 0
      %2086 = vmatprep.subr.bf16.mxu0 0
      %2087 = vmatpush2.bf16.msra.mxu0 0
      %2088 = vmatprep.subr.bf16.mxu0 0
      %2089 = vmatpush2.bf16.msra.mxu0 0
      %2090 = vmatprep.subr.bf16.mxu0 0
      %2091 = vmatpush2.bf16.msra.mxu0 0
      %2092 = vmatprep.subr.bf16.mxu0 0
      %2093 = vmatpush2.bf16.msra.mxu0 0
      %2094 = vmatprep.mubr.bf16.mxu0 0
      %2095 = vmatmul.mubr.bf16.gmra.mxu0 %v1982
      %v2096 = vpop.f32.mrf.mxu0
      %v2097 = vadd.f32 0.0, %v2096
      %v2098 = vpop.f32.mrf.mxu0
      %v2099 = vpop.f32.mrf.mxu0
      %v2100 = vadd.f32 0.0, %v2099
      %v2101 = vpop.f32.mrf.mxu0
      %2102 = vmatprep.mubr.bf16.mxu0 0
      %2103 = vmatmul.mubr.bf16.gmra.mxu0 %v1983
      %v2104 = vpop.f32.mrf.mxu0
      %v2105 = vadd.f32 0.0, %v2104
      %v2106 = vpop.f32.mrf.mxu0
      %v2107 = vpop.f32.mrf.mxu0
      %v2108 = vadd.f32 0.0, %v2107
      %v2109 = vpop.f32.mrf.mxu0
      %2110 = vmatprep.mubr.bf16.mxu0 0
      %2111 = vmatmul.mubr.bf16.gmra.mxu0 %v1984
      %v2112 = vpop.f32.mrf.mxu0
      %v2113 = vadd.f32 0.0, %v2112
      %v2114 = vpop.f32.mrf.mxu0
      %v2115 = vpop.f32.mrf.mxu0
      %v2116 = vadd.f32 0.0, %v2115
      %v2117 = vpop.f32.mrf.mxu0
      %2118 = vmatprep.mubr.bf16.mxu0 0
      %2119 = vmatmul.mubr.bf16.gmra.mxu0 %v1985
      %v2120 = vpop.f32.mrf.mxu0
      %v2121 = vadd.f32 0.0, %v2120
      %v2122 = vpop.f32.mrf.mxu0
      %v2123 = vpop.f32.mrf.mxu0
      %v2124 = vadd.f32 0.0, %v2123
      %v2125 = vpop.f32.mrf.mxu0
      %2126 = vmatprep.mubr.bf16.mxu0 0
      %2127 = vmatmul.mubr.bf16.gmra.mxu0 %v1986
      %v2128 = vpop.f32.mrf.mxu0
      %v2129 = vadd.f32 0.0, %v2128
      %v2130 = vpop.f32.mrf.mxu0
      %v2131 = vpop.f32.mrf.mxu0
      %v2132 = vadd.f32 0.0, %v2131
      %v2133 = vpop.f32.mrf.mxu0
      %2134 = vmatprep.mubr.bf16.mxu0 0
      %2135 = vmatmul.mubr.bf16.gmra.mxu0 %v1987
      %v2136 = vpop.f32.mrf.mxu0
      %v2137 = vadd.f32 0.0, %v2136
      %v2138 = vpop.f32.mrf.mxu0
      %v2139 = vpop.f32.mrf.mxu0
      %v2140 = vadd.f32 0.0, %v2139
      %v2141 = vpop.f32.mrf.mxu0
      %2142 = vmatprep.mubr.bf16.mxu0 0
      %2143 = vmatmul.mubr.bf16.gmra.mxu0 %v1988
      %v2144 = vpop.f32.mrf.mxu0
      %v2145 = vadd.f32 0.0, %v2144
      %v2146 = vpop.f32.mrf.mxu0
      %v2147 = vpop.f32.mrf.mxu0
      %v2148 = vadd.f32 0.0, %v2147
      %v2149 = vpop.f32.mrf.mxu0
      %2150 = vmatprep.mubr.bf16.mxu0 0
      %2151 = vmatmul.mubr.bf16.gmra.mxu0 %v1989
      %v2152 = vpop.f32.mrf.mxu0
      %v2153 = vadd.f32 0.0, %v2152
      %v2154 = vpop.f32.mrf.mxu0
      %v2155 = vpop.f32.mrf.mxu0
      %v2156 = vadd.f32 0.0, %v2155
      %v2157 = vpop.f32.mrf.mxu0
      %2158 = vmatprep.mubr.bf16.mxu0 0
      %2159 = vmatmul.mubr.bf16.gmra.mxu0 %v1990
      %v2160 = vpop.f32.mrf.mxu0
      %v2161 = vadd.f32 0.0, %v2160
      %v2162 = vpop.f32.mrf.mxu0
      %v2163 = vpop.f32.mrf.mxu0
      %v2164 = vadd.f32 0.0, %v2163
      %v2165 = vpop.f32.mrf.mxu0
      %2166 = vmatprep.mubr.bf16.mxu0 0
      %2167 = vmatmul.mubr.bf16.gmra.mxu0 %v1991
      %v2168 = vpop.f32.mrf.mxu0
      %v2169 = vadd.f32 0.0, %v2168
      %v2170 = vpop.f32.mrf.mxu0
      %v2171 = vpop.f32.mrf.mxu0
      %v2172 = vadd.f32 0.0, %v2171
      %v2173 = vpop.f32.mrf.mxu0
      %2174 = vmatprep.mubr.bf16.mxu0 0
      %2175 = vmatmul.mubr.bf16.gmra.mxu0 %v1992
      %v2176 = vpop.f32.mrf.mxu0
      %v2177 = vadd.f32 0.0, %v2176
      %v2178 = vpop.f32.mrf.mxu0
      %v2179 = vpop.f32.mrf.mxu0
      %v2180 = vadd.f32 0.0, %v2179
      %v2181 = vpop.f32.mrf.mxu0
      %2182 = vmatprep.mubr.bf16.mxu0 0
      %2183 = vmatmul.mubr.bf16.gmra.mxu0 %v1993
      %v2184 = vpop.f32.mrf.mxu0
      %v2185 = vadd.f32 0.0, %v2184
      %v2186 = vpop.f32.mrf.mxu0
      %v2187 = vpop.f32.mrf.mxu0
      %v2188 = vadd.f32 0.0, %v2187
      %v2189 = vpop.f32.mrf.mxu0
      %2190 = vmatprep.mubr.bf16.mxu0 0
      %2191 = vmatmul.mubr.bf16.gmra.mxu0 %v1994
      %v2192 = vpop.f32.mrf.mxu0
      %v2193 = vadd.f32 0.0, %v2192
      %v2194 = vpop.f32.mrf.mxu0
      %v2195 = vpop.f32.mrf.mxu0
      %v2196 = vadd.f32 0.0, %v2195
      %v2197 = vpop.f32.mrf.mxu0
      %2198 = vmatprep.mubr.bf16.mxu0 0
      %2199 = vmatmul.mubr.bf16.gmra.mxu0 %v1995
      %v2200 = vpop.f32.mrf.mxu0
      %v2201 = vadd.f32 0.0, %v2200
      %v2202 = vpop.f32.mrf.mxu0
      %v2203 = vpop.f32.mrf.mxu0
      %v2204 = vadd.f32 0.0, %v2203
      %v2205 = vpop.f32.mrf.mxu0
      %2206 = vmatprep.mubr.bf16.mxu0 0
      %2207 = vmatmul.mubr.bf16.gmra.mxu0 %v1996
      %v2208 = vpop.f32.mrf.mxu0
      %v2209 = vadd.f32 0.0, %v2208
      %v2210 = vpop.f32.mrf.mxu0
      %v2211 = vpop.f32.mrf.mxu0
      %v2212 = vadd.f32 0.0, %v2211
      %v2213 = vpop.f32.mrf.mxu0
      %2214 = vmatprep.mubr.bf16.mxu0 0
      %2215 = vmatmul.mubr.bf16.gmra.mxu0 %v1997
      %v2216 = vpop.f32.mrf.mxu0
      %v2217 = vadd.f32 0.0, %v2216
      %v2218 = vpop.f32.mrf.mxu0
      %v2219 = vpop.f32.mrf.mxu0
      %v2220 = vadd.f32 0.0, %v2219
      %v2221 = vpop.f32.mrf.mxu0
      %2222 = vdwg.mxu0
      %v2223 = vadd.f32 %v1833, %v2097
      %v2224 = vadd.f32 %v1834, %v2100
      %v2225 = vadd.f32 %v1835, %v2105
      %v2226 = vadd.f32 %v1836, %v2108
      %v2227 = vadd.f32 %v1837, %v2113
      %v2228 = vadd.f32 %v1838, %v2116
      %v2229 = vadd.f32 %v1839, %v2121
      %v2230 = vadd.f32 %v1840, %v2124
      %v2231 = vadd.f32 %v1841, %v2129
      %v2232 = vadd.f32 %v1842, %v2132
      %v2233 = vadd.f32 %v1843, %v2137
      %v2234 = vadd.f32 %v1844, %v2140
      %v2235 = vadd.f32 %v1845, %v2145
      %v2236 = vadd.f32 %v1846, %v2148
      %v2237 = vadd.f32 %v1847, %v2153
      %v2238 = vadd.f32 %v1848, %v2156
      %v2239 = vadd.f32 %v1849, %v2161
      %v2240 = vadd.f32 %v1850, %v2164
      %v2241 = vadd.f32 %v1851, %v2169
      %v2242 = vadd.f32 %v1852, %v2172
      %v2243 = vadd.f32 %v1853, %v2177
      %v2244 = vadd.f32 %v1854, %v2180
      %v2245 = vadd.f32 %v1855, %v2185
      %v2246 = vadd.f32 %v1856, %v2188
      %v2247 = vadd.f32 %v1857, %v2193
      %v2248 = vadd.f32 %v1858, %v2196
      %v2249 = vadd.f32 %v1859, %v2201
      %v2250 = vadd.f32 %v1860, %v2204
      %v2251 = vadd.f32 %v1861, %v2209
      %v2252 = vadd.f32 %v1862, %v2212
      %v2253 = vadd.f32 %v1863, %v2217
      %v2254 = vadd.f32 %v1864, %v2220
      %v2255 = vld [vmem:[%s1868] sm:$0xf]
      %v2256 = vld [vmem:[%s1868 + $0x4] sm:$0xf]
      %v2257 = vld [vmem:[%s1868 + $0x8] sm:$0x1]
      %v2258 = vld [vmem:[%s1868 + $0xc] sm:$0xf]
      %v2259 = vld [vmem:[%s1868 + $0x10] sm:$0xf]
      %v2260 = vld [vmem:[%s1868 + $0x14] sm:$0x1]
      %v2261 = vld [vmem:[%s1868 + $0x18] sm:$0xf]
      %v2262 = vld [vmem:[%s1868 + $0x1c] sm:$0xf]
      %v2263 = vld [vmem:[%s1868 + $0x20] sm:$0x1]
      %v2264 = vld [vmem:[%s1868 + $0x24] sm:$0xf]
      %v2265 = vld [vmem:[%s1868 + $0x28] sm:$0xf]
      %v2266 = vld [vmem:[%s1868 + $0x2c] sm:$0x1]
      %v2267 = vld [vmem:[%s1868 + $0x30] sm:$0xf]
      %v2268 = vld [vmem:[%s1868 + $0x34] sm:$0xf]
      %v2269 = vld [vmem:[%s1868 + $0x38] sm:$0x1]
      %v2270 = vld [vmem:[%s1868 + $0x3c] sm:$0xf]
      %v2271 = vld [vmem:[%s1868 + $0x40] sm:$0xf]
      %v2272 = vld [vmem:[%s1868 + $0x44] sm:$0x1]
      %v2273 = vld [vmem:[%s1868 + $0x48] sm:$0xf]
      %v2274 = vld [vmem:[%s1868 + $0x4c] sm:$0xf]
      %v2275 = vld [vmem:[%s1868 + $0x50] sm:$0x1]
      %v2276 = vld [vmem:[%s1868 + $0x54] sm:$0xf]
      %v2277 = vld [vmem:[%s1868 + $0x58] sm:$0xf]
      %v2278 = vld [vmem:[%s1868 + $0x5c] sm:$0x1]
      %v2279 = vld [vmem:[%s1868 + $0x60] sm:$0xf]
      %v2280 = vld [vmem:[%s1868 + $0x64] sm:$0xf]
      %v2281 = vld [vmem:[%s1868 + $0x68] sm:$0x1]
      %v2282 = vld [vmem:[%s1868 + $0x6c] sm:$0xf]
      %v2283 = vld [vmem:[%s1868 + $0x70] sm:$0xf]
      %v2284 = vld [vmem:[%s1868 + $0x74] sm:$0x1]
      %v2285 = vld [vmem:[%s1868 + $0x78] sm:$0xf]
      %v2286 = vld [vmem:[%s1868 + $0x7c] sm:$0xf]
      %v2287 = vld [vmem:[%s1868 + $0x80] sm:$0x1]
      %v2288 = vld [vmem:[%s1868 + $0x84] sm:$0xf]
      %v2289 = vld [vmem:[%s1868 + $0x88] sm:$0xf]
      %v2290 = vld [vmem:[%s1868 + $0x8c] sm:$0x1]
      %v2291 = vld [vmem:[%s1868 + $0x90] sm:$0xf]
      %v2292 = vld [vmem:[%s1868 + $0x94] sm:$0xf]
      %v2293 = vld [vmem:[%s1868 + $0x98] sm:$0x1]
      %v2294 = vld [vmem:[%s1868 + $0x9c] sm:$0xf]
      %v2295 = vld [vmem:[%s1868 + $0xa0] sm:$0xf]
      %v2296 = vld [vmem:[%s1868 + $0xa4] sm:$0x1]
      %v2297 = vld [vmem:[%s1868 + $0xa8] sm:$0xf]
      %v2298 = vld [vmem:[%s1868 + $0xac] sm:$0xf]
      %v2299 = vld [vmem:[%s1868 + $0xb0] sm:$0x1]
      %v2300 = vld [vmem:[%s1868 + $0xb4] sm:$0xf]
      %v2301 = vld [vmem:[%s1868 + $0xb8] sm:$0xf]
      %v2302 = vld [vmem:[%s1868 + $0xbc] sm:$0x1]
      %v2304 = vshrl.u32 %v2255, 16
      %v2306 = vrot.slane %v2304, 4
      %v2307 = vshll.u32 %v2255, 16
      %v2309 = vrot.slane %v2307, 5
      %v2310 = vor.u32 %v2306, %v2309
      %v2311 = vrot.slane %v2310, 4
      %v2313 = vshll.u32 %v2256, 16
      %v2315 = vrot.slane %v2313, 5
      %v2316 = vsel %vm400, %v2311, %v2315
      %v2317 = vshrl.u32 %v2256, 16
      %v2319 = vrot.slane %v2317, 4
      %v2320 = vor.u32 %v2319, %v2315
      %v2321 = vrot.slane %v2320, 4
      %v2323 = vshll.u32 %v2257, 16
      %v2325 = vrot.slane %v2323, 5
      %v2326 = vsel %vm400, %v2321, %v2325
      %v2328 = vshrl.u32 %v2258, 16
      %v2330 = vrot.slane %v2328, 4
      %v2331 = vshll.u32 %v2258, 16
      %v2333 = vrot.slane %v2331, 5
      %v2334 = vor.u32 %v2330, %v2333
      %v2335 = vrot.slane %v2334, 4
      %v2337 = vshll.u32 %v2259, 16
      %v2339 = vrot.slane %v2337, 5
      %v2340 = vsel %vm400, %v2335, %v2339
      %v2341 = vshrl.u32 %v2259, 16
      %v2343 = vrot.slane %v2341, 4
      %v2344 = vor.u32 %v2343, %v2339
      %v2345 = vrot.slane %v2344, 4
      %v2347 = vshll.u32 %v2260, 16
      %v2349 = vrot.slane %v2347, 5
      %v2350 = vsel %vm400, %v2345, %v2349
      %v2352 = vshrl.u32 %v2261, 16
      %v2354 = vrot.slane %v2352, 4
      %v2355 = vshll.u32 %v2261, 16
      %v2357 = vrot.slane %v2355, 5
      %v2358 = vor.u32 %v2354, %v2357
      %v2359 = vrot.slane %v2358, 4
      %v2361 = vshll.u32 %v2262, 16
      %v2363 = vrot.slane %v2361, 5
      %v2364 = vsel %vm400, %v2359, %v2363
      %v2365 = vshrl.u32 %v2262, 16
      %v2367 = vrot.slane %v2365, 4
      %v2368 = vor.u32 %v2367, %v2363
      %v2369 = vrot.slane %v2368, 4
      %v2371 = vshll.u32 %v2263, 16
      %v2373 = vrot.slane %v2371, 5
      %v2374 = vsel %vm400, %v2369, %v2373
      %v2376 = vshrl.u32 %v2264, 16
      %v2378 = vrot.slane %v2376, 4
      %v2379 = vshll.u32 %v2264, 16
      %v2381 = vrot.slane %v2379, 5
      %v2382 = vor.u32 %v2378, %v2381
      %v2383 = vrot.slane %v2382, 4
      %v2385 = vshll.u32 %v2265, 16
      %v2387 = vrot.slane %v2385, 5
      %v2388 = vsel %vm400, %v2383, %v2387
      %v2389 = vshrl.u32 %v2265, 16
      %v2391 = vrot.slane %v2389, 4
      %v2392 = vor.u32 %v2391, %v2387
      %v2393 = vrot.slane %v2392, 4
      %v2395 = vshll.u32 %v2266, 16
      %v2397 = vrot.slane %v2395, 5
      %v2398 = vsel %vm400, %v2393, %v2397
      %v2400 = vshrl.u32 %v2267, 16
      %v2402 = vrot.slane %v2400, 4
      %v2403 = vshll.u32 %v2267, 16
      %v2405 = vrot.slane %v2403, 5
      %v2406 = vor.u32 %v2402, %v2405
      %v2407 = vrot.slane %v2406, 4
      %v2409 = vshll.u32 %v2268, 16
      %v2411 = vrot.slane %v2409, 5
      %v2412 = vsel %vm400, %v2407, %v2411
      %v2413 = vshrl.u32 %v2268, 16
      %v2415 = vrot.slane %v2413, 4
      %v2416 = vor.u32 %v2415, %v2411
      %v2417 = vrot.slane %v2416, 4
      %v2419 = vshll.u32 %v2269, 16
      %v2421 = vrot.slane %v2419, 5
      %v2422 = vsel %vm400, %v2417, %v2421
      %v2424 = vshrl.u32 %v2270, 16
      %v2426 = vrot.slane %v2424, 4
      %v2427 = vshll.u32 %v2270, 16
      %v2429 = vrot.slane %v2427, 5
      %v2430 = vor.u32 %v2426, %v2429
      %v2431 = vrot.slane %v2430, 4
      %v2433 = vshll.u32 %v2271, 16
      %v2435 = vrot.slane %v2433, 5
      %v2436 = vsel %vm400, %v2431, %v2435
      %v2437 = vshrl.u32 %v2271, 16
      %v2439 = vrot.slane %v2437, 4
      %v2440 = vor.u32 %v2439, %v2435
      %v2441 = vrot.slane %v2440, 4
      %v2443 = vshll.u32 %v2272, 16
      %v2445 = vrot.slane %v2443, 5
      %v2446 = vsel %vm400, %v2441, %v2445
      %v2448 = vshrl.u32 %v2273, 16
      %v2450 = vrot.slane %v2448, 4
      %v2451 = vshll.u32 %v2273, 16
      %v2453 = vrot.slane %v2451, 5
      %v2454 = vor.u32 %v2450, %v2453
      %v2455 = vrot.slane %v2454, 4
      %v2457 = vshll.u32 %v2274, 16
      %v2459 = vrot.slane %v2457, 5
      %v2460 = vsel %vm400, %v2455, %v2459
      %v2461 = vshrl.u32 %v2274, 16
      %v2463 = vrot.slane %v2461, 4
      %v2464 = vor.u32 %v2463, %v2459
      %v2465 = vrot.slane %v2464, 4
      %v2467 = vshll.u32 %v2275, 16
      %v2469 = vrot.slane %v2467, 5
      %v2470 = vsel %vm400, %v2465, %v2469
      %v2472 = vshrl.u32 %v2276, 16
      %v2474 = vrot.slane %v2472, 4
      %v2475 = vshll.u32 %v2276, 16
      %v2477 = vrot.slane %v2475, 5
      %v2478 = vor.u32 %v2474, %v2477
      %v2479 = vrot.slane %v2478, 4
      %v2481 = vshll.u32 %v2277, 16
      %v2483 = vrot.slane %v2481, 5
      %v2484 = vsel %vm400, %v2479, %v2483
      %v2485 = vshrl.u32 %v2277, 16
      %v2487 = vrot.slane %v2485, 4
      %v2488 = vor.u32 %v2487, %v2483
      %v2489 = vrot.slane %v2488, 4
      %v2491 = vshll.u32 %v2278, 16
      %v2493 = vrot.slane %v2491, 5
      %v2494 = vsel %vm400, %v2489, %v2493
      %v2496 = vshrl.u32 %v2279, 16
      %v2498 = vrot.slane %v2496, 4
      %v2499 = vshll.u32 %v2279, 16
      %v2501 = vrot.slane %v2499, 5
      %v2502 = vor.u32 %v2498, %v2501
      %v2503 = vrot.slane %v2502, 4
      %v2505 = vshll.u32 %v2280, 16
      %v2507 = vrot.slane %v2505, 5
      %v2508 = vsel %vm400, %v2503, %v2507
      %v2509 = vshrl.u32 %v2280, 16
      %v2511 = vrot.slane %v2509, 4
      %v2512 = vor.u32 %v2511, %v2507
      %v2513 = vrot.slane %v2512, 4
      %v2515 = vshll.u32 %v2281, 16
      %v2517 = vrot.slane %v2515, 5
      %v2518 = vsel %vm400, %v2513, %v2517
      %v2520 = vshrl.u32 %v2282, 16
      %v2522 = vrot.slane %v2520, 4
      %v2523 = vshll.u32 %v2282, 16
      %v2525 = vrot.slane %v2523, 5
      %v2526 = vor.u32 %v2522, %v2525
      %v2527 = vrot.slane %v2526, 4
      %v2529 = vshll.u32 %v2283, 16
      %v2531 = vrot.slane %v2529, 5
      %v2532 = vsel %vm400, %v2527, %v2531
      %v2533 = vshrl.u32 %v2283, 16
      %v2535 = vrot.slane %v2533, 4
      %v2536 = vor.u32 %v2535, %v2531
      %v2537 = vrot.slane %v2536, 4
      %v2539 = vshll.u32 %v2284, 16
      %v2541 = vrot.slane %v2539, 5
      %v2542 = vsel %vm400, %v2537, %v2541
      %v2544 = vshrl.u32 %v2285, 16
      %v2546 = vrot.slane %v2544, 4
      %v2547 = vshll.u32 %v2285, 16
      %v2549 = vrot.slane %v2547, 5
      %v2550 = vor.u32 %v2546, %v2549
      %v2551 = vrot.slane %v2550, 4
      %v2553 = vshll.u32 %v2286, 16
      %v2555 = vrot.slane %v2553, 5
      %v2556 = vsel %vm400, %v2551, %v2555
      %v2557 = vshrl.u32 %v2286, 16
      %v2559 = vrot.slane %v2557, 4
      %v2560 = vor.u32 %v2559, %v2555
      %v2561 = vrot.slane %v2560, 4
      %v2563 = vshll.u32 %v2287, 16
      %v2565 = vrot.slane %v2563, 5
      %v2566 = vsel %vm400, %v2561, %v2565
      %v2568 = vshrl.u32 %v2288, 16
      %v2570 = vrot.slane %v2568, 4
      %v2571 = vshll.u32 %v2288, 16
      %v2573 = vrot.slane %v2571, 5
      %v2574 = vor.u32 %v2570, %v2573
      %v2575 = vrot.slane %v2574, 4
      %v2577 = vshll.u32 %v2289, 16
      %v2579 = vrot.slane %v2577, 5
      %v2580 = vsel %vm400, %v2575, %v2579
      %v2581 = vshrl.u32 %v2289, 16
      %v2583 = vrot.slane %v2581, 4
      %v2584 = vor.u32 %v2583, %v2579
      %v2585 = vrot.slane %v2584, 4
      %v2587 = vshll.u32 %v2290, 16
      %v2589 = vrot.slane %v2587, 5
      %v2590 = vsel %vm400, %v2585, %v2589
      %v2592 = vshrl.u32 %v2291, 16
      %v2594 = vrot.slane %v2592, 4
      %v2595 = vshll.u32 %v2291, 16
      %v2597 = vrot.slane %v2595, 5
      %v2598 = vor.u32 %v2594, %v2597
      %v2599 = vrot.slane %v2598, 4
      %v2601 = vshll.u32 %v2292, 16
      %v2603 = vrot.slane %v2601, 5
      %v2604 = vsel %vm400, %v2599, %v2603
      %v2605 = vshrl.u32 %v2292, 16
      %v2607 = vrot.slane %v2605, 4
      %v2608 = vor.u32 %v2607, %v2603
      %v2609 = vrot.slane %v2608, 4
      %v2611 = vshll.u32 %v2293, 16
      %v2613 = vrot.slane %v2611, 5
      %v2614 = vsel %vm400, %v2609, %v2613
      %v2616 = vshrl.u32 %v2294, 16
      %v2618 = vrot.slane %v2616, 4
      %v2619 = vshll.u32 %v2294, 16
      %v2621 = vrot.slane %v2619, 5
      %v2622 = vor.u32 %v2618, %v2621
      %v2623 = vrot.slane %v2622, 4
      %v2625 = vshll.u32 %v2295, 16
      %v2627 = vrot.slane %v2625, 5
      %v2628 = vsel %vm400, %v2623, %v2627
      %v2629 = vshrl.u32 %v2295, 16
      %v2631 = vrot.slane %v2629, 4
      %v2632 = vor.u32 %v2631, %v2627
      %v2633 = vrot.slane %v2632, 4
      %v2635 = vshll.u32 %v2296, 16
      %v2637 = vrot.slane %v2635, 5
      %v2638 = vsel %vm400, %v2633, %v2637
      %v2640 = vshrl.u32 %v2297, 16
      %v2642 = vrot.slane %v2640, 4
      %v2643 = vshll.u32 %v2297, 16
      %v2645 = vrot.slane %v2643, 5
      %v2646 = vor.u32 %v2642, %v2645
      %v2647 = vrot.slane %v2646, 4
      %v2649 = vshll.u32 %v2298, 16
      %v2651 = vrot.slane %v2649, 5
      %v2652 = vsel %vm400, %v2647, %v2651
      %v2653 = vshrl.u32 %v2298, 16
      %v2655 = vrot.slane %v2653, 4
      %v2656 = vor.u32 %v2655, %v2651
      %v2657 = vrot.slane %v2656, 4
      %v2659 = vshll.u32 %v2299, 16
      %v2661 = vrot.slane %v2659, 5
      %v2662 = vsel %vm400, %v2657, %v2661
      %v2664 = vshrl.u32 %v2300, 16
      %v2666 = vrot.slane %v2664, 4
      %v2667 = vshll.u32 %v2300, 16
      %v2669 = vrot.slane %v2667, 5
      %v2670 = vor.u32 %v2666, %v2669
      %v2671 = vrot.slane %v2670, 4
      %v2673 = vshll.u32 %v2301, 16
      %v2675 = vrot.slane %v2673, 5
      %v2676 = vsel %vm400, %v2671, %v2675
      %v2677 = vshrl.u32 %v2301, 16
      %v2679 = vrot.slane %v2677, 4
      %v2680 = vor.u32 %v2679, %v2675
      %v2681 = vrot.slane %v2680, 4
      %v2683 = vshll.u32 %v2302, 16
      %v2685 = vrot.slane %v2683, 5
      %v2686 = vsel %vm400, %v2681, %v2685
      %s2687 = scalar_lea.vmem %s1, 256
      %v2688 = vld [vmem:[%s2687] sm:$0xf]
      %v2689 = vld [vmem:[%s2687 + $0x4] sm:$0xf]
      %v2690 = vld [vmem:[%s2687 + $0x8] sm:$0xf]
      %v2691 = vld [vmem:[%s2687 + $0xc] sm:$0xf]
      %v2692 = vld [vmem:[%s2687 + $0x10] sm:$0xf]
      %v2693 = vld [vmem:[%s2687 + $0x14] sm:$0xf]
      %v2694 = vld [vmem:[%s2687 + $0x18] sm:$0xf]
      %v2695 = vld [vmem:[%s2687 + $0x1c] sm:$0xf]
      %v2696 = vld [vmem:[%s2687 + $0x20] sm:$0xf]
      %v2697 = vld [vmem:[%s2687 + $0x24] sm:$0xf]
      %v2698 = vld [vmem:[%s2687 + $0x28] sm:$0xf]
      %v2699 = vld [vmem:[%s2687 + $0x2c] sm:$0xf]
      %v2700 = vld [vmem:[%s2687 + $0x30] sm:$0xf]
      %v2701 = vld [vmem:[%s2687 + $0x34] sm:$0xf]
      %v2702 = vld [vmem:[%s2687 + $0x38] sm:$0xf]
      %v2703 = vld [vmem:[%s2687 + $0x3c] sm:$0xf]
      %v2704 = vunpack.c.l.b16 %v2316
      %v2705 = vunpack.c.l.b16 %v2326
      %v2706 = vunpack.c.l.b16 %v2340
      %v2707 = vunpack.c.l.b16 %v2350
      %v2708 = vunpack.c.l.b16 %v2364
      %v2709 = vunpack.c.l.b16 %v2374
      %v2710 = vunpack.c.l.b16 %v2388
      %v2711 = vunpack.c.l.b16 %v2398
      %v2712 = vunpack.c.l.b16 %v2412
      %v2713 = vunpack.c.l.b16 %v2422
      %v2714 = vunpack.c.l.b16 %v2436
      %v2715 = vunpack.c.l.b16 %v2446
      %v2716 = vunpack.c.l.b16 %v2460
      %v2717 = vunpack.c.l.b16 %v2470
      %v2718 = vunpack.c.l.b16 %v2484
      %v2719 = vunpack.c.l.b16 %v2494
      %v2720 = vunpack.c.l.b16 %v2508
      %v2721 = vunpack.c.l.b16 %v2518
      %v2722 = vunpack.c.l.b16 %v2532
      %v2723 = vunpack.c.l.b16 %v2542
      %v2724 = vunpack.c.l.b16 %v2556
      %v2725 = vunpack.c.l.b16 %v2566
      %v2726 = vunpack.c.l.b16 %v2580
      %v2727 = vunpack.c.l.b16 %v2590
      %v2728 = vunpack.c.l.b16 %v2604
      %v2729 = vunpack.c.l.b16 %v2614
      %v2730 = vunpack.c.l.b16 %v2628
      %v2731 = vunpack.c.l.b16 %v2638
      %v2732 = vunpack.c.l.b16 %v2652
      %v2733 = vunpack.c.l.b16 %v2662
      %v2734 = vunpack.c.l.b16 %v2676
      %v2735 = vunpack.c.l.b16 %v2686
      %v2736 = vpack.c.b16 %v2705, %v2704
      %v2737 = vpack.c.b16 %v2707, %v2706
      %v2738 = vpack.c.b16 %v2709, %v2708
      %v2739 = vpack.c.b16 %v2711, %v2710
      %v2740 = vpack.c.b16 %v2713, %v2712
      %v2741 = vpack.c.b16 %v2715, %v2714
      %v2742 = vpack.c.b16 %v2717, %v2716
      %v2743 = vpack.c.b16 %v2719, %v2718
      %v2744 = vpack.c.b16 %v2721, %v2720
      %v2745 = vpack.c.b16 %v2723, %v2722
      %v2746 = vpack.c.b16 %v2725, %v2724
      %v2747 = vpack.c.b16 %v2727, %v2726
      %v2748 = vpack.c.b16 %v2729, %v2728
      %v2749 = vpack.c.b16 %v2731, %v2730
      %v2750 = vpack.c.b16 %v2733, %v2732
      %v2751 = vpack.c.b16 %v2735, %v2734
      %v2784 = vunpack.c.l.b16 %v2688
      %v2785 = vunpack.c.l.b16 %v2689
      %v2786 = vunpack.c.l.b16 %v2690
      %v2787 = vunpack.c.l.b16 %v2691
      %v2788 = vunpack.c.l.b16 %v2692
      %v2789 = vunpack.c.l.b16 %v2693
      %v2790 = vunpack.c.l.b16 %v2694
      %v2791 = vunpack.c.l.b16 %v2695
      %v2792 = vunpack.c.l.b16 %v2696
      %v2793 = vunpack.c.l.b16 %v2697
      %v2794 = vunpack.c.l.b16 %v2698
      %v2795 = vunpack.c.l.b16 %v2699
      %v2796 = vunpack.c.l.b16 %v2700
      %v2797 = vunpack.c.l.b16 %v2701
      %v2798 = vunpack.c.l.b16 %v2702
      %v2799 = vunpack.c.l.b16 %v2703
      %v2800 = vpack.c.b16 %v2785, %v2784
      %v2801 = vpack.c.b16 %v2787, %v2786
      %v2802 = vpack.c.b16 %v2789, %v2788
      %v2803 = vpack.c.b16 %v2791, %v2790
      %v2804 = vpack.c.b16 %v2793, %v2792
      %v2805 = vpack.c.b16 %v2795, %v2794
      %v2806 = vpack.c.b16 %v2797, %v2796
      %v2807 = vpack.c.b16 %v2799, %v2798
      %2816 = vmatprep.subr.bf16.mxu0 0
      %2817 = vmatpush1.bf16.msra.mxu0 %v2807
      %2818 = vmatprep.subr.bf16.mxu0 0
      %2819 = vmatpush1.bf16.msra.mxu0 %v2806
      %2820 = vmatprep.subr.bf16.mxu0 0
      %2821 = vmatpush1.bf16.msra.mxu0 %v2805
      %2822 = vmatprep.subr.bf16.mxu0 0
      %2823 = vmatpush1.bf16.msra.mxu0 %v2804
      %2824 = vmatprep.subr.bf16.mxu0 0
      %2825 = vmatpush1.bf16.msra.mxu0 %v2803
      %2826 = vmatprep.subr.bf16.mxu0 0
      %2827 = vmatpush1.bf16.msra.mxu0 %v2802
      %2828 = vmatprep.subr.bf16.mxu0 0
      %2829 = vmatpush1.bf16.msra.mxu0 %v2801
      %2830 = vmatprep.subr.bf16.mxu0 0
      %2831 = vmatpush1.bf16.msra.mxu0 %v2800
      %2832 = vmatprep.subr.bf16.mxu0 0
      %2833 = vmatpush2.bf16.msra.mxu0 0
      %2834 = vmatprep.subr.bf16.mxu0 0
      %2835 = vmatpush2.bf16.msra.mxu0 0
      %2836 = vmatprep.subr.bf16.mxu0 0
      %2837 = vmatpush2.bf16.msra.mxu0 0
      %2838 = vmatprep.subr.bf16.mxu0 0
      %2839 = vmatpush2.bf16.msra.mxu0 0
      %2840 = vmatprep.subr.bf16.mxu0 0
      %2841 = vmatpush2.bf16.msra.mxu0 0
      %2842 = vmatprep.subr.bf16.mxu0 0
      %2843 = vmatpush2.bf16.msra.mxu0 0
      %2844 = vmatprep.subr.bf16.mxu0 0
      %2845 = vmatpush2.bf16.msra.mxu0 0
      %2846 = vmatprep.subr.bf16.mxu0 0
      %2847 = vmatpush2.bf16.msra.mxu0 0
      %2848 = vmatprep.mubr.bf16.mxu0 0
      %2849 = vmatmul.mubr.bf16.gmra.mxu0 %v2736
      %v2850 = vpop.f32.mrf.mxu0
      %v2851 = vadd.f32 0.0, %v2850
      %v2852 = vpop.f32.mrf.mxu0
      %v2853 = vpop.f32.mrf.mxu0
      %v2854 = vadd.f32 0.0, %v2853
      %v2855 = vpop.f32.mrf.mxu0
      %2856 = vmatprep.mubr.bf16.mxu0 0
      %2857 = vmatmul.mubr.bf16.gmra.mxu0 %v2737
      %v2858 = vpop.f32.mrf.mxu0
      %v2859 = vadd.f32 0.0, %v2858
      %v2860 = vpop.f32.mrf.mxu0
      %v2861 = vpop.f32.mrf.mxu0
      %v2862 = vadd.f32 0.0, %v2861
      %v2863 = vpop.f32.mrf.mxu0
      %2864 = vmatprep.mubr.bf16.mxu0 0
      %2865 = vmatmul.mubr.bf16.gmra.mxu0 %v2738
      %v2866 = vpop.f32.mrf.mxu0
      %v2867 = vadd.f32 0.0, %v2866
      %v2868 = vpop.f32.mrf.mxu0
      %v2869 = vpop.f32.mrf.mxu0
      %v2870 = vadd.f32 0.0, %v2869
      %v2871 = vpop.f32.mrf.mxu0
      %2872 = vmatprep.mubr.bf16.mxu0 0
      %2873 = vmatmul.mubr.bf16.gmra.mxu0 %v2739
      %v2874 = vpop.f32.mrf.mxu0
      %v2875 = vadd.f32 0.0, %v2874
      %v2876 = vpop.f32.mrf.mxu0
      %v2877 = vpop.f32.mrf.mxu0
      %v2878 = vadd.f32 0.0, %v2877
      %v2879 = vpop.f32.mrf.mxu0
      %2880 = vmatprep.mubr.bf16.mxu0 0
      %2881 = vmatmul.mubr.bf16.gmra.mxu0 %v2740
      %v2882 = vpop.f32.mrf.mxu0
      %v2883 = vadd.f32 0.0, %v2882
      %v2884 = vpop.f32.mrf.mxu0
      %v2885 = vpop.f32.mrf.mxu0
      %v2886 = vadd.f32 0.0, %v2885
      %v2887 = vpop.f32.mrf.mxu0
      %2888 = vmatprep.mubr.bf16.mxu0 0
      %2889 = vmatmul.mubr.bf16.gmra.mxu0 %v2741
      %v2890 = vpop.f32.mrf.mxu0
      %v2891 = vadd.f32 0.0, %v2890
      %v2892 = vpop.f32.mrf.mxu0
      %v2893 = vpop.f32.mrf.mxu0
      %v2894 = vadd.f32 0.0, %v2893
      %v2895 = vpop.f32.mrf.mxu0
      %2896 = vmatprep.mubr.bf16.mxu0 0
      %2897 = vmatmul.mubr.bf16.gmra.mxu0 %v2742
      %v2898 = vpop.f32.mrf.mxu0
      %v2899 = vadd.f32 0.0, %v2898
      %v2900 = vpop.f32.mrf.mxu0
      %v2901 = vpop.f32.mrf.mxu0
      %v2902 = vadd.f32 0.0, %v2901
      %v2903 = vpop.f32.mrf.mxu0
      %2904 = vmatprep.mubr.bf16.mxu0 0
      %2905 = vmatmul.mubr.bf16.gmra.mxu0 %v2743
      %v2906 = vpop.f32.mrf.mxu0
      %v2907 = vadd.f32 0.0, %v2906
      %v2908 = vpop.f32.mrf.mxu0
      %v2909 = vpop.f32.mrf.mxu0
      %v2910 = vadd.f32 0.0, %v2909
      %v2911 = vpop.f32.mrf.mxu0
      %2912 = vmatprep.mubr.bf16.mxu0 0
      %2913 = vmatmul.mubr.bf16.gmra.mxu0 %v2744
      %v2914 = vpop.f32.mrf.mxu0
      %v2915 = vadd.f32 0.0, %v2914
      %v2916 = vpop.f32.mrf.mxu0
      %v2917 = vpop.f32.mrf.mxu0
      %v2918 = vadd.f32 0.0, %v2917
      %v2919 = vpop.f32.mrf.mxu0
      %2920 = vmatprep.mubr.bf16.mxu0 0
      %2921 = vmatmul.mubr.bf16.gmra.mxu0 %v2745
      %v2922 = vpop.f32.mrf.mxu0
      %v2923 = vadd.f32 0.0, %v2922
      %v2924 = vpop.f32.mrf.mxu0
      %v2925 = vpop.f32.mrf.mxu0
      %v2926 = vadd.f32 0.0, %v2925
      %v2927 = vpop.f32.mrf.mxu0
      %2928 = vmatprep.mubr.bf16.mxu0 0
      %2929 = vmatmul.mubr.bf16.gmra.mxu0 %v2746
      %v2930 = vpop.f32.mrf.mxu0
      %v2931 = vadd.f32 0.0, %v2930
      %v2932 = vpop.f32.mrf.mxu0
      %v2933 = vpop.f32.mrf.mxu0
      %v2934 = vadd.f32 0.0, %v2933
      %v2935 = vpop.f32.mrf.mxu0
      %2936 = vmatprep.mubr.bf16.mxu0 0
      %2937 = vmatmul.mubr.bf16.gmra.mxu0 %v2747
      %v2938 = vpop.f32.mrf.mxu0
      %v2939 = vadd.f32 0.0, %v2938
      %v2940 = vpop.f32.mrf.mxu0
      %v2941 = vpop.f32.mrf.mxu0
      %v2942 = vadd.f32 0.0, %v2941
      %v2943 = vpop.f32.mrf.mxu0
      %2944 = vmatprep.mubr.bf16.mxu0 0
      %2945 = vmatmul.mubr.bf16.gmra.mxu0 %v2748
      %v2946 = vpop.f32.mrf.mxu0
      %v2947 = vadd.f32 0.0, %v2946
      %v2948 = vpop.f32.mrf.mxu0
      %v2949 = vpop.f32.mrf.mxu0
      %v2950 = vadd.f32 0.0, %v2949
      %v2951 = vpop.f32.mrf.mxu0
      %2952 = vmatprep.mubr.bf16.mxu0 0
      %2953 = vmatmul.mubr.bf16.gmra.mxu0 %v2749
      %v2954 = vpop.f32.mrf.mxu0
      %v2955 = vadd.f32 0.0, %v2954
      %v2956 = vpop.f32.mrf.mxu0
      %v2957 = vpop.f32.mrf.mxu0
      %v2958 = vadd.f32 0.0, %v2957
      %v2959 = vpop.f32.mrf.mxu0
      %2960 = vmatprep.mubr.bf16.mxu0 0
      %2961 = vmatmul.mubr.bf16.gmra.mxu0 %v2750
      %v2962 = vpop.f32.mrf.mxu0
      %v2963 = vadd.f32 0.0, %v2962
      %v2964 = vpop.f32.mrf.mxu0
      %v2965 = vpop.f32.mrf.mxu0
      %v2966 = vadd.f32 0.0, %v2965
      %v2967 = vpop.f32.mrf.mxu0
      %2968 = vmatprep.mubr.bf16.mxu0 0
      %2969 = vmatmul.mubr.bf16.gmra.mxu0 %v2751
      %v2970 = vpop.f32.mrf.mxu0
      %v2971 = vadd.f32 0.0, %v2970
      %v2972 = vpop.f32.mrf.mxu0
      %v2973 = vpop.f32.mrf.mxu0
      %v2974 = vadd.f32 0.0, %v2973
      %v2975 = vpop.f32.mrf.mxu0
      %2976 = vdwg.mxu0
      %v2977 = vadd.f32 %v2223, %v2851
      %v2978 = vadd.f32 %v2224, %v2854
      %v2979 = vadd.f32 %v2225, %v2859
      %v2980 = vadd.f32 %v2226, %v2862
      %v2981 = vadd.f32 %v2227, %v2867
      %v2982 = vadd.f32 %v2228, %v2870
      %v2983 = vadd.f32 %v2229, %v2875
      %v2984 = vadd.f32 %v2230, %v2878
      %v2985 = vadd.f32 %v2231, %v2883
      %v2986 = vadd.f32 %v2232, %v2886
      %v2987 = vadd.f32 %v2233, %v2891
      %v2988 = vadd.f32 %v2234, %v2894
      %v2989 = vadd.f32 %v2235, %v2899
      %v2990 = vadd.f32 %v2236, %v2902
      %v2991 = vadd.f32 %v2237, %v2907
      %v2992 = vadd.f32 %v2238, %v2910
      %v2993 = vadd.f32 %v2239, %v2915
      %v2994 = vadd.f32 %v2240, %v2918
      %v2995 = vadd.f32 %v2241, %v2923
      %v2996 = vadd.f32 %v2242, %v2926
      %v2997 = vadd.f32 %v2243, %v2931
      %v2998 = vadd.f32 %v2244, %v2934
      %v2999 = vadd.f32 %v2245, %v2939
      %v3000 = vadd.f32 %v2246, %v2942
      %v3001 = vadd.f32 %v2247, %v2947
      %v3002 = vadd.f32 %v2248, %v2950
      %v3003 = vadd.f32 %v2249, %v2955
      %v3004 = vadd.f32 %v2250, %v2958
      %v3005 = vadd.f32 %v2251, %v2963
      %v3006 = vadd.f32 %v2252, %v2966
      %v3007 = vadd.f32 %v2253, %v2971
      %v3008 = vadd.f32 %v2254, %v2974
      %v3009 = vld [vmem:[%s2] sm:$0xf]
      %v3010 = vld [vmem:[%s2 + $0x4] sm:$0xf]
      %v3011 = vld [vmem:[%s2 + $0x8] sm:$0xf]
      %v3012 = vld [vmem:[%s2 + $0xc] sm:$0xf]
      %v3013 = vld [vmem:[%s2 + $0x10] sm:$0xf]
      %v3014 = vld [vmem:[%s2 + $0x14] sm:$0xf]
      %v3015 = vld [vmem:[%s2 + $0x18] sm:$0xf]
      %v3016 = vld [vmem:[%s2 + $0x1c] sm:$0xf]
      %v3017 = vld [vmem:[%s2 + $0x20] sm:$0xf]
      %v3018 = vld [vmem:[%s2 + $0x24] sm:$0xf]
      %v3019 = vld [vmem:[%s2 + $0x28] sm:$0xf]
      %v3020 = vld [vmem:[%s2 + $0x2c] sm:$0xf]
      %v3021 = vld [vmem:[%s2 + $0x30] sm:$0xf]
      %v3022 = vld [vmem:[%s2 + $0x34] sm:$0xf]
      %v3023 = vld [vmem:[%s2 + $0x38] sm:$0xf]
      %v3024 = vld [vmem:[%s2 + $0x3c] sm:$0xf]
      %v3041 = vunpack.c.l.b16 %v3009
      %v3042 = vunpack.c.l.b16 %v3010
      %v3043 = vunpack.c.l.b16 %v3011
      %v3044 = vunpack.c.l.b16 %v3012
      %v3045 = vunpack.c.l.b16 %v3013
      %v3046 = vunpack.c.l.b16 %v3014
      %v3047 = vunpack.c.l.b16 %v3015
      %v3048 = vunpack.c.l.b16 %v3016
      %v3049 = vunpack.c.l.b16 %v3017
      %v3050 = vunpack.c.l.b16 %v3018
      %v3051 = vunpack.c.l.b16 %v3019
      %v3052 = vunpack.c.l.b16 %v3020
      %v3053 = vunpack.c.l.b16 %v3021
      %v3054 = vunpack.c.l.b16 %v3022
      %v3055 = vunpack.c.l.b16 %v3023
      %v3056 = vunpack.c.l.b16 %v3024
      %v3057 = vpack.c.b16 %v3042, %v3041
      %v3058 = vpack.c.b16 %v3044, %v3043
      %v3059 = vpack.c.b16 %v3046, %v3045
      %v3060 = vpack.c.b16 %v3048, %v3047
      %v3061 = vpack.c.b16 %v3050, %v3049
      %v3062 = vpack.c.b16 %v3052, %v3051
      %v3063 = vpack.c.b16 %v3054, %v3053
      %v3064 = vpack.c.b16 %v3056, %v3055
      %3073 = vmatprep.subr.bf16.mxu0 0
      %3074 = vmatpush1.bf16.msra.mxu0 %v3064
      %3075 = vmatprep.subr.bf16.mxu0 0
      %3076 = vmatpush1.bf16.msra.mxu0 %v3063
      %3077 = vmatprep.subr.bf16.mxu0 0
      %3078 = vmatpush1.bf16.msra.mxu0 %v3062
      %3079 = vmatprep.subr.bf16.mxu0 0
      %3080 = vmatpush1.bf16.msra.mxu0 %v3061
      %3081 = vmatprep.subr.bf16.mxu0 0
      %3082 = vmatpush1.bf16.msra.mxu0 %v3060
      %3083 = vmatprep.subr.bf16.mxu0 0
      %3084 = vmatpush1.bf16.msra.mxu0 %v3059
      %3085 = vmatprep.subr.bf16.mxu0 0
      %3086 = vmatpush1.bf16.msra.mxu0 %v3058
      %3087 = vmatprep.subr.bf16.mxu0 0
      %3088 = vmatpush1.bf16.msra.mxu0 %v3057
      %3089 = vmatprep.subr.bf16.mxu0 0
      %3090 = vmatpush2.bf16.msra.mxu0 0
      %3091 = vmatprep.subr.bf16.mxu0 0
      %3092 = vmatpush2.bf16.msra.mxu0 0
      %3093 = vmatprep.subr.bf16.mxu0 0
      %3094 = vmatpush2.bf16.msra.mxu0 0
      %3095 = vmatprep.subr.bf16.mxu0 0
      %3096 = vmatpush2.bf16.msra.mxu0 0
      %3097 = vmatprep.subr.bf16.mxu0 0
      %3098 = vmatpush2.bf16.msra.mxu0 0
      %3099 = vmatprep.subr.bf16.mxu0 0
      %3100 = vmatpush2.bf16.msra.mxu0 0
      %3101 = vmatprep.subr.bf16.mxu0 0
      %3102 = vmatpush2.bf16.msra.mxu0 0
      %3103 = vmatprep.subr.bf16.mxu0 0
      %3104 = vmatpush2.bf16.msra.mxu0 0
      %3105 = vmatprep.mubr.bf16.mxu0 0
      %3106 = vmatmul.mubr.bf16.gmra.mxu0 %v2736
      %v3107 = vpop.f32.mrf.mxu0
      %v3108 = vadd.f32 0.0, %v3107
      %v3109 = vpop.f32.mrf.mxu0
      %v3110 = vpop.f32.mrf.mxu0
      %v3111 = vadd.f32 0.0, %v3110
      %v3112 = vpop.f32.mrf.mxu0
      %3113 = vmatprep.mubr.bf16.mxu0 0
      %3114 = vmatmul.mubr.bf16.gmra.mxu0 %v2737
      %v3115 = vpop.f32.mrf.mxu0
      %v3116 = vadd.f32 0.0, %v3115
      %v3117 = vpop.f32.mrf.mxu0
      %v3118 = vpop.f32.mrf.mxu0
      %v3119 = vadd.f32 0.0, %v3118
      %v3120 = vpop.f32.mrf.mxu0
      %3121 = vmatprep.mubr.bf16.mxu0 0
      %3122 = vmatmul.mubr.bf16.gmra.mxu0 %v2738
      %v3123 = vpop.f32.mrf.mxu0
      %v3124 = vadd.f32 0.0, %v3123
      %v3125 = vpop.f32.mrf.mxu0
      %v3126 = vpop.f32.mrf.mxu0
      %v3127 = vadd.f32 0.0, %v3126
      %v3128 = vpop.f32.mrf.mxu0
      %3129 = vmatprep.mubr.bf16.mxu0 0
      %3130 = vmatmul.mubr.bf16.gmra.mxu0 %v2739
      %v3131 = vpop.f32.mrf.mxu0
      %v3132 = vadd.f32 0.0, %v3131
      %v3133 = vpop.f32.mrf.mxu0
      %v3134 = vpop.f32.mrf.mxu0
      %v3135 = vadd.f32 0.0, %v3134
      %v3136 = vpop.f32.mrf.mxu0
      %3137 = vmatprep.mubr.bf16.mxu0 0
      %3138 = vmatmul.mubr.bf16.gmra.mxu0 %v2740
      %v3139 = vpop.f32.mrf.mxu0
      %v3140 = vadd.f32 0.0, %v3139
      %v3141 = vpop.f32.mrf.mxu0
      %v3142 = vpop.f32.mrf.mxu0
      %v3143 = vadd.f32 0.0, %v3142
      %v3144 = vpop.f32.mrf.mxu0
      %3145 = vmatprep.mubr.bf16.mxu0 0
      %3146 = vmatmul.mubr.bf16.gmra.mxu0 %v2741
      %v3147 = vpop.f32.mrf.mxu0
      %v3148 = vadd.f32 0.0, %v3147
      %v3149 = vpop.f32.mrf.mxu0
      %v3150 = vpop.f32.mrf.mxu0
      %v3151 = vadd.f32 0.0, %v3150
      %v3152 = vpop.f32.mrf.mxu0
      %3153 = vmatprep.mubr.bf16.mxu0 0
      %3154 = vmatmul.mubr.bf16.gmra.mxu0 %v2742
      %v3155 = vpop.f32.mrf.mxu0
      %v3156 = vadd.f32 0.0, %v3155
      %v3157 = vpop.f32.mrf.mxu0
      %v3158 = vpop.f32.mrf.mxu0
      %v3159 = vadd.f32 0.0, %v3158
      %v3160 = vpop.f32.mrf.mxu0
      %3161 = vmatprep.mubr.bf16.mxu0 0
      %3162 = vmatmul.mubr.bf16.gmra.mxu0 %v2743
      %v3163 = vpop.f32.mrf.mxu0
      %v3164 = vadd.f32 0.0, %v3163
      %v3165 = vpop.f32.mrf.mxu0
      %v3166 = vpop.f32.mrf.mxu0
      %v3167 = vadd.f32 0.0, %v3166
      %v3168 = vpop.f32.mrf.mxu0
      %3169 = vmatprep.mubr.bf16.mxu0 0
      %3170 = vmatmul.mubr.bf16.gmra.mxu0 %v2744
      %v3171 = vpop.f32.mrf.mxu0
      %v3172 = vadd.f32 0.0, %v3171
      %v3173 = vpop.f32.mrf.mxu0
      %v3174 = vpop.f32.mrf.mxu0
      %v3175 = vadd.f32 0.0, %v3174
      %v3176 = vpop.f32.mrf.mxu0
      %3177 = vmatprep.mubr.bf16.mxu0 0
      %3178 = vmatmul.mubr.bf16.gmra.mxu0 %v2745
      %v3179 = vpop.f32.mrf.mxu0
      %v3180 = vadd.f32 0.0, %v3179
      %v3181 = vpop.f32.mrf.mxu0
      %v3182 = vpop.f32.mrf.mxu0
      %v3183 = vadd.f32 0.0, %v3182
      %v3184 = vpop.f32.mrf.mxu0
      %3185 = vmatprep.mubr.bf16.mxu0 0
      %3186 = vmatmul.mubr.bf16.gmra.mxu0 %v2746
      %v3187 = vpop.f32.mrf.mxu0
      %v3188 = vadd.f32 0.0, %v3187
      %v3189 = vpop.f32.mrf.mxu0
      %v3190 = vpop.f32.mrf.mxu0
      %v3191 = vadd.f32 0.0, %v3190
      %v3192 = vpop.f32.mrf.mxu0
      %3193 = vmatprep.mubr.bf16.mxu0 0
      %3194 = vmatmul.mubr.bf16.gmra.mxu0 %v2747
      %v3195 = vpop.f32.mrf.mxu0
      %v3196 = vadd.f32 0.0, %v3195
      %v3197 = vpop.f32.mrf.mxu0
      %v3198 = vpop.f32.mrf.mxu0
      %v3199 = vadd.f32 0.0, %v3198
      %v3200 = vpop.f32.mrf.mxu0
      %3201 = vmatprep.mubr.bf16.mxu0 0
      %3202 = vmatmul.mubr.bf16.gmra.mxu0 %v2748
      %v3203 = vpop.f32.mrf.mxu0
      %v3204 = vadd.f32 0.0, %v3203
      %v3205 = vpop.f32.mrf.mxu0
      %v3206 = vpop.f32.mrf.mxu0
      %v3207 = vadd.f32 0.0, %v3206
      %v3208 = vpop.f32.mrf.mxu0
      %3209 = vmatprep.mubr.bf16.mxu0 0
      %3210 = vmatmul.mubr.bf16.gmra.mxu0 %v2749
      %v3211 = vpop.f32.mrf.mxu0
      %v3212 = vadd.f32 0.0, %v3211
      %v3213 = vpop.f32.mrf.mxu0
      %v3214 = vpop.f32.mrf.mxu0
      %v3215 = vadd.f32 0.0, %v3214
      %v3216 = vpop.f32.mrf.mxu0
      %3217 = vmatprep.mubr.bf16.mxu0 0
      %3218 = vmatmul.mubr.bf16.gmra.mxu0 %v2750
      %v3219 = vpop.f32.mrf.mxu0
      %v3220 = vadd.f32 0.0, %v3219
      %v3221 = vpop.f32.mrf.mxu0
      %v3222 = vpop.f32.mrf.mxu0
      %v3223 = vadd.f32 0.0, %v3222
      %v3224 = vpop.f32.mrf.mxu0
      %3225 = vmatprep.mubr.bf16.mxu0 0
      %3226 = vmatmul.mubr.bf16.gmra.mxu0 %v2751
      %v3227 = vpop.f32.mrf.mxu0
      %v3228 = vadd.f32 0.0, %v3227
      %v3229 = vpop.f32.mrf.mxu0
      %v3230 = vpop.f32.mrf.mxu0
      %v3231 = vadd.f32 0.0, %v3230
      %v3232 = vpop.f32.mrf.mxu0
      %3233 = vdwg.mxu0
      %3234 = vst [vmem:[%s317] sm:$0xff] %v3108
      %3235 = vst [vmem:[%s317 + $0x8] sm:$0xff] %v3111
      %3236 = vst [vmem:[%s317 + $0x10] sm:$0xff] %v3116
      %3237 = vst [vmem:[%s317 + $0x18] sm:$0xff] %v3119
      %3238 = vst [vmem:[%s317 + $0x20] sm:$0xff] %v3124
      %3239 = vst [vmem:[%s317 + $0x28] sm:$0xff] %v3127
      %3240 = vst [vmem:[%s317 + $0x30] sm:$0xff] %v3132
      %3241 = vst [vmem:[%s317 + $0x38] sm:$0xff] %v3135
      %3242 = vst [vmem:[%s317 + $0x40] sm:$0xff] %v3140
      %3243 = vst [vmem:[%s317 + $0x48] sm:$0xff] %v3143
      %3244 = vst [vmem:[%s317 + $0x50] sm:$0xff] %v3148
      %3245 = vst [vmem:[%s317 + $0x58] sm:$0xff] %v3151
      %3246 = vst [vmem:[%s317 + $0x60] sm:$0xff] %v3156
      %3247 = vst [vmem:[%s317 + $0x68] sm:$0xff] %v3159
      %3248 = vst [vmem:[%s317 + $0x70] sm:$0xff] %v3164
      %3249 = vst [vmem:[%s317 + $0x78] sm:$0xff] %v3167
      %3250 = vst [vmem:[%s317 + $0x80] sm:$0xff] %v3172
      %3251 = vst [vmem:[%s317 + $0x88] sm:$0xff] %v3175
      %3252 = vst [vmem:[%s317 + $0x90] sm:$0xff] %v3180
      %3253 = vst [vmem:[%s317 + $0x98] sm:$0xff] %v3183
      %3254 = vst [vmem:[%s317 + $0xa0] sm:$0xff] %v3188
      %3255 = vst [vmem:[%s317 + $0xa8] sm:$0xff] %v3191
      %3256 = vst [vmem:[%s317 + $0xb0] sm:$0xff] %v3196
      %3257 = vst [vmem:[%s317 + $0xb8] sm:$0xff] %v3199
      %3258 = vst [vmem:[%s317 + $0xc0] sm:$0xff] %v3204
      %3259 = vst [vmem:[%s317 + $0xc8] sm:$0xff] %v3207
      %3260 = vst [vmem:[%s317 + $0xd0] sm:$0xff] %v3212
      %3261 = vst [vmem:[%s317 + $0xd8] sm:$0xff] %v3215
      %3262 = vst [vmem:[%s317 + $0xe0] sm:$0xff] %v3220
      %3263 = vst [vmem:[%s317 + $0xe8] sm:$0xff] %v3223
      %3264 = vst [vmem:[%s317 + $0xf0] sm:$0xff] %v3228
      %3265 = vst [vmem:[%s317 + $0xf8] sm:$0xff] %v3231
      %v3266 = vld [vmem:[%s322] sm:$0x1]
      %v3267 = vadd.f32 %v3108, %v3111
      %v3268 = vadd.f32 %v3267, %v3116
      %v3269 = vadd.f32 %v3268, %v3119
      %v3270 = vadd.f32 %v3269, %v3124
      %v3271 = vadd.f32 %v3270, %v3127
      %v3272 = vadd.f32 %v3271, %v3132
      %v3273 = vadd.f32 %v3272, %v3135
      %v3274 = vadd.f32 %v3273, %v3140
      %v3275 = vadd.f32 %v3274, %v3143
      %v3276 = vadd.f32 %v3275, %v3148
      %v3277 = vadd.f32 %v3276, %v3151
      %v3278 = vadd.f32 %v3277, %v3156
      %v3279 = vadd.f32 %v3278, %v3159
      %v3280 = vadd.f32 %v3279, %v3164
      %v3281 = vadd.f32 %v3280, %v3167
      %v3282 = vadd.f32 %v3281, %v3172
      %v3283 = vadd.f32 %v3282, %v3175
      %v3284 = vadd.f32 %v3283, %v3180
      %v3285 = vadd.f32 %v3284, %v3183
      %v3286 = vadd.f32 %v3285, %v3188
      %v3287 = vadd.f32 %v3286, %v3191
      %v3288 = vadd.f32 %v3287, %v3196
      %v3289 = vadd.f32 %v3288, %v3199
      %v3290 = vadd.f32 %v3289, %v3204
      %v3291 = vadd.f32 %v3290, %v3207
      %v3292 = vadd.f32 %v3291, %v3212
      %v3293 = vadd.f32 %v3292, %v3215
      %v3294 = vadd.f32 %v3293, %v3220
      %v3295 = vadd.f32 %v3294, %v3223
      %v3296 = vadd.f32 %v3295, %v3228
      %v3297 = vadd.f32 %v3296, %v3231
      %v3298 = vrot.slane %v3297, 4
      %v3299 = vadd.f32 %v3297, %v3298
      %v3300 = vrot.slane %v3299, 2
      %v3301 = vadd.f32 %v3299, %v3300
      %v3302 = vrot.slane %v3301, 1
      %v3303 = vadd.f32 %v3301, %v3302
      %v3304 = vadd.f32 %v3266, %v3303
      %3305 = vst [vmem:[%s322] sm:$0x1] %v3304
      %v3306 = vld [vmem:[%s322 + $0x1] sm:$0x1]
      %v3307 = vmul.f32 %v3108, %v3108
      %v3308 = vmul.f32 %v3111, %v3111
      %v3309 = vmul.f32 %v3116, %v3116
      %v3310 = vmul.f32 %v3119, %v3119
      %v3311 = vmul.f32 %v3124, %v3124
      %v3312 = vmul.f32 %v3127, %v3127
      %v3313 = vmul.f32 %v3132, %v3132
      %v3314 = vmul.f32 %v3135, %v3135
      %v3315 = vmul.f32 %v3140, %v3140
      %v3316 = vmul.f32 %v3143, %v3143
      %v3317 = vmul.f32 %v3148, %v3148
      %v3318 = vmul.f32 %v3151, %v3151
      %v3319 = vmul.f32 %v3156, %v3156
      %v3320 = vmul.f32 %v3159, %v3159
      %v3321 = vmul.f32 %v3164, %v3164
      %v3322 = vmul.f32 %v3167, %v3167
      %v3323 = vmul.f32 %v3172, %v3172
      %v3324 = vmul.f32 %v3175, %v3175
      %v3325 = vmul.f32 %v3180, %v3180
      %v3326 = vmul.f32 %v3183, %v3183
      %v3327 = vmul.f32 %v3188, %v3188
      %v3328 = vmul.f32 %v3191, %v3191
      %v3329 = vmul.f32 %v3196, %v3196
      %v3330 = vmul.f32 %v3199, %v3199
      %v3331 = vmul.f32 %v3204, %v3204
      %v3332 = vmul.f32 %v3207, %v3207
      %v3333 = vmul.f32 %v3212, %v3212
      %v3334 = vmul.f32 %v3215, %v3215
      %v3335 = vmul.f32 %v3220, %v3220
      %v3336 = vmul.f32 %v3223, %v3223
      %v3337 = vmul.f32 %v3228, %v3228
      %v3338 = vmul.f32 %v3231, %v3231
      %v3339 = vadd.f32 %v3307, %v3308
      %v3340 = vadd.f32 %v3339, %v3309
      %v3341 = vadd.f32 %v3340, %v3310
      %v3342 = vadd.f32 %v3341, %v3311
      %v3343 = vadd.f32 %v3342, %v3312
      %v3344 = vadd.f32 %v3343, %v3313
      %v3345 = vadd.f32 %v3344, %v3314
      %v3346 = vadd.f32 %v3345, %v3315
      %v3347 = vadd.f32 %v3346, %v3316
      %v3348 = vadd.f32 %v3347, %v3317
      %v3349 = vadd.f32 %v3348, %v3318
      %v3350 = vadd.f32 %v3349, %v3319
      %v3351 = vadd.f32 %v3350, %v3320
      %v3352 = vadd.f32 %v3351, %v3321
      %v3353 = vadd.f32 %v3352, %v3322
      %v3354 = vadd.f32 %v3353, %v3323
      %v3355 = vadd.f32 %v3354, %v3324
      %v3356 = vadd.f32 %v3355, %v3325
      %v3357 = vadd.f32 %v3356, %v3326
      %v3358 = vadd.f32 %v3357, %v3327
      %v3359 = vadd.f32 %v3358, %v3328
      %v3360 = vadd.f32 %v3359, %v3329
      %v3361 = vadd.f32 %v3360, %v3330
      %v3362 = vadd.f32 %v3361, %v3331
      %v3363 = vadd.f32 %v3362, %v3332
      %v3364 = vadd.f32 %v3363, %v3333
      %v3365 = vadd.f32 %v3364, %v3334
      %v3366 = vadd.f32 %v3365, %v3335
      %v3367 = vadd.f32 %v3366, %v3336
      %v3368 = vadd.f32 %v3367, %v3337
      %v3369 = vadd.f32 %v3368, %v3338
      %v3370 = vrot.slane %v3369, 4
      %v3371 = vadd.f32 %v3369, %v3370
      %v3372 = vrot.slane %v3371, 2
      %v3373 = vadd.f32 %v3371, %v3372
      %v3374 = vrot.slane %v3373, 1
      %v3375 = vadd.f32 %v3373, %v3374
      %v3376 = vadd.f32 %v3306, %v3375
      %3377 = vst [vmem:[%s322 + $0x1] sm:$0x1] %v3376
      %v3378 = vld [vmem:[%s1868] sm:$0xe]
      %v3379 = vld [vmem:[%s1868 + $0x4] sm:$0xf]
      %v3380 = vld [vmem:[%s1868 + $0x8] sm:$0x1]
      %v3381 = vld [vmem:[%s1868 + $0xc] sm:$0xe]
      %v3382 = vld [vmem:[%s1868 + $0x10] sm:$0xf]
      %v3383 = vld [vmem:[%s1868 + $0x14] sm:$0x1]
      %v3384 = vld [vmem:[%s1868 + $0x18] sm:$0xe]
      %v3385 = vld [vmem:[%s1868 + $0x1c] sm:$0xf]
      %v3386 = vld [vmem:[%s1868 + $0x20] sm:$0x1]
      %v3387 = vld [vmem:[%s1868 + $0x24] sm:$0xe]
      %v3388 = vld [vmem:[%s1868 + $0x28] sm:$0xf]
      %v3389 = vld [vmem:[%s1868 + $0x2c] sm:$0x1]
      %v3390 = vld [vmem:[%s1868 + $0x30] sm:$0xe]
      %v3391 = vld [vmem:[%s1868 + $0x34] sm:$0xf]
      %v3392 = vld [vmem:[%s1868 + $0x38] sm:$0x1]
      %v3393 = vld [vmem:[%s1868 + $0x3c] sm:$0xe]
      %v3394 = vld [vmem:[%s1868 + $0x40] sm:$0xf]
      %v3395 = vld [vmem:[%s1868 + $0x44] sm:$0x1]
      %v3396 = vld [vmem:[%s1868 + $0x48] sm:$0xe]
      %v3397 = vld [vmem:[%s1868 + $0x4c] sm:$0xf]
      %v3398 = vld [vmem:[%s1868 + $0x50] sm:$0x1]
      %v3399 = vld [vmem:[%s1868 + $0x54] sm:$0xe]
      %v3400 = vld [vmem:[%s1868 + $0x58] sm:$0xf]
      %v3401 = vld [vmem:[%s1868 + $0x5c] sm:$0x1]
      %v3402 = vld [vmem:[%s1868 + $0x60] sm:$0xe]
      %v3403 = vld [vmem:[%s1868 + $0x64] sm:$0xf]
      %v3404 = vld [vmem:[%s1868 + $0x68] sm:$0x1]
      %v3405 = vld [vmem:[%s1868 + $0x6c] sm:$0xe]
      %v3406 = vld [vmem:[%s1868 + $0x70] sm:$0xf]
      %v3407 = vld [vmem:[%s1868 + $0x74] sm:$0x1]
      %v3408 = vld [vmem:[%s1868 + $0x78] sm:$0xe]
      %v3409 = vld [vmem:[%s1868 + $0x7c] sm:$0xf]
      %v3410 = vld [vmem:[%s1868 + $0x80] sm:$0x1]
      %v3411 = vld [vmem:[%s1868 + $0x84] sm:$0xe]
      %v3412 = vld [vmem:[%s1868 + $0x88] sm:$0xf]
      %v3413 = vld [vmem:[%s1868 + $0x8c] sm:$0x1]
      %v3414 = vld [vmem:[%s1868 + $0x90] sm:$0xe]
      %v3415 = vld [vmem:[%s1868 + $0x94] sm:$0xf]
      %v3416 = vld [vmem:[%s1868 + $0x98] sm:$0x1]
      %v3417 = vld [vmem:[%s1868 + $0x9c] sm:$0xe]
      %v3418 = vld [vmem:[%s1868 + $0xa0] sm:$0xf]
      %v3419 = vld [vmem:[%s1868 + $0xa4] sm:$0x1]
      %v3420 = vld [vmem:[%s1868 + $0xa8] sm:$0xe]
      %v3421 = vld [vmem:[%s1868 + $0xac] sm:$0xf]
      %v3422 = vld [vmem:[%s1868 + $0xb0] sm:$0x1]
      %v3423 = vld [vmem:[%s1868 + $0xb4] sm:$0xe]
      %v3424 = vld [vmem:[%s1868 + $0xb8] sm:$0xf]
      %v3425 = vld [vmem:[%s1868 + $0xbc] sm:$0x1]
      %v3474 = vrot.slane %v3378, 5
      %v3475 = vrot.slane %v3474, 4
      %v3476 = vrot.slane %v3379, 5
      %v3477 = vsel %vm1430, %v3475, %v3476
      %v3478 = vrot.slane %v3476, 4
      %v3479 = vrot.slane %v3380, 5
      %v3480 = vsel %vm1430, %v3478, %v3479
      %v3481 = vrot.slane %v3381, 5
      %v3482 = vrot.slane %v3481, 4
      %v3483 = vrot.slane %v3382, 5
      %v3484 = vsel %vm1430, %v3482, %v3483
      %v3485 = vrot.slane %v3483, 4
      %v3486 = vrot.slane %v3383, 5
      %v3487 = vsel %vm1430, %v3485, %v3486
      %v3488 = vrot.slane %v3384, 5
      %v3489 = vrot.slane %v3488, 4
      %v3490 = vrot.slane %v3385, 5
      %v3491 = vsel %vm1430, %v3489, %v3490
      %v3492 = vrot.slane %v3490, 4
      %v3493 = vrot.slane %v3386, 5
      %v3494 = vsel %vm1430, %v3492, %v3493
      %v3495 = vrot.slane %v3387, 5
      %v3496 = vrot.slane %v3495, 4
      %v3497 = vrot.slane %v3388, 5
      %v3498 = vsel %vm1430, %v3496, %v3497
      %v3499 = vrot.slane %v3497, 4
      %v3500 = vrot.slane %v3389, 5
      %v3501 = vsel %vm1430, %v3499, %v3500
      %v3502 = vrot.slane %v3390, 5
      %v3503 = vrot.slane %v3502, 4
      %v3504 = vrot.slane %v3391, 5
      %v3505 = vsel %vm1430, %v3503, %v3504
      %v3506 = vrot.slane %v3504, 4
      %v3507 = vrot.slane %v3392, 5
      %v3508 = vsel %vm1430, %v3506, %v3507
      %v3509 = vrot.slane %v3393, 5
      %v3510 = vrot.slane %v3509, 4
      %v3511 = vrot.slane %v3394, 5
      %v3512 = vsel %vm1430, %v3510, %v3511
      %v3513 = vrot.slane %v3511, 4
      %v3514 = vrot.slane %v3395, 5
      %v3515 = vsel %vm1430, %v3513, %v3514
      %v3516 = vrot.slane %v3396, 5
      %v3517 = vrot.slane %v3516, 4
      %v3518 = vrot.slane %v3397, 5
      %v3519 = vsel %vm1430, %v3517, %v3518
      %v3520 = vrot.slane %v3518, 4
      %v3521 = vrot.slane %v3398, 5
      %v3522 = vsel %vm1430, %v3520, %v3521
      %v3523 = vrot.slane %v3399, 5
      %v3524 = vrot.slane %v3523, 4
      %v3525 = vrot.slane %v3400, 5
      %v3526 = vsel %vm1430, %v3524, %v3525
      %v3527 = vrot.slane %v3525, 4
      %v3528 = vrot.slane %v3401, 5
      %v3529 = vsel %vm1430, %v3527, %v3528
      %v3530 = vrot.slane %v3402, 5
      %v3531 = vrot.slane %v3530, 4
      %v3532 = vrot.slane %v3403, 5
      %v3533 = vsel %vm1430, %v3531, %v3532
      %v3534 = vrot.slane %v3532, 4
      %v3535 = vrot.slane %v3404, 5
      %v3536 = vsel %vm1430, %v3534, %v3535
      %v3537 = vrot.slane %v3405, 5
      %v3538 = vrot.slane %v3537, 4
      %v3539 = vrot.slane %v3406, 5
      %v3540 = vsel %vm1430, %v3538, %v3539
      %v3541 = vrot.slane %v3539, 4
      %v3542 = vrot.slane %v3407, 5
      %v3543 = vsel %vm1430, %v3541, %v3542
      %v3544 = vrot.slane %v3408, 5
      %v3545 = vrot.slane %v3544, 4
      %v3546 = vrot.slane %v3409, 5
      %v3547 = vsel %vm1430, %v3545, %v3546
      %v3548 = vrot.slane %v3546, 4
      %v3549 = vrot.slane %v3410, 5
      %v3550 = vsel %vm1430, %v3548, %v3549
      %v3551 = vrot.slane %v3411, 5
      %v3552 = vrot.slane %v3551, 4
      %v3553 = vrot.slane %v3412, 5
      %v3554 = vsel %vm1430, %v3552, %v3553
      %v3555 = vrot.slane %v3553, 4
      %v3556 = vrot.slane %v3413, 5
      %v3557 = vsel %vm1430, %v3555, %v3556
      %v3558 = vrot.slane %v3414, 5
      %v3559 = vrot.slane %v3558, 4
      %v3560 = vrot.slane %v3415, 5
      %v3561 = vsel %vm1430, %v3559, %v3560
      %v3562 = vrot.slane %v3560, 4
      %v3563 = vrot.slane %v3416, 5
      %v3564 = vsel %vm1430, %v3562, %v3563
      %v3565 = vrot.slane %v3417, 5
      %v3566 = vrot.slane %v3565, 4
      %v3567 = vrot.slane %v3418, 5
      %v3568 = vsel %vm1430, %v3566, %v3567
      %v3569 = vrot.slane %v3567, 4
      %v3570 = vrot.slane %v3419, 5
      %v3571 = vsel %vm1430, %v3569, %v3570
      %v3572 = vrot.slane %v3420, 5
      %v3573 = vrot.slane %v3572, 4
      %v3574 = vrot.slane %v3421, 5
      %v3575 = vsel %vm1430, %v3573, %v3574
      %v3576 = vrot.slane %v3574, 4
      %v3577 = vrot.slane %v3422, 5
      %v3578 = vsel %vm1430, %v3576, %v3577
      %v3579 = vrot.slane %v3423, 5
      %v3580 = vrot.slane %v3579, 4
      %v3581 = vrot.slane %v3424, 5
      %v3582 = vsel %vm1430, %v3580, %v3581
      %v3583 = vrot.slane %v3581, 4
      %v3584 = vrot.slane %v3425, 5
      %v3585 = vsel %vm1430, %v3583, %v3584
      %s3586 = scalar_lea.vmem %s1, 320
      %v3587 = vld [vmem:[%s3586] sm:$0xf]
      %v3588 = vld [vmem:[%s3586 + $0x4] sm:$0xf]
      %v3589 = vld [vmem:[%s3586 + $0x8] sm:$0xf]
      %v3590 = vld [vmem:[%s3586 + $0xc] sm:$0xf]
      %v3591 = vld [vmem:[%s3586 + $0x10] sm:$0xf]
      %v3592 = vld [vmem:[%s3586 + $0x14] sm:$0xf]
      %v3593 = vld [vmem:[%s3586 + $0x18] sm:$0xf]
      %v3594 = vld [vmem:[%s3586 + $0x1c] sm:$0xf]
      %v3595 = vld [vmem:[%s3586 + $0x20] sm:$0xf]
      %v3596 = vld [vmem:[%s3586 + $0x24] sm:$0xf]
      %v3597 = vld [vmem:[%s3586 + $0x28] sm:$0xf]
      %v3598 = vld [vmem:[%s3586 + $0x2c] sm:$0xf]
      %v3599 = vld [vmem:[%s3586 + $0x30] sm:$0xf]
      %v3600 = vld [vmem:[%s3586 + $0x34] sm:$0xf]
      %v3601 = vld [vmem:[%s3586 + $0x38] sm:$0xf]
      %v3602 = vld [vmem:[%s3586 + $0x3c] sm:$0xf]
      %v3603 = vunpack.c.l.b16 %v3477
      %v3604 = vunpack.c.l.b16 %v3480
      %v3605 = vunpack.c.l.b16 %v3484
      %v3606 = vunpack.c.l.b16 %v3487
      %v3607 = vunpack.c.l.b16 %v3491
      %v3608 = vunpack.c.l.b16 %v3494
      %v3609 = vunpack.c.l.b16 %v3498
      %v3610 = vunpack.c.l.b16 %v3501
      %v3611 = vunpack.c.l.b16 %v3505
      %v3612 = vunpack.c.l.b16 %v3508
      %v3613 = vunpack.c.l.b16 %v3512
      %v3614 = vunpack.c.l.b16 %v3515
      %v3615 = vunpack.c.l.b16 %v3519
      %v3616 = vunpack.c.l.b16 %v3522
      %v3617 = vunpack.c.l.b16 %v3526
      %v3618 = vunpack.c.l.b16 %v3529
      %v3619 = vunpack.c.l.b16 %v3533
      %v3620 = vunpack.c.l.b16 %v3536
      %v3621 = vunpack.c.l.b16 %v3540
      %v3622 = vunpack.c.l.b16 %v3543
      %v3623 = vunpack.c.l.b16 %v3547
      %v3624 = vunpack.c.l.b16 %v3550
      %v3625 = vunpack.c.l.b16 %v3554
      %v3626 = vunpack.c.l.b16 %v3557
      %v3627 = vunpack.c.l.b16 %v3561
      %v3628 = vunpack.c.l.b16 %v3564
      %v3629 = vunpack.c.l.b16 %v3568
      %v3630 = vunpack.c.l.b16 %v3571
      %v3631 = vunpack.c.l.b16 %v3575
      %v3632 = vunpack.c.l.b16 %v3578
      %v3633 = vunpack.c.l.b16 %v3582
      %v3634 = vunpack.c.l.b16 %v3585
      %v3635 = vpack.c.b16 %v3604, %v3603
      %v3636 = vpack.c.b16 %v3606, %v3605
      %v3637 = vpack.c.b16 %v3608, %v3607
      %v3638 = vpack.c.b16 %v3610, %v3609
      %v3639 = vpack.c.b16 %v3612, %v3611
      %v3640 = vpack.c.b16 %v3614, %v3613
      %v3641 = vpack.c.b16 %v3616, %v3615
      %v3642 = vpack.c.b16 %v3618, %v3617
      %v3643 = vpack.c.b16 %v3620, %v3619
      %v3644 = vpack.c.b16 %v3622, %v3621
      %v3645 = vpack.c.b16 %v3624, %v3623
      %v3646 = vpack.c.b16 %v3626, %v3625
      %v3647 = vpack.c.b16 %v3628, %v3627
      %v3648 = vpack.c.b16 %v3630, %v3629
      %v3649 = vpack.c.b16 %v3632, %v3631
      %v3650 = vpack.c.b16 %v3634, %v3633
      %v3683 = vunpack.c.l.b16 %v3587
      %v3684 = vunpack.c.l.b16 %v3588
      %v3685 = vunpack.c.l.b16 %v3589
      %v3686 = vunpack.c.l.b16 %v3590
      %v3687 = vunpack.c.l.b16 %v3591
      %v3688 = vunpack.c.l.b16 %v3592
      %v3689 = vunpack.c.l.b16 %v3593
      %v3690 = vunpack.c.l.b16 %v3594
      %v3691 = vunpack.c.l.b16 %v3595
      %v3692 = vunpack.c.l.b16 %v3596
      %v3693 = vunpack.c.l.b16 %v3597
      %v3694 = vunpack.c.l.b16 %v3598
      %v3695 = vunpack.c.l.b16 %v3599
      %v3696 = vunpack.c.l.b16 %v3600
      %v3697 = vunpack.c.l.b16 %v3601
      %v3698 = vunpack.c.l.b16 %v3602
      %v3699 = vpack.c.b16 %v3684, %v3683
      %v3700 = vpack.c.b16 %v3686, %v3685
      %v3701 = vpack.c.b16 %v3688, %v3687
      %v3702 = vpack.c.b16 %v3690, %v3689
      %v3703 = vpack.c.b16 %v3692, %v3691
      %v3704 = vpack.c.b16 %v3694, %v3693
      %v3705 = vpack.c.b16 %v3696, %v3695
      %v3706 = vpack.c.b16 %v3698, %v3697
      %3715 = vmatprep.subr.bf16.mxu0 0
      %3716 = vmatpush1.bf16.msra.mxu0 %v3706
      %3717 = vmatprep.subr.bf16.mxu0 0
      %3718 = vmatpush1.bf16.msra.mxu0 %v3705
      %3719 = vmatprep.subr.bf16.mxu0 0
      %3720 = vmatpush1.bf16.msra.mxu0 %v3704
      %3721 = vmatprep.subr.bf16.mxu0 0
      %3722 = vmatpush1.bf16.msra.mxu0 %v3703
      %3723 = vmatprep.subr.bf16.mxu0 0
      %3724 = vmatpush1.bf16.msra.mxu0 %v3702
      %3725 = vmatprep.subr.bf16.mxu0 0
      %3726 = vmatpush1.bf16.msra.mxu0 %v3701
      %3727 = vmatprep.subr.bf16.mxu0 0
      %3728 = vmatpush1.bf16.msra.mxu0 %v3700
      %3729 = vmatprep.subr.bf16.mxu0 0
      %3730 = vmatpush1.bf16.msra.mxu0 %v3699
      %3731 = vmatprep.subr.bf16.mxu0 0
      %3732 = vmatpush2.bf16.msra.mxu0 0
      %3733 = vmatprep.subr.bf16.mxu0 0
      %3734 = vmatpush2.bf16.msra.mxu0 0
      %3735 = vmatprep.subr.bf16.mxu0 0
      %3736 = vmatpush2.bf16.msra.mxu0 0
      %3737 = vmatprep.subr.bf16.mxu0 0
      %3738 = vmatpush2.bf16.msra.mxu0 0
      %3739 = vmatprep.subr.bf16.mxu0 0
      %3740 = vmatpush2.bf16.msra.mxu0 0
      %3741 = vmatprep.subr.bf16.mxu0 0
      %3742 = vmatpush2.bf16.msra.mxu0 0
      %3743 = vmatprep.subr.bf16.mxu0 0
      %3744 = vmatpush2.bf16.msra.mxu0 0
      %3745 = vmatprep.subr.bf16.mxu0 0
      %3746 = vmatpush2.bf16.msra.mxu0 0
      %3747 = vmatprep.mubr.bf16.mxu0 0
      %3748 = vmatmul.mubr.bf16.gmra.mxu0 %v3635
      %v3749 = vpop.f32.mrf.mxu0
      %v3750 = vadd.f32 0.0, %v3749
      %v3751 = vpop.f32.mrf.mxu0
      %v3752 = vpop.f32.mrf.mxu0
      %v3753 = vadd.f32 0.0, %v3752
      %v3754 = vpop.f32.mrf.mxu0
      %3755 = vmatprep.mubr.bf16.mxu0 0
      %3756 = vmatmul.mubr.bf16.gmra.mxu0 %v3636
      %v3757 = vpop.f32.mrf.mxu0
      %v3758 = vadd.f32 0.0, %v3757
      %v3759 = vpop.f32.mrf.mxu0
      %v3760 = vpop.f32.mrf.mxu0
      %v3761 = vadd.f32 0.0, %v3760
      %v3762 = vpop.f32.mrf.mxu0
      %3763 = vmatprep.mubr.bf16.mxu0 0
      %3764 = vmatmul.mubr.bf16.gmra.mxu0 %v3637
      %v3765 = vpop.f32.mrf.mxu0
      %v3766 = vadd.f32 0.0, %v3765
      %v3767 = vpop.f32.mrf.mxu0
      %v3768 = vpop.f32.mrf.mxu0
      %v3769 = vadd.f32 0.0, %v3768
      %v3770 = vpop.f32.mrf.mxu0
      %3771 = vmatprep.mubr.bf16.mxu0 0
      %3772 = vmatmul.mubr.bf16.gmra.mxu0 %v3638
      %v3773 = vpop.f32.mrf.mxu0
      %v3774 = vadd.f32 0.0, %v3773
      %v3775 = vpop.f32.mrf.mxu0
      %v3776 = vpop.f32.mrf.mxu0
      %v3777 = vadd.f32 0.0, %v3776
      %v3778 = vpop.f32.mrf.mxu0
      %3779 = vmatprep.mubr.bf16.mxu0 0
      %3780 = vmatmul.mubr.bf16.gmra.mxu0 %v3639
      %v3781 = vpop.f32.mrf.mxu0
      %v3782 = vadd.f32 0.0, %v3781
      %v3783 = vpop.f32.mrf.mxu0
      %v3784 = vpop.f32.mrf.mxu0
      %v3785 = vadd.f32 0.0, %v3784
      %v3786 = vpop.f32.mrf.mxu0
      %3787 = vmatprep.mubr.bf16.mxu0 0
      %3788 = vmatmul.mubr.bf16.gmra.mxu0 %v3640
      %v3789 = vpop.f32.mrf.mxu0
      %v3790 = vadd.f32 0.0, %v3789
      %v3791 = vpop.f32.mrf.mxu0
      %v3792 = vpop.f32.mrf.mxu0
      %v3793 = vadd.f32 0.0, %v3792
      %v3794 = vpop.f32.mrf.mxu0
      %3795 = vmatprep.mubr.bf16.mxu0 0
      %3796 = vmatmul.mubr.bf16.gmra.mxu0 %v3641
      %v3797 = vpop.f32.mrf.mxu0
      %v3798 = vadd.f32 0.0, %v3797
      %v3799 = vpop.f32.mrf.mxu0
      %v3800 = vpop.f32.mrf.mxu0
      %v3801 = vadd.f32 0.0, %v3800
      %v3802 = vpop.f32.mrf.mxu0
      %3803 = vmatprep.mubr.bf16.mxu0 0
      %3804 = vmatmul.mubr.bf16.gmra.mxu0 %v3642
      %v3805 = vpop.f32.mrf.mxu0
      %v3806 = vadd.f32 0.0, %v3805
      %v3807 = vpop.f32.mrf.mxu0
      %v3808 = vpop.f32.mrf.mxu0
      %v3809 = vadd.f32 0.0, %v3808
      %v3810 = vpop.f32.mrf.mxu0
      %3811 = vmatprep.mubr.bf16.mxu0 0
      %3812 = vmatmul.mubr.bf16.gmra.mxu0 %v3643
      %v3813 = vpop.f32.mrf.mxu0
      %v3814 = vadd.f32 0.0, %v3813
      %v3815 = vpop.f32.mrf.mxu0
      %v3816 = vpop.f32.mrf.mxu0
      %v3817 = vadd.f32 0.0, %v3816
      %v3818 = vpop.f32.mrf.mxu0
      %3819 = vmatprep.mubr.bf16.mxu0 0
      %3820 = vmatmul.mubr.bf16.gmra.mxu0 %v3644
      %v3821 = vpop.f32.mrf.mxu0
      %v3822 = vadd.f32 0.0, %v3821
      %v3823 = vpop.f32.mrf.mxu0
      %v3824 = vpop.f32.mrf.mxu0
      %v3825 = vadd.f32 0.0, %v3824
      %v3826 = vpop.f32.mrf.mxu0
      %3827 = vmatprep.mubr.bf16.mxu0 0
      %3828 = vmatmul.mubr.bf16.gmra.mxu0 %v3645
      %v3829 = vpop.f32.mrf.mxu0
      %v3830 = vadd.f32 0.0, %v3829
      %v3831 = vpop.f32.mrf.mxu0
      %v3832 = vpop.f32.mrf.mxu0
      %v3833 = vadd.f32 0.0, %v3832
      %v3834 = vpop.f32.mrf.mxu0
      %3835 = vmatprep.mubr.bf16.mxu0 0
      %3836 = vmatmul.mubr.bf16.gmra.mxu0 %v3646
      %v3837 = vpop.f32.mrf.mxu0
      %v3838 = vadd.f32 0.0, %v3837
      %v3839 = vpop.f32.mrf.mxu0
      %v3840 = vpop.f32.mrf.mxu0
      %v3841 = vadd.f32 0.0, %v3840
      %v3842 = vpop.f32.mrf.mxu0
      %3843 = vmatprep.mubr.bf16.mxu0 0
      %3844 = vmatmul.mubr.bf16.gmra.mxu0 %v3647
      %v3845 = vpop.f32.mrf.mxu0
      %v3846 = vadd.f32 0.0, %v3845
      %v3847 = vpop.f32.mrf.mxu0
      %v3848 = vpop.f32.mrf.mxu0
      %v3849 = vadd.f32 0.0, %v3848
      %v3850 = vpop.f32.mrf.mxu0
      %3851 = vmatprep.mubr.bf16.mxu0 0
      %3852 = vmatmul.mubr.bf16.gmra.mxu0 %v3648
      %v3853 = vpop.f32.mrf.mxu0
      %v3854 = vadd.f32 0.0, %v3853
      %v3855 = vpop.f32.mrf.mxu0
      %v3856 = vpop.f32.mrf.mxu0
      %v3857 = vadd.f32 0.0, %v3856
      %v3858 = vpop.f32.mrf.mxu0
      %3859 = vmatprep.mubr.bf16.mxu0 0
      %3860 = vmatmul.mubr.bf16.gmra.mxu0 %v3649
      %v3861 = vpop.f32.mrf.mxu0
      %v3862 = vadd.f32 0.0, %v3861
      %v3863 = vpop.f32.mrf.mxu0
      %v3864 = vpop.f32.mrf.mxu0
      %v3865 = vadd.f32 0.0, %v3864
      %v3866 = vpop.f32.mrf.mxu0
      %3867 = vmatprep.mubr.bf16.mxu0 0
      %3868 = vmatmul.mubr.bf16.gmra.mxu0 %v3650
      %v3869 = vpop.f32.mrf.mxu0
      %v3870 = vadd.f32 0.0, %v3869
      %v3871 = vpop.f32.mrf.mxu0
      %v3872 = vpop.f32.mrf.mxu0
      %v3873 = vadd.f32 0.0, %v3872
      %v3874 = vpop.f32.mrf.mxu0
      %3875 = vdwg.mxu0
      %v3876 = vadd.f32 %v2977, %v3750
      %v3877 = vadd.f32 %v2978, %v3753
      %v3878 = vadd.f32 %v2979, %v3758
      %v3879 = vadd.f32 %v2980, %v3761
      %v3880 = vadd.f32 %v2981, %v3766
      %v3881 = vadd.f32 %v2982, %v3769
      %v3882 = vadd.f32 %v2983, %v3774
      %v3883 = vadd.f32 %v2984, %v3777
      %v3884 = vadd.f32 %v2985, %v3782
      %v3885 = vadd.f32 %v2986, %v3785
      %v3886 = vadd.f32 %v2987, %v3790
      %v3887 = vadd.f32 %v2988, %v3793
      %v3888 = vadd.f32 %v2989, %v3798
      %v3889 = vadd.f32 %v2990, %v3801
      %v3890 = vadd.f32 %v2991, %v3806
      %v3891 = vadd.f32 %v2992, %v3809
      %v3892 = vadd.f32 %v2993, %v3814
      %v3893 = vadd.f32 %v2994, %v3817
      %v3894 = vadd.f32 %v2995, %v3822
      %v3895 = vadd.f32 %v2996, %v3825
      %v3896 = vadd.f32 %v2997, %v3830
      %v3897 = vadd.f32 %v2998, %v3833
      %v3898 = vadd.f32 %v2999, %v3838
      %v3899 = vadd.f32 %v3000, %v3841
      %v3900 = vadd.f32 %v3001, %v3846
      %v3901 = vadd.f32 %v3002, %v3849
      %v3902 = vadd.f32 %v3003, %v3854
      %v3903 = vadd.f32 %v3004, %v3857
      %v3904 = vadd.f32 %v3005, %v3862
      %v3905 = vadd.f32 %v3006, %v3865
      %v3906 = vadd.f32 %v3007, %v3870
      %v3907 = vadd.f32 %v3008, %v3873
      %s3908 = sadd.s32 %s324, 2
      %s3909 = smul.u32 %s3908, 3
      %s3910 = smul.addr %s3909, 4
      %s3911 = scalar_lea.vmem %s292, %s3910
      %v3912 = vld [vmem:[%s3911] sm:$0xf]
      %v3913 = vld [vmem:[%s3911 + $0x4] sm:$0xf]
      %v3914 = vld [vmem:[%s3911 + $0xc] sm:$0xf]
      %v3915 = vld [vmem:[%s3911 + $0x10] sm:$0xf]
      %v3916 = vld [vmem:[%s3911 + $0x18] sm:$0xf]
      %v3917 = vld [vmem:[%s3911 + $0x1c] sm:$0xf]
      %v3918 = vld [vmem:[%s3911 + $0x24] sm:$0xf]
      %v3919 = vld [vmem:[%s3911 + $0x28] sm:$0xf]
      %v3920 = vld [vmem:[%s3911 + $0x30] sm:$0xf]
      %v3921 = vld [vmem:[%s3911 + $0x34] sm:$0xf]
      %v3922 = vld [vmem:[%s3911 + $0x3c] sm:$0xf]
      %v3923 = vld [vmem:[%s3911 + $0x40] sm:$0xf]
      %v3924 = vld [vmem:[%s3911 + $0x48] sm:$0xf]
      %v3925 = vld [vmem:[%s3911 + $0x4c] sm:$0xf]
      %v3926 = vld [vmem:[%s3911 + $0x54] sm:$0xf]
      %v3927 = vld [vmem:[%s3911 + $0x58] sm:$0xf]
      %v3928 = vld [vmem:[%s3911 + $0x60] sm:$0xf]
      %v3929 = vld [vmem:[%s3911 + $0x64] sm:$0xf]
      %v3930 = vld [vmem:[%s3911 + $0x6c] sm:$0xf]
      %v3931 = vld [vmem:[%s3911 + $0x70] sm:$0xf]
      %v3932 = vld [vmem:[%s3911 + $0x78] sm:$0xf]
      %v3933 = vld [vmem:[%s3911 + $0x7c] sm:$0xf]
      %v3934 = vld [vmem:[%s3911 + $0x84] sm:$0xf]
      %v3935 = vld [vmem:[%s3911 + $0x88] sm:$0xf]
      %v3936 = vld [vmem:[%s3911 + $0x90] sm:$0xf]
      %v3937 = vld [vmem:[%s3911 + $0x94] sm:$0xf]
      %v3938 = vld [vmem:[%s3911 + $0x9c] sm:$0xf]
      %v3939 = vld [vmem:[%s3911 + $0xa0] sm:$0xf]
      %v3940 = vld [vmem:[%s3911 + $0xa8] sm:$0xf]
      %v3941 = vld [vmem:[%s3911 + $0xac] sm:$0xf]
      %v3942 = vld [vmem:[%s3911 + $0xb4] sm:$0xf]
      %v3943 = vld [vmem:[%s3911 + $0xb8] sm:$0xf]
      %s3944 = scalar_lea.vmem %s1, 384
      %v3945 = vld [vmem:[%s3944] sm:$0xf]
      %v3946 = vld [vmem:[%s3944 + $0x4] sm:$0xf]
      %v3947 = vld [vmem:[%s3944 + $0x8] sm:$0xf]
      %v3948 = vld [vmem:[%s3944 + $0xc] sm:$0xf]
      %v3949 = vld [vmem:[%s3944 + $0x10] sm:$0xf]
      %v3950 = vld [vmem:[%s3944 + $0x14] sm:$0xf]
      %v3951 = vld [vmem:[%s3944 + $0x18] sm:$0xf]
      %v3952 = vld [vmem:[%s3944 + $0x1c] sm:$0xf]
      %v3953 = vld [vmem:[%s3944 + $0x20] sm:$0xf]
      %v3954 = vld [vmem:[%s3944 + $0x24] sm:$0xf]
      %v3955 = vld [vmem:[%s3944 + $0x28] sm:$0xf]
      %v3956 = vld [vmem:[%s3944 + $0x2c] sm:$0xf]
      %v3957 = vld [vmem:[%s3944 + $0x30] sm:$0xf]
      %v3958 = vld [vmem:[%s3944 + $0x34] sm:$0xf]
      %v3959 = vld [vmem:[%s3944 + $0x38] sm:$0xf]
      %v3960 = vld [vmem:[%s3944 + $0x3c] sm:$0xf]
      %v3993 = vunpack.c.l.b16 %v3912
      %v3994 = vunpack.c.l.b16 %v3913
      %v3995 = vunpack.c.l.b16 %v3914
      %v3996 = vunpack.c.l.b16 %v3915
      %v3997 = vunpack.c.l.b16 %v3916
      %v3998 = vunpack.c.l.b16 %v3917
      %v3999 = vunpack.c.l.b16 %v3918
      %v4000 = vunpack.c.l.b16 %v3919
      %v4001 = vunpack.c.l.b16 %v3920
      %v4002 = vunpack.c.l.b16 %v3921
      %v4003 = vunpack.c.l.b16 %v3922
      %v4004 = vunpack.c.l.b16 %v3923
      %v4005 = vunpack.c.l.b16 %v3924
      %v4006 = vunpack.c.l.b16 %v3925
      %v4007 = vunpack.c.l.b16 %v3926
      %v4008 = vunpack.c.l.b16 %v3927
      %v4009 = vunpack.c.l.b16 %v3928
      %v4010 = vunpack.c.l.b16 %v3929
      %v4011 = vunpack.c.l.b16 %v3930
      %v4012 = vunpack.c.l.b16 %v3931
      %v4013 = vunpack.c.l.b16 %v3932
      %v4014 = vunpack.c.l.b16 %v3933
      %v4015 = vunpack.c.l.b16 %v3934
      %v4016 = vunpack.c.l.b16 %v3935
      %v4017 = vunpack.c.l.b16 %v3936
      %v4018 = vunpack.c.l.b16 %v3937
      %v4019 = vunpack.c.l.b16 %v3938
      %v4020 = vunpack.c.l.b16 %v3939
      %v4021 = vunpack.c.l.b16 %v3940
      %v4022 = vunpack.c.l.b16 %v3941
      %v4023 = vunpack.c.l.b16 %v3942
      %v4024 = vunpack.c.l.b16 %v3943
      %v4025 = vpack.c.b16 %v3994, %v3993
      %v4026 = vpack.c.b16 %v3996, %v3995
      %v4027 = vpack.c.b16 %v3998, %v3997
      %v4028 = vpack.c.b16 %v4000, %v3999
      %v4029 = vpack.c.b16 %v4002, %v4001
      %v4030 = vpack.c.b16 %v4004, %v4003
      %v4031 = vpack.c.b16 %v4006, %v4005
      %v4032 = vpack.c.b16 %v4008, %v4007
      %v4033 = vpack.c.b16 %v4010, %v4009
      %v4034 = vpack.c.b16 %v4012, %v4011
      %v4035 = vpack.c.b16 %v4014, %v4013
      %v4036 = vpack.c.b16 %v4016, %v4015
      %v4037 = vpack.c.b16 %v4018, %v4017
      %v4038 = vpack.c.b16 %v4020, %v4019
      %v4039 = vpack.c.b16 %v4022, %v4021
      %v4040 = vpack.c.b16 %v4024, %v4023
      %v4073 = vunpack.c.l.b16 %v3945
      %v4074 = vunpack.c.l.b16 %v3946
      %v4075 = vunpack.c.l.b16 %v3947
      %v4076 = vunpack.c.l.b16 %v3948
      %v4077 = vunpack.c.l.b16 %v3949
      %v4078 = vunpack.c.l.b16 %v3950
      %v4079 = vunpack.c.l.b16 %v3951
      %v4080 = vunpack.c.l.b16 %v3952
      %v4081 = vunpack.c.l.b16 %v3953
      %v4082 = vunpack.c.l.b16 %v3954
      %v4083 = vunpack.c.l.b16 %v3955
      %v4084 = vunpack.c.l.b16 %v3956
      %v4085 = vunpack.c.l.b16 %v3957
      %v4086 = vunpack.c.l.b16 %v3958
      %v4087 = vunpack.c.l.b16 %v3959
      %v4088 = vunpack.c.l.b16 %v3960
      %v4089 = vpack.c.b16 %v4074, %v4073
      %v4090 = vpack.c.b16 %v4076, %v4075
      %v4091 = vpack.c.b16 %v4078, %v4077
      %v4092 = vpack.c.b16 %v4080, %v4079
      %v4093 = vpack.c.b16 %v4082, %v4081
      %v4094 = vpack.c.b16 %v4084, %v4083
      %v4095 = vpack.c.b16 %v4086, %v4085
      %v4096 = vpack.c.b16 %v4088, %v4087
      %4105 = vmatprep.subr.bf16.mxu0 0
      %4106 = vmatpush1.bf16.msra.mxu0 %v4096
      %4107 = vmatprep.subr.bf16.mxu0 0
      %4108 = vmatpush1.bf16.msra.mxu0 %v4095
      %4109 = vmatprep.subr.bf16.mxu0 0
      %4110 = vmatpush1.bf16.msra.mxu0 %v4094
      %4111 = vmatprep.subr.bf16.mxu0 0
      %4112 = vmatpush1.bf16.msra.mxu0 %v4093
      %4113 = vmatprep.subr.bf16.mxu0 0
      %4114 = vmatpush1.bf16.msra.mxu0 %v4092
      %4115 = vmatprep.subr.bf16.mxu0 0
      %4116 = vmatpush1.bf16.msra.mxu0 %v4091
      %4117 = vmatprep.subr.bf16.mxu0 0
      %4118 = vmatpush1.bf16.msra.mxu0 %v4090
      %4119 = vmatprep.subr.bf16.mxu0 0
      %4120 = vmatpush1.bf16.msra.mxu0 %v4089
      %4121 = vmatprep.subr.bf16.mxu0 0
      %4122 = vmatpush2.bf16.msra.mxu0 0
      %4123 = vmatprep.subr.bf16.mxu0 0
      %4124 = vmatpush2.bf16.msra.mxu0 0
      %4125 = vmatprep.subr.bf16.mxu0 0
      %4126 = vmatpush2.bf16.msra.mxu0 0
      %4127 = vmatprep.subr.bf16.mxu0 0
      %4128 = vmatpush2.bf16.msra.mxu0 0
      %4129 = vmatprep.subr.bf16.mxu0 0
      %4130 = vmatpush2.bf16.msra.mxu0 0
      %4131 = vmatprep.subr.bf16.mxu0 0
      %4132 = vmatpush2.bf16.msra.mxu0 0
      %4133 = vmatprep.subr.bf16.mxu0 0
      %4134 = vmatpush2.bf16.msra.mxu0 0
      %4135 = vmatprep.subr.bf16.mxu0 0
      %4136 = vmatpush2.bf16.msra.mxu0 0
      %4137 = vmatprep.mubr.bf16.mxu0 0
      %4138 = vmatmul.mubr.bf16.gmra.mxu0 %v4025
      %v4139 = vpop.f32.mrf.mxu0
      %v4140 = vadd.f32 0.0, %v4139
      %v4141 = vpop.f32.mrf.mxu0
      %v4142 = vpop.f32.mrf.mxu0
      %v4143 = vadd.f32 0.0, %v4142
      %v4144 = vpop.f32.mrf.mxu0
      %4145 = vmatprep.mubr.bf16.mxu0 0
      %4146 = vmatmul.mubr.bf16.gmra.mxu0 %v4026
      %v4147 = vpop.f32.mrf.mxu0
      %v4148 = vadd.f32 0.0, %v4147
      %v4149 = vpop.f32.mrf.mxu0
      %v4150 = vpop.f32.mrf.mxu0
      %v4151 = vadd.f32 0.0, %v4150
      %v4152 = vpop.f32.mrf.mxu0
      %4153 = vmatprep.mubr.bf16.mxu0 0
      %4154 = vmatmul.mubr.bf16.gmra.mxu0 %v4027
      %v4155 = vpop.f32.mrf.mxu0
      %v4156 = vadd.f32 0.0, %v4155
      %v4157 = vpop.f32.mrf.mxu0
      %v4158 = vpop.f32.mrf.mxu0
      %v4159 = vadd.f32 0.0, %v4158
      %v4160 = vpop.f32.mrf.mxu0
      %4161 = vmatprep.mubr.bf16.mxu0 0
      %4162 = vmatmul.mubr.bf16.gmra.mxu0 %v4028
      %v4163 = vpop.f32.mrf.mxu0
      %v4164 = vadd.f32 0.0, %v4163
      %v4165 = vpop.f32.mrf.mxu0
      %v4166 = vpop.f32.mrf.mxu0
      %v4167 = vadd.f32 0.0, %v4166
      %v4168 = vpop.f32.mrf.mxu0
      %4169 = vmatprep.mubr.bf16.mxu0 0
      %4170 = vmatmul.mubr.bf16.gmra.mxu0 %v4029
      %v4171 = vpop.f32.mrf.mxu0
      %v4172 = vadd.f32 0.0, %v4171
      %v4173 = vpop.f32.mrf.mxu0
      %v4174 = vpop.f32.mrf.mxu0
      %v4175 = vadd.f32 0.0, %v4174
      %v4176 = vpop.f32.mrf.mxu0
      %4177 = vmatprep.mubr.bf16.mxu0 0
      %4178 = vmatmul.mubr.bf16.gmra.mxu0 %v4030
      %v4179 = vpop.f32.mrf.mxu0
      %v4180 = vadd.f32 0.0, %v4179
      %v4181 = vpop.f32.mrf.mxu0
      %v4182 = vpop.f32.mrf.mxu0
      %v4183 = vadd.f32 0.0, %v4182
      %v4184 = vpop.f32.mrf.mxu0
      %4185 = vmatprep.mubr.bf16.mxu0 0
      %4186 = vmatmul.mubr.bf16.gmra.mxu0 %v4031
      %v4187 = vpop.f32.mrf.mxu0
      %v4188 = vadd.f32 0.0, %v4187
      %v4189 = vpop.f32.mrf.mxu0
      %v4190 = vpop.f32.mrf.mxu0
      %v4191 = vadd.f32 0.0, %v4190
      %v4192 = vpop.f32.mrf.mxu0
      %4193 = vmatprep.mubr.bf16.mxu0 0
      %4194 = vmatmul.mubr.bf16.gmra.mxu0 %v4032
      %v4195 = vpop.f32.mrf.mxu0
      %v4196 = vadd.f32 0.0, %v4195
      %v4197 = vpop.f32.mrf.mxu0
      %v4198 = vpop.f32.mrf.mxu0
      %v4199 = vadd.f32 0.0, %v4198
      %v4200 = vpop.f32.mrf.mxu0
      %4201 = vmatprep.mubr.bf16.mxu0 0
      %4202 = vmatmul.mubr.bf16.gmra.mxu0 %v4033
      %v4203 = vpop.f32.mrf.mxu0
      %v4204 = vadd.f32 0.0, %v4203
      %v4205 = vpop.f32.mrf.mxu0
      %v4206 = vpop.f32.mrf.mxu0
      %v4207 = vadd.f32 0.0, %v4206
      %v4208 = vpop.f32.mrf.mxu0
      %4209 = vmatprep.mubr.bf16.mxu0 0
      %4210 = vmatmul.mubr.bf16.gmra.mxu0 %v4034
      %v4211 = vpop.f32.mrf.mxu0
      %v4212 = vadd.f32 0.0, %v4211
      %v4213 = vpop.f32.mrf.mxu0
      %v4214 = vpop.f32.mrf.mxu0
      %v4215 = vadd.f32 0.0, %v4214
      %v4216 = vpop.f32.mrf.mxu0
      %4217 = vmatprep.mubr.bf16.mxu0 0
      %4218 = vmatmul.mubr.bf16.gmra.mxu0 %v4035
      %v4219 = vpop.f32.mrf.mxu0
      %v4220 = vadd.f32 0.0, %v4219
      %v4221 = vpop.f32.mrf.mxu0
      %v4222 = vpop.f32.mrf.mxu0
      %v4223 = vadd.f32 0.0, %v4222
      %v4224 = vpop.f32.mrf.mxu0
      %4225 = vmatprep.mubr.bf16.mxu0 0
      %4226 = vmatmul.mubr.bf16.gmra.mxu0 %v4036
      %v4227 = vpop.f32.mrf.mxu0
      %v4228 = vadd.f32 0.0, %v4227
      %v4229 = vpop.f32.mrf.mxu0
      %v4230 = vpop.f32.mrf.mxu0
      %v4231 = vadd.f32 0.0, %v4230
      %v4232 = vpop.f32.mrf.mxu0
      %4233 = vmatprep.mubr.bf16.mxu0 0
      %4234 = vmatmul.mubr.bf16.gmra.mxu0 %v4037
      %v4235 = vpop.f32.mrf.mxu0
      %v4236 = vadd.f32 0.0, %v4235
      %v4237 = vpop.f32.mrf.mxu0
      %v4238 = vpop.f32.mrf.mxu0
      %v4239 = vadd.f32 0.0, %v4238
      %v4240 = vpop.f32.mrf.mxu0
      %4241 = vmatprep.mubr.bf16.mxu0 0
      %4242 = vmatmul.mubr.bf16.gmra.mxu0 %v4038
      %v4243 = vpop.f32.mrf.mxu0
      %v4244 = vadd.f32 0.0, %v4243
      %v4245 = vpop.f32.mrf.mxu0
      %v4246 = vpop.f32.mrf.mxu0
      %v4247 = vadd.f32 0.0, %v4246
      %v4248 = vpop.f32.mrf.mxu0
      %4249 = vmatprep.mubr.bf16.mxu0 0
      %4250 = vmatmul.mubr.bf16.gmra.mxu0 %v4039
      %v4251 = vpop.f32.mrf.mxu0
      %v4252 = vadd.f32 0.0, %v4251
      %v4253 = vpop.f32.mrf.mxu0
      %v4254 = vpop.f32.mrf.mxu0
      %v4255 = vadd.f32 0.0, %v4254
      %v4256 = vpop.f32.mrf.mxu0
      %4257 = vmatprep.mubr.bf16.mxu0 0
      %4258 = vmatmul.mubr.bf16.gmra.mxu0 %v4040
      %v4259 = vpop.f32.mrf.mxu0
      %v4260 = vadd.f32 0.0, %v4259
      %v4261 = vpop.f32.mrf.mxu0
      %v4262 = vpop.f32.mrf.mxu0
      %v4263 = vadd.f32 0.0, %v4262
      %v4264 = vpop.f32.mrf.mxu0
      %4265 = vdwg.mxu0
      %v4266 = vadd.f32 %v3876, %v4140
      %v4267 = vadd.f32 %v3877, %v4143
      %v4268 = vadd.f32 %v3878, %v4148
      %v4269 = vadd.f32 %v3879, %v4151
      %v4270 = vadd.f32 %v3880, %v4156
      %v4271 = vadd.f32 %v3881, %v4159
      %v4272 = vadd.f32 %v3882, %v4164
      %v4273 = vadd.f32 %v3883, %v4167
      %v4274 = vadd.f32 %v3884, %v4172
      %v4275 = vadd.f32 %v3885, %v4175
      %v4276 = vadd.f32 %v3886, %v4180
      %v4277 = vadd.f32 %v3887, %v4183
      %v4278 = vadd.f32 %v3888, %v4188
      %v4279 = vadd.f32 %v3889, %v4191
      %v4280 = vadd.f32 %v3890, %v4196
      %v4281 = vadd.f32 %v3891, %v4199
      %v4282 = vadd.f32 %v3892, %v4204
      %v4283 = vadd.f32 %v3893, %v4207
      %v4284 = vadd.f32 %v3894, %v4212
      %v4285 = vadd.f32 %v3895, %v4215
      %v4286 = vadd.f32 %v3896, %v4220
      %v4287 = vadd.f32 %v3897, %v4223
      %v4288 = vadd.f32 %v3898, %v4228
      %v4289 = vadd.f32 %v3899, %v4231
      %v4290 = vadd.f32 %v3900, %v4236
      %v4291 = vadd.f32 %v3901, %v4239
      %v4292 = vadd.f32 %v3902, %v4244
      %v4293 = vadd.f32 %v3903, %v4247
      %v4294 = vadd.f32 %v3904, %v4252
      %v4295 = vadd.f32 %v3905, %v4255
      %v4296 = vadd.f32 %v3906, %v4260
      %v4297 = vadd.f32 %v3907, %v4263
      %v4298 = vld [vmem:[%s3911] sm:$0xf]
      %v4299 = vld [vmem:[%s3911 + $0x4] sm:$0xf]
      %v4300 = vld [vmem:[%s3911 + $0x8] sm:$0x1]
      %v4301 = vld [vmem:[%s3911 + $0xc] sm:$0xf]
      %v4302 = vld [vmem:[%s3911 + $0x10] sm:$0xf]
      %v4303 = vld [vmem:[%s3911 + $0x14] sm:$0x1]
      %v4304 = vld [vmem:[%s3911 + $0x18] sm:$0xf]
      %v4305 = vld [vmem:[%s3911 + $0x1c] sm:$0xf]
      %v4306 = vld [vmem:[%s3911 + $0x20] sm:$0x1]
      %v4307 = vld [vmem:[%s3911 + $0x24] sm:$0xf]
      %v4308 = vld [vmem:[%s3911 + $0x28] sm:$0xf]
      %v4309 = vld [vmem:[%s3911 + $0x2c] sm:$0x1]
      %v4310 = vld [vmem:[%s3911 + $0x30] sm:$0xf]
      %v4311 = vld [vmem:[%s3911 + $0x34] sm:$0xf]
      %v4312 = vld [vmem:[%s3911 + $0x38] sm:$0x1]
      %v4313 = vld [vmem:[%s3911 + $0x3c] sm:$0xf]
      %v4314 = vld [vmem:[%s3911 + $0x40] sm:$0xf]
      %v4315 = vld [vmem:[%s3911 + $0x44] sm:$0x1]
      %v4316 = vld [vmem:[%s3911 + $0x48] sm:$0xf]
      %v4317 = vld [vmem:[%s3911 + $0x4c] sm:$0xf]
      %v4318 = vld [vmem:[%s3911 + $0x50] sm:$0x1]
      %v4319 = vld [vmem:[%s3911 + $0x54] sm:$0xf]
      %v4320 = vld [vmem:[%s3911 + $0x58] sm:$0xf]
      %v4321 = vld [vmem:[%s3911 + $0x5c] sm:$0x1]
      %v4322 = vld [vmem:[%s3911 + $0x60] sm:$0xf]
      %v4323 = vld [vmem:[%s3911 + $0x64] sm:$0xf]
      %v4324 = vld [vmem:[%s3911 + $0x68] sm:$0x1]
      %v4325 = vld [vmem:[%s3911 + $0x6c] sm:$0xf]
      %v4326 = vld [vmem:[%s3911 + $0x70] sm:$0xf]
      %v4327 = vld [vmem:[%s3911 + $0x74] sm:$0x1]
      %v4328 = vld [vmem:[%s3911 + $0x78] sm:$0xf]
      %v4329 = vld [vmem:[%s3911 + $0x7c] sm:$0xf]
      %v4330 = vld [vmem:[%s3911 + $0x80] sm:$0x1]
      %v4331 = vld [vmem:[%s3911 + $0x84] sm:$0xf]
      %v4332 = vld [vmem:[%s3911 + $0x88] sm:$0xf]
      %v4333 = vld [vmem:[%s3911 + $0x8c] sm:$0x1]
      %v4334 = vld [vmem:[%s3911 + $0x90] sm:$0xf]
      %v4335 = vld [vmem:[%s3911 + $0x94] sm:$0xf]
      %v4336 = vld [vmem:[%s3911 + $0x98] sm:$0x1]
      %v4337 = vld [vmem:[%s3911 + $0x9c] sm:$0xf]
      %v4338 = vld [vmem:[%s3911 + $0xa0] sm:$0xf]
      %v4339 = vld [vmem:[%s3911 + $0xa4] sm:$0x1]
      %v4340 = vld [vmem:[%s3911 + $0xa8] sm:$0xf]
      %v4341 = vld [vmem:[%s3911 + $0xac] sm:$0xf]
      %v4342 = vld [vmem:[%s3911 + $0xb0] sm:$0x1]
      %v4343 = vld [vmem:[%s3911 + $0xb4] sm:$0xf]
      %v4344 = vld [vmem:[%s3911 + $0xb8] sm:$0xf]
      %v4345 = vld [vmem:[%s3911 + $0xbc] sm:$0x1]
      %v4347 = vshrl.u32 %v4298, 16
      %v4349 = vrot.slane %v4347, 4
      %v4350 = vshll.u32 %v4298, 16
      %v4352 = vrot.slane %v4350, 5
      %v4353 = vor.u32 %v4349, %v4352
      %v4354 = vrot.slane %v4353, 4
      %v4356 = vshll.u32 %v4299, 16
      %v4358 = vrot.slane %v4356, 5
      %v4359 = vsel %vm400, %v4354, %v4358
      %v4360 = vshrl.u32 %v4299, 16
      %v4362 = vrot.slane %v4360, 4
      %v4363 = vor.u32 %v4362, %v4358
      %v4364 = vrot.slane %v4363, 4
      %v4366 = vshll.u32 %v4300, 16
      %v4368 = vrot.slane %v4366, 5
      %v4369 = vsel %vm400, %v4364, %v4368
      %v4371 = vshrl.u32 %v4301, 16
      %v4373 = vrot.slane %v4371, 4
      %v4374 = vshll.u32 %v4301, 16
      %v4376 = vrot.slane %v4374, 5
      %v4377 = vor.u32 %v4373, %v4376
      %v4378 = vrot.slane %v4377, 4
      %v4380 = vshll.u32 %v4302, 16
      %v4382 = vrot.slane %v4380, 5
      %v4383 = vsel %vm400, %v4378, %v4382
      %v4384 = vshrl.u32 %v4302, 16
      %v4386 = vrot.slane %v4384, 4
      %v4387 = vor.u32 %v4386, %v4382
      %v4388 = vrot.slane %v4387, 4
      %v4390 = vshll.u32 %v4303, 16
      %v4392 = vrot.slane %v4390, 5
      %v4393 = vsel %vm400, %v4388, %v4392
      %v4395 = vshrl.u32 %v4304, 16
      %v4397 = vrot.slane %v4395, 4
      %v4398 = vshll.u32 %v4304, 16
      %v4400 = vrot.slane %v4398, 5
      %v4401 = vor.u32 %v4397, %v4400
      %v4402 = vrot.slane %v4401, 4
      %v4404 = vshll.u32 %v4305, 16
      %v4406 = vrot.slane %v4404, 5
      %v4407 = vsel %vm400, %v4402, %v4406
      %v4408 = vshrl.u32 %v4305, 16
      %v4410 = vrot.slane %v4408, 4
      %v4411 = vor.u32 %v4410, %v4406
      %v4412 = vrot.slane %v4411, 4
      %v4414 = vshll.u32 %v4306, 16
      %v4416 = vrot.slane %v4414, 5
      %v4417 = vsel %vm400, %v4412, %v4416
      %v4419 = vshrl.u32 %v4307, 16
      %v4421 = vrot.slane %v4419, 4
      %v4422 = vshll.u32 %v4307, 16
      %v4424 = vrot.slane %v4422, 5
      %v4425 = vor.u32 %v4421, %v4424
      %v4426 = vrot.slane %v4425, 4
      %v4428 = vshll.u32 %v4308, 16
      %v4430 = vrot.slane %v4428, 5
      %v4431 = vsel %vm400, %v4426, %v4430
      %v4432 = vshrl.u32 %v4308, 16
      %v4434 = vrot.slane %v4432, 4
      %v4435 = vor.u32 %v4434, %v4430
      %v4436 = vrot.slane %v4435, 4
      %v4438 = vshll.u32 %v4309, 16
      %v4440 = vrot.slane %v4438, 5
      %v4441 = vsel %vm400, %v4436, %v4440
      %v4443 = vshrl.u32 %v4310, 16
      %v4445 = vrot.slane %v4443, 4
      %v4446 = vshll.u32 %v4310, 16
      %v4448 = vrot.slane %v4446, 5
      %v4449 = vor.u32 %v4445, %v4448
      %v4450 = vrot.slane %v4449, 4
      %v4452 = vshll.u32 %v4311, 16
      %v4454 = vrot.slane %v4452, 5
      %v4455 = vsel %vm400, %v4450, %v4454
      %v4456 = vshrl.u32 %v4311, 16
      %v4458 = vrot.slane %v4456, 4
      %v4459 = vor.u32 %v4458, %v4454
      %v4460 = vrot.slane %v4459, 4
      %v4462 = vshll.u32 %v4312, 16
      %v4464 = vrot.slane %v4462, 5
      %v4465 = vsel %vm400, %v4460, %v4464
      %v4467 = vshrl.u32 %v4313, 16
      %v4469 = vrot.slane %v4467, 4
      %v4470 = vshll.u32 %v4313, 16
      %v4472 = vrot.slane %v4470, 5
      %v4473 = vor.u32 %v4469, %v4472
      %v4474 = vrot.slane %v4473, 4
      %v4476 = vshll.u32 %v4314, 16
      %v4478 = vrot.slane %v4476, 5
      %v4479 = vsel %vm400, %v4474, %v4478
      %v4480 = vshrl.u32 %v4314, 16
      %v4482 = vrot.slane %v4480, 4
      %v4483 = vor.u32 %v4482, %v4478
      %v4484 = vrot.slane %v4483, 4
      %v4486 = vshll.u32 %v4315, 16
      %v4488 = vrot.slane %v4486, 5
      %v4489 = vsel %vm400, %v4484, %v4488
      %v4491 = vshrl.u32 %v4316, 16
      %v4493 = vrot.slane %v4491, 4
      %v4494 = vshll.u32 %v4316, 16
      %v4496 = vrot.slane %v4494, 5
      %v4497 = vor.u32 %v4493, %v4496
      %v4498 = vrot.slane %v4497, 4
      %v4500 = vshll.u32 %v4317, 16
      %v4502 = vrot.slane %v4500, 5
      %v4503 = vsel %vm400, %v4498, %v4502
      %v4504 = vshrl.u32 %v4317, 16
      %v4506 = vrot.slane %v4504, 4
      %v4507 = vor.u32 %v4506, %v4502
      %v4508 = vrot.slane %v4507, 4
      %v4510 = vshll.u32 %v4318, 16
      %v4512 = vrot.slane %v4510, 5
      %v4513 = vsel %vm400, %v4508, %v4512
      %v4515 = vshrl.u32 %v4319, 16
      %v4517 = vrot.slane %v4515, 4
      %v4518 = vshll.u32 %v4319, 16
      %v4520 = vrot.slane %v4518, 5
      %v4521 = vor.u32 %v4517, %v4520
      %v4522 = vrot.slane %v4521, 4
      %v4524 = vshll.u32 %v4320, 16
      %v4526 = vrot.slane %v4524, 5
      %v4527 = vsel %vm400, %v4522, %v4526
      %v4528 = vshrl.u32 %v4320, 16
      %v4530 = vrot.slane %v4528, 4
      %v4531 = vor.u32 %v4530, %v4526
      %v4532 = vrot.slane %v4531, 4
      %v4534 = vshll.u32 %v4321, 16
      %v4536 = vrot.slane %v4534, 5
      %v4537 = vsel %vm400, %v4532, %v4536
      %v4539 = vshrl.u32 %v4322, 16
      %v4541 = vrot.slane %v4539, 4
      %v4542 = vshll.u32 %v4322, 16
      %v4544 = vrot.slane %v4542, 5
      %v4545 = vor.u32 %v4541, %v4544
      %v4546 = vrot.slane %v4545, 4
      %v4548 = vshll.u32 %v4323, 16
      %v4550 = vrot.slane %v4548, 5
      %v4551 = vsel %vm400, %v4546, %v4550
      %v4552 = vshrl.u32 %v4323, 16
      %v4554 = vrot.slane %v4552, 4
      %v4555 = vor.u32 %v4554, %v4550
      %v4556 = vrot.slane %v4555, 4
      %v4558 = vshll.u32 %v4324, 16
      %v4560 = vrot.slane %v4558, 5
      %v4561 = vsel %vm400, %v4556, %v4560
      %v4563 = vshrl.u32 %v4325, 16
      %v4565 = vrot.slane %v4563, 4
      %v4566 = vshll.u32 %v4325, 16
      %v4568 = vrot.slane %v4566, 5
      %v4569 = vor.u32 %v4565, %v4568
      %v4570 = vrot.slane %v4569, 4
      %v4572 = vshll.u32 %v4326, 16
      %v4574 = vrot.slane %v4572, 5
      %v4575 = vsel %vm400, %v4570, %v4574
      %v4576 = vshrl.u32 %v4326, 16
      %v4578 = vrot.slane %v4576, 4
      %v4579 = vor.u32 %v4578, %v4574
      %v4580 = vrot.slane %v4579, 4
      %v4582 = vshll.u32 %v4327, 16
      %v4584 = vrot.slane %v4582, 5
      %v4585 = vsel %vm400, %v4580, %v4584
      %v4587 = vshrl.u32 %v4328, 16
      %v4589 = vrot.slane %v4587, 4
      %v4590 = vshll.u32 %v4328, 16
      %v4592 = vrot.slane %v4590, 5
      %v4593 = vor.u32 %v4589, %v4592
      %v4594 = vrot.slane %v4593, 4
      %v4596 = vshll.u32 %v4329, 16
      %v4598 = vrot.slane %v4596, 5
      %v4599 = vsel %vm400, %v4594, %v4598
      %v4600 = vshrl.u32 %v4329, 16
      %v4602 = vrot.slane %v4600, 4
      %v4603 = vor.u32 %v4602, %v4598
      %v4604 = vrot.slane %v4603, 4
      %v4606 = vshll.u32 %v4330, 16
      %v4608 = vrot.slane %v4606, 5
      %v4609 = vsel %vm400, %v4604, %v4608
      %v4611 = vshrl.u32 %v4331, 16
      %v4613 = vrot.slane %v4611, 4
      %v4614 = vshll.u32 %v4331, 16
      %v4616 = vrot.slane %v4614, 5
      %v4617 = vor.u32 %v4613, %v4616
      %v4618 = vrot.slane %v4617, 4
      %v4620 = vshll.u32 %v4332, 16
      %v4622 = vrot.slane %v4620, 5
      %v4623 = vsel %vm400, %v4618, %v4622
      %v4624 = vshrl.u32 %v4332, 16
      %v4626 = vrot.slane %v4624, 4
      %v4627 = vor.u32 %v4626, %v4622
      %v4628 = vrot.slane %v4627, 4
      %v4630 = vshll.u32 %v4333, 16
      %v4632 = vrot.slane %v4630, 5
      %v4633 = vsel %vm400, %v4628, %v4632
      %v4635 = vshrl.u32 %v4334, 16
      %v4637 = vrot.slane %v4635, 4
      %v4638 = vshll.u32 %v4334, 16
      %v4640 = vrot.slane %v4638, 5
      %v4641 = vor.u32 %v4637, %v4640
      %v4642 = vrot.slane %v4641, 4
      %v4644 = vshll.u32 %v4335, 16
      %v4646 = vrot.slane %v4644, 5
      %v4647 = vsel %vm400, %v4642, %v4646
      %v4648 = vshrl.u32 %v4335, 16
      %v4650 = vrot.slane %v4648, 4
      %v4651 = vor.u32 %v4650, %v4646
      %v4652 = vrot.slane %v4651, 4
      %v4654 = vshll.u32 %v4336, 16
      %v4656 = vrot.slane %v4654, 5
      %v4657 = vsel %vm400, %v4652, %v4656
      %v4659 = vshrl.u32 %v4337, 16
      %v4661 = vrot.slane %v4659, 4
      %v4662 = vshll.u32 %v4337, 16
      %v4664 = vrot.slane %v4662, 5
      %v4665 = vor.u32 %v4661, %v4664
      %v4666 = vrot.slane %v4665, 4
      %v4668 = vshll.u32 %v4338, 16
      %v4670 = vrot.slane %v4668, 5
      %v4671 = vsel %vm400, %v4666, %v4670
      %v4672 = vshrl.u32 %v4338, 16
      %v4674 = vrot.slane %v4672, 4
      %v4675 = vor.u32 %v4674, %v4670
      %v4676 = vrot.slane %v4675, 4
      %v4678 = vshll.u32 %v4339, 16
      %v4680 = vrot.slane %v4678, 5
      %v4681 = vsel %vm400, %v4676, %v4680
      %v4683 = vshrl.u32 %v4340, 16
      %v4685 = vrot.slane %v4683, 4
      %v4686 = vshll.u32 %v4340, 16
      %v4688 = vrot.slane %v4686, 5
      %v4689 = vor.u32 %v4685, %v4688
      %v4690 = vrot.slane %v4689, 4
      %v4692 = vshll.u32 %v4341, 16
      %v4694 = vrot.slane %v4692, 5
      %v4695 = vsel %vm400, %v4690, %v4694
      %v4696 = vshrl.u32 %v4341, 16
      %v4698 = vrot.slane %v4696, 4
      %v4699 = vor.u32 %v4698, %v4694
      %v4700 = vrot.slane %v4699, 4
      %v4702 = vshll.u32 %v4342, 16
      %v4704 = vrot.slane %v4702, 5
      %v4705 = vsel %vm400, %v4700, %v4704
      %v4707 = vshrl.u32 %v4343, 16
      %v4709 = vrot.slane %v4707, 4
      %v4710 = vshll.u32 %v4343, 16
      %v4712 = vrot.slane %v4710, 5
      %v4713 = vor.u32 %v4709, %v4712
      %v4714 = vrot.slane %v4713, 4
      %v4716 = vshll.u32 %v4344, 16
      %v4718 = vrot.slane %v4716, 5
      %v4719 = vsel %vm400, %v4714, %v4718
      %v4720 = vshrl.u32 %v4344, 16
      %v4722 = vrot.slane %v4720, 4
      %v4723 = vor.u32 %v4722, %v4718
      %v4724 = vrot.slane %v4723, 4
      %v4726 = vshll.u32 %v4345, 16
      %v4728 = vrot.slane %v4726, 5
      %v4729 = vsel %vm400, %v4724, %v4728
      %s4730 = scalar_lea.vmem %s1, 448
      %v4731 = vld [vmem:[%s4730] sm:$0xf]
      %v4732 = vld [vmem:[%s4730 + $0x4] sm:$0xf]
      %v4733 = vld [vmem:[%s4730 + $0x8] sm:$0xf]
      %v4734 = vld [vmem:[%s4730 + $0xc] sm:$0xf]
      %v4735 = vld [vmem:[%s4730 + $0x10] sm:$0xf]
      %v4736 = vld [vmem:[%s4730 + $0x14] sm:$0xf]
      %v4737 = vld [vmem:[%s4730 + $0x18] sm:$0xf]
      %v4738 = vld [vmem:[%s4730 + $0x1c] sm:$0xf]
      %v4739 = vld [vmem:[%s4730 + $0x20] sm:$0xf]
      %v4740 = vld [vmem:[%s4730 + $0x24] sm:$0xf]
      %v4741 = vld [vmem:[%s4730 + $0x28] sm:$0xf]
      %v4742 = vld [vmem:[%s4730 + $0x2c] sm:$0xf]
      %v4743 = vld [vmem:[%s4730 + $0x30] sm:$0xf]
      %v4744 = vld [vmem:[%s4730 + $0x34] sm:$0xf]
      %v4745 = vld [vmem:[%s4730 + $0x38] sm:$0xf]
      %v4746 = vld [vmem:[%s4730 + $0x3c] sm:$0xf]
      %v4747 = vunpack.c.l.b16 %v4359
      %v4748 = vunpack.c.l.b16 %v4369
      %v4749 = vunpack.c.l.b16 %v4383
      %v4750 = vunpack.c.l.b16 %v4393
      %v4751 = vunpack.c.l.b16 %v4407
      %v4752 = vunpack.c.l.b16 %v4417
      %v4753 = vunpack.c.l.b16 %v4431
      %v4754 = vunpack.c.l.b16 %v4441
      %v4755 = vunpack.c.l.b16 %v4455
      %v4756 = vunpack.c.l.b16 %v4465
      %v4757 = vunpack.c.l.b16 %v4479
      %v4758 = vunpack.c.l.b16 %v4489
      %v4759 = vunpack.c.l.b16 %v4503
      %v4760 = vunpack.c.l.b16 %v4513
      %v4761 = vunpack.c.l.b16 %v4527
      %v4762 = vunpack.c.l.b16 %v4537
      %v4763 = vunpack.c.l.b16 %v4551
      %v4764 = vunpack.c.l.b16 %v4561
      %v4765 = vunpack.c.l.b16 %v4575
      %v4766 = vunpack.c.l.b16 %v4585
      %v4767 = vunpack.c.l.b16 %v4599
      %v4768 = vunpack.c.l.b16 %v4609
      %v4769 = vunpack.c.l.b16 %v4623
      %v4770 = vunpack.c.l.b16 %v4633
      %v4771 = vunpack.c.l.b16 %v4647
      %v4772 = vunpack.c.l.b16 %v4657
      %v4773 = vunpack.c.l.b16 %v4671
      %v4774 = vunpack.c.l.b16 %v4681
      %v4775 = vunpack.c.l.b16 %v4695
      %v4776 = vunpack.c.l.b16 %v4705
      %v4777 = vunpack.c.l.b16 %v4719
      %v4778 = vunpack.c.l.b16 %v4729
      %v4779 = vpack.c.b16 %v4748, %v4747
      %v4780 = vpack.c.b16 %v4750, %v4749
      %v4781 = vpack.c.b16 %v4752, %v4751
      %v4782 = vpack.c.b16 %v4754, %v4753
      %v4783 = vpack.c.b16 %v4756, %v4755
      %v4784 = vpack.c.b16 %v4758, %v4757
      %v4785 = vpack.c.b16 %v4760, %v4759
      %v4786 = vpack.c.b16 %v4762, %v4761
      %v4787 = vpack.c.b16 %v4764, %v4763
      %v4788 = vpack.c.b16 %v4766, %v4765
      %v4789 = vpack.c.b16 %v4768, %v4767
      %v4790 = vpack.c.b16 %v4770, %v4769
      %v4791 = vpack.c.b16 %v4772, %v4771
      %v4792 = vpack.c.b16 %v4774, %v4773
      %v4793 = vpack.c.b16 %v4776, %v4775
      %v4794 = vpack.c.b16 %v4778, %v4777
      %v4827 = vunpack.c.l.b16 %v4731
      %v4828 = vunpack.c.l.b16 %v4732
      %v4829 = vunpack.c.l.b16 %v4733
      %v4830 = vunpack.c.l.b16 %v4734
      %v4831 = vunpack.c.l.b16 %v4735
      %v4832 = vunpack.c.l.b16 %v4736
      %v4833 = vunpack.c.l.b16 %v4737
      %v4834 = vunpack.c.l.b16 %v4738
      %v4835 = vunpack.c.l.b16 %v4739
      %v4836 = vunpack.c.l.b16 %v4740
      %v4837 = vunpack.c.l.b16 %v4741
      %v4838 = vunpack.c.l.b16 %v4742
      %v4839 = vunpack.c.l.b16 %v4743
      %v4840 = vunpack.c.l.b16 %v4744
      %v4841 = vunpack.c.l.b16 %v4745
      %v4842 = vunpack.c.l.b16 %v4746
      %v4843 = vpack.c.b16 %v4828, %v4827
      %v4844 = vpack.c.b16 %v4830, %v4829
      %v4845 = vpack.c.b16 %v4832, %v4831
      %v4846 = vpack.c.b16 %v4834, %v4833
      %v4847 = vpack.c.b16 %v4836, %v4835
      %v4848 = vpack.c.b16 %v4838, %v4837
      %v4849 = vpack.c.b16 %v4840, %v4839
      %v4850 = vpack.c.b16 %v4842, %v4841
      %4859 = vmatprep.subr.bf16.mxu0 0
      %4860 = vmatpush1.bf16.msra.mxu0 %v4850
      %4861 = vmatprep.subr.bf16.mxu0 0
      %4862 = vmatpush1.bf16.msra.mxu0 %v4849
      %4863 = vmatprep.subr.bf16.mxu0 0
      %4864 = vmatpush1.bf16.msra.mxu0 %v4848
      %4865 = vmatprep.subr.bf16.mxu0 0
      %4866 = vmatpush1.bf16.msra.mxu0 %v4847
      %4867 = vmatprep.subr.bf16.mxu0 0
      %4868 = vmatpush1.bf16.msra.mxu0 %v4846
      %4869 = vmatprep.subr.bf16.mxu0 0
      %4870 = vmatpush1.bf16.msra.mxu0 %v4845
      %4871 = vmatprep.subr.bf16.mxu0 0
      %4872 = vmatpush1.bf16.msra.mxu0 %v4844
      %4873 = vmatprep.subr.bf16.mxu0 0
      %4874 = vmatpush1.bf16.msra.mxu0 %v4843
      %4875 = vmatprep.subr.bf16.mxu0 0
      %4876 = vmatpush2.bf16.msra.mxu0 0
      %4877 = vmatprep.subr.bf16.mxu0 0
      %4878 = vmatpush2.bf16.msra.mxu0 0
      %4879 = vmatprep.subr.bf16.mxu0 0
      %4880 = vmatpush2.bf16.msra.mxu0 0
      %4881 = vmatprep.subr.bf16.mxu0 0
      %4882 = vmatpush2.bf16.msra.mxu0 0
      %4883 = vmatprep.subr.bf16.mxu0 0
      %4884 = vmatpush2.bf16.msra.mxu0 0
      %4885 = vmatprep.subr.bf16.mxu0 0
      %4886 = vmatpush2.bf16.msra.mxu0 0
      %4887 = vmatprep.subr.bf16.mxu0 0
      %4888 = vmatpush2.bf16.msra.mxu0 0
      %4889 = vmatprep.subr.bf16.mxu0 0
      %4890 = vmatpush2.bf16.msra.mxu0 0
      %4891 = vmatprep.mubr.bf16.mxu0 0
      %4892 = vmatmul.mubr.bf16.gmra.mxu0 %v4779
      %v4893 = vpop.f32.mrf.mxu0
      %v4894 = vadd.f32 0.0, %v4893
      %v4895 = vpop.f32.mrf.mxu0
      %v4896 = vpop.f32.mrf.mxu0
      %v4897 = vadd.f32 0.0, %v4896
      %v4898 = vpop.f32.mrf.mxu0
      %4899 = vmatprep.mubr.bf16.mxu0 0
      %4900 = vmatmul.mubr.bf16.gmra.mxu0 %v4780
      %v4901 = vpop.f32.mrf.mxu0
      %v4902 = vadd.f32 0.0, %v4901
      %v4903 = vpop.f32.mrf.mxu0
      %v4904 = vpop.f32.mrf.mxu0
      %v4905 = vadd.f32 0.0, %v4904
      %v4906 = vpop.f32.mrf.mxu0
      %4907 = vmatprep.mubr.bf16.mxu0 0
      %4908 = vmatmul.mubr.bf16.gmra.mxu0 %v4781
      %v4909 = vpop.f32.mrf.mxu0
      %v4910 = vadd.f32 0.0, %v4909
      %v4911 = vpop.f32.mrf.mxu0
      %v4912 = vpop.f32.mrf.mxu0
      %v4913 = vadd.f32 0.0, %v4912
      %v4914 = vpop.f32.mrf.mxu0
      %4915 = vmatprep.mubr.bf16.mxu0 0
      %4916 = vmatmul.mubr.bf16.gmra.mxu0 %v4782
      %v4917 = vpop.f32.mrf.mxu0
      %v4918 = vadd.f32 0.0, %v4917
      %v4919 = vpop.f32.mrf.mxu0
      %v4920 = vpop.f32.mrf.mxu0
      %v4921 = vadd.f32 0.0, %v4920
      %v4922 = vpop.f32.mrf.mxu0
      %4923 = vmatprep.mubr.bf16.mxu0 0
      %4924 = vmatmul.mubr.bf16.gmra.mxu0 %v4783
      %v4925 = vpop.f32.mrf.mxu0
      %v4926 = vadd.f32 0.0, %v4925
      %v4927 = vpop.f32.mrf.mxu0
      %v4928 = vpop.f32.mrf.mxu0
      %v4929 = vadd.f32 0.0, %v4928
      %v4930 = vpop.f32.mrf.mxu0
      %4931 = vmatprep.mubr.bf16.mxu0 0
      %4932 = vmatmul.mubr.bf16.gmra.mxu0 %v4784
      %v4933 = vpop.f32.mrf.mxu0
      %v4934 = vadd.f32 0.0, %v4933
      %v4935 = vpop.f32.mrf.mxu0
      %v4936 = vpop.f32.mrf.mxu0
      %v4937 = vadd.f32 0.0, %v4936
      %v4938 = vpop.f32.mrf.mxu0
      %4939 = vmatprep.mubr.bf16.mxu0 0
      %4940 = vmatmul.mubr.bf16.gmra.mxu0 %v4785
      %v4941 = vpop.f32.mrf.mxu0
      %v4942 = vadd.f32 0.0, %v4941
      %v4943 = vpop.f32.mrf.mxu0
      %v4944 = vpop.f32.mrf.mxu0
      %v4945 = vadd.f32 0.0, %v4944
      %v4946 = vpop.f32.mrf.mxu0
      %4947 = vmatprep.mubr.bf16.mxu0 0
      %4948 = vmatmul.mubr.bf16.gmra.mxu0 %v4786
      %v4949 = vpop.f32.mrf.mxu0
      %v4950 = vadd.f32 0.0, %v4949
      %v4951 = vpop.f32.mrf.mxu0
      %v4952 = vpop.f32.mrf.mxu0
      %v4953 = vadd.f32 0.0, %v4952
      %v4954 = vpop.f32.mrf.mxu0
      %4955 = vmatprep.mubr.bf16.mxu0 0
      %4956 = vmatmul.mubr.bf16.gmra.mxu0 %v4787
      %v4957 = vpop.f32.mrf.mxu0
      %v4958 = vadd.f32 0.0, %v4957
      %v4959 = vpop.f32.mrf.mxu0
      %v4960 = vpop.f32.mrf.mxu0
      %v4961 = vadd.f32 0.0, %v4960
      %v4962 = vpop.f32.mrf.mxu0
      %4963 = vmatprep.mubr.bf16.mxu0 0
      %4964 = vmatmul.mubr.bf16.gmra.mxu0 %v4788
      %v4965 = vpop.f32.mrf.mxu0
      %v4966 = vadd.f32 0.0, %v4965
      %v4967 = vpop.f32.mrf.mxu0
      %v4968 = vpop.f32.mrf.mxu0
      %v4969 = vadd.f32 0.0, %v4968
      %v4970 = vpop.f32.mrf.mxu0
      %4971 = vmatprep.mubr.bf16.mxu0 0
      %4972 = vmatmul.mubr.bf16.gmra.mxu0 %v4789
      %v4973 = vpop.f32.mrf.mxu0
      %v4974 = vadd.f32 0.0, %v4973
      %v4975 = vpop.f32.mrf.mxu0
      %v4976 = vpop.f32.mrf.mxu0
      %v4977 = vadd.f32 0.0, %v4976
      %v4978 = vpop.f32.mrf.mxu0
      %4979 = vmatprep.mubr.bf16.mxu0 0
      %4980 = vmatmul.mubr.bf16.gmra.mxu0 %v4790
      %v4981 = vpop.f32.mrf.mxu0
      %v4982 = vadd.f32 0.0, %v4981
      %v4983 = vpop.f32.mrf.mxu0
      %v4984 = vpop.f32.mrf.mxu0
      %v4985 = vadd.f32 0.0, %v4984
      %v4986 = vpop.f32.mrf.mxu0
      %4987 = vmatprep.mubr.bf16.mxu0 0
      %4988 = vmatmul.mubr.bf16.gmra.mxu0 %v4791
      %v4989 = vpop.f32.mrf.mxu0
      %v4990 = vadd.f32 0.0, %v4989
      %v4991 = vpop.f32.mrf.mxu0
      %v4992 = vpop.f32.mrf.mxu0
      %v4993 = vadd.f32 0.0, %v4992
      %v4994 = vpop.f32.mrf.mxu0
      %4995 = vmatprep.mubr.bf16.mxu0 0
      %4996 = vmatmul.mubr.bf16.gmra.mxu0 %v4792
      %v4997 = vpop.f32.mrf.mxu0
      %v4998 = vadd.f32 0.0, %v4997
      %v4999 = vpop.f32.mrf.mxu0
      %v5000 = vpop.f32.mrf.mxu0
      %v5001 = vadd.f32 0.0, %v5000
      %v5002 = vpop.f32.mrf.mxu0
      %5003 = vmatprep.mubr.bf16.mxu0 0
      %5004 = vmatmul.mubr.bf16.gmra.mxu0 %v4793
      %v5005 = vpop.f32.mrf.mxu0
      %v5006 = vadd.f32 0.0, %v5005
      %v5007 = vpop.f32.mrf.mxu0
      %v5008 = vpop.f32.mrf.mxu0
      %v5009 = vadd.f32 0.0, %v5008
      %v5010 = vpop.f32.mrf.mxu0
      %5011 = vmatprep.mubr.bf16.mxu0 0
      %5012 = vmatmul.mubr.bf16.gmra.mxu0 %v4794
      %v5013 = vpop.f32.mrf.mxu0
      %v5014 = vadd.f32 0.0, %v5013
      %v5015 = vpop.f32.mrf.mxu0
      %v5016 = vpop.f32.mrf.mxu0
      %v5017 = vadd.f32 0.0, %v5016
      %v5018 = vpop.f32.mrf.mxu0
      %5019 = vdwg.mxu0
      %v5020 = vadd.f32 %v4266, %v4894
      %v5021 = vadd.f32 %v4267, %v4897
      %v5022 = vadd.f32 %v4268, %v4902
      %v5023 = vadd.f32 %v4269, %v4905
      %v5024 = vadd.f32 %v4270, %v4910
      %v5025 = vadd.f32 %v4271, %v4913
      %v5026 = vadd.f32 %v4272, %v4918
      %v5027 = vadd.f32 %v4273, %v4921
      %v5028 = vadd.f32 %v4274, %v4926
      %v5029 = vadd.f32 %v4275, %v4929
      %v5030 = vadd.f32 %v4276, %v4934
      %v5031 = vadd.f32 %v4277, %v4937
      %v5032 = vadd.f32 %v4278, %v4942
      %v5033 = vadd.f32 %v4279, %v4945
      %v5034 = vadd.f32 %v4280, %v4950
      %v5035 = vadd.f32 %v4281, %v4953
      %v5036 = vadd.f32 %v4282, %v4958
      %v5037 = vadd.f32 %v4283, %v4961
      %v5038 = vadd.f32 %v4284, %v4966
      %v5039 = vadd.f32 %v4285, %v4969
      %v5040 = vadd.f32 %v4286, %v4974
      %v5041 = vadd.f32 %v4287, %v4977
      %v5042 = vadd.f32 %v4288, %v4982
      %v5043 = vadd.f32 %v4289, %v4985
      %v5044 = vadd.f32 %v4290, %v4990
      %v5045 = vadd.f32 %v4291, %v4993
      %v5046 = vadd.f32 %v4292, %v4998
      %v5047 = vadd.f32 %v4293, %v5001
      %v5048 = vadd.f32 %v4294, %v5006
      %v5049 = vadd.f32 %v4295, %v5009
      %v5050 = vadd.f32 %v4296, %v5014
      %v5051 = vadd.f32 %v4297, %v5017
      %v5052 = vld [vmem:[%s3911] sm:$0xe]
      %v5053 = vld [vmem:[%s3911 + $0xc] sm:$0xe]
      %v5054 = vld [vmem:[%s3911 + $0x18] sm:$0xe]
      %v5055 = vld [vmem:[%s3911 + $0x24] sm:$0xe]
      %v5056 = vld [vmem:[%s3911 + $0x30] sm:$0xe]
      %v5057 = vld [vmem:[%s3911 + $0x3c] sm:$0xe]
      %v5058 = vld [vmem:[%s3911 + $0x48] sm:$0xe]
      %v5059 = vld [vmem:[%s3911 + $0x54] sm:$0xe]
      %v5060 = vld [vmem:[%s3911 + $0x60] sm:$0xe]
      %v5061 = vld [vmem:[%s3911 + $0x6c] sm:$0xe]
      %v5062 = vld [vmem:[%s3911 + $0x78] sm:$0xe]
      %v5063 = vld [vmem:[%s3911 + $0x84] sm:$0xe]
      %v5064 = vld [vmem:[%s3911 + $0x90] sm:$0xe]
      %v5065 = vld [vmem:[%s3911 + $0x9c] sm:$0xe]
      %v5066 = vld [vmem:[%s3911 + $0xa8] sm:$0xe]
      %v5067 = vld [vmem:[%s3911 + $0xb4] sm:$0xe]
      %v5116 = vrot.slane %v5052, 5
      %v5117 = vrot.slane %v5116, 4
      %v5118 = vrot.slane %v4299, 5
      %v5119 = vsel %vm1430, %v5117, %v5118
      %v5120 = vrot.slane %v5118, 4
      %v5121 = vrot.slane %v4300, 5
      %v5122 = vsel %vm1430, %v5120, %v5121
      %v5123 = vrot.slane %v5053, 5
      %v5124 = vrot.slane %v5123, 4
      %v5125 = vrot.slane %v4302, 5
      %v5126 = vsel %vm1430, %v5124, %v5125
      %v5127 = vrot.slane %v5125, 4
      %v5128 = vrot.slane %v4303, 5
      %v5129 = vsel %vm1430, %v5127, %v5128
      %v5130 = vrot.slane %v5054, 5
      %v5131 = vrot.slane %v5130, 4
      %v5132 = vrot.slane %v4305, 5
      %v5133 = vsel %vm1430, %v5131, %v5132
      %v5134 = vrot.slane %v5132, 4
      %v5135 = vrot.slane %v4306, 5
      %v5136 = vsel %vm1430, %v5134, %v5135
      %v5137 = vrot.slane %v5055, 5
      %v5138 = vrot.slane %v5137, 4
      %v5139 = vrot.slane %v4308, 5
      %v5140 = vsel %vm1430, %v5138, %v5139
      %v5141 = vrot.slane %v5139, 4
      %v5142 = vrot.slane %v4309, 5
      %v5143 = vsel %vm1430, %v5141, %v5142
      %v5144 = vrot.slane %v5056, 5
      %v5145 = vrot.slane %v5144, 4
      %v5146 = vrot.slane %v4311, 5
      %v5147 = vsel %vm1430, %v5145, %v5146
      %v5148 = vrot.slane %v5146, 4
      %v5149 = vrot.slane %v4312, 5
      %v5150 = vsel %vm1430, %v5148, %v5149
      %v5151 = vrot.slane %v5057, 5
      %v5152 = vrot.slane %v5151, 4
      %v5153 = vrot.slane %v4314, 5
      %v5154 = vsel %vm1430, %v5152, %v5153
      %v5155 = vrot.slane %v5153, 4
      %v5156 = vrot.slane %v4315, 5
      %v5157 = vsel %vm1430, %v5155, %v5156
      %v5158 = vrot.slane %v5058, 5
      %v5159 = vrot.slane %v5158, 4
      %v5160 = vrot.slane %v4317, 5
      %v5161 = vsel %vm1430, %v5159, %v5160
      %v5162 = vrot.slane %v5160, 4
      %v5163 = vrot.slane %v4318, 5
      %v5164 = vsel %vm1430, %v5162, %v5163
      %v5165 = vrot.slane %v5059, 5
      %v5166 = vrot.slane %v5165, 4
      %v5167 = vrot.slane %v4320, 5
      %v5168 = vsel %vm1430, %v5166, %v5167
      %v5169 = vrot.slane %v5167, 4
      %v5170 = vrot.slane %v4321, 5
      %v5171 = vsel %vm1430, %v5169, %v5170
      %v5172 = vrot.slane %v5060, 5
      %v5173 = vrot.slane %v5172, 4
      %v5174 = vrot.slane %v4323, 5
      %v5175 = vsel %vm1430, %v5173, %v5174
      %v5176 = vrot.slane %v5174, 4
      %v5177 = vrot.slane %v4324, 5
      %v5178 = vsel %vm1430, %v5176, %v5177
      %v5179 = vrot.slane %v5061, 5
      %v5180 = vrot.slane %v5179, 4
      %v5181 = vrot.slane %v4326, 5
      %v5182 = vsel %vm1430, %v5180, %v5181
      %v5183 = vrot.slane %v5181, 4
      %v5184 = vrot.slane %v4327, 5
      %v5185 = vsel %vm1430, %v5183, %v5184
      %v5186 = vrot.slane %v5062, 5
      %v5187 = vrot.slane %v5186, 4
      %v5188 = vrot.slane %v4329, 5
      %v5189 = vsel %vm1430, %v5187, %v5188
      %v5190 = vrot.slane %v5188, 4
      %v5191 = vrot.slane %v4330, 5
      %v5192 = vsel %vm1430, %v5190, %v5191
      %v5193 = vrot.slane %v5063, 5
      %v5194 = vrot.slane %v5193, 4
      %v5195 = vrot.slane %v4332, 5
      %v5196 = vsel %vm1430, %v5194, %v5195
      %v5197 = vrot.slane %v5195, 4
      %v5198 = vrot.slane %v4333, 5
      %v5199 = vsel %vm1430, %v5197, %v5198
      %v5200 = vrot.slane %v5064, 5
      %v5201 = vrot.slane %v5200, 4
      %v5202 = vrot.slane %v4335, 5
      %v5203 = vsel %vm1430, %v5201, %v5202
      %v5204 = vrot.slane %v5202, 4
      %v5205 = vrot.slane %v4336, 5
      %v5206 = vsel %vm1430, %v5204, %v5205
      %v5207 = vrot.slane %v5065, 5
      %v5208 = vrot.slane %v5207, 4
      %v5209 = vrot.slane %v4338, 5
      %v5210 = vsel %vm1430, %v5208, %v5209
      %v5211 = vrot.slane %v5209, 4
      %v5212 = vrot.slane %v4339, 5
      %v5213 = vsel %vm1430, %v5211, %v5212
      %v5214 = vrot.slane %v5066, 5
      %v5215 = vrot.slane %v5214, 4
      %v5216 = vrot.slane %v4341, 5
      %v5217 = vsel %vm1430, %v5215, %v5216
      %v5218 = vrot.slane %v5216, 4
      %v5219 = vrot.slane %v4342, 5
      %v5220 = vsel %vm1430, %v5218, %v5219
      %v5221 = vrot.slane %v5067, 5
      %v5222 = vrot.slane %v5221, 4
      %v5223 = vrot.slane %v4344, 5
      %v5224 = vsel %vm1430, %v5222, %v5223
      %v5225 = vrot.slane %v5223, 4
      %v5226 = vrot.slane %v4345, 5
      %v5227 = vsel %vm1430, %v5225, %v5226
      %s5228 = scalar_lea.vmem %s1, 512
      %v5229 = vld [vmem:[%s5228] sm:$0xf]
      %v5230 = vld [vmem:[%s5228 + $0x4] sm:$0xf]
      %v5231 = vld [vmem:[%s5228 + $0x8] sm:$0xf]
      %v5232 = vld [vmem:[%s5228 + $0xc] sm:$0xf]
      %v5233 = vld [vmem:[%s5228 + $0x10] sm:$0xf]
      %v5234 = vld [vmem:[%s5228 + $0x14] sm:$0xf]
      %v5235 = vld [vmem:[%s5228 + $0x18] sm:$0xf]
      %v5236 = vld [vmem:[%s5228 + $0x1c] sm:$0xf]
      %v5237 = vld [vmem:[%s5228 + $0x20] sm:$0xf]
      %v5238 = vld [vmem:[%s5228 + $0x24] sm:$0xf]
      %v5239 = vld [vmem:[%s5228 + $0x28] sm:$0xf]
      %v5240 = vld [vmem:[%s5228 + $0x2c] sm:$0xf]
      %v5241 = vld [vmem:[%s5228 + $0x30] sm:$0xf]
      %v5242 = vld [vmem:[%s5228 + $0x34] sm:$0xf]
      %v5243 = vld [vmem:[%s5228 + $0x38] sm:$0xf]
      %v5244 = vld [vmem:[%s5228 + $0x3c] sm:$0xf]
      %v5245 = vunpack.c.l.b16 %v5119
      %v5246 = vunpack.c.l.b16 %v5122
      %v5247 = vunpack.c.l.b16 %v5126
      %v5248 = vunpack.c.l.b16 %v5129
      %v5249 = vunpack.c.l.b16 %v5133
      %v5250 = vunpack.c.l.b16 %v5136
      %v5251 = vunpack.c.l.b16 %v5140
      %v5252 = vunpack.c.l.b16 %v5143
      %v5253 = vunpack.c.l.b16 %v5147
      %v5254 = vunpack.c.l.b16 %v5150
      %v5255 = vunpack.c.l.b16 %v5154
      %v5256 = vunpack.c.l.b16 %v5157
      %v5257 = vunpack.c.l.b16 %v5161
      %v5258 = vunpack.c.l.b16 %v5164
      %v5259 = vunpack.c.l.b16 %v5168
      %v5260 = vunpack.c.l.b16 %v5171
      %v5261 = vunpack.c.l.b16 %v5175
      %v5262 = vunpack.c.l.b16 %v5178
      %v5263 = vunpack.c.l.b16 %v5182
      %v5264 = vunpack.c.l.b16 %v5185
      %v5265 = vunpack.c.l.b16 %v5189
      %v5266 = vunpack.c.l.b16 %v5192
      %v5267 = vunpack.c.l.b16 %v5196
      %v5268 = vunpack.c.l.b16 %v5199
      %v5269 = vunpack.c.l.b16 %v5203
      %v5270 = vunpack.c.l.b16 %v5206
      %v5271 = vunpack.c.l.b16 %v5210
      %v5272 = vunpack.c.l.b16 %v5213
      %v5273 = vunpack.c.l.b16 %v5217
      %v5274 = vunpack.c.l.b16 %v5220
      %v5275 = vunpack.c.l.b16 %v5224
      %v5276 = vunpack.c.l.b16 %v5227
      %v5277 = vpack.c.b16 %v5246, %v5245
      %v5278 = vpack.c.b16 %v5248, %v5247
      %v5279 = vpack.c.b16 %v5250, %v5249
      %v5280 = vpack.c.b16 %v5252, %v5251
      %v5281 = vpack.c.b16 %v5254, %v5253
      %v5282 = vpack.c.b16 %v5256, %v5255
      %v5283 = vpack.c.b16 %v5258, %v5257
      %v5284 = vpack.c.b16 %v5260, %v5259
      %v5285 = vpack.c.b16 %v5262, %v5261
      %v5286 = vpack.c.b16 %v5264, %v5263
      %v5287 = vpack.c.b16 %v5266, %v5265
      %v5288 = vpack.c.b16 %v5268, %v5267
      %v5289 = vpack.c.b16 %v5270, %v5269
      %v5290 = vpack.c.b16 %v5272, %v5271
      %v5291 = vpack.c.b16 %v5274, %v5273
      %v5292 = vpack.c.b16 %v5276, %v5275
      %v5325 = vunpack.c.l.b16 %v5229
      %v5326 = vunpack.c.l.b16 %v5230
      %v5327 = vunpack.c.l.b16 %v5231
      %v5328 = vunpack.c.l.b16 %v5232
      %v5329 = vunpack.c.l.b16 %v5233
      %v5330 = vunpack.c.l.b16 %v5234
      %v5331 = vunpack.c.l.b16 %v5235
      %v5332 = vunpack.c.l.b16 %v5236
      %v5333 = vunpack.c.l.b16 %v5237
      %v5334 = vunpack.c.l.b16 %v5238
      %v5335 = vunpack.c.l.b16 %v5239
      %v5336 = vunpack.c.l.b16 %v5240
      %v5337 = vunpack.c.l.b16 %v5241
      %v5338 = vunpack.c.l.b16 %v5242
      %v5339 = vunpack.c.l.b16 %v5243
      %v5340 = vunpack.c.l.b16 %v5244
      %v5341 = vpack.c.b16 %v5326, %v5325
      %v5342 = vpack.c.b16 %v5328, %v5327
      %v5343 = vpack.c.b16 %v5330, %v5329
      %v5344 = vpack.c.b16 %v5332, %v5331
      %v5345 = vpack.c.b16 %v5334, %v5333
      %v5346 = vpack.c.b16 %v5336, %v5335
      %v5347 = vpack.c.b16 %v5338, %v5337
      %v5348 = vpack.c.b16 %v5340, %v5339
      %5357 = vmatprep.subr.bf16.mxu0 0
      %5358 = vmatpush1.bf16.msra.mxu0 %v5348
      %5359 = vmatprep.subr.bf16.mxu0 0
      %5360 = vmatpush1.bf16.msra.mxu0 %v5347
      %5361 = vmatprep.subr.bf16.mxu0 0
      %5362 = vmatpush1.bf16.msra.mxu0 %v5346
      %5363 = vmatprep.subr.bf16.mxu0 0
      %5364 = vmatpush1.bf16.msra.mxu0 %v5345
      %5365 = vmatprep.subr.bf16.mxu0 0
      %5366 = vmatpush1.bf16.msra.mxu0 %v5344
      %5367 = vmatprep.subr.bf16.mxu0 0
      %5368 = vmatpush1.bf16.msra.mxu0 %v5343
      %5369 = vmatprep.subr.bf16.mxu0 0
      %5370 = vmatpush1.bf16.msra.mxu0 %v5342
      %5371 = vmatprep.subr.bf16.mxu0 0
      %5372 = vmatpush1.bf16.msra.mxu0 %v5341
      %5373 = vmatprep.subr.bf16.mxu0 0
      %5374 = vmatpush2.bf16.msra.mxu0 0
      %5375 = vmatprep.subr.bf16.mxu0 0
      %5376 = vmatpush2.bf16.msra.mxu0 0
      %5377 = vmatprep.subr.bf16.mxu0 0
      %5378 = vmatpush2.bf16.msra.mxu0 0
      %5379 = vmatprep.subr.bf16.mxu0 0
      %5380 = vmatpush2.bf16.msra.mxu0 0
      %5381 = vmatprep.subr.bf16.mxu0 0
      %5382 = vmatpush2.bf16.msra.mxu0 0
      %5383 = vmatprep.subr.bf16.mxu0 0
      %5384 = vmatpush2.bf16.msra.mxu0 0
      %5385 = vmatprep.subr.bf16.mxu0 0
      %5386 = vmatpush2.bf16.msra.mxu0 0
      %5387 = vmatprep.subr.bf16.mxu0 0
      %5388 = vmatpush2.bf16.msra.mxu0 0
      %5389 = vmatprep.mubr.bf16.mxu0 0
      %5390 = vmatmul.mubr.bf16.gmra.mxu0 %v5277
      %v5391 = vpop.f32.mrf.mxu0
      %v5392 = vadd.f32 0.0, %v5391
      %v5393 = vpop.f32.mrf.mxu0
      %v5394 = vpop.f32.mrf.mxu0
      %v5395 = vadd.f32 0.0, %v5394
      %v5396 = vpop.f32.mrf.mxu0
      %5397 = vmatprep.mubr.bf16.mxu0 0
      %5398 = vmatmul.mubr.bf16.gmra.mxu0 %v5278
      %v5399 = vpop.f32.mrf.mxu0
      %v5400 = vadd.f32 0.0, %v5399
      %v5401 = vpop.f32.mrf.mxu0
      %v5402 = vpop.f32.mrf.mxu0
      %v5403 = vadd.f32 0.0, %v5402
      %v5404 = vpop.f32.mrf.mxu0
      %5405 = vmatprep.mubr.bf16.mxu0 0
      %5406 = vmatmul.mubr.bf16.gmra.mxu0 %v5279
      %v5407 = vpop.f32.mrf.mxu0
      %v5408 = vadd.f32 0.0, %v5407
      %v5409 = vpop.f32.mrf.mxu0
      %v5410 = vpop.f32.mrf.mxu0
      %v5411 = vadd.f32 0.0, %v5410
      %v5412 = vpop.f32.mrf.mxu0
      %5413 = vmatprep.mubr.bf16.mxu0 0
      %5414 = vmatmul.mubr.bf16.gmra.mxu0 %v5280
      %v5415 = vpop.f32.mrf.mxu0
      %v5416 = vadd.f32 0.0, %v5415
      %v5417 = vpop.f32.mrf.mxu0
      %v5418 = vpop.f32.mrf.mxu0
      %v5419 = vadd.f32 0.0, %v5418
      %v5420 = vpop.f32.mrf.mxu0
      %5421 = vmatprep.mubr.bf16.mxu0 0
      %5422 = vmatmul.mubr.bf16.gmra.mxu0 %v5281
      %v5423 = vpop.f32.mrf.mxu0
      %v5424 = vadd.f32 0.0, %v5423
      %v5425 = vpop.f32.mrf.mxu0
      %v5426 = vpop.f32.mrf.mxu0
      %v5427 = vadd.f32 0.0, %v5426
      %v5428 = vpop.f32.mrf.mxu0
      %5429 = vmatprep.mubr.bf16.mxu0 0
      %5430 = vmatmul.mubr.bf16.gmra.mxu0 %v5282
      %v5431 = vpop.f32.mrf.mxu0
      %v5432 = vadd.f32 0.0, %v5431
      %v5433 = vpop.f32.mrf.mxu0
      %v5434 = vpop.f32.mrf.mxu0
      %v5435 = vadd.f32 0.0, %v5434
      %v5436 = vpop.f32.mrf.mxu0
      %5437 = vmatprep.mubr.bf16.mxu0 0
      %5438 = vmatmul.mubr.bf16.gmra.mxu0 %v5283
      %v5439 = vpop.f32.mrf.mxu0
      %v5440 = vadd.f32 0.0, %v5439
      %v5441 = vpop.f32.mrf.mxu0
      %v5442 = vpop.f32.mrf.mxu0
      %v5443 = vadd.f32 0.0, %v5442
      %v5444 = vpop.f32.mrf.mxu0
      %5445 = vmatprep.mubr.bf16.mxu0 0
      %5446 = vmatmul.mubr.bf16.gmra.mxu0 %v5284
      %v5447 = vpop.f32.mrf.mxu0
      %v5448 = vadd.f32 0.0, %v5447
      %v5449 = vpop.f32.mrf.mxu0
      %v5450 = vpop.f32.mrf.mxu0
      %v5451 = vadd.f32 0.0, %v5450
      %v5452 = vpop.f32.mrf.mxu0
      %5453 = vmatprep.mubr.bf16.mxu0 0
      %5454 = vmatmul.mubr.bf16.gmra.mxu0 %v5285
      %v5455 = vpop.f32.mrf.mxu0
      %v5456 = vadd.f32 0.0, %v5455
      %v5457 = vpop.f32.mrf.mxu0
      %v5458 = vpop.f32.mrf.mxu0
      %v5459 = vadd.f32 0.0, %v5458
      %v5460 = vpop.f32.mrf.mxu0
      %5461 = vmatprep.mubr.bf16.mxu0 0
      %5462 = vmatmul.mubr.bf16.gmra.mxu0 %v5286
      %v5463 = vpop.f32.mrf.mxu0
      %v5464 = vadd.f32 0.0, %v5463
      %v5465 = vpop.f32.mrf.mxu0
      %v5466 = vpop.f32.mrf.mxu0
      %v5467 = vadd.f32 0.0, %v5466
      %v5468 = vpop.f32.mrf.mxu0
      %5469 = vmatprep.mubr.bf16.mxu0 0
      %5470 = vmatmul.mubr.bf16.gmra.mxu0 %v5287
      %v5471 = vpop.f32.mrf.mxu0
      %v5472 = vadd.f32 0.0, %v5471
      %v5473 = vpop.f32.mrf.mxu0
      %v5474 = vpop.f32.mrf.mxu0
      %v5475 = vadd.f32 0.0, %v5474
      %v5476 = vpop.f32.mrf.mxu0
      %5477 = vmatprep.mubr.bf16.mxu0 0
      %5478 = vmatmul.mubr.bf16.gmra.mxu0 %v5288
      %v5479 = vpop.f32.mrf.mxu0
      %v5480 = vadd.f32 0.0, %v5479
      %v5481 = vpop.f32.mrf.mxu0
      %v5482 = vpop.f32.mrf.mxu0
      %v5483 = vadd.f32 0.0, %v5482
      %v5484 = vpop.f32.mrf.mxu0
      %5485 = vmatprep.mubr.bf16.mxu0 0
      %5486 = vmatmul.mubr.bf16.gmra.mxu0 %v5289
      %v5487 = vpop.f32.mrf.mxu0
      %v5488 = vadd.f32 0.0, %v5487
      %v5489 = vpop.f32.mrf.mxu0
      %v5490 = vpop.f32.mrf.mxu0
      %v5491 = vadd.f32 0.0, %v5490
      %v5492 = vpop.f32.mrf.mxu0
      %5493 = vmatprep.mubr.bf16.mxu0 0
      %5494 = vmatmul.mubr.bf16.gmra.mxu0 %v5290
      %v5495 = vpop.f32.mrf.mxu0
      %v5496 = vadd.f32 0.0, %v5495
      %v5497 = vpop.f32.mrf.mxu0
      %v5498 = vpop.f32.mrf.mxu0
      %v5499 = vadd.f32 0.0, %v5498
      %v5500 = vpop.f32.mrf.mxu0
      %5501 = vmatprep.mubr.bf16.mxu0 0
      %5502 = vmatmul.mubr.bf16.gmra.mxu0 %v5291
      %v5503 = vpop.f32.mrf.mxu0
      %v5504 = vadd.f32 0.0, %v5503
      %v5505 = vpop.f32.mrf.mxu0
      %v5506 = vpop.f32.mrf.mxu0
      %v5507 = vadd.f32 0.0, %v5506
      %v5508 = vpop.f32.mrf.mxu0
      %5509 = vmatprep.mubr.bf16.mxu0 0
      %5510 = vmatmul.mubr.bf16.gmra.mxu0 %v5292
      %v5511 = vpop.f32.mrf.mxu0
      %v5512 = vadd.f32 0.0, %v5511
      %v5513 = vpop.f32.mrf.mxu0
      %v5514 = vpop.f32.mrf.mxu0
      %v5515 = vadd.f32 0.0, %v5514
      %v5516 = vpop.f32.mrf.mxu0
      %5517 = vdwg.mxu0
      %v5518 = vadd.f32 %v5020, %v5392
      %v5519 = vadd.f32 %v5021, %v5395
      %v5520 = vadd.f32 %v5022, %v5400
      %v5521 = vadd.f32 %v5023, %v5403
      %v5522 = vadd.f32 %v5024, %v5408
      %v5523 = vadd.f32 %v5025, %v5411
      %v5524 = vadd.f32 %v5026, %v5416
      %v5525 = vadd.f32 %v5027, %v5419
      %v5526 = vadd.f32 %v5028, %v5424
      %v5527 = vadd.f32 %v5029, %v5427
      %v5528 = vadd.f32 %v5030, %v5432
      %v5529 = vadd.f32 %v5031, %v5435
      %v5530 = vadd.f32 %v5032, %v5440
      %v5531 = vadd.f32 %v5033, %v5443
      %v5532 = vadd.f32 %v5034, %v5448
      %v5533 = vadd.f32 %v5035, %v5451
      %v5534 = vadd.f32 %v5036, %v5456
      %v5535 = vadd.f32 %v5037, %v5459
      %v5536 = vadd.f32 %v5038, %v5464
      %v5537 = vadd.f32 %v5039, %v5467
      %v5538 = vadd.f32 %v5040, %v5472
      %v5539 = vadd.f32 %v5041, %v5475
      %v5540 = vadd.f32 %v5042, %v5480
      %v5541 = vadd.f32 %v5043, %v5483
      %v5542 = vadd.f32 %v5044, %v5488
      %v5543 = vadd.f32 %v5045, %v5491
      %v5544 = vadd.f32 %v5046, %v5496
      %v5545 = vadd.f32 %v5047, %v5499
      %v5546 = vadd.f32 %v5048, %v5504
      %v5547 = vadd.f32 %v5049, %v5507
      %v5548 = vadd.f32 %v5050, %v5512
      %v5549 = vadd.f32 %v5051, %v5515
      %5550 = vst [vmem:[%s302] sm:$0xff] %v5518
      %5551 = vst [vmem:[%s302 + $0x8] sm:$0xff] %v5519
      %5552 = vst [vmem:[%s302 + $0x10] sm:$0xff] %v5520
      %5553 = vst [vmem:[%s302 + $0x18] sm:$0xff] %v5521
      %5554 = vst [vmem:[%s302 + $0x20] sm:$0xff] %v5522
      %5555 = vst [vmem:[%s302 + $0x28] sm:$0xff] %v5523
      %5556 = vst [vmem:[%s302 + $0x30] sm:$0xff] %v5524
      %5557 = vst [vmem:[%s302 + $0x38] sm:$0xff] %v5525
      %5558 = vst [vmem:[%s302 + $0x40] sm:$0xff] %v5526
      %5559 = vst [vmem:[%s302 + $0x48] sm:$0xff] %v5527
      %5560 = vst [vmem:[%s302 + $0x50] sm:$0xff] %v5528
      %5561 = vst [vmem:[%s302 + $0x58] sm:$0xff] %v5529
      %5562 = vst [vmem:[%s302 + $0x60] sm:$0xff] %v5530
      %5563 = vst [vmem:[%s302 + $0x68] sm:$0xff] %v5531
      %5564 = vst [vmem:[%s302 + $0x70] sm:$0xff] %v5532
      %5565 = vst [vmem:[%s302 + $0x78] sm:$0xff] %v5533
      %5566 = vst [vmem:[%s302 + $0x80] sm:$0xff] %v5534
      %5567 = vst [vmem:[%s302 + $0x88] sm:$0xff] %v5535
      %5568 = vst [vmem:[%s302 + $0x90] sm:$0xff] %v5536
      %5569 = vst [vmem:[%s302 + $0x98] sm:$0xff] %v5537
      %5570 = vst [vmem:[%s302 + $0xa0] sm:$0xff] %v5538
      %5571 = vst [vmem:[%s302 + $0xa8] sm:$0xff] %v5539
      %5572 = vst [vmem:[%s302 + $0xb0] sm:$0xff] %v5540
      %5573 = vst [vmem:[%s302 + $0xb8] sm:$0xff] %v5541
      %5574 = vst [vmem:[%s302 + $0xc0] sm:$0xff] %v5542
      %5575 = vst [vmem:[%s302 + $0xc8] sm:$0xff] %v5543
      %5576 = vst [vmem:[%s302 + $0xd0] sm:$0xff] %v5544
      %5577 = vst [vmem:[%s302 + $0xd8] sm:$0xff] %v5545
      %5578 = vst [vmem:[%s302 + $0xe0] sm:$0xff] %v5546
      %5579 = vst [vmem:[%s302 + $0xe8] sm:$0xff] %v5547
      %5580 = vst [vmem:[%s302 + $0xf0] sm:$0xff] %v5548
      %5581 = vst [vmem:[%s302 + $0xf8] sm:$0xff] %v5549
      %v5582 = vld [vmem:[%s307] sm:$0x1]
      %v5583 = vadd.f32 %v5518, %v5519
      %v5584 = vadd.f32 %v5583, %v5520
      %v5585 = vadd.f32 %v5584, %v5521
      %v5586 = vadd.f32 %v5585, %v5522
      %v5587 = vadd.f32 %v5586, %v5523
      %v5588 = vadd.f32 %v5587, %v5524
      %v5589 = vadd.f32 %v5588, %v5525
      %v5590 = vadd.f32 %v5589, %v5526
      %v5591 = vadd.f32 %v5590, %v5527
      %v5592 = vadd.f32 %v5591, %v5528
      %v5593 = vadd.f32 %v5592, %v5529
      %v5594 = vadd.f32 %v5593, %v5530
      %v5595 = vadd.f32 %v5594, %v5531
      %v5596 = vadd.f32 %v5595, %v5532
      %v5597 = vadd.f32 %v5596, %v5533
      %v5598 = vadd.f32 %v5597, %v5534
      %v5599 = vadd.f32 %v5598, %v5535
      %v5600 = vadd.f32 %v5599, %v5536
      %v5601 = vadd.f32 %v5600, %v5537
      %v5602 = vadd.f32 %v5601, %v5538
      %v5603 = vadd.f32 %v5602, %v5539
      %v5604 = vadd.f32 %v5603, %v5540
      %v5605 = vadd.f32 %v5604, %v5541
      %v5606 = vadd.f32 %v5605, %v5542
      %v5607 = vadd.f32 %v5606, %v5543
      %v5608 = vadd.f32 %v5607, %v5544
      %v5609 = vadd.f32 %v5608, %v5545
      %v5610 = vadd.f32 %v5609, %v5546
      %v5611 = vadd.f32 %v5610, %v5547
      %v5612 = vadd.f32 %v5611, %v5548
      %v5613 = vadd.f32 %v5612, %v5549
      %v5614 = vrot.slane %v5613, 4
      %v5615 = vadd.f32 %v5613, %v5614
      %v5616 = vrot.slane %v5615, 2
      %v5617 = vadd.f32 %v5615, %v5616
      %v5618 = vrot.slane %v5617, 1
      %v5619 = vadd.f32 %v5617, %v5618
      %v5620 = vadd.f32 %v5582, %v5619
      %5621 = vst [vmem:[%s307] sm:$0x1] %v5620
      %v5622 = vld [vmem:[%s307 + $0x1] sm:$0x1]
      %v5623 = vmul.f32 %v5518, %v5518
      %v5624 = vmul.f32 %v5519, %v5519
      %v5625 = vmul.f32 %v5520, %v5520
      %v5626 = vmul.f32 %v5521, %v5521
      %v5627 = vmul.f32 %v5522, %v5522
      %v5628 = vmul.f32 %v5523, %v5523
      %v5629 = vmul.f32 %v5524, %v5524
      %v5630 = vmul.f32 %v5525, %v5525
      %v5631 = vmul.f32 %v5526, %v5526
      %v5632 = vmul.f32 %v5527, %v5527
      %v5633 = vmul.f32 %v5528, %v5528
      %v5634 = vmul.f32 %v5529, %v5529
      %v5635 = vmul.f32 %v5530, %v5530
      %v5636 = vmul.f32 %v5531, %v5531
      %v5637 = vmul.f32 %v5532, %v5532
      %v5638 = vmul.f32 %v5533, %v5533
      %v5639 = vmul.f32 %v5534, %v5534
      %v5640 = vmul.f32 %v5535, %v5535
      %v5641 = vmul.f32 %v5536, %v5536
      %v5642 = vmul.f32 %v5537, %v5537
      %v5643 = vmul.f32 %v5538, %v5538
      %v5644 = vmul.f32 %v5539, %v5539
      %v5645 = vmul.f32 %v5540, %v5540
      %v5646 = vmul.f32 %v5541, %v5541
      %v5647 = vmul.f32 %v5542, %v5542
      %v5648 = vmul.f32 %v5543, %v5543
      %v5649 = vmul.f32 %v5544, %v5544
      %v5650 = vmul.f32 %v5545, %v5545
      %v5651 = vmul.f32 %v5546, %v5546
      %v5652 = vmul.f32 %v5547, %v5547
      %v5653 = vmul.f32 %v5548, %v5548
      %v5654 = vmul.f32 %v5549, %v5549
      %v5655 = vadd.f32 %v5623, %v5624
      %v5656 = vadd.f32 %v5655, %v5625
      %v5657 = vadd.f32 %v5656, %v5626
      %v5658 = vadd.f32 %v5657, %v5627
      %v5659 = vadd.f32 %v5658, %v5628
      %v5660 = vadd.f32 %v5659, %v5629
      %v5661 = vadd.f32 %v5660, %v5630
      %v5662 = vadd.f32 %v5661, %v5631
      %v5663 = vadd.f32 %v5662, %v5632
      %v5664 = vadd.f32 %v5663, %v5633
      %v5665 = vadd.f32 %v5664, %v5634
      %v5666 = vadd.f32 %v5665, %v5635
      %v5667 = vadd.f32 %v5666, %v5636
      %v5668 = vadd.f32 %v5667, %v5637
      %v5669 = vadd.f32 %v5668, %v5638
      %v5670 = vadd.f32 %v5669, %v5639
      %v5671 = vadd.f32 %v5670, %v5640
      %v5672 = vadd.f32 %v5671, %v5641
      %v5673 = vadd.f32 %v5672, %v5642
      %v5674 = vadd.f32 %v5673, %v5643
      %v5675 = vadd.f32 %v5674, %v5644
      %v5676 = vadd.f32 %v5675, %v5645
      %v5677 = vadd.f32 %v5676, %v5646
      %v5678 = vadd.f32 %v5677, %v5647
      %v5679 = vadd.f32 %v5678, %v5648
      %v5680 = vadd.f32 %v5679, %v5649
      %v5681 = vadd.f32 %v5680, %v5650
      %v5682 = vadd.f32 %v5681, %v5651
      %v5683 = vadd.f32 %v5682, %v5652
      %v5684 = vadd.f32 %v5683, %v5653
      %v5685 = vadd.f32 %v5684, %v5654
      %v5686 = vrot.slane %v5685, 4
      %v5687 = vadd.f32 %v5685, %v5686
      %v5688 = vrot.slane %v5687, 2
      %v5689 = vadd.f32 %v5687, %v5688
      %v5690 = vrot.slane %v5689, 1
      %v5691 = vadd.f32 %v5689, %v5690
      %v5692 = vadd.f32 %v5622, %v5691
      %5693 = vst [vmem:[%s307 + $0x1] sm:$0x1] %v5692
      %s5694 = smul.u32 16, %s23
      %p5695 = scmp.lt.s32.totalorder %s22, 1
      %s5696 = scalar_select %p5695, %s22, 1
      %p5697 = scmp.lt.s32.totalorder %s5694, 15
      %s5698 = scalar_select %p5697, %s5694, 15
      %s5699 = smul.addr %s5698, 2
      %s5700 = smul.addr %s5696, 32
      %s5701 = sadd.s32 %s5699, %s5700
      %s5702 = smul.addr %s5701, 8
      %s5703 = scalar_lea.vmem %s3, %s5702
      %p5704 = scmp.lt.s32.totalorder %s22, 1
      %s5705 = scalar_select %p5704, %s22, 1
      %s5706 = smul.addr %s5705, 2
      %s5707 = scalar_lea.vmem %s4, %s5706
      %s5708 = smul.u32 16, %s23
      %p5709 = scmp.lt.s32.totalorder %s22, 1
      %s5710 = scalar_select %p5709, %s22, 1
      %p5711 = scmp.lt.s32.totalorder %s5708, 15
      %s5712 = scalar_select %p5711, %s5708, 15
      %s5713 = smul.addr %s5712, 2
      %s5714 = smul.addr %s5710, 32
      %s5715 = sadd.s32 %s5713, %s5714
      %s5716 = smul.addr %s5715, 8
      %s5717 = scalar_lea.vmem %s5, %s5716
      %p5718 = scmp.lt.s32.totalorder %s22, 1
      %s5719 = scalar_select %p5718, %s22, 1
      %s5720 = smul.addr %s5719, 2
      %s5721 = scalar_lea.vmem %s6, %s5720
      // Predicated region
      $region37: #{resblock_forward.3} parent=31 // pred_check
        %p5722 = pneg %p118
      $region38: #{resblock_forward.3} parent=31 // pred_check_branch
        %5724 = sbr.rel (%p5722) target = $region40
      $region39: #{resblock_forward.3} parent=31 // pred_region
        %s5725 = smul.u32 16, %s23
      $region40: #{resblock_forward.3} parent=31 // pred_fallthru
        _
      // Predicated region
      $region41: #{resblock_forward.3} parent=31 // pred_check
        %p5726 = pneg %p144
      $region42: #{resblock_forward.3} parent=31 // pred_check_branch
        %5728 = sbr.rel (%p5726) target = $region44
      $region43: #{resblock_forward.3} parent=31 // pred_region
        _
      $region44: #{resblock_forward.3} parent=31 // pred_fallthru
        _
      // Predicated region
      $region45: #{resblock_forward.3} parent=31 // pred_check
        %p5729 = pneg %p172
      $region46: #{resblock_forward.3} parent=31 // pred_check_branch
        %5731 = sbr.rel (%p5729) target = $region48
      $region47: #{resblock_forward.3} parent=31 // pred_region
        %s5732 = smul.u32 16, %s23
      $region48: #{resblock_forward.3} parent=31 // pred_fallthru
        _
      // Predicated region
      $region49: #{resblock_forward.3} parent=31 // pred_check
        %p5733 = pneg %p198
      $region50: #{resblock_forward.3} parent=31 // pred_check_branch
        %5735 = sbr.rel (%p5733) target = $region52
      $region51: #{resblock_forward.3} parent=31 // pred_region
        _
      $region52: #{resblock_forward.3} parent=31 // pred_fallthru
        _
    $region32: #{resblock_forward.3} parent=5 // pred_fallthru
      _
    %p5736 = scmp.le.s32.totalorder 2, %s13
    // Predicated region
    $region53: #{resblock_forward.3} parent=5 // pred_check
      %p5737 = pneg %p5736
    $region54: #{resblock_forward.3} parent=5 // pred_check_branch
      %5739 = sbr.rel (%p5737) target = $region56
    $region55: #{resblock_forward.3} parent=5 // pred_region
      %s5740 = ssub.s32 %s13, 2
      // Predicated region
      $region57: #{resblock_forward.3} parent=55 // pred_check
        %p5741 = pneg %p124
      $region58: #{resblock_forward.3} parent=55 // pred_check_branch
        %5743 = sbr.rel (%p5741) target = $region60
      $region59: #{resblock_forward.3} parent=55 // pred_region
        %s5744 = smul.u32 16, %s25
        %p5745 = scmp.lt.s32.totalorder %s24, 1
        %s5746 = scalar_select %p5745, %s24, 1
        %p5747 = scmp.lt.s32.totalorder %s5744, 15
        %s5748 = scalar_select %p5747, %s5744, 15
        %s5749 = smul.addr %s5748, 2
        %s5750 = smul.addr %s5746, 32
        %s5751 = sadd.s32 %s5749, %s5750
        %s5752 = smul.addr %s5751, 8
        %s5753 = scalar_lea.vmem %s3, %s5752
      $region60: #{resblock_forward.3} parent=55 // pred_fallthru
        _
      // Predicated region
      $region61: #{resblock_forward.3} parent=55 // pred_check
        %p5754 = pneg %p150
      $region62: #{resblock_forward.3} parent=55 // pred_check_branch
        %5756 = sbr.rel (%p5754) target = $region64
      $region63: #{resblock_forward.3} parent=55 // pred_region
        %p5757 = scmp.lt.s32.totalorder %s24, 1
        %s5758 = scalar_select %p5757, %s24, 1
        %s5759 = smul.addr %s5758, 2
        %s5760 = scalar_lea.vmem %s4, %s5759
      $region64: #{resblock_forward.3} parent=55 // pred_fallthru
        _
      // Predicated region
      $region65: #{resblock_forward.3} parent=55 // pred_check
        %p5761 = pneg %p178
      $region66: #{resblock_forward.3} parent=55 // pred_check_branch
        %5763 = sbr.rel (%p5761) target = $region68
      $region67: #{resblock_forward.3} parent=55 // pred_region
        %s5764 = smul.u32 16, %s25
        %p5765 = scmp.lt.s32.totalorder %s24, 1
        %s5766 = scalar_select %p5765, %s24, 1
        %p5767 = scmp.lt.s32.totalorder %s5764, 15
        %s5768 = scalar_select %p5767, %s5764, 15
        %s5769 = smul.addr %s5768, 2
        %s5770 = smul.addr %s5766, 32
        %s5771 = sadd.s32 %s5769, %s5770
        %s5772 = smul.addr %s5771, 8
        %s5773 = scalar_lea.vmem %s5, %s5772
      $region68: #{resblock_forward.3} parent=55 // pred_fallthru
        _
      // Predicated region
      $region69: #{resblock_forward.3} parent=55 // pred_check
        %p5774 = pneg %p204
      $region70: #{resblock_forward.3} parent=55 // pred_check_branch
        %5776 = sbr.rel (%p5774) target = $region72
      $region71: #{resblock_forward.3} parent=55 // pred_region
        %p5777 = scmp.lt.s32.totalorder %s24, 1
        %s5778 = scalar_select %p5777, %s24, 1
        %s5779 = smul.addr %s5778, 2
        %s5780 = scalar_lea.vmem %s6, %s5779
      $region72: #{resblock_forward.3} parent=55 // pred_fallthru
        _
    $region56: #{resblock_forward.3} parent=5 // pred_fallthru
      _
  $region6: #{resblock_forward.3} parent=0 // loop_footer
    %s17 = sadd.s32 1, %s13
  $region7: #{resblock_forward.3} parent=0 // loop_footer_branch
    %12 = sbr.rel target = $region3
  $region8: #{resblock_forward.3} parent=0 // loop_exit
    _

// kernel: resblock_forward.4
$region0: #{resblock_forward.4}
  #allocation0 [shape = 'u32[]', space=smem, size = 0x4, offset = 0x4, fixed_abs, tag = 'smem constant byte address 0x4 - core index']
  #allocation1 [shape = 'u32[144,128]{1,0:T(1,128)}', space=vmem, size = 0x12000, scoped, tag = 'internal scratch']
  #allocation2 [shape = 'bf16[18,18,128]{2,1,0:T(8,128)(2,1)}', space=vmem, size = 0x1b000, scoped, tag = 'scratch operand']
  %s0 = inlined_call_operand.vmem [shape: f32[2,16,16,128], index: 0, kind: input, shape index: {}]
  %s1 = inlined_call_operand.vmem [shape: f32[1,128], index: 1, kind: input, shape index: {}]
  %s2 = inlined_call_operand.vmem [shape: f32[1,128], index: 2, kind: input, shape index: {}]
  %s3 = inlined_call_operand.vmem [shape: bf16[9,128,128], index: 3, kind: input, shape index: {}]
  %s4 = inlined_call_operand.vmem [shape: f32[2,16,16,128], index: 4, kind: output, shape index: {0}]
  %s5 = inlined_call_operand.vmem [shape: f32[2,2,128], index: 5, kind: output, shape index: {1}]
  %6 = xla_tuple %s4, %s5
  %s7 = sld [smem:[#allocation0]]
  $region61: #{resblock_forward.4} parent=0
    _
  %s9 = ssub.s32 1, %s7
  %s10 = scalar_select 0, %s9, %s7
  loop: start=0, step=1, limit=4
  $region2: #{resblock_forward.4} parent=0 // loop_pre_header
    _
  $region3: #{resblock_forward.4} parent=0 // loop_header
    %s12 = sphi 0, %s16
    %p13 = scmp.ge.s32.totalorder %s12, 4
    %s19 = sphi 0, %s31
    %s20 = sphi 0, %s27
    %s21 = sphi 0, %s19
    %s22 = sphi 0, %s20
    %s23 = sphi 0, %s21
    %s24 = sphi 0, %s22
    %s34 = sphi 0, %s36
    %s37 = sphi 0, %s34
    %s38 = sphi 0, %s37
    %s54 = sphi 0, %s38
    %s58 = sphi 0, %s58
    %s60 = sphi 0, %s58
    %s61 = sphi 0, %s60
    %s75 = sphi 0, %s61
    %s79 = sphi 0, %s79
    %s81 = sphi 0, %s79
    %s82 = sphi 0, %s81
    %s96 = sphi 0, %s82
    %s100 = sphi 0, %s100
    %s102 = sphi 0, %s100
    %s103 = sphi 0, %s102
    %s117 = sphi 0, %s103
    %s125 = sphi 0, %s127
    %s128 = sphi 0, %s125
    %s129 = sphi 0, %s128
    %s145 = sphi 0, %s129
    %s151 = sphi 0, %s153
    %s154 = sphi 0, %s151
    %s155 = sphi 0, %s154
    %s171 = sphi 0, %s155
  $region4: #{resblock_forward.4} parent=0 // loop_header_branch
    %15 = sbr.rel (%p13) target = $region8
  $region5: #{resblock_forward.4} parent=0 // loop_body
    %s17 = ssub.s32 %s12, 1
    %s18 = ssub.s32 %s12, 2
    %s25 = sadd.s32 1, %s20
    %p26 = scmp.ge.s32.totalorder %s25, 1
    %s27 = scalar_select %p26, 0, %s25
    %s28 = sadd.s32 1, %s19
    %s29 = scalar_select %p26, %s28, %s19
    %p30 = scmp.ge.s32.totalorder %s29, 2
    %s31 = scalar_select %p30, 0, %s29
    %s32 = ssub.s32 %s19, %s31
    %p33 = scmp.eq.s32.totalorder %s32, 0
    %s35 = sadd.s32 %s34, 1
    %s36 = scalar_select %p33, %s34, %s35
    %p39 = pneg %p33
    %p40 = scmp.eq.s32.totalorder %s12, 1
    %p41 = por %p39, %p40
    %p42 = scmp.ne.s32.totalorder %s34, %s37
    %p43 = scmp.eq.s32.totalorder %s12, 0
    %p44 = por %p42, %p43
    %p45 = scmp.ne.s32.totalorder %s34, %s37
    %p46 = scmp.eq.s32.totalorder %s17, 1
    %p47 = por %p45, %p46
    %p48 = scmp.ne.s32.totalorder %s37, %s38
    %p49 = scmp.eq.s32.totalorder %s17, 0
    %p50 = por %p48, %p49
    %p51 = scmp.ne.s32.totalorder %s37, %s38
    %p52 = scmp.eq.s32.totalorder %s18, 1
    %p53 = por %p51, %p52
    %p55 = scmp.ne.s32.totalorder %s38, %s54
    %p56 = scmp.eq.s32.totalorder %s18, 0
    %p57 = por %p55, %p56
    %s59 = sadd.s32 %s58, 1
    %p62 = scmp.eq.s32.totalorder %s12, 1
    %p63 = scmp.ne.s32.totalorder %s58, %s60
    %p64 = scmp.eq.s32.totalorder %s12, 0
    %p65 = por %p63, %p64
    %p66 = scmp.ne.s32.totalorder %s58, %s60
    %p67 = scmp.eq.s32.totalorder %s17, 1
    %p68 = por %p66, %p67
    %p69 = scmp.ne.s32.totalorder %s60, %s61
    %p70 = scmp.eq.s32.totalorder %s17, 0
    %p71 = por %p69, %p70
    %p72 = scmp.ne.s32.totalorder %s60, %s61
    %p73 = scmp.eq.s32.totalorder %s18, 1
    %p74 = por %p72, %p73
    %p76 = scmp.ne.s32.totalorder %s61, %s75
    %p77 = scmp.eq.s32.totalorder %s18, 0
    %p78 = por %p76, %p77
    %s80 = sadd.s32 %s79, 1
    %p83 = scmp.eq.s32.totalorder %s12, 1
    %p84 = scmp.ne.s32.totalorder %s79, %s81
    %p85 = scmp.eq.s32.totalorder %s12, 0
    %p86 = por %p84, %p85
    %p87 = scmp.ne.s32.totalorder %s79, %s81
    %p88 = scmp.eq.s32.totalorder %s17, 1
    %p89 = por %p87, %p88
    %p90 = scmp.ne.s32.totalorder %s81, %s82
    %p91 = scmp.eq.s32.totalorder %s17, 0
    %p92 = por %p90, %p91
    %p93 = scmp.ne.s32.totalorder %s81, %s82
    %p94 = scmp.eq.s32.totalorder %s18, 1
    %p95 = por %p93, %p94
    %p97 = scmp.ne.s32.totalorder %s82, %s96
    %p98 = scmp.eq.s32.totalorder %s18, 0
    %p99 = por %p97, %p98
    %s101 = sadd.s32 %s100, 1
    %p104 = scmp.eq.s32.totalorder %s12, 1
    %p105 = scmp.ne.s32.totalorder %s100, %s102
    %p106 = scmp.eq.s32.totalorder %s12, 0
    %p107 = por %p105, %p106
    %p108 = scmp.ne.s32.totalorder %s100, %s102
    %p109 = scmp.eq.s32.totalorder %s17, 1
    %p110 = por %p108, %p109
    %p111 = scmp.ne.s32.totalorder %s102, %s103
    %p112 = scmp.eq.s32.totalorder %s17, 0
    %p113 = por %p111, %p112
    %p114 = scmp.ne.s32.totalorder %s102, %s103
    %p115 = scmp.eq.s32.totalorder %s18, 1
    %p116 = por %p114, %p115
    %p118 = scmp.ne.s32.totalorder %s103, %s117
    %p119 = scmp.eq.s32.totalorder %s18, 0
    %p120 = por %p118, %p119
    %s121 = ssub.s32 %s19, %s31
    %s122 = ssub.s32 %s20, %s27
    %s123 = sor.u32 %s121, %s122
    %p124 = scmp.eq.s32.totalorder %s123, 0
    %s126 = sadd.s32 %s125, 1
    %s127 = scalar_select %p124, %s125, %s126
    %p130 = pneg %p124
    %p131 = scmp.eq.s32.totalorder %s12, 1
    %p132 = por %p130, %p131
    %p133 = scmp.ne.s32.totalorder %s125, %s128
    %p134 = scmp.eq.s32.totalorder %s12, 0
    %p135 = por %p133, %p134
    %p136 = scmp.ne.s32.totalorder %s125, %s128
    %p137 = scmp.eq.s32.totalorder %s17, 1
    %p138 = por %p136, %p137
    %p139 = scmp.ne.s32.totalorder %s128, %s129
    %p140 = scmp.eq.s32.totalorder %s17, 0
    %p141 = por %p139, %p140
    %p142 = scmp.ne.s32.totalorder %s128, %s129
    %p143 = scmp.eq.s32.totalorder %s18, 1
    %p144 = por %p142, %p143
    %p146 = scmp.ne.s32.totalorder %s129, %s145
    %p147 = scmp.eq.s32.totalorder %s18, 0
    %p148 = por %p146, %p147
    %s149 = ssub.s32 %s19, %s31
    %p150 = scmp.eq.s32.totalorder %s149, 0
    %s152 = sadd.s32 %s151, 1
    %s153 = scalar_select %p150, %s151, %s152
    %p156 = pneg %p150
    %p157 = scmp.eq.s32.totalorder %s12, 1
    %p158 = por %p156, %p157
    %p159 = scmp.ne.s32.totalorder %s151, %s154
    %p160 = scmp.eq.s32.totalorder %s12, 0
    %p161 = por %p159, %p160
    %p162 = scmp.ne.s32.totalorder %s151, %s154
    %p163 = scmp.eq.s32.totalorder %s17, 1
    %p164 = por %p162, %p163
    %p165 = scmp.ne.s32.totalorder %s154, %s155
    %p166 = scmp.eq.s32.totalorder %s17, 0
    %p167 = por %p165, %p166
    %p168 = scmp.ne.s32.totalorder %s154, %s155
    %p169 = scmp.eq.s32.totalorder %s18, 1
    %p170 = por %p168, %p169
    %p172 = scmp.ne.s32.totalorder %s155, %s171
    %p173 = scmp.eq.s32.totalorder %s18, 0
    %p174 = por %p172, %p173
    %p175 = scmp.le.s32.totalorder 1, %s12
    %p176 = scmp.lt.s32.totalorder %s12, 3
    %p177 = pnand %p175, %p176
    %p178 = pneg %p177
    // Predicated region
    $region9: #{resblock_forward.4} parent=5 // pred_check
      _
    $region10: #{resblock_forward.4} parent=5 // pred_check_branch
      %180 = sbr.rel (%p177) target = $region12
    $region11: #{resblock_forward.4} parent=5 // pred_region
      %s181 = ssub.s32 %s12, 1
      // Predicated region
      $region13: #{resblock_forward.4} parent=11 // pred_check
        %p182 = pneg %p71
      $region14: #{resblock_forward.4} parent=11 // pred_check_branch
        %184 = sbr.rel (%p182) target = $region16
      $region15: #{resblock_forward.4} parent=11 // pred_region
        _
      $region16: #{resblock_forward.4} parent=11 // pred_fallthru
        _
      // Predicated region
      $region17: #{resblock_forward.4} parent=11 // pred_check
        %p185 = pneg %p92
      $region18: #{resblock_forward.4} parent=11 // pred_check_branch
        %187 = sbr.rel (%p185) target = $region20
      $region19: #{resblock_forward.4} parent=11 // pred_region
        _
      $region20: #{resblock_forward.4} parent=11 // pred_fallthru
        _
      // Predicated region
      $region21: #{resblock_forward.4} parent=11 // pred_check
        %p188 = pneg %p113
      $region22: #{resblock_forward.4} parent=11 // pred_check_branch
        %190 = sbr.rel (%p188) target = $region24
      $region23: #{resblock_forward.4} parent=11 // pred_region
        _
      $region24: #{resblock_forward.4} parent=11 // pred_fallthru
        _
    $region12: #{resblock_forward.4} parent=5 // pred_fallthru
      _
    %p191 = scmp.lt.s32.totalorder %s12, 2
    // Predicated region
    $region25: #{resblock_forward.4} parent=5 // pred_check
      %p192 = pneg %p191
    $region26: #{resblock_forward.4} parent=5 // pred_check_branch
      %194 = sbr.rel (%p192) target = $region28
    $region27: #{resblock_forward.4} parent=5 // pred_region
      // Predicated region
      $region29: #{resblock_forward.4} parent=27 // pred_check
        %p195 = pneg %p44
      $region30: #{resblock_forward.4} parent=27 // pred_check_branch
        %197 = sbr.rel (%p195) target = $region32
      $region31: #{resblock_forward.4} parent=27 // pred_region
        %p198 = scmp.lt.s32.totalorder %s19, 1
        %s199 = scalar_select %p198, %s19, 1
        %s200 = smul.addr %s199, 32
        %s201 = smul.addr %s200, 8
        %s202 = scalar_lea.vmem %s0, %s201
      $region32: #{resblock_forward.4} parent=27 // pred_fallthru
        _
    $region28: #{resblock_forward.4} parent=5 // pred_fallthru
      _
    %p203 = scmp.le.s32.totalorder 1, %s12
    %p204 = scmp.lt.s32.totalorder %s12, 3
    %p205 = pnand %p203, %p204
    %p206 = pneg %p205
    // Predicated region
    $region33: #{resblock_forward.4} parent=5 // pred_check
      _
    $region34: #{resblock_forward.4} parent=5 // pred_check_branch
      %208 = sbr.rel (%p205) target = $region36
    $region35: #{resblock_forward.4} parent=5 // pred_region
      %s209 = ssub.s32 %s12, 1
      %p210 = scmp.lt.s32.totalorder %s21, 1
      %s211 = scalar_select %p210, %s21, 1
      %s212 = smul.addr %s211, 32
      %s213 = smul.addr %s212, 8
      %s214 = scalar_lea.vmem %s0, %s213
      %p215 = pneg %p50
      %p216 = pneg %p47
      %p217 = pneg %p71
      %p218 = pneg %p68
      %p219 = pneg %p92
      %p220 = pneg %p89
      %p221 = pneg %p113
      %p222 = pneg %p110
      %p223 = pneg %p141
      %p224 = pneg %p138
      %s225 = smul.u32 16, %s22
      %p226 = scmp.lt.s32.totalorder %s21, 1
      %s227 = scalar_select %p226, %s21, 1
      %p228 = scmp.lt.s32.totalorder %s225, 15
      %s229 = scalar_select %p228, %s225, 15
      %s230 = smul.addr %s229, 2
      %s231 = smul.addr %s227, 32
      %s232 = sadd.s32 %s230, %s231
      %s233 = smul.addr %s232, 8
      %s234 = scalar_lea.vmem %s4, %s233
      %p235 = pneg %p167
      %p236 = pneg %p164
      %p237 = scmp.lt.s32.totalorder %s21, 1
      %s238 = scalar_select %p237, %s21, 1
      %s239 = smul.addr %s238, 2
      %s240 = scalar_lea.vmem %s5, %s239
      %p241 = scmp.lt.s32.totalorder %s21, 1
      %s242 = scalar_select %p241, %s21, 1
      %s243 = smul.addr %s242, 32
      %s244 = smul.addr %s243, 8
      %s245 = scalar_lea.vmem %s0, %s244
      %s246 = smul.u32 16, %s22
      %p247 = scmp.lt.s32.totalorder %s21, 1
      %s248 = scalar_select %p247, %s21, 1
      %p249 = scmp.lt.s32.totalorder %s246, 15
      %s250 = scalar_select %p249, %s246, 15
      %s251 = smul.addr %s250, 2
      %s252 = smul.addr %s248, 32
      %s253 = sadd.s32 %s251, %s252
      %s254 = smul.addr %s253, 8
      %s255 = scalar_lea.vmem %s4, %s254
      %s256 = smul.u32 16, %s22
      %p257 = scmp.lt.s32.totalorder %s21, 1
      %s258 = scalar_select %p257, %s21, 1
      %s259 = smul.addr %s258, 2
      %s260 = scalar_lea.vmem %s5, %s259
      %s262 = smul.u32 %s22, 16
      %p263 = scmp.eq.s32.totalorder %s22, 0
      // Predicated region
      $region37: #{resblock_forward.4} parent=35 // pred_check
        %p264 = pneg %p263
      $region38: #{resblock_forward.4} parent=35 // pred_check_branch
        %266 = sbr.rel (%p264) target = $region40
      $region39: #{resblock_forward.4} parent=35 // pred_region
        %267 = vst [vmem:[%s260] sm:$0x3] 0.0
        %268 = vst [vmem:[#allocation2] sm:$0xf] 0
        %269 = vst [vmem:[#allocation2 + $0x4] sm:$0xf] 0
        %270 = vst [vmem:[#allocation2 + $0x8] sm:$0x1] 0
        %271 = vst [vmem:[#allocation2 + $0xc] sm:$0xf] 0
        %272 = vst [vmem:[#allocation2 + $0x10] sm:$0xf] 0
        %273 = vst [vmem:[#allocation2 + $0x14] sm:$0x1] 0
        %274 = vst [vmem:[#allocation2 + $0x18] sm:$0xf] 0
        %275 = vst [vmem:[#allocation2 + $0x1c] sm:$0xf] 0
        %276 = vst [vmem:[#allocation2 + $0x20] sm:$0x1] 0
        %277 = vst [vmem:[#allocation2 + $0x24] sm:$0xf] 0
        %278 = vst [vmem:[#allocation2 + $0x28] sm:$0xf] 0
        %279 = vst [vmem:[#allocation2 + $0x2c] sm:$0x1] 0
        %280 = vst [vmem:[#allocation2 + $0x30] sm:$0xf] 0
        %281 = vst [vmem:[#allocation2 + $0x34] sm:$0xf] 0
        %282 = vst [vmem:[#allocation2 + $0x38] sm:$0x1] 0
        %283 = vst [vmem:[#allocation2 + $0x3c] sm:$0xf] 0
        %284 = vst [vmem:[#allocation2 + $0x40] sm:$0xf] 0
        %285 = vst [vmem:[#allocation2 + $0x44] sm:$0x1] 0
        %286 = vst [vmem:[#allocation2 + $0x48] sm:$0xf] 0
        %287 = vst [vmem:[#allocation2 + $0x4c] sm:$0xf] 0
        %288 = vst [vmem:[#allocation2 + $0x50] sm:$0x1] 0
        %289 = vst [vmem:[#allocation2 + $0x54] sm:$0xf] 0
        %290 = vst [vmem:[#allocation2 + $0x58] sm:$0xf] 0
        %291 = vst [vmem:[#allocation2 + $0x5c] sm:$0x1] 0
        %292 = vst [vmem:[#allocation2 + $0x60] sm:$0xf] 0
        %293 = vst [vmem:[#allocation2 + $0x64] sm:$0xf] 0
        %294 = vst [vmem:[#allocation2 + $0x68] sm:$0x1] 0
        %295 = vst [vmem:[#allocation2 + $0x6c] sm:$0xf] 0
        %296 = vst [vmem:[#allocation2 + $0x70] sm:$0xf] 0
        %297 = vst [vmem:[#allocation2 + $0x74] sm:$0x1] 0
        %298 = vst [vmem:[#allocation2 + $0x78] sm:$0xf] 0
        %299 = vst [vmem:[#allocation2 + $0x7c] sm:$0xf] 0
        %300 = vst [vmem:[#allocation2 + $0x80] sm:$0x1] 0
        %301 = vst [vmem:[#allocation2 + $0x84] sm:$0xf] 0
        %302 = vst [vmem:[#allocation2 + $0x88] sm:$0xf] 0
        %303 = vst [vmem:[#allocation2 + $0x8c] sm:$0x1] 0
        %304 = vst [vmem:[#allocation2 + $0x90] sm:$0xf] 0
        %305 = vst [vmem:[#allocation2 + $0x94] sm:$0xf] 0
        %306 = vst [vmem:[#allocation2 + $0x98] sm:$0x1] 0
        %307 = vst [vmem:[#allocation2 + $0x9c] sm:$0xf] 0
        %308 = vst [vmem:[#allocation2 + $0xa0] sm:$0xf] 0
        %309 = vst [vmem:[#allocation2 + $0xa4] sm:$0x1] 0
        %310 = vst [vmem:[#allocation2 + $0xa8] sm:$0xf] 0
        %311 = vst [vmem:[#allocation2 + $0xac] sm:$0xf] 0
        %312 = vst [vmem:[#allocation2 + $0xb0] sm:$0x1] 0
        %313 = vst [vmem:[#allocation2 + $0xb4] sm:$0xf] 0
        %314 = vst [vmem:[#allocation2 + $0xb8] sm:$0xf] 0
        %315 = vst [vmem:[#allocation2 + $0xbc] sm:$0x1] 0
        %316 = vst [vmem:[#allocation2 + $0xc0] sm:$0xf] 0
        %317 = vst [vmem:[#allocation2 + $0xc4] sm:$0xf] 0
        %318 = vst [vmem:[#allocation2 + $0xc8] sm:$0x1] 0
        %319 = vst [vmem:[#allocation2 + $0xcc] sm:$0xf] 0
        %320 = vst [vmem:[#allocation2 + $0xd0] sm:$0xf] 0
        %321 = vst [vmem:[#allocation2 + $0xd4] sm:$0x1] 0
        %v322 = vld [vmem:[%s245] sm:$0xff]
        %v323 = vld [vmem:[%s245 + $0x8] sm:$0xff]
        %v324 = vld [vmem:[%s245 + $0x10] sm:$0xff]
        %v325 = vld [vmem:[%s245 + $0x18] sm:$0xff]
        %v326 = vld [vmem:[%s245 + $0x20] sm:$0xff]
        %v327 = vld [vmem:[%s245 + $0x28] sm:$0xff]
        %v328 = vld [vmem:[%s245 + $0x30] sm:$0xff]
        %v329 = vld [vmem:[%s245 + $0x38] sm:$0xff]
        %v330 = vld [vmem:[%s245 + $0x40] sm:$0xff]
        %v331 = vld [vmem:[%s245 + $0x48] sm:$0xff]
        %v332 = vld [vmem:[%s245 + $0x50] sm:$0xff]
        %v333 = vld [vmem:[%s245 + $0x58] sm:$0xff]
        %v334 = vld [vmem:[%s245 + $0x60] sm:$0xff]
        %v335 = vld [vmem:[%s245 + $0x68] sm:$0xff]
        %v336 = vld [vmem:[%s245 + $0x70] sm:$0xff]
        %v337 = vld [vmem:[%s245 + $0x78] sm:$0xff]
        %v338 = vld [vmem:[%s245 + $0x80] sm:$0xff]
        %v339 = vld [vmem:[%s245 + $0x88] sm:$0xff]
        %v340 = vld [vmem:[%s245 + $0x90] sm:$0xff]
        %v341 = vld [vmem:[%s245 + $0x98] sm:$0xff]
        %v342 = vld [vmem:[%s245 + $0xa0] sm:$0xff]
        %v343 = vld [vmem:[%s245 + $0xa8] sm:$0xff]
        %v344 = vld [vmem:[%s245 + $0xb0] sm:$0xff]
        %v345 = vld [vmem:[%s245 + $0xb8] sm:$0xff]
        %v346 = vld [vmem:[%s245 + $0xc0] sm:$0xff]
        %v347 = vld [vmem:[%s245 + $0xc8] sm:$0xff]
        %v348 = vld [vmem:[%s245 + $0xd0] sm:$0xff]
        %v349 = vld [vmem:[%s245 + $0xd8] sm:$0xff]
        %v350 = vld [vmem:[%s245 + $0xe0] sm:$0xff]
        %v351 = vld [vmem:[%s245 + $0xe8] sm:$0xff]
        %v352 = vld [vmem:[%s245 + $0xf0] sm:$0xff]
        %v353 = vld [vmem:[%s245 + $0xf8] sm:$0xff]
        %v354 = vld [vmem:[%s1] sm:$0x1]
        %v356 = vlaneseq
        %v357 = vshrl.u32 %v356, 7
        %v358 = vsub.s32 0, %v357
        %v359 = vrot.slane %v354, %v358
        %v361 = vmul.f32 %v322, %v359
        %v362 = vmul.f32 %v323, %v359
        %v363 = vmul.f32 %v324, %v359
        %v364 = vmul.f32 %v325, %v359
        %v365 = vmul.f32 %v326, %v359
        %v366 = vmul.f32 %v327, %v359
        %v367 = vmul.f32 %v328, %v359
        %v368 = vmul.f32 %v329, %v359
        %v369 = vmul.f32 %v330, %v359
        %v370 = vmul.f32 %v331, %v359
        %v371 = vmul.f32 %v332, %v359
        %v372 = vmul.f32 %v333, %v359
        %v373 = vmul.f32 %v334, %v359
        %v374 = vmul.f32 %v335, %v359
        %v375 = vmul.f32 %v336, %v359
        %v376 = vmul.f32 %v337, %v359
        %v377 = vmul.f32 %v338, %v359
        %v378 = vmul.f32 %v339, %v359
        %v379 = vmul.f32 %v340, %v359
        %v380 = vmul.f32 %v341, %v359
        %v381 = vmul.f32 %v342, %v359
        %v382 = vmul.f32 %v343, %v359
        %v383 = vmul.f32 %v344, %v359
        %v384 = vmul.f32 %v345, %v359
        %v385 = vmul.f32 %v346, %v359
        %v386 = vmul.f32 %v347, %v359
        %v387 = vmul.f32 %v348, %v359
        %v388 = vmul.f32 %v349, %v359
        %v389 = vmul.f32 %v350, %v359
        %v390 = vmul.f32 %v351, %v359
        %v391 = vmul.f32 %v352, %v359
        %v392 = vmul.f32 %v353, %v359
        %v393 = vld [vmem:[%s2] sm:$0x1]
        %v395 = vlaneseq
        %v396 = vshrl.u32 %v395, 7
        %v397 = vsub.s32 0, %v396
        %v398 = vrot.slane %v393, %v397
        %v400 = vadd.f32 %v361, %v398
        %v401 = vadd.f32 %v362, %v398
        %v402 = vadd.f32 %v363, %v398
        %v403 = vadd.f32 %v364, %v398
        %v404 = vadd.f32 %v365, %v398
        %v405 = vadd.f32 %v366, %v398
        %v406 = vadd.f32 %v367, %v398
        %v407 = vadd.f32 %v368, %v398
        %v408 = vadd.f32 %v369, %v398
        %v409 = vadd.f32 %v370, %v398
        %v410 = vadd.f32 %v371, %v398
        %v411 = vadd.f32 %v372, %v398
        %v412 = vadd.f32 %v373, %v398
        %v413 = vadd.f32 %v374, %v398
        %v414 = vadd.f32 %v375, %v398
        %v415 = vadd.f32 %v376, %v398
        %v416 = vadd.f32 %v377, %v398
        %v417 = vadd.f32 %v378, %v398
        %v418 = vadd.f32 %v379, %v398
        %v419 = vadd.f32 %v380, %v398
        %v420 = vadd.f32 %v381, %v398
        %v421 = vadd.f32 %v382, %v398
        %v422 = vadd.f32 %v383, %v398
        %v423 = vadd.f32 %v384, %v398
        %v424 = vadd.f32 %v385, %v398
        %v425 = vadd.f32 %v386, %v398
        %v426 = vadd.f32 %v387, %v398
        %v427 = vadd.f32 %v388, %v398
        %v428 = vadd.f32 %v389, %v398
        %v429 = vadd.f32 %v390, %v398
        %v430 = vadd.f32 %v391, %v398
        %v431 = vadd.f32 %v392, %v398
        %v432 = vmax.f32 %v400, 0.0
        %v433 = vmax.f32 %v401, 0.0
        %v434 = vmax.f32 %v402, 0.0
        %v435 = vmax.f32 %v403, 0.0
        %v436 = vmax.f32 %v404, 0.0
        %v437 = vmax.f32 %v405, 0.0
        %v438 = vmax.f32 %v406, 0.0
        %v439 = vmax.f32 %v407, 0.0
        %v440 = vmax.f32 %v408, 0.0
        %v441 = vmax.f32 %v409, 0.0
        %v442 = vmax.f32 %v410, 0.0
        %v443 = vmax.f32 %v411, 0.0
        %v444 = vmax.f32 %v412, 0.0
        %v445 = vmax.f32 %v413, 0.0
        %v446 = vmax.f32 %v414, 0.0
        %v447 = vmax.f32 %v415, 0.0
        %v448 = vmax.f32 %v416, 0.0
        %v449 = vmax.f32 %v417, 0.0
        %v450 = vmax.f32 %v418, 0.0
        %v451 = vmax.f32 %v419, 0.0
        %v452 = vmax.f32 %v420, 0.0
        %v453 = vmax.f32 %v421, 0.0
        %v454 = vmax.f32 %v422, 0.0
        %v455 = vmax.f32 %v423, 0.0
        %v456 = vmax.f32 %v424, 0.0
        %v457 = vmax.f32 %v425, 0.0
        %v458 = vmax.f32 %v426, 0.0
        %v459 = vmax.f32 %v427, 0.0
        %v460 = vmax.f32 %v428, 0.0
        %v461 = vmax.f32 %v429, 0.0
        %v462 = vmax.f32 %v430, 0.0
        %v463 = vmax.f32 %v431, 0.0
        %v464 = vpack.c.bf16 %v433, %v432
        %v465 = vpack.c.bf16 %v435, %v434
        %v466 = vpack.c.bf16 %v437, %v436
        %v467 = vpack.c.bf16 %v439, %v438
        %v468 = vpack.c.bf16 %v441, %v440
        %v469 = vpack.c.bf16 %v443, %v442
        %v470 = vpack.c.bf16 %v445, %v444
        %v471 = vpack.c.bf16 %v447, %v446
        %v472 = vpack.c.bf16 %v449, %v448
        %v473 = vpack.c.bf16 %v451, %v450
        %v474 = vpack.c.bf16 %v453, %v452
        %v475 = vpack.c.bf16 %v455, %v454
        %v476 = vpack.c.bf16 %v457, %v456
        %v477 = vpack.c.bf16 %v459, %v458
        %v478 = vpack.c.bf16 %v461, %v460
        %v479 = vpack.c.bf16 %v463, %v462
        %v496 = vunpack.c.l.b16 %v464
        %v497 = vunpack.c.h.b16 %v464
        %v498 = vunpack.c.l.b16 %v465
        %v499 = vunpack.c.h.b16 %v465
        %v500 = vunpack.c.l.b16 %v466
        %v501 = vunpack.c.h.b16 %v466
        %v502 = vunpack.c.l.b16 %v467
        %v503 = vunpack.c.h.b16 %v467
        %v504 = vunpack.c.l.b16 %v468
        %v505 = vunpack.c.h.b16 %v468
        %v506 = vunpack.c.l.b16 %v469
        %v507 = vunpack.c.h.b16 %v469
        %v508 = vunpack.c.l.b16 %v470
        %v509 = vunpack.c.h.b16 %v470
        %v510 = vunpack.c.l.b16 %v471
        %v511 = vunpack.c.h.b16 %v471
        %v512 = vunpack.c.l.b16 %v472
        %v513 = vunpack.c.h.b16 %v472
        %v514 = vunpack.c.l.b16 %v473
        %v515 = vunpack.c.h.b16 %v473
        %v516 = vunpack.c.l.b16 %v474
        %v517 = vunpack.c.h.b16 %v474
        %v518 = vunpack.c.l.b16 %v475
        %v519 = vunpack.c.h.b16 %v475
        %v520 = vunpack.c.l.b16 %v476
        %v521 = vunpack.c.h.b16 %v476
        %v522 = vunpack.c.l.b16 %v477
        %v523 = vunpack.c.h.b16 %v477
        %v524 = vunpack.c.l.b16 %v478
        %v525 = vunpack.c.h.b16 %v478
        %v526 = vunpack.c.l.b16 %v479
        %v527 = vunpack.c.h.b16 %v479
        %v528 = vpack.c.b16 %v496, %v496
        %v529 = vpack.c.b16 %v497, %v497
        %v530 = vpack.c.b16 %v498, %v498
        %v531 = vpack.c.b16 %v499, %v499
        %v532 = vpack.c.b16 %v500, %v500
        %v533 = vpack.c.b16 %v501, %v501
        %v534 = vpack.c.b16 %v502, %v502
        %v535 = vpack.c.b16 %v503, %v503
        %v536 = vpack.c.b16 %v504, %v504
        %v537 = vpack.c.b16 %v505, %v505
        %v538 = vpack.c.b16 %v506, %v506
        %v539 = vpack.c.b16 %v507, %v507
        %v540 = vpack.c.b16 %v508, %v508
        %v541 = vpack.c.b16 %v509, %v509
        %v542 = vpack.c.b16 %v510, %v510
        %v543 = vpack.c.b16 %v511, %v511
        %v544 = vpack.c.b16 %v512, %v512
        %v545 = vpack.c.b16 %v513, %v513
        %v546 = vpack.c.b16 %v514, %v514
        %v547 = vpack.c.b16 %v515, %v515
        %v548 = vpack.c.b16 %v516, %v516
        %v549 = vpack.c.b16 %v517, %v517
        %v550 = vpack.c.b16 %v518, %v518
        %v551 = vpack.c.b16 %v519, %v519
        %v552 = vpack.c.b16 %v520, %v520
        %v553 = vpack.c.b16 %v521, %v521
        %v554 = vpack.c.b16 %v522, %v522
        %v555 = vpack.c.b16 %v523, %v523
        %v556 = vpack.c.b16 %v524, %v524
        %v557 = vpack.c.b16 %v525, %v525
        %v558 = vpack.c.b16 %v526, %v526
        %v559 = vpack.c.b16 %v527, %v527
        %vm560 = vsmask.f32 256
        %vm561 = vsmask.f32 4368
        %vm562 = vmor %vm560, %vm561
        %v564 = vshrl.u32 %v528, 16
        %v566 = vrot.slane %v564, 7
        %v567 = vshll.u32 %v528, 16
        %v569 = vor.u32 %v566, %v567
        %v570 = vrot.slane %v566, 4
        %v572 = vshrl.u32 %v529, 16
        %v574 = vrot.slane %v572, 7
        %v575 = vshll.u32 %v529, 16
        %v577 = vor.u32 %v574, %v575
        %v578 = vsel %vm562, %v570, %v577
        %v579 = vrot.slane %v574, 4
        %v581 = vshrl.u32 %v530, 16
        %v583 = vrot.slane %v581, 7
        %v584 = vshll.u32 %v530, 16
        %v586 = vor.u32 %v583, %v584
        %v587 = vrot.slane %v583, 4
        %v589 = vshrl.u32 %v531, 16
        %v591 = vrot.slane %v589, 7
        %v592 = vshll.u32 %v531, 16
        %v594 = vor.u32 %v591, %v592
        %v595 = vsel %vm562, %v587, %v594
        %v596 = vrot.slane %v591, 4
        %v598 = vshrl.u32 %v532, 16
        %v600 = vrot.slane %v598, 7
        %v601 = vshll.u32 %v532, 16
        %v603 = vor.u32 %v600, %v601
        %v604 = vrot.slane %v600, 4
        %v606 = vshrl.u32 %v533, 16
        %v608 = vrot.slane %v606, 7
        %v609 = vshll.u32 %v533, 16
        %v611 = vor.u32 %v608, %v609
        %v612 = vsel %vm562, %v604, %v611
        %v613 = vrot.slane %v608, 4
        %v615 = vshrl.u32 %v534, 16
        %v617 = vrot.slane %v615, 7
        %v618 = vshll.u32 %v534, 16
        %v620 = vor.u32 %v617, %v618
        %v621 = vrot.slane %v617, 4
        %v623 = vshrl.u32 %v535, 16
        %v625 = vrot.slane %v623, 7
        %v626 = vshll.u32 %v535, 16
        %v628 = vor.u32 %v625, %v626
        %v629 = vsel %vm562, %v621, %v628
        %v630 = vrot.slane %v625, 4
        %v632 = vshrl.u32 %v536, 16
        %v634 = vrot.slane %v632, 7
        %v635 = vshll.u32 %v536, 16
        %v637 = vor.u32 %v634, %v635
        %v638 = vrot.slane %v634, 4
        %v640 = vshrl.u32 %v537, 16
        %v642 = vrot.slane %v640, 7
        %v643 = vshll.u32 %v537, 16
        %v645 = vor.u32 %v642, %v643
        %v646 = vsel %vm562, %v638, %v645
        %v647 = vrot.slane %v642, 4
        %v649 = vshrl.u32 %v538, 16
        %v651 = vrot.slane %v649, 7
        %v652 = vshll.u32 %v538, 16
        %v654 = vor.u32 %v651, %v652
        %v655 = vrot.slane %v651, 4
        %v657 = vshrl.u32 %v539, 16
        %v659 = vrot.slane %v657, 7
        %v660 = vshll.u32 %v539, 16
        %v662 = vor.u32 %v659, %v660
        %v663 = vsel %vm562, %v655, %v662
        %v664 = vrot.slane %v659, 4
        %v666 = vshrl.u32 %v540, 16
        %v668 = vrot.slane %v666, 7
        %v669 = vshll.u32 %v540, 16
        %v671 = vor.u32 %v668, %v669
        %v672 = vrot.slane %v668, 4
        %v674 = vshrl.u32 %v541, 16
        %v676 = vrot.slane %v674, 7
        %v677 = vshll.u32 %v541, 16
        %v679 = vor.u32 %v676, %v677
        %v680 = vsel %vm562, %v672, %v679
        %v681 = vrot.slane %v676, 4
        %v683 = vshrl.u32 %v542, 16
        %v685 = vrot.slane %v683, 7
        %v686 = vshll.u32 %v542, 16
        %v688 = vor.u32 %v685, %v686
        %v689 = vrot.slane %v685, 4
        %v691 = vshrl.u32 %v543, 16
        %v693 = vrot.slane %v691, 7
        %v694 = vshll.u32 %v543, 16
        %v696 = vor.u32 %v693, %v694
        %v697 = vsel %vm562, %v689, %v696
        %v698 = vrot.slane %v693, 4
        %v700 = vshrl.u32 %v544, 16
        %v702 = vrot.slane %v700, 7
        %v703 = vshll.u32 %v544, 16
        %v705 = vor.u32 %v702, %v703
        %v706 = vrot.slane %v702, 4
        %v708 = vshrl.u32 %v545, 16
        %v710 = vrot.slane %v708, 7
        %v711 = vshll.u32 %v545, 16
        %v713 = vor.u32 %v710, %v711
        %v714 = vsel %vm562, %v706, %v713
        %v715 = vrot.slane %v710, 4
        %v717 = vshrl.u32 %v546, 16
        %v719 = vrot.slane %v717, 7
        %v720 = vshll.u32 %v546, 16
        %v722 = vor.u32 %v719, %v720
        %v723 = vrot.slane %v719, 4
        %v725 = vshrl.u32 %v547, 16
        %v727 = vrot.slane %v725, 7
        %v728 = vshll.u32 %v547, 16
        %v730 = vor.u32 %v727, %v728
        %v731 = vsel %vm562, %v723, %v730
        %v732 = vrot.slane %v727, 4
        %v734 = vshrl.u32 %v548, 16
        %v736 = vrot.slane %v734, 7
        %v737 = vshll.u32 %v548, 16
        %v739 = vor.u32 %v736, %v737
        %v740 = vrot.slane %v736, 4
        %v742 = vshrl.u32 %v549, 16
        %v744 = vrot.slane %v742, 7
        %v745 = vshll.u32 %v549, 16
        %v747 = vor.u32 %v744, %v745
        %v748 = vsel %vm562, %v740, %v747
        %v749 = vrot.slane %v744, 4
        %v751 = vshrl.u32 %v550, 16
        %v753 = vrot.slane %v751, 7
        %v754 = vshll.u32 %v550, 16
        %v756 = vor.u32 %v753, %v754
        %v757 = vrot.slane %v753, 4
        %v759 = vshrl.u32 %v551, 16
        %v761 = vrot.slane %v759, 7
        %v762 = vshll.u32 %v551, 16
        %v764 = vor.u32 %v761, %v762
        %v765 = vsel %vm562, %v757, %v764
        %v766 = vrot.slane %v761, 4
        %v768 = vshrl.u32 %v552, 16
        %v770 = vrot.slane %v768, 7
        %v771 = vshll.u32 %v552, 16
        %v773 = vor.u32 %v770, %v771
        %v774 = vrot.slane %v770, 4
        %v776 = vshrl.u32 %v553, 16
        %v778 = vrot.slane %v776, 7
        %v779 = vshll.u32 %v553, 16
        %v781 = vor.u32 %v778, %v779
        %v782 = vsel %vm562, %v774, %v781
        %v783 = vrot.slane %v778, 4
        %v785 = vshrl.u32 %v554, 16
        %v787 = vrot.slane %v785, 7
        %v788 = vshll.u32 %v554, 16
        %v790 = vor.u32 %v787, %v788
        %v791 = vrot.slane %v787, 4
        %v793 = vshrl.u32 %v555, 16
        %v795 = vrot.slane %v793, 7
        %v796 = vshll.u32 %v555, 16
        %v798 = vor.u32 %v795, %v796
        %v799 = vsel %vm562, %v791, %v798
        %v800 = vrot.slane %v795, 4
        %v802 = vshrl.u32 %v556, 16
        %v804 = vrot.slane %v802, 7
        %v805 = vshll.u32 %v556, 16
        %v807 = vor.u32 %v804, %v805
        %v808 = vrot.slane %v804, 4
        %v810 = vshrl.u32 %v557, 16
        %v812 = vrot.slane %v810, 7
        %v813 = vshll.u32 %v557, 16
        %v815 = vor.u32 %v812, %v813
        %v816 = vsel %vm562, %v808, %v815
        %v817 = vrot.slane %v812, 4
        %v819 = vshrl.u32 %v558, 16
        %v821 = vrot.slane %v819, 7
        %v822 = vshll.u32 %v558, 16
        %v824 = vor.u32 %v821, %v822
        %v825 = vrot.slane %v821, 4
        %v827 = vshrl.u32 %v559, 16
        %v829 = vrot.slane %v827, 7
        %v830 = vshll.u32 %v559, 16
        %v832 = vor.u32 %v829, %v830
        %v833 = vsel %vm562, %v825, %v832
        %v834 = vrot.slane %v829, 4
        %s883 = scalar_lea.vmem [#allocation2], 12
        %vm884 = vcmask 1043456
        %vm885 = vsmask.f32 7938
        %vm886 = vmand %vm884, %vm885
        %v887 = vld [vmem:[%s883] sm:$0xf]
        %v888 = vsel %vm886, %v569, %v887
        %889 = vst [vmem:[%s883] sm:$0xf] %v888
        %890 = vst [vmem:[%s883 + $0x4] sm:$0xf] %v578
        %vm891 = vcmask 1040384
        %vm892 = vmand %vm891, %vm560
        %v893 = vld [vmem:[%s883 + $0x8] sm:$0x1]
        %v894 = vsel %vm892, %v579, %v893
        %895 = vst [vmem:[%s883 + $0x8] sm:$0x1] %v894
        %v896 = vld [vmem:[%s883 + $0xc] sm:$0xf]
        %v897 = vsel %vm886, %v586, %v896
        %898 = vst [vmem:[%s883 + $0xc] sm:$0xf] %v897
        %899 = vst [vmem:[%s883 + $0x10] sm:$0xf] %v595
        %v900 = vld [vmem:[%s883 + $0x14] sm:$0x1]
        %v901 = vsel %vm892, %v596, %v900
        %902 = vst [vmem:[%s883 + $0x14] sm:$0x1] %v901
        %v903 = vld [vmem:[%s883 + $0x18] sm:$0xf]
        %v904 = vsel %vm886, %v603, %v903
        %905 = vst [vmem:[%s883 + $0x18] sm:$0xf] %v904
        %906 = vst [vmem:[%s883 + $0x1c] sm:$0xf] %v612
        %v907 = vld [vmem:[%s883 + $0x20] sm:$0x1]
        %v908 = vsel %vm892, %v613, %v907
        %909 = vst [vmem:[%s883 + $0x20] sm:$0x1] %v908
        %v910 = vld [vmem:[%s883 + $0x24] sm:$0xf]
        %v911 = vsel %vm886, %v620, %v910
        %912 = vst [vmem:[%s883 + $0x24] sm:$0xf] %v911
        %913 = vst [vmem:[%s883 + $0x28] sm:$0xf] %v629
        %v914 = vld [vmem:[%s883 + $0x2c] sm:$0x1]
        %v915 = vsel %vm892, %v630, %v914
        %916 = vst [vmem:[%s883 + $0x2c] sm:$0x1] %v915
        %v917 = vld [vmem:[%s883 + $0x30] sm:$0xf]
        %v918 = vsel %vm886, %v637, %v917
        %919 = vst [vmem:[%s883 + $0x30] sm:$0xf] %v918
        %920 = vst [vmem:[%s883 + $0x34] sm:$0xf] %v646
        %v921 = vld [vmem:[%s883 + $0x38] sm:$0x1]
        %v922 = vsel %vm892, %v647, %v921
        %923 = vst [vmem:[%s883 + $0x38] sm:$0x1] %v922
        %v924 = vld [vmem:[%s883 + $0x3c] sm:$0xf]
        %v925 = vsel %vm886, %v654, %v924
        %926 = vst [vmem:[%s883 + $0x3c] sm:$0xf] %v925
        %927 = vst [vmem:[%s883 + $0x40] sm:$0xf] %v663
        %v928 = vld [vmem:[%s883 + $0x44] sm:$0x1]
        %v929 = vsel %vm892, %v664, %v928
        %930 = vst [vmem:[%s883 + $0x44] sm:$0x1] %v929
        %v931 = vld [vmem:[%s883 + $0x48] sm:$0xf]
        %v932 = vsel %vm886, %v671, %v931
        %933 = vst [vmem:[%s883 + $0x48] sm:$0xf] %v932
        %934 = vst [vmem:[%s883 + $0x4c] sm:$0xf] %v680
        %v935 = vld [vmem:[%s883 + $0x50] sm:$0x1]
        %v936 = vsel %vm892, %v681, %v935
        %937 = vst [vmem:[%s883 + $0x50] sm:$0x1] %v936
        %v938 = vld [vmem:[%s883 + $0x54] sm:$0xf]
        %v939 = vsel %vm886, %v688, %v938
        %940 = vst [vmem:[%s883 + $0x54] sm:$0xf] %v939
        %941 = vst [vmem:[%s883 + $0x58] sm:$0xf] %v697
        %v942 = vld [vmem:[%s883 + $0x5c] sm:$0x1]
        %v943 = vsel %vm892, %v698, %v942
        %944 = vst [vmem:[%s883 + $0x5c] sm:$0x1] %v943
        %v945 = vld [vmem:[%s883 + $0x60] sm:$0xf]
        %v946 = vsel %vm886, %v705, %v945
        %947 = vst [vmem:[%s883 + $0x60] sm:$0xf] %v946
        %948 = vst [vmem:[%s883 + $0x64] sm:$0xf] %v714
        %v949 = vld [vmem:[%s883 + $0x68] sm:$0x1]
        %v950 = vsel %vm892, %v715, %v949
        %951 = vst [vmem:[%s883 + $0x68] sm:$0x1] %v950
        %v952 = vld [vmem:[%s883 + $0x6c] sm:$0xf]
        %v953 = vsel %vm886, %v722, %v952
        %954 = vst [vmem:[%s883 + $0x6c] sm:$0xf] %v953
        %955 = vst [vmem:[%s883 + $0x70] sm:$0xf] %v731
        %v956 = vld [vmem:[%s883 + $0x74] sm:$0x1]
        %v957 = vsel %vm892, %v732, %v956
        %958 = vst [vmem:[%s883 + $0x74] sm:$0x1] %v957
        %v959 = vld [vmem:[%s883 + $0x78] sm:$0xf]
        %v960 = vsel %vm886, %v739, %v959
        %961 = vst [vmem:[%s883 + $0x78] sm:$0xf] %v960
        %962 = vst [vmem:[%s883 + $0x7c] sm:$0xf] %v748
        %v963 = vld [vmem:[%s883 + $0x80] sm:$0x1]
        %v964 = vsel %vm892, %v749, %v963
        %965 = vst [vmem:[%s883 + $0x80] sm:$0x1] %v964
        %v966 = vld [vmem:[%s883 + $0x84] sm:$0xf]
        %v967 = vsel %vm886, %v756, %v966
        %968 = vst [vmem:[%s883 + $0x84] sm:$0xf] %v967
        %969 = vst [vmem:[%s883 + $0x88] sm:$0xf] %v765
        %v970 = vld [vmem:[%s883 + $0x8c] sm:$0x1]
        %v971 = vsel %vm892, %v766, %v970
        %972 = vst [vmem:[%s883 + $0x8c] sm:$0x1] %v971
        %v973 = vld [vmem:[%s883 + $0x90] sm:$0xf]
        %v974 = vsel %vm886, %v773, %v973
        %975 = vst [vmem:[%s883 + $0x90] sm:$0xf] %v974
        %976 = vst [vmem:[%s883 + $0x94] sm:$0xf] %v782
        %v977 = vld [vmem:[%s883 + $0x98] sm:$0x1]
        %v978 = vsel %vm892, %v783, %v977
        %979 = vst [vmem:[%s883 + $0x98] sm:$0x1] %v978
        %v980 = vld [vmem:[%s883 + $0x9c] sm:$0xf]
        %v981 = vsel %vm886, %v790, %v980
        %982 = vst [vmem:[%s883 + $0x9c] sm:$0xf] %v981
        %983 = vst [vmem:[%s883 + $0xa0] sm:$0xf] %v799
        %v984 = vld [vmem:[%s883 + $0xa4] sm:$0x1]
        %v985 = vsel %vm892, %v800, %v984
        %986 = vst [vmem:[%s883 + $0xa4] sm:$0x1] %v985
        %v987 = vld [vmem:[%s883 + $0xa8] sm:$0xf]
        %v988 = vsel %vm886, %v807, %v987
        %989 = vst [vmem:[%s883 + $0xa8] sm:$0xf] %v988
        %990 = vst [vmem:[%s883 + $0xac] sm:$0xf] %v816
        %v991 = vld [vmem:[%s883 + $0xb0] sm:$0x1]
        %v992 = vsel %vm892, %v817, %v991
        %993 = vst [vmem:[%s883 + $0xb0] sm:$0x1] %v992
        %v994 = vld [vmem:[%s883 + $0xb4] sm:$0xf]
        %v995 = vsel %vm886, %v824, %v994
        %996 = vst [vmem:[%s883 + $0xb4] sm:$0xf] %v995
        %997 = vst [vmem:[%s883 + $0xb8] sm:$0xf] %v833
        %v998 = vld [vmem:[%s883 + $0xbc] sm:$0x1]
        %v999 = vsel %vm892, %v834, %v998
        %1000 = vst [vmem:[%s883 + $0xbc] sm:$0x1] %v999
      $region40: #{resblock_forward.4} parent=35 // pred_fallthru
        _
      %s1001 = smul.u32 %s262, 3
      %s1002 = smul.addr %s1001, 4
      %s1003 = scalar_lea.vmem [#allocation2], %s1002
      %v1004 = vld [vmem:[%s1003] sm:$0xf]
      %v1005 = vld [vmem:[%s1003 + $0x4] sm:$0xf]
      %v1006 = vld [vmem:[%s1003 + $0xc] sm:$0xf]
      %v1007 = vld [vmem:[%s1003 + $0x10] sm:$0xf]
      %v1008 = vld [vmem:[%s1003 + $0x18] sm:$0xf]
      %v1009 = vld [vmem:[%s1003 + $0x1c] sm:$0xf]
      %v1010 = vld [vmem:[%s1003 + $0x24] sm:$0xf]
      %v1011 = vld [vmem:[%s1003 + $0x28] sm:$0xf]
      %v1012 = vld [vmem:[%s1003 + $0x30] sm:$0xf]
      %v1013 = vld [vmem:[%s1003 + $0x34] sm:$0xf]
      %v1014 = vld [vmem:[%s1003 + $0x3c] sm:$0xf]
      %v1015 = vld [vmem:[%s1003 + $0x40] sm:$0xf]
      %v1016 = vld [vmem:[%s1003 + $0x48] sm:$0xf]
      %v1017 = vld [vmem:[%s1003 + $0x4c] sm:$0xf]
      %v1018 = vld [vmem:[%s1003 + $0x54] sm:$0xf]
      %v1019 = vld [vmem:[%s1003 + $0x58] sm:$0xf]
      %v1020 = vld [vmem:[%s1003 + $0x60] sm:$0xf]
      %v1021 = vld [vmem:[%s1003 + $0x64] sm:$0xf]
      %v1022 = vld [vmem:[%s1003 + $0x6c] sm:$0xf]
      %v1023 = vld [vmem:[%s1003 + $0x70] sm:$0xf]
      %v1024 = vld [vmem:[%s1003 + $0x78] sm:$0xf]
      %v1025 = vld [vmem:[%s1003 + $0x7c] sm:$0xf]
      %v1026 = vld [vmem:[%s1003 + $0x84] sm:$0xf]
      %v1027 = vld [vmem:[%s1003 + $0x88] sm:$0xf]
      %v1028 = vld [vmem:[%s1003 + $0x90] sm:$0xf]
      %v1029 = vld [vmem:[%s1003 + $0x94] sm:$0xf]
      %v1030 = vld [vmem:[%s1003 + $0x9c] sm:$0xf]
      %v1031 = vld [vmem:[%s1003 + $0xa0] sm:$0xf]
      %v1032 = vld [vmem:[%s1003 + $0xa8] sm:$0xf]
      %v1033 = vld [vmem:[%s1003 + $0xac] sm:$0xf]
      %v1034 = vld [vmem:[%s1003 + $0xb4] sm:$0xf]
      %v1035 = vld [vmem:[%s1003 + $0xb8] sm:$0xf]
      %v1036 = vld [vmem:[%s3] sm:$0xf]
      %v1037 = vld [vmem:[%s3 + $0x4] sm:$0xf]
      %v1038 = vld [vmem:[%s3 + $0x8] sm:$0xf]
      %v1039 = vld [vmem:[%s3 + $0xc] sm:$0xf]
      %v1040 = vld [vmem:[%s3 + $0x10] sm:$0xf]
      %v1041 = vld [vmem:[%s3 + $0x14] sm:$0xf]
      %v1042 = vld [vmem:[%s3 + $0x18] sm:$0xf]
      %v1043 = vld [vmem:[%s3 + $0x1c] sm:$0xf]
      %v1044 = vld [vmem:[%s3 + $0x20] sm:$0xf]
      %v1045 = vld [vmem:[%s3 + $0x24] sm:$0xf]
      %v1046 = vld [vmem:[%s3 + $0x28] sm:$0xf]
      %v1047 = vld [vmem:[%s3 + $0x2c] sm:$0xf]
      %v1048 = vld [vmem:[%s3 + $0x30] sm:$0xf]
      %v1049 = vld [vmem:[%s3 + $0x34] sm:$0xf]
      %v1050 = vld [vmem:[%s3 + $0x38] sm:$0xf]
      %v1051 = vld [vmem:[%s3 + $0x3c] sm:$0xf]
      %v1052 = vld [vmem:[%s1003 + $0x8] sm:$0x1]
      %v1053 = vld [vmem:[%s1003 + $0x14] sm:$0x1]
      %v1054 = vld [vmem:[%s1003 + $0x20] sm:$0x1]
      %v1055 = vld [vmem:[%s1003 + $0x2c] sm:$0x1]
      %v1056 = vld [vmem:[%s1003 + $0x38] sm:$0x1]
      %v1057 = vld [vmem:[%s1003 + $0x44] sm:$0x1]
      %v1058 = vld [vmem:[%s1003 + $0x50] sm:$0x1]
      %v1059 = vld [vmem:[%s1003 + $0x5c] sm:$0x1]
      %v1060 = vld [vmem:[%s1003 + $0x68] sm:$0x1]
      %v1061 = vld [vmem:[%s1003 + $0x74] sm:$0x1]
      %v1062 = vld [vmem:[%s1003 + $0x80] sm:$0x1]
      %v1063 = vld [vmem:[%s1003 + $0x8c] sm:$0x1]
      %v1064 = vld [vmem:[%s1003 + $0x98] sm:$0x1]
      %v1065 = vld [vmem:[%s1003 + $0xa4] sm:$0x1]
      %v1066 = vld [vmem:[%s1003 + $0xb0] sm:$0x1]
      %v1067 = vld [vmem:[%s1003 + $0xbc] sm:$0x1]
      %vm1068 = vsmask.f32 3328
      %vm1069 = vsmask.f32 7440
      %vm1070 = vmor %vm1068, %vm1069
      %v1072 = vshrl.u32 %v1004, 16
      %v1074 = vrot.slane %v1072, 4
      %v1075 = vshll.u32 %v1004, 16
      %v1077 = vrot.slane %v1075, 5
      %v1078 = vor.u32 %v1074, %v1077
      %v1079 = vrot.slane %v1078, 4
      %v1081 = vshll.u32 %v1005, 16
      %v1083 = vrot.slane %v1081, 5
      %v1084 = vsel %vm1070, %v1079, %v1083
      %v1085 = vshrl.u32 %v1005, 16
      %v1087 = vrot.slane %v1085, 4
      %v1088 = vor.u32 %v1087, %v1083
      %v1089 = vrot.slane %v1088, 4
      %v1091 = vshll.u32 %v1052, 16
      %v1093 = vrot.slane %v1091, 5
      %v1094 = vsel %vm1070, %v1089, %v1093
      %v1096 = vshrl.u32 %v1006, 16
      %v1098 = vrot.slane %v1096, 4
      %v1099 = vshll.u32 %v1006, 16
      %v1101 = vrot.slane %v1099, 5
      %v1102 = vor.u32 %v1098, %v1101
      %v1103 = vrot.slane %v1102, 4
      %v1105 = vshll.u32 %v1007, 16
      %v1107 = vrot.slane %v1105, 5
      %v1108 = vsel %vm1070, %v1103, %v1107
      %v1109 = vshrl.u32 %v1007, 16
      %v1111 = vrot.slane %v1109, 4
      %v1112 = vor.u32 %v1111, %v1107
      %v1113 = vrot.slane %v1112, 4
      %v1115 = vshll.u32 %v1053, 16
      %v1117 = vrot.slane %v1115, 5
      %v1118 = vsel %vm1070, %v1113, %v1117
      %v1120 = vshrl.u32 %v1008, 16
      %v1122 = vrot.slane %v1120, 4
      %v1123 = vshll.u32 %v1008, 16
      %v1125 = vrot.slane %v1123, 5
      %v1126 = vor.u32 %v1122, %v1125
      %v1127 = vrot.slane %v1126, 4
      %v1129 = vshll.u32 %v1009, 16
      %v1131 = vrot.slane %v1129, 5
      %v1132 = vsel %vm1070, %v1127, %v1131
      %v1133 = vshrl.u32 %v1009, 16
      %v1135 = vrot.slane %v1133, 4
      %v1136 = vor.u32 %v1135, %v1131
      %v1137 = vrot.slane %v1136, 4
      %v1139 = vshll.u32 %v1054, 16
      %v1141 = vrot.slane %v1139, 5
      %v1142 = vsel %vm1070, %v1137, %v1141
      %v1144 = vshrl.u32 %v1010, 16
      %v1146 = vrot.slane %v1144, 4
      %v1147 = vshll.u32 %v1010, 16
      %v1149 = vrot.slane %v1147, 5
      %v1150 = vor.u32 %v1146, %v1149
      %v1151 = vrot.slane %v1150, 4
      %v1153 = vshll.u32 %v1011, 16
      %v1155 = vrot.slane %v1153, 5
      %v1156 = vsel %vm1070, %v1151, %v1155
      %v1157 = vshrl.u32 %v1011, 16
      %v1159 = vrot.slane %v1157, 4
      %v1160 = vor.u32 %v1159, %v1155
      %v1161 = vrot.slane %v1160, 4
      %v1163 = vshll.u32 %v1055, 16
      %v1165 = vrot.slane %v1163, 5
      %v1166 = vsel %vm1070, %v1161, %v1165
      %v1168 = vshrl.u32 %v1012, 16
      %v1170 = vrot.slane %v1168, 4
      %v1171 = vshll.u32 %v1012, 16
      %v1173 = vrot.slane %v1171, 5
      %v1174 = vor.u32 %v1170, %v1173
      %v1175 = vrot.slane %v1174, 4
      %v1177 = vshll.u32 %v1013, 16
      %v1179 = vrot.slane %v1177, 5
      %v1180 = vsel %vm1070, %v1175, %v1179
      %v1181 = vshrl.u32 %v1013, 16
      %v1183 = vrot.slane %v1181, 4
      %v1184 = vor.u32 %v1183, %v1179
      %v1185 = vrot.slane %v1184, 4
      %v1187 = vshll.u32 %v1056, 16
      %v1189 = vrot.slane %v1187, 5
      %v1190 = vsel %vm1070, %v1185, %v1189
      %v1192 = vshrl.u32 %v1014, 16
      %v1194 = vrot.slane %v1192, 4
      %v1195 = vshll.u32 %v1014, 16
      %v1197 = vrot.slane %v1195, 5
      %v1198 = vor.u32 %v1194, %v1197
      %v1199 = vrot.slane %v1198, 4
      %v1201 = vshll.u32 %v1015, 16
      %v1203 = vrot.slane %v1201, 5
      %v1204 = vsel %vm1070, %v1199, %v1203
      %v1205 = vshrl.u32 %v1015, 16
      %v1207 = vrot.slane %v1205, 4
      %v1208 = vor.u32 %v1207, %v1203
      %v1209 = vrot.slane %v1208, 4
      %v1211 = vshll.u32 %v1057, 16
      %v1213 = vrot.slane %v1211, 5
      %v1214 = vsel %vm1070, %v1209, %v1213
      %v1216 = vshrl.u32 %v1016, 16
      %v1218 = vrot.slane %v1216, 4
      %v1219 = vshll.u32 %v1016, 16
      %v1221 = vrot.slane %v1219, 5
      %v1222 = vor.u32 %v1218, %v1221
      %v1223 = vrot.slane %v1222, 4
      %v1225 = vshll.u32 %v1017, 16
      %v1227 = vrot.slane %v1225, 5
      %v1228 = vsel %vm1070, %v1223, %v1227
      %v1229 = vshrl.u32 %v1017, 16
      %v1231 = vrot.slane %v1229, 4
      %v1232 = vor.u32 %v1231, %v1227
      %v1233 = vrot.slane %v1232, 4
      %v1235 = vshll.u32 %v1058, 16
      %v1237 = vrot.slane %v1235, 5
      %v1238 = vsel %vm1070, %v1233, %v1237
      %v1240 = vshrl.u32 %v1018, 16
      %v1242 = vrot.slane %v1240, 4
      %v1243 = vshll.u32 %v1018, 16
      %v1245 = vrot.slane %v1243, 5
      %v1246 = vor.u32 %v1242, %v1245
      %v1247 = vrot.slane %v1246, 4
      %v1249 = vshll.u32 %v1019, 16
      %v1251 = vrot.slane %v1249, 5
      %v1252 = vsel %vm1070, %v1247, %v1251
      %v1253 = vshrl.u32 %v1019, 16
      %v1255 = vrot.slane %v1253, 4
      %v1256 = vor.u32 %v1255, %v1251
      %v1257 = vrot.slane %v1256, 4
      %v1259 = vshll.u32 %v1059, 16
      %v1261 = vrot.slane %v1259, 5
      %v1262 = vsel %vm1070, %v1257, %v1261
      %v1264 = vshrl.u32 %v1020, 16
      %v1266 = vrot.slane %v1264, 4
      %v1267 = vshll.u32 %v1020, 16
      %v1269 = vrot.slane %v1267, 5
      %v1270 = vor.u32 %v1266, %v1269
      %v1271 = vrot.slane %v1270, 4
      %v1273 = vshll.u32 %v1021, 16
      %v1275 = vrot.slane %v1273, 5
      %v1276 = vsel %vm1070, %v1271, %v1275
      %v1277 = vshrl.u32 %v1021, 16
      %v1279 = vrot.slane %v1277, 4
      %v1280 = vor.u32 %v1279, %v1275
      %v1281 = vrot.slane %v1280, 4
      %v1283 = vshll.u32 %v1060, 16
      %v1285 = vrot.slane %v1283, 5
      %v1286 = vsel %vm1070, %v1281, %v1285
      %v1288 = vshrl.u32 %v1022, 16
      %v1290 = vrot.slane %v1288, 4
      %v1291 = vshll.u32 %v1022, 16
      %v1293 = vrot.slane %v1291, 5
      %v1294 = vor.u32 %v1290, %v1293
      %v1295 = vrot.slane %v1294, 4
      %v1297 = vshll.u32 %v1023, 16
      %v1299 = vrot.slane %v1297, 5
      %v1300 = vsel %vm1070, %v1295, %v1299
      %v1301 = vshrl.u32 %v1023, 16
      %v1303 = vrot.slane %v1301, 4
      %v1304 = vor.u32 %v1303, %v1299
      %v1305 = vrot.slane %v1304, 4
      %v1307 = vshll.u32 %v1061, 16
      %v1309 = vrot.slane %v1307, 5
      %v1310 = vsel %vm1070, %v1305, %v1309
      %v1312 = vshrl.u32 %v1024, 16
      %v1314 = vrot.slane %v1312, 4
      %v1315 = vshll.u32 %v1024, 16
      %v1317 = vrot.slane %v1315, 5
      %v1318 = vor.u32 %v1314, %v1317
      %v1319 = vrot.slane %v1318, 4
      %v1321 = vshll.u32 %v1025, 16
      %v1323 = vrot.slane %v1321, 5
      %v1324 = vsel %vm1070, %v1319, %v1323
      %v1325 = vshrl.u32 %v1025, 16
      %v1327 = vrot.slane %v1325, 4
      %v1328 = vor.u32 %v1327, %v1323
      %v1329 = vrot.slane %v1328, 4
      %v1331 = vshll.u32 %v1062, 16
      %v1333 = vrot.slane %v1331, 5
      %v1334 = vsel %vm1070, %v1329, %v1333
      %v1336 = vshrl.u32 %v1026, 16
      %v1338 = vrot.slane %v1336, 4
      %v1339 = vshll.u32 %v1026, 16
      %v1341 = vrot.slane %v1339, 5
      %v1342 = vor.u32 %v1338, %v1341
      %v1343 = vrot.slane %v1342, 4
      %v1345 = vshll.u32 %v1027, 16
      %v1347 = vrot.slane %v1345, 5
      %v1348 = vsel %vm1070, %v1343, %v1347
      %v1349 = vshrl.u32 %v1027, 16
      %v1351 = vrot.slane %v1349, 4
      %v1352 = vor.u32 %v1351, %v1347
      %v1353 = vrot.slane %v1352, 4
      %v1355 = vshll.u32 %v1063, 16
      %v1357 = vrot.slane %v1355, 5
      %v1358 = vsel %vm1070, %v1353, %v1357
      %v1360 = vshrl.u32 %v1028, 16
      %v1362 = vrot.slane %v1360, 4
      %v1363 = vshll.u32 %v1028, 16
      %v1365 = vrot.slane %v1363, 5
      %v1366 = vor.u32 %v1362, %v1365
      %v1367 = vrot.slane %v1366, 4
      %v1369 = vshll.u32 %v1029, 16
      %v1371 = vrot.slane %v1369, 5
      %v1372 = vsel %vm1070, %v1367, %v1371
      %v1373 = vshrl.u32 %v1029, 16
      %v1375 = vrot.slane %v1373, 4
      %v1376 = vor.u32 %v1375, %v1371
      %v1377 = vrot.slane %v1376, 4
      %v1379 = vshll.u32 %v1064, 16
      %v1381 = vrot.slane %v1379, 5
      %v1382 = vsel %vm1070, %v1377, %v1381
      %v1384 = vshrl.u32 %v1030, 16
      %v1386 = vrot.slane %v1384, 4
      %v1387 = vshll.u32 %v1030, 16
      %v1389 = vrot.slane %v1387, 5
      %v1390 = vor.u32 %v1386, %v1389
      %v1391 = vrot.slane %v1390, 4
      %v1393 = vshll.u32 %v1031, 16
      %v1395 = vrot.slane %v1393, 5
      %v1396 = vsel %vm1070, %v1391, %v1395
      %v1397 = vshrl.u32 %v1031, 16
      %v1399 = vrot.slane %v1397, 4
      %v1400 = vor.u32 %v1399, %v1395
      %v1401 = vrot.slane %v1400, 4
      %v1403 = vshll.u32 %v1065, 16
      %v1405 = vrot.slane %v1403, 5
      %v1406 = vsel %vm1070, %v1401, %v1405
      %v1408 = vshrl.u32 %v1032, 16
      %v1410 = vrot.slane %v1408, 4
      %v1411 = vshll.u32 %v1032, 16
      %v1413 = vrot.slane %v1411, 5
      %v1414 = vor.u32 %v1410, %v1413
      %v1415 = vrot.slane %v1414, 4
      %v1417 = vshll.u32 %v1033, 16
      %v1419 = vrot.slane %v1417, 5
      %v1420 = vsel %vm1070, %v1415, %v1419
      %v1421 = vshrl.u32 %v1033, 16
      %v1423 = vrot.slane %v1421, 4
      %v1424 = vor.u32 %v1423, %v1419
      %v1425 = vrot.slane %v1424, 4
      %v1427 = vshll.u32 %v1066, 16
      %v1429 = vrot.slane %v1427, 5
      %v1430 = vsel %vm1070, %v1425, %v1429
      %v1432 = vshrl.u32 %v1034, 16
      %v1434 = vrot.slane %v1432, 4
      %v1435 = vshll.u32 %v1034, 16
      %v1437 = vrot.slane %v1435, 5
      %v1438 = vor.u32 %v1434, %v1437
      %v1439 = vrot.slane %v1438, 4
      %v1441 = vshll.u32 %v1035, 16
      %v1443 = vrot.slane %v1441, 5
      %v1444 = vsel %vm1070, %v1439, %v1443
      %v1445 = vshrl.u32 %v1035, 16
      %v1447 = vrot.slane %v1445, 4
      %v1448 = vor.u32 %v1447, %v1443
      %v1449 = vrot.slane %v1448, 4
      %v1451 = vshll.u32 %v1067, 16
      %v1453 = vrot.slane %v1451, 5
      %v1454 = vsel %vm1070, %v1449, %v1453
      %s1455 = scalar_lea.vmem %s3, 64
      %v1456 = vld [vmem:[%s1455] sm:$0xf]
      %v1457 = vld [vmem:[%s1455 + $0x4] sm:$0xf]
      %v1458 = vld [vmem:[%s1455 + $0x8] sm:$0xf]
      %v1459 = vld [vmem:[%s1455 + $0xc] sm:$0xf]
      %v1460 = vld [vmem:[%s1455 + $0x10] sm:$0xf]
      %v1461 = vld [vmem:[%s1455 + $0x14] sm:$0xf]
      %v1462 = vld [vmem:[%s1455 + $0x18] sm:$0xf]
      %v1463 = vld [vmem:[%s1455 + $0x1c] sm:$0xf]
      %v1464 = vld [vmem:[%s1455 + $0x20] sm:$0xf]
      %v1465 = vld [vmem:[%s1455 + $0x24] sm:$0xf]
      %v1466 = vld [vmem:[%s1455 + $0x28] sm:$0xf]
      %v1467 = vld [vmem:[%s1455 + $0x2c] sm:$0xf]
      %v1468 = vld [vmem:[%s1455 + $0x30] sm:$0xf]
      %v1469 = vld [vmem:[%s1455 + $0x34] sm:$0xf]
      %v1470 = vld [vmem:[%s1455 + $0x38] sm:$0xf]
      %v1471 = vld [vmem:[%s1455 + $0x3c] sm:$0xf]
      %v1472 = vunpack.c.l.b16 %v1084
      %v1473 = vunpack.c.l.b16 %v1094
      %v1474 = vunpack.c.l.b16 %v1108
      %v1475 = vunpack.c.l.b16 %v1118
      %v1476 = vunpack.c.l.b16 %v1132
      %v1477 = vunpack.c.l.b16 %v1142
      %v1478 = vunpack.c.l.b16 %v1156
      %v1479 = vunpack.c.l.b16 %v1166
      %v1480 = vunpack.c.l.b16 %v1180
      %v1481 = vunpack.c.l.b16 %v1190
      %v1482 = vunpack.c.l.b16 %v1204
      %v1483 = vunpack.c.l.b16 %v1214
      %v1484 = vunpack.c.l.b16 %v1228
      %v1485 = vunpack.c.l.b16 %v1238
      %v1486 = vunpack.c.l.b16 %v1252
      %v1487 = vunpack.c.l.b16 %v1262
      %v1488 = vunpack.c.l.b16 %v1276
      %v1489 = vunpack.c.l.b16 %v1286
      %v1490 = vunpack.c.l.b16 %v1300
      %v1491 = vunpack.c.l.b16 %v1310
      %v1492 = vunpack.c.l.b16 %v1324
      %v1493 = vunpack.c.l.b16 %v1334
      %v1494 = vunpack.c.l.b16 %v1348
      %v1495 = vunpack.c.l.b16 %v1358
      %v1496 = vunpack.c.l.b16 %v1372
      %v1497 = vunpack.c.l.b16 %v1382
      %v1498 = vunpack.c.l.b16 %v1396
      %v1499 = vunpack.c.l.b16 %v1406
      %v1500 = vunpack.c.l.b16 %v1420
      %v1501 = vunpack.c.l.b16 %v1430
      %v1502 = vunpack.c.l.b16 %v1444
      %v1503 = vunpack.c.l.b16 %v1454
      %v1504 = vpack.c.b16 %v1473, %v1472
      %v1505 = vpack.c.b16 %v1475, %v1474
      %v1506 = vpack.c.b16 %v1477, %v1476
      %v1507 = vpack.c.b16 %v1479, %v1478
      %v1508 = vpack.c.b16 %v1481, %v1480
      %v1509 = vpack.c.b16 %v1483, %v1482
      %v1510 = vpack.c.b16 %v1485, %v1484
      %v1511 = vpack.c.b16 %v1487, %v1486
      %v1512 = vpack.c.b16 %v1489, %v1488
      %v1513 = vpack.c.b16 %v1491, %v1490
      %v1514 = vpack.c.b16 %v1493, %v1492
      %v1515 = vpack.c.b16 %v1495, %v1494
      %v1516 = vpack.c.b16 %v1497, %v1496
      %v1517 = vpack.c.b16 %v1499, %v1498
      %v1518 = vpack.c.b16 %v1501, %v1500
      %v1519 = vpack.c.b16 %v1503, %v1502
      %v1552 = vunpack.c.l.b16 %v1456
      %v1553 = vunpack.c.l.b16 %v1457
      %v1554 = vunpack.c.l.b16 %v1458
      %v1555 = vunpack.c.l.b16 %v1459
      %v1556 = vunpack.c.l.b16 %v1460
      %v1557 = vunpack.c.l.b16 %v1461
      %v1558 = vunpack.c.l.b16 %v1462
      %v1559 = vunpack.c.l.b16 %v1463
      %v1560 = vunpack.c.l.b16 %v1464
      %v1561 = vunpack.c.l.b16 %v1465
      %v1562 = vunpack.c.l.b16 %v1466
      %v1563 = vunpack.c.l.b16 %v1467
      %v1564 = vunpack.c.l.b16 %v1468
      %v1565 = vunpack.c.l.b16 %v1469
      %v1566 = vunpack.c.l.b16 %v1470
      %v1567 = vunpack.c.l.b16 %v1471
      %v1568 = vpack.c.b16 %v1553, %v1552
      %v1569 = vpack.c.b16 %v1555, %v1554
      %v1570 = vpack.c.b16 %v1557, %v1556
      %v1571 = vpack.c.b16 %v1559, %v1558
      %v1572 = vpack.c.b16 %v1561, %v1560
      %v1573 = vpack.c.b16 %v1563, %v1562
      %v1574 = vpack.c.b16 %v1565, %v1564
      %v1575 = vpack.c.b16 %v1567, %v1566
      %1584 = vmatprep.subr.bf16.mxu0 0
      %1585 = vmatpush1.bf16.msra.mxu0 %v1575
      %1586 = vmatprep.subr.bf16.mxu0 0
      %1587 = vmatpush1.bf16.msra.mxu0 %v1574
      %1588 = vmatprep.subr.bf16.mxu0 0
      %1589 = vmatpush1.bf16.msra.mxu0 %v1573
      %1590 = vmatprep.subr.bf16.mxu0 0
      %1591 = vmatpush1.bf16.msra.mxu0 %v1572
      %1592 = vmatprep.subr.bf16.mxu0 0
      %1593 = vmatpush1.bf16.msra.mxu0 %v1571
      %1594 = vmatprep.subr.bf16.mxu0 0
      %1595 = vmatpush1.bf16.msra.mxu0 %v1570
      %1596 = vmatprep.subr.bf16.mxu0 0
      %1597 = vmatpush1.bf16.msra.mxu0 %v1569
      %1598 = vmatprep.subr.bf16.mxu0 0
      %1599 = vmatpush1.bf16.msra.mxu0 %v1568
      %1600 = vmatprep.subr.bf16.mxu0 0
      %1601 = vmatpush2.bf16.msra.mxu0 0
      %1602 = vmatprep.subr.bf16.mxu0 0
      %1603 = vmatpush2.bf16.msra.mxu0 0
      %1604 = vmatprep.subr.bf16.mxu0 0
      %1605 = vmatpush2.bf16.msra.mxu0 0
      %1606 = vmatprep.subr.bf16.mxu0 0
      %1607 = vmatpush2.bf16.msra.mxu0 0
      %1608 = vmatprep.subr.bf16.mxu0 0
      %1609 = vmatpush2.bf16.msra.mxu0 0
      %1610 = vmatprep.subr.bf16.mxu0 0
      %1611 = vmatpush2.bf16.msra.mxu0 0
      %1612 = vmatprep.subr.bf16.mxu0 0
      %1613 = vmatpush2.bf16.msra.mxu0 0
      %1614 = vmatprep.subr.bf16.mxu0 0
      %1615 = vmatpush2.bf16.msra.mxu0 0
      %1616 = vmatprep.mubr.bf16.mxu0 0
      %1617 = vmatmul.mubr.bf16.gmra.mxu0 %v1504
      %v1618 = vpop.f32.mrf.mxu0
      %v1619 = vadd.f32 0.0, %v1618
      %v1620 = vpop.f32.mrf.mxu0
      %v1621 = vpop.f32.mrf.mxu0
      %v1622 = vadd.f32 0.0, %v1621
      %v1623 = vpop.f32.mrf.mxu0
      %1624 = vmatprep.mubr.bf16.mxu0 0
      %1625 = vmatmul.mubr.bf16.gmra.mxu0 %v1505
      %v1626 = vpop.f32.mrf.mxu0
      %v1627 = vadd.f32 0.0, %v1626
      %v1628 = vpop.f32.mrf.mxu0
      %v1629 = vpop.f32.mrf.mxu0
      %v1630 = vadd.f32 0.0, %v1629
      %v1631 = vpop.f32.mrf.mxu0
      %1632 = vmatprep.mubr.bf16.mxu0 0
      %1633 = vmatmul.mubr.bf16.gmra.mxu0 %v1506
      %v1634 = vpop.f32.mrf.mxu0
      %v1635 = vadd.f32 0.0, %v1634
      %v1636 = vpop.f32.mrf.mxu0
      %v1637 = vpop.f32.mrf.mxu0
      %v1638 = vadd.f32 0.0, %v1637
      %v1639 = vpop.f32.mrf.mxu0
      %1640 = vmatprep.mubr.bf16.mxu0 0
      %1641 = vmatmul.mubr.bf16.gmra.mxu0 %v1507
      %v1642 = vpop.f32.mrf.mxu0
      %v1643 = vadd.f32 0.0, %v1642
      %v1644 = vpop.f32.mrf.mxu0
      %v1645 = vpop.f32.mrf.mxu0
      %v1646 = vadd.f32 0.0, %v1645
      %v1647 = vpop.f32.mrf.mxu0
      %1648 = vmatprep.mubr.bf16.mxu0 0
      %1649 = vmatmul.mubr.bf16.gmra.mxu0 %v1508
      %v1650 = vpop.f32.mrf.mxu0
      %v1651 = vadd.f32 0.0, %v1650
      %v1652 = vpop.f32.mrf.mxu0
      %v1653 = vpop.f32.mrf.mxu0
      %v1654 = vadd.f32 0.0, %v1653
      %v1655 = vpop.f32.mrf.mxu0
      %1656 = vmatprep.mubr.bf16.mxu0 0
      %1657 = vmatmul.mubr.bf16.gmra.mxu0 %v1509
      %v1658 = vpop.f32.mrf.mxu0
      %v1659 = vadd.f32 0.0, %v1658
      %v1660 = vpop.f32.mrf.mxu0
      %v1661 = vpop.f32.mrf.mxu0
      %v1662 = vadd.f32 0.0, %v1661
      %v1663 = vpop.f32.mrf.mxu0
      %1664 = vmatprep.mubr.bf16.mxu0 0
      %1665 = vmatmul.mubr.bf16.gmra.mxu0 %v1510
      %v1666 = vpop.f32.mrf.mxu0
      %v1667 = vadd.f32 0.0, %v1666
      %v1668 = vpop.f32.mrf.mxu0
      %v1669 = vpop.f32.mrf.mxu0
      %v1670 = vadd.f32 0.0, %v1669
      %v1671 = vpop.f32.mrf.mxu0
      %1672 = vmatprep.mubr.bf16.mxu0 0
      %1673 = vmatmul.mubr.bf16.gmra.mxu0 %v1511
      %v1674 = vpop.f32.mrf.mxu0
      %v1675 = vadd.f32 0.0, %v1674
      %v1676 = vpop.f32.mrf.mxu0
      %v1677 = vpop.f32.mrf.mxu0
      %v1678 = vadd.f32 0.0, %v1677
      %v1679 = vpop.f32.mrf.mxu0
      %1680 = vmatprep.mubr.bf16.mxu0 0
      %1681 = vmatmul.mubr.bf16.gmra.mxu0 %v1512
      %v1682 = vpop.f32.mrf.mxu0
      %v1683 = vadd.f32 0.0, %v1682
      %v1684 = vpop.f32.mrf.mxu0
      %v1685 = vpop.f32.mrf.mxu0
      %v1686 = vadd.f32 0.0, %v1685
      %v1687 = vpop.f32.mrf.mxu0
      %1688 = vmatprep.mubr.bf16.mxu0 0
      %1689 = vmatmul.mubr.bf16.gmra.mxu0 %v1513
      %v1690 = vpop.f32.mrf.mxu0
      %v1691 = vadd.f32 0.0, %v1690
      %v1692 = vpop.f32.mrf.mxu0
      %v1693 = vpop.f32.mrf.mxu0
      %v1694 = vadd.f32 0.0, %v1693
      %v1695 = vpop.f32.mrf.mxu0
      %1696 = vmatprep.mubr.bf16.mxu0 0
      %1697 = vmatmul.mubr.bf16.gmra.mxu0 %v1514
      %v1698 = vpop.f32.mrf.mxu0
      %v1699 = vadd.f32 0.0, %v1698
      %v1700 = vpop.f32.mrf.mxu0
      %v1701 = vpop.f32.mrf.mxu0
      %v1702 = vadd.f32 0.0, %v1701
      %v1703 = vpop.f32.mrf.mxu0
      %1704 = vmatprep.mubr.bf16.mxu0 0
      %1705 = vmatmul.mubr.bf16.gmra.mxu0 %v1515
      %v1706 = vpop.f32.mrf.mxu0
      %v1707 = vadd.f32 0.0, %v1706
      %v1708 = vpop.f32.mrf.mxu0
      %v1709 = vpop.f32.mrf.mxu0
      %v1710 = vadd.f32 0.0, %v1709
      %v1711 = vpop.f32.mrf.mxu0
      %1712 = vmatprep.mubr.bf16.mxu0 0
      %1713 = vmatmul.mubr.bf16.gmra.mxu0 %v1516
      %v1714 = vpop.f32.mrf.mxu0
      %v1715 = vadd.f32 0.0, %v1714
      %v1716 = vpop.f32.mrf.mxu0
      %v1717 = vpop.f32.mrf.mxu0
      %v1718 = vadd.f32 0.0, %v1717
      %v1719 = vpop.f32.mrf.mxu0
      %1720 = vmatprep.mubr.bf16.mxu0 0
      %1721 = vmatmul.mubr.bf16.gmra.mxu0 %v1517
      %v1722 = vpop.f32.mrf.mxu0
      %v1723 = vadd.f32 0.0, %v1722
      %v1724 = vpop.f32.mrf.mxu0
      %v1725 = vpop.f32.mrf.mxu0
      %v1726 = vadd.f32 0.0, %v1725
      %v1727 = vpop.f32.mrf.mxu0
      %1728 = vmatprep.mubr.bf16.mxu0 0
      %1729 = vmatmul.mubr.bf16.gmra.mxu0 %v1518
      %v1730 = vpop.f32.mrf.mxu0
      %v1731 = vadd.f32 0.0, %v1730
      %v1732 = vpop.f32.mrf.mxu0
      %v1733 = vpop.f32.mrf.mxu0
      %v1734 = vadd.f32 0.0, %v1733
      %v1735 = vpop.f32.mrf.mxu0
      %1736 = vmatprep.mubr.bf16.mxu0 0
      %1737 = vmatmul.mubr.bf16.gmra.mxu0 %v1519
      %v1738 = vpop.f32.mrf.mxu0
      %v1739 = vadd.f32 0.0, %v1738
      %v1740 = vpop.f32.mrf.mxu0
      %v1741 = vpop.f32.mrf.mxu0
      %v1742 = vadd.f32 0.0, %v1741
      %v1743 = vpop.f32.mrf.mxu0
      %1744 = vdwg.mxu0
      %v1777 = vunpack.c.l.b16 %v1004
      %v1778 = vunpack.c.l.b16 %v1005
      %v1779 = vunpack.c.l.b16 %v1006
      %v1780 = vunpack.c.l.b16 %v1007
      %v1781 = vunpack.c.l.b16 %v1008
      %v1782 = vunpack.c.l.b16 %v1009
      %v1783 = vunpack.c.l.b16 %v1010
      %v1784 = vunpack.c.l.b16 %v1011
      %v1785 = vunpack.c.l.b16 %v1012
      %v1786 = vunpack.c.l.b16 %v1013
      %v1787 = vunpack.c.l.b16 %v1014
      %v1788 = vunpack.c.l.b16 %v1015
      %v1789 = vunpack.c.l.b16 %v1016
      %v1790 = vunpack.c.l.b16 %v1017
      %v1791 = vunpack.c.l.b16 %v1018
      %v1792 = vunpack.c.l.b16 %v1019
      %v1793 = vunpack.c.l.b16 %v1020
      %v1794 = vunpack.c.l.b16 %v1021
      %v1795 = vunpack.c.l.b16 %v1022
      %v1796 = vunpack.c.l.b16 %v1023
      %v1797 = vunpack.c.l.b16 %v1024
      %v1798 = vunpack.c.l.b16 %v1025
      %v1799 = vunpack.c.l.b16 %v1026
      %v1800 = vunpack.c.l.b16 %v1027
      %v1801 = vunpack.c.l.b16 %v1028
      %v1802 = vunpack.c.l.b16 %v1029
      %v1803 = vunpack.c.l.b16 %v1030
      %v1804 = vunpack.c.l.b16 %v1031
      %v1805 = vunpack.c.l.b16 %v1032
      %v1806 = vunpack.c.l.b16 %v1033
      %v1807 = vunpack.c.l.b16 %v1034
      %v1808 = vunpack.c.l.b16 %v1035
      %v1809 = vpack.c.b16 %v1778, %v1777
      %v1810 = vpack.c.b16 %v1780, %v1779
      %v1811 = vpack.c.b16 %v1782, %v1781
      %v1812 = vpack.c.b16 %v1784, %v1783
      %v1813 = vpack.c.b16 %v1786, %v1785
      %v1814 = vpack.c.b16 %v1788, %v1787
      %v1815 = vpack.c.b16 %v1790, %v1789
      %v1816 = vpack.c.b16 %v1792, %v1791
      %v1817 = vpack.c.b16 %v1794, %v1793
      %v1818 = vpack.c.b16 %v1796, %v1795
      %v1819 = vpack.c.b16 %v1798, %v1797
      %v1820 = vpack.c.b16 %v1800, %v1799
      %v1821 = vpack.c.b16 %v1802, %v1801
      %v1822 = vpack.c.b16 %v1804, %v1803
      %v1823 = vpack.c.b16 %v1806, %v1805
      %v1824 = vpack.c.b16 %v1808, %v1807
      %v1857 = vunpack.c.l.b16 %v1036
      %v1858 = vunpack.c.l.b16 %v1037
      %v1859 = vunpack.c.l.b16 %v1038
      %v1860 = vunpack.c.l.b16 %v1039
      %v1861 = vunpack.c.l.b16 %v1040
      %v1862 = vunpack.c.l.b16 %v1041
      %v1863 = vunpack.c.l.b16 %v1042
      %v1864 = vunpack.c.l.b16 %v1043
      %v1865 = vunpack.c.l.b16 %v1044
      %v1866 = vunpack.c.l.b16 %v1045
      %v1867 = vunpack.c.l.b16 %v1046
      %v1868 = vunpack.c.l.b16 %v1047
      %v1869 = vunpack.c.l.b16 %v1048
      %v1870 = vunpack.c.l.b16 %v1049
      %v1871 = vunpack.c.l.b16 %v1050
      %v1872 = vunpack.c.l.b16 %v1051
      %v1873 = vpack.c.b16 %v1858, %v1857
      %v1874 = vpack.c.b16 %v1860, %v1859
      %v1875 = vpack.c.b16 %v1862, %v1861
      %v1876 = vpack.c.b16 %v1864, %v1863
      %v1877 = vpack.c.b16 %v1866, %v1865
      %v1878 = vpack.c.b16 %v1868, %v1867
      %v1879 = vpack.c.b16 %v1870, %v1869
      %v1880 = vpack.c.b16 %v1872, %v1871
      %1889 = vmatprep.subr.bf16.mxu0 0
      %1890 = vmatpush1.bf16.msra.mxu0 %v1880
      %1891 = vmatprep.subr.bf16.mxu0 0
      %1892 = vmatpush1.bf16.msra.mxu0 %v1879
      %1893 = vmatprep.subr.bf16.mxu0 0
      %1894 = vmatpush1.bf16.msra.mxu0 %v1878
      %1895 = vmatprep.subr.bf16.mxu0 0
      %1896 = vmatpush1.bf16.msra.mxu0 %v1877
      %1897 = vmatprep.subr.bf16.mxu0 0
      %1898 = vmatpush1.bf16.msra.mxu0 %v1876
      %1899 = vmatprep.subr.bf16.mxu0 0
      %1900 = vmatpush1.bf16.msra.mxu0 %v1875
      %1901 = vmatprep.subr.bf16.mxu0 0
      %1902 = vmatpush1.bf16.msra.mxu0 %v1874
      %1903 = vmatprep.subr.bf16.mxu0 0
      %1904 = vmatpush1.bf16.msra.mxu0 %v1873
      %1905 = vmatprep.subr.bf16.mxu0 0
      %1906 = vmatpush2.bf16.msra.mxu0 0
      %1907 = vmatprep.subr.bf16.mxu0 0
      %1908 = vmatpush2.bf16.msra.mxu0 0
      %1909 = vmatprep.subr.bf16.mxu0 0
      %1910 = vmatpush2.bf16.msra.mxu0 0
      %1911 = vmatprep.subr.bf16.mxu0 0
      %1912 = vmatpush2.bf16.msra.mxu0 0
      %1913 = vmatprep.subr.bf16.mxu0 0
      %1914 = vmatpush2.bf16.msra.mxu0 0
      %1915 = vmatprep.subr.bf16.mxu0 0
      %1916 = vmatpush2.bf16.msra.mxu0 0
      %1917 = vmatprep.subr.bf16.mxu0 0
      %1918 = vmatpush2.bf16.msra.mxu0 0
      %1919 = vmatprep.subr.bf16.mxu0 0
      %1920 = vmatpush2.bf16.msra.mxu0 0
      %1921 = vmatprep.mubr.bf16.mxu0 0
      %1922 = vmatmul.mubr.bf16.gmra.mxu0 %v1809
      %v1923 = vpop.f32.mrf.mxu0
      %v1924 = vadd.f32 %v1619, %v1923
      %v1925 = vpop.f32.mrf.mxu0
      %v1926 = vpop.f32.mrf.mxu0
      %v1927 = vadd.f32 %v1622, %v1926
      %v1928 = vpop.f32.mrf.mxu0
      %1929 = vmatprep.mubr.bf16.mxu0 0
      %1930 = vmatmul.mubr.bf16.gmra.mxu0 %v1810
      %v1931 = vpop.f32.mrf.mxu0
      %v1932 = vadd.f32 %v1627, %v1931
      %v1933 = vpop.f32.mrf.mxu0
      %v1934 = vpop.f32.mrf.mxu0
      %v1935 = vadd.f32 %v1630, %v1934
      %v1936 = vpop.f32.mrf.mxu0
      %1937 = vmatprep.mubr.bf16.mxu0 0
      %1938 = vmatmul.mubr.bf16.gmra.mxu0 %v1811
      %v1939 = vpop.f32.mrf.mxu0
      %v1940 = vadd.f32 %v1635, %v1939
      %v1941 = vpop.f32.mrf.mxu0
      %v1942 = vpop.f32.mrf.mxu0
      %v1943 = vadd.f32 %v1638, %v1942
      %v1944 = vpop.f32.mrf.mxu0
      %1945 = vmatprep.mubr.bf16.mxu0 0
      %1946 = vmatmul.mubr.bf16.gmra.mxu0 %v1812
      %v1947 = vpop.f32.mrf.mxu0
      %v1948 = vadd.f32 %v1643, %v1947
      %v1949 = vpop.f32.mrf.mxu0
      %v1950 = vpop.f32.mrf.mxu0
      %v1951 = vadd.f32 %v1646, %v1950
      %v1952 = vpop.f32.mrf.mxu0
      %1953 = vmatprep.mubr.bf16.mxu0 0
      %1954 = vmatmul.mubr.bf16.gmra.mxu0 %v1813
      %v1955 = vpop.f32.mrf.mxu0
      %v1956 = vadd.f32 %v1651, %v1955
      %v1957 = vpop.f32.mrf.mxu0
      %v1958 = vpop.f32.mrf.mxu0
      %v1959 = vadd.f32 %v1654, %v1958
      %v1960 = vpop.f32.mrf.mxu0
      %1961 = vmatprep.mubr.bf16.mxu0 0
      %1962 = vmatmul.mubr.bf16.gmra.mxu0 %v1814
      %v1963 = vpop.f32.mrf.mxu0
      %v1964 = vadd.f32 %v1659, %v1963
      %v1965 = vpop.f32.mrf.mxu0
      %v1966 = vpop.f32.mrf.mxu0
      %v1967 = vadd.f32 %v1662, %v1966
      %v1968 = vpop.f32.mrf.mxu0
      %1969 = vmatprep.mubr.bf16.mxu0 0
      %1970 = vmatmul.mubr.bf16.gmra.mxu0 %v1815
      %v1971 = vpop.f32.mrf.mxu0
      %v1972 = vadd.f32 %v1667, %v1971
      %v1973 = vpop.f32.mrf.mxu0
      %v1974 = vpop.f32.mrf.mxu0
      %v1975 = vadd.f32 %v1670, %v1974
      %v1976 = vpop.f32.mrf.mxu0
      %1977 = vmatprep.mubr.bf16.mxu0 0
      %1978 = vmatmul.mubr.bf16.gmra.mxu0 %v1816
      %v1979 = vpop.f32.mrf.mxu0
      %v1980 = vadd.f32 %v1675, %v1979
      %v1981 = vpop.f32.mrf.mxu0
      %v1982 = vpop.f32.mrf.mxu0
      %v1983 = vadd.f32 %v1678, %v1982
      %v1984 = vpop.f32.mrf.mxu0
      %1985 = vmatprep.mubr.bf16.mxu0 0
      %1986 = vmatmul.mubr.bf16.gmra.mxu0 %v1817
      %v1987 = vpop.f32.mrf.mxu0
      %v1988 = vadd.f32 %v1683, %v1987
      %v1989 = vpop.f32.mrf.mxu0
      %v1990 = vpop.f32.mrf.mxu0
      %v1991 = vadd.f32 %v1686, %v1990
      %v1992 = vpop.f32.mrf.mxu0
      %1993 = vmatprep.mubr.bf16.mxu0 0
      %1994 = vmatmul.mubr.bf16.gmra.mxu0 %v1818
      %v1995 = vpop.f32.mrf.mxu0
      %v1996 = vadd.f32 %v1691, %v1995
      %v1997 = vpop.f32.mrf.mxu0
      %v1998 = vpop.f32.mrf.mxu0
      %v1999 = vadd.f32 %v1694, %v1998
      %v2000 = vpop.f32.mrf.mxu0
      %2001 = vmatprep.mubr.bf16.mxu0 0
      %2002 = vmatmul.mubr.bf16.gmra.mxu0 %v1819
      %v2003 = vpop.f32.mrf.mxu0
      %v2004 = vadd.f32 %v1699, %v2003
      %v2005 = vpop.f32.mrf.mxu0
      %v2006 = vpop.f32.mrf.mxu0
      %v2007 = vadd.f32 %v1702, %v2006
      %v2008 = vpop.f32.mrf.mxu0
      %2009 = vmatprep.mubr.bf16.mxu0 0
      %2010 = vmatmul.mubr.bf16.gmra.mxu0 %v1820
      %v2011 = vpop.f32.mrf.mxu0
      %v2012 = vadd.f32 %v1707, %v2011
      %v2013 = vpop.f32.mrf.mxu0
      %v2014 = vpop.f32.mrf.mxu0
      %v2015 = vadd.f32 %v1710, %v2014
      %v2016 = vpop.f32.mrf.mxu0
      %2017 = vmatprep.mubr.bf16.mxu0 0
      %2018 = vmatmul.mubr.bf16.gmra.mxu0 %v1821
      %v2019 = vpop.f32.mrf.mxu0
      %v2020 = vadd.f32 %v1715, %v2019
      %v2021 = vpop.f32.mrf.mxu0
      %v2022 = vpop.f32.mrf.mxu0
      %v2023 = vadd.f32 %v1718, %v2022
      %v2024 = vpop.f32.mrf.mxu0
      %2025 = vmatprep.mubr.bf16.mxu0 0
      %2026 = vmatmul.mubr.bf16.gmra.mxu0 %v1822
      %v2027 = vpop.f32.mrf.mxu0
      %v2028 = vadd.f32 %v1723, %v2027
      %v2029 = vpop.f32.mrf.mxu0
      %v2030 = vpop.f32.mrf.mxu0
      %v2031 = vadd.f32 %v1726, %v2030
      %v2032 = vpop.f32.mrf.mxu0
      %2033 = vmatprep.mubr.bf16.mxu0 0
      %2034 = vmatmul.mubr.bf16.gmra.mxu0 %v1823
      %v2035 = vpop.f32.mrf.mxu0
      %v2036 = vadd.f32 %v1731, %v2035
      %v2037 = vpop.f32.mrf.mxu0
      %v2038 = vpop.f32.mrf.mxu0
      %v2039 = vadd.f32 %v1734, %v2038
      %v2040 = vpop.f32.mrf.mxu0
      %2041 = vmatprep.mubr.bf16.mxu0 0
      %2042 = vmatmul.mubr.bf16.gmra.mxu0 %v1824
      %v2043 = vpop.f32.mrf.mxu0
      %v2044 = vadd.f32 %v1739, %v2043
      %v2045 = vpop.f32.mrf.mxu0
      %v2046 = vpop.f32.mrf.mxu0
      %v2047 = vadd.f32 %v1742, %v2046
      %v2048 = vpop.f32.mrf.mxu0
      %2049 = vdwg.mxu0
      %v2050 = vld [vmem:[%s1003] sm:$0xe]
      %v2051 = vld [vmem:[%s1003 + $0xc] sm:$0xe]
      %v2052 = vld [vmem:[%s1003 + $0x18] sm:$0xe]
      %v2053 = vld [vmem:[%s1003 + $0x24] sm:$0xe]
      %v2054 = vld [vmem:[%s1003 + $0x30] sm:$0xe]
      %v2055 = vld [vmem:[%s1003 + $0x3c] sm:$0xe]
      %v2056 = vld [vmem:[%s1003 + $0x48] sm:$0xe]
      %v2057 = vld [vmem:[%s1003 + $0x54] sm:$0xe]
      %v2058 = vld [vmem:[%s1003 + $0x60] sm:$0xe]
      %v2059 = vld [vmem:[%s1003 + $0x6c] sm:$0xe]
      %v2060 = vld [vmem:[%s1003 + $0x78] sm:$0xe]
      %v2061 = vld [vmem:[%s1003 + $0x84] sm:$0xe]
      %v2062 = vld [vmem:[%s1003 + $0x90] sm:$0xe]
      %v2063 = vld [vmem:[%s1003 + $0x9c] sm:$0xe]
      %v2064 = vld [vmem:[%s1003 + $0xa8] sm:$0xe]
      %v2065 = vld [vmem:[%s1003 + $0xb4] sm:$0xe]
      %vm2098 = vcmask 1042432
      %vm2099 = vcmask 1046532
      %vm2100 = vmor %vm2098, %vm2099
      %v2101 = vrot.slane %v2050, 5
      %v2102 = vrot.slane %v2101, 4
      %v2103 = vrot.slane %v1005, 5
      %v2104 = vsel %vm2100, %v2102, %v2103
      %v2105 = vrot.slane %v2103, 4
      %v2106 = vrot.slane %v1052, 5
      %v2107 = vsel %vm2100, %v2105, %v2106
      %v2108 = vrot.slane %v2051, 5
      %v2109 = vrot.slane %v2108, 4
      %v2110 = vrot.slane %v1007, 5
      %v2111 = vsel %vm2100, %v2109, %v2110
      %v2112 = vrot.slane %v2110, 4
      %v2113 = vrot.slane %v1053, 5
      %v2114 = vsel %vm2100, %v2112, %v2113
      %v2115 = vrot.slane %v2052, 5
      %v2116 = vrot.slane %v2115, 4
      %v2117 = vrot.slane %v1009, 5
      %v2118 = vsel %vm2100, %v2116, %v2117
      %v2119 = vrot.slane %v2117, 4
      %v2120 = vrot.slane %v1054, 5
      %v2121 = vsel %vm2100, %v2119, %v2120
      %v2122 = vrot.slane %v2053, 5
      %v2123 = vrot.slane %v2122, 4
      %v2124 = vrot.slane %v1011, 5
      %v2125 = vsel %vm2100, %v2123, %v2124
      %v2126 = vrot.slane %v2124, 4
      %v2127 = vrot.slane %v1055, 5
      %v2128 = vsel %vm2100, %v2126, %v2127
      %v2129 = vrot.slane %v2054, 5
      %v2130 = vrot.slane %v2129, 4
      %v2131 = vrot.slane %v1013, 5
      %v2132 = vsel %vm2100, %v2130, %v2131
      %v2133 = vrot.slane %v2131, 4
      %v2134 = vrot.slane %v1056, 5
      %v2135 = vsel %vm2100, %v2133, %v2134
      %v2136 = vrot.slane %v2055, 5
      %v2137 = vrot.slane %v2136, 4
      %v2138 = vrot.slane %v1015, 5
      %v2139 = vsel %vm2100, %v2137, %v2138
      %v2140 = vrot.slane %v2138, 4
      %v2141 = vrot.slane %v1057, 5
      %v2142 = vsel %vm2100, %v2140, %v2141
      %v2143 = vrot.slane %v2056, 5
      %v2144 = vrot.slane %v2143, 4
      %v2145 = vrot.slane %v1017, 5
      %v2146 = vsel %vm2100, %v2144, %v2145
      %v2147 = vrot.slane %v2145, 4
      %v2148 = vrot.slane %v1058, 5
      %v2149 = vsel %vm2100, %v2147, %v2148
      %v2150 = vrot.slane %v2057, 5
      %v2151 = vrot.slane %v2150, 4
      %v2152 = vrot.slane %v1019, 5
      %v2153 = vsel %vm2100, %v2151, %v2152
      %v2154 = vrot.slane %v2152, 4
      %v2155 = vrot.slane %v1059, 5
      %v2156 = vsel %vm2100, %v2154, %v2155
      %v2157 = vrot.slane %v2058, 5
      %v2158 = vrot.slane %v2157, 4
      %v2159 = vrot.slane %v1021, 5
      %v2160 = vsel %vm2100, %v2158, %v2159
      %v2161 = vrot.slane %v2159, 4
      %v2162 = vrot.slane %v1060, 5
      %v2163 = vsel %vm2100, %v2161, %v2162
      %v2164 = vrot.slane %v2059, 5
      %v2165 = vrot.slane %v2164, 4
      %v2166 = vrot.slane %v1023, 5
      %v2167 = vsel %vm2100, %v2165, %v2166
      %v2168 = vrot.slane %v2166, 4
      %v2169 = vrot.slane %v1061, 5
      %v2170 = vsel %vm2100, %v2168, %v2169
      %v2171 = vrot.slane %v2060, 5
      %v2172 = vrot.slane %v2171, 4
      %v2173 = vrot.slane %v1025, 5
      %v2174 = vsel %vm2100, %v2172, %v2173
      %v2175 = vrot.slane %v2173, 4
      %v2176 = vrot.slane %v1062, 5
      %v2177 = vsel %vm2100, %v2175, %v2176
      %v2178 = vrot.slane %v2061, 5
      %v2179 = vrot.slane %v2178, 4
      %v2180 = vrot.slane %v1027, 5
      %v2181 = vsel %vm2100, %v2179, %v2180
      %v2182 = vrot.slane %v2180, 4
      %v2183 = vrot.slane %v1063, 5
      %v2184 = vsel %vm2100, %v2182, %v2183
      %v2185 = vrot.slane %v2062, 5
      %v2186 = vrot.slane %v2185, 4
      %v2187 = vrot.slane %v1029, 5
      %v2188 = vsel %vm2100, %v2186, %v2187
      %v2189 = vrot.slane %v2187, 4
      %v2190 = vrot.slane %v1064, 5
      %v2191 = vsel %vm2100, %v2189, %v2190
      %v2192 = vrot.slane %v2063, 5
      %v2193 = vrot.slane %v2192, 4
      %v2194 = vrot.slane %v1031, 5
      %v2195 = vsel %vm2100, %v2193, %v2194
      %v2196 = vrot.slane %v2194, 4
      %v2197 = vrot.slane %v1065, 5
      %v2198 = vsel %vm2100, %v2196, %v2197
      %v2199 = vrot.slane %v2064, 5
      %v2200 = vrot.slane %v2199, 4
      %v2201 = vrot.slane %v1033, 5
      %v2202 = vsel %vm2100, %v2200, %v2201
      %v2203 = vrot.slane %v2201, 4
      %v2204 = vrot.slane %v1066, 5
      %v2205 = vsel %vm2100, %v2203, %v2204
      %v2206 = vrot.slane %v2065, 5
      %v2207 = vrot.slane %v2206, 4
      %v2208 = vrot.slane %v1035, 5
      %v2209 = vsel %vm2100, %v2207, %v2208
      %v2210 = vrot.slane %v2208, 4
      %v2211 = vrot.slane %v1067, 5
      %v2212 = vsel %vm2100, %v2210, %v2211
      %s2213 = scalar_lea.vmem %s3, 128
      %v2214 = vld [vmem:[%s2213] sm:$0xf]
      %v2215 = vld [vmem:[%s2213 + $0x4] sm:$0xf]
      %v2216 = vld [vmem:[%s2213 + $0x8] sm:$0xf]
      %v2217 = vld [vmem:[%s2213 + $0xc] sm:$0xf]
      %v2218 = vld [vmem:[%s2213 + $0x10] sm:$0xf]
      %v2219 = vld [vmem:[%s2213 + $0x14] sm:$0xf]
      %v2220 = vld [vmem:[%s2213 + $0x18] sm:$0xf]
      %v2221 = vld [vmem:[%s2213 + $0x1c] sm:$0xf]
      %v2222 = vld [vmem:[%s2213 + $0x20] sm:$0xf]
      %v2223 = vld [vmem:[%s2213 + $0x24] sm:$0xf]
      %v2224 = vld [vmem:[%s2213 + $0x28] sm:$0xf]
      %v2225 = vld [vmem:[%s2213 + $0x2c] sm:$0xf]
      %v2226 = vld [vmem:[%s2213 + $0x30] sm:$0xf]
      %v2227 = vld [vmem:[%s2213 + $0x34] sm:$0xf]
      %v2228 = vld [vmem:[%s2213 + $0x38] sm:$0xf]
      %v2229 = vld [vmem:[%s2213 + $0x3c] sm:$0xf]
      %v2230 = vunpack.c.l.b16 %v2104
      %v2231 = vunpack.c.l.b16 %v2107
      %v2232 = vunpack.c.l.b16 %v2111
      %v2233 = vunpack.c.l.b16 %v2114
      %v2234 = vunpack.c.l.b16 %v2118
      %v2235 = vunpack.c.l.b16 %v2121
      %v2236 = vunpack.c.l.b16 %v2125
      %v2237 = vunpack.c.l.b16 %v2128
      %v2238 = vunpack.c.l.b16 %v2132
      %v2239 = vunpack.c.l.b16 %v2135
      %v2240 = vunpack.c.l.b16 %v2139
      %v2241 = vunpack.c.l.b16 %v2142
      %v2242 = vunpack.c.l.b16 %v2146
      %v2243 = vunpack.c.l.b16 %v2149
      %v2244 = vunpack.c.l.b16 %v2153
      %v2245 = vunpack.c.l.b16 %v2156
      %v2246 = vunpack.c.l.b16 %v2160
      %v2247 = vunpack.c.l.b16 %v2163
      %v2248 = vunpack.c.l.b16 %v2167
      %v2249 = vunpack.c.l.b16 %v2170
      %v2250 = vunpack.c.l.b16 %v2174
      %v2251 = vunpack.c.l.b16 %v2177
      %v2252 = vunpack.c.l.b16 %v2181
      %v2253 = vunpack.c.l.b16 %v2184
      %v2254 = vunpack.c.l.b16 %v2188
      %v2255 = vunpack.c.l.b16 %v2191
      %v2256 = vunpack.c.l.b16 %v2195
      %v2257 = vunpack.c.l.b16 %v2198
      %v2258 = vunpack.c.l.b16 %v2202
      %v2259 = vunpack.c.l.b16 %v2205
      %v2260 = vunpack.c.l.b16 %v2209
      %v2261 = vunpack.c.l.b16 %v2212
      %v2262 = vpack.c.b16 %v2231, %v2230
      %v2263 = vpack.c.b16 %v2233, %v2232
      %v2264 = vpack.c.b16 %v2235, %v2234
      %v2265 = vpack.c.b16 %v2237, %v2236
      %v2266 = vpack.c.b16 %v2239, %v2238
      %v2267 = vpack.c.b16 %v2241, %v2240
      %v2268 = vpack.c.b16 %v2243, %v2242
      %v2269 = vpack.c.b16 %v2245, %v2244
      %v2270 = vpack.c.b16 %v2247, %v2246
      %v2271 = vpack.c.b16 %v2249, %v2248
      %v2272 = vpack.c.b16 %v2251, %v2250
      %v2273 = vpack.c.b16 %v2253, %v2252
      %v2274 = vpack.c.b16 %v2255, %v2254
      %v2275 = vpack.c.b16 %v2257, %v2256
      %v2276 = vpack.c.b16 %v2259, %v2258
      %v2277 = vpack.c.b16 %v2261, %v2260
      %v2310 = vunpack.c.l.b16 %v2214
      %v2311 = vunpack.c.l.b16 %v2215
      %v2312 = vunpack.c.l.b16 %v2216
      %v2313 = vunpack.c.l.b16 %v2217
      %v2314 = vunpack.c.l.b16 %v2218
      %v2315 = vunpack.c.l.b16 %v2219
      %v2316 = vunpack.c.l.b16 %v2220
      %v2317 = vunpack.c.l.b16 %v2221
      %v2318 = vunpack.c.l.b16 %v2222
      %v2319 = vunpack.c.l.b16 %v2223
      %v2320 = vunpack.c.l.b16 %v2224
      %v2321 = vunpack.c.l.b16 %v2225
      %v2322 = vunpack.c.l.b16 %v2226
      %v2323 = vunpack.c.l.b16 %v2227
      %v2324 = vunpack.c.l.b16 %v2228
      %v2325 = vunpack.c.l.b16 %v2229
      %v2326 = vpack.c.b16 %v2311, %v2310
      %v2327 = vpack.c.b16 %v2313, %v2312
      %v2328 = vpack.c.b16 %v2315, %v2314
      %v2329 = vpack.c.b16 %v2317, %v2316
      %v2330 = vpack.c.b16 %v2319, %v2318
      %v2331 = vpack.c.b16 %v2321, %v2320
      %v2332 = vpack.c.b16 %v2323, %v2322
      %v2333 = vpack.c.b16 %v2325, %v2324
      %2342 = vmatprep.subr.bf16.mxu0 0
      %2343 = vmatpush1.bf16.msra.mxu0 %v2333
      %2344 = vmatprep.subr.bf16.mxu0 0
      %2345 = vmatpush1.bf16.msra.mxu0 %v2332
      %2346 = vmatprep.subr.bf16.mxu0 0
      %2347 = vmatpush1.bf16.msra.mxu0 %v2331
      %2348 = vmatprep.subr.bf16.mxu0 0
      %2349 = vmatpush1.bf16.msra.mxu0 %v2330
      %2350 = vmatprep.subr.bf16.mxu0 0
      %2351 = vmatpush1.bf16.msra.mxu0 %v2329
      %2352 = vmatprep.subr.bf16.mxu0 0
      %2353 = vmatpush1.bf16.msra.mxu0 %v2328
      %2354 = vmatprep.subr.bf16.mxu0 0
      %2355 = vmatpush1.bf16.msra.mxu0 %v2327
      %2356 = vmatprep.subr.bf16.mxu0 0
      %2357 = vmatpush1.bf16.msra.mxu0 %v2326
      %2358 = vmatprep.subr.bf16.mxu0 0
      %2359 = vmatpush2.bf16.msra.mxu0 0
      %2360 = vmatprep.subr.bf16.mxu0 0
      %2361 = vmatpush2.bf16.msra.mxu0 0
      %2362 = vmatprep.subr.bf16.mxu0 0
      %2363 = vmatpush2.bf16.msra.mxu0 0
      %2364 = vmatprep.subr.bf16.mxu0 0
      %2365 = vmatpush2.bf16.msra.mxu0 0
      %2366 = vmatprep.subr.bf16.mxu0 0
      %2367 = vmatpush2.bf16.msra.mxu0 0
      %2368 = vmatprep.subr.bf16.mxu0 0
      %2369 = vmatpush2.bf16.msra.mxu0 0
      %2370 = vmatprep.subr.bf16.mxu0 0
      %2371 = vmatpush2.bf16.msra.mxu0 0
      %2372 = vmatprep.subr.bf16.mxu0 0
      %2373 = vmatpush2.bf16.msra.mxu0 0
      %2374 = vmatprep.mubr.bf16.mxu0 0
      %2375 = vmatmul.mubr.bf16.gmra.mxu0 %v2262
      %v2376 = vpop.f32.mrf.mxu0
      %v2377 = vadd.f32 0.0, %v2376
      %v2378 = vpop.f32.mrf.mxu0
      %v2379 = vpop.f32.mrf.mxu0
      %v2380 = vadd.f32 0.0, %v2379
      %v2381 = vpop.f32.mrf.mxu0
      %2382 = vmatprep.mubr.bf16.mxu0 0
      %2383 = vmatmul.mubr.bf16.gmra.mxu0 %v2263
      %v2384 = vpop.f32.mrf.mxu0
      %v2385 = vadd.f32 0.0, %v2384
      %v2386 = vpop.f32.mrf.mxu0
      %v2387 = vpop.f32.mrf.mxu0
      %v2388 = vadd.f32 0.0, %v2387
      %v2389 = vpop.f32.mrf.mxu0
      %2390 = vmatprep.mubr.bf16.mxu0 0
      %2391 = vmatmul.mubr.bf16.gmra.mxu0 %v2264
      %v2392 = vpop.f32.mrf.mxu0
      %v2393 = vadd.f32 0.0, %v2392
      %v2394 = vpop.f32.mrf.mxu0
      %v2395 = vpop.f32.mrf.mxu0
      %v2396 = vadd.f32 0.0, %v2395
      %v2397 = vpop.f32.mrf.mxu0
      %2398 = vmatprep.mubr.bf16.mxu0 0
      %2399 = vmatmul.mubr.bf16.gmra.mxu0 %v2265
      %v2400 = vpop.f32.mrf.mxu0
      %v2401 = vadd.f32 0.0, %v2400
      %v2402 = vpop.f32.mrf.mxu0
      %v2403 = vpop.f32.mrf.mxu0
      %v2404 = vadd.f32 0.0, %v2403
      %v2405 = vpop.f32.mrf.mxu0
      %2406 = vmatprep.mubr.bf16.mxu0 0
      %2407 = vmatmul.mubr.bf16.gmra.mxu0 %v2266
      %v2408 = vpop.f32.mrf.mxu0
      %v2409 = vadd.f32 0.0, %v2408
      %v2410 = vpop.f32.mrf.mxu0
      %v2411 = vpop.f32.mrf.mxu0
      %v2412 = vadd.f32 0.0, %v2411
      %v2413 = vpop.f32.mrf.mxu0
      %2414 = vmatprep.mubr.bf16.mxu0 0
      %2415 = vmatmul.mubr.bf16.gmra.mxu0 %v2267
      %v2416 = vpop.f32.mrf.mxu0
      %v2417 = vadd.f32 0.0, %v2416
      %v2418 = vpop.f32.mrf.mxu0
      %v2419 = vpop.f32.mrf.mxu0
      %v2420 = vadd.f32 0.0, %v2419
      %v2421 = vpop.f32.mrf.mxu0
      %2422 = vmatprep.mubr.bf16.mxu0 0
      %2423 = vmatmul.mubr.bf16.gmra.mxu0 %v2268
      %v2424 = vpop.f32.mrf.mxu0
      %v2425 = vadd.f32 0.0, %v2424
      %v2426 = vpop.f32.mrf.mxu0
      %v2427 = vpop.f32.mrf.mxu0
      %v2428 = vadd.f32 0.0, %v2427
      %v2429 = vpop.f32.mrf.mxu0
      %2430 = vmatprep.mubr.bf16.mxu0 0
      %2431 = vmatmul.mubr.bf16.gmra.mxu0 %v2269
      %v2432 = vpop.f32.mrf.mxu0
      %v2433 = vadd.f32 0.0, %v2432
      %v2434 = vpop.f32.mrf.mxu0
      %v2435 = vpop.f32.mrf.mxu0
      %v2436 = vadd.f32 0.0, %v2435
      %v2437 = vpop.f32.mrf.mxu0
      %2438 = vmatprep.mubr.bf16.mxu0 0
      %2439 = vmatmul.mubr.bf16.gmra.mxu0 %v2270
      %v2440 = vpop.f32.mrf.mxu0
      %v2441 = vadd.f32 0.0, %v2440
      %v2442 = vpop.f32.mrf.mxu0
      %v2443 = vpop.f32.mrf.mxu0
      %v2444 = vadd.f32 0.0, %v2443
      %v2445 = vpop.f32.mrf.mxu0
      %2446 = vmatprep.mubr.bf16.mxu0 0
      %2447 = vmatmul.mubr.bf16.gmra.mxu0 %v2271
      %v2448 = vpop.f32.mrf.mxu0
      %v2449 = vadd.f32 0.0, %v2448
      %v2450 = vpop.f32.mrf.mxu0
      %v2451 = vpop.f32.mrf.mxu0
      %v2452 = vadd.f32 0.0, %v2451
      %v2453 = vpop.f32.mrf.mxu0
      %2454 = vmatprep.mubr.bf16.mxu0 0
      %2455 = vmatmul.mubr.bf16.gmra.mxu0 %v2272
      %v2456 = vpop.f32.mrf.mxu0
      %v2457 = vadd.f32 0.0, %v2456
      %v2458 = vpop.f32.mrf.mxu0
      %v2459 = vpop.f32.mrf.mxu0
      %v2460 = vadd.f32 0.0, %v2459
      %v2461 = vpop.f32.mrf.mxu0
      %2462 = vmatprep.mubr.bf16.mxu0 0
      %2463 = vmatmul.mubr.bf16.gmra.mxu0 %v2273
      %v2464 = vpop.f32.mrf.mxu0
      %v2465 = vadd.f32 0.0, %v2464
      %v2466 = vpop.f32.mrf.mxu0
      %v2467 = vpop.f32.mrf.mxu0
      %v2468 = vadd.f32 0.0, %v2467
      %v2469 = vpop.f32.mrf.mxu0
      %2470 = vmatprep.mubr.bf16.mxu0 0
      %2471 = vmatmul.mubr.bf16.gmra.mxu0 %v2274
      %v2472 = vpop.f32.mrf.mxu0
      %v2473 = vadd.f32 0.0, %v2472
      %v2474 = vpop.f32.mrf.mxu0
      %v2475 = vpop.f32.mrf.mxu0
      %v2476 = vadd.f32 0.0, %v2475
      %v2477 = vpop.f32.mrf.mxu0
      %2478 = vmatprep.mubr.bf16.mxu0 0
      %2479 = vmatmul.mubr.bf16.gmra.mxu0 %v2275
      %v2480 = vpop.f32.mrf.mxu0
      %v2481 = vadd.f32 0.0, %v2480
      %v2482 = vpop.f32.mrf.mxu0
      %v2483 = vpop.f32.mrf.mxu0
      %v2484 = vadd.f32 0.0, %v2483
      %v2485 = vpop.f32.mrf.mxu0
      %2486 = vmatprep.mubr.bf16.mxu0 0
      %2487 = vmatmul.mubr.bf16.gmra.mxu0 %v2276
      %v2488 = vpop.f32.mrf.mxu0
      %v2489 = vadd.f32 0.0, %v2488
      %v2490 = vpop.f32.mrf.mxu0
      %v2491 = vpop.f32.mrf.mxu0
      %v2492 = vadd.f32 0.0, %v2491
      %v2493 = vpop.f32.mrf.mxu0
      %2494 = vmatprep.mubr.bf16.mxu0 0
      %2495 = vmatmul.mubr.bf16.gmra.mxu0 %v2277
      %v2496 = vpop.f32.mrf.mxu0
      %v2497 = vadd.f32 0.0, %v2496
      %v2498 = vpop.f32.mrf.mxu0
      %v2499 = vpop.f32.mrf.mxu0
      %v2500 = vadd.f32 0.0, %v2499
      %v2501 = vpop.f32.mrf.mxu0
      %2502 = vdwg.mxu0
      %v2503 = vadd.f32 %v1924, %v2377
      %v2504 = vadd.f32 %v1927, %v2380
      %v2505 = vadd.f32 %v1932, %v2385
      %v2506 = vadd.f32 %v1935, %v2388
      %v2507 = vadd.f32 %v1940, %v2393
      %v2508 = vadd.f32 %v1943, %v2396
      %v2509 = vadd.f32 %v1948, %v2401
      %v2510 = vadd.f32 %v1951, %v2404
      %v2511 = vadd.f32 %v1956, %v2409
      %v2512 = vadd.f32 %v1959, %v2412
      %v2513 = vadd.f32 %v1964, %v2417
      %v2514 = vadd.f32 %v1967, %v2420
      %v2515 = vadd.f32 %v1972, %v2425
      %v2516 = vadd.f32 %v1975, %v2428
      %v2517 = vadd.f32 %v1980, %v2433
      %v2518 = vadd.f32 %v1983, %v2436
      %v2519 = vadd.f32 %v1988, %v2441
      %v2520 = vadd.f32 %v1991, %v2444
      %v2521 = vadd.f32 %v1996, %v2449
      %v2522 = vadd.f32 %v1999, %v2452
      %v2523 = vadd.f32 %v2004, %v2457
      %v2524 = vadd.f32 %v2007, %v2460
      %v2525 = vadd.f32 %v2012, %v2465
      %v2526 = vadd.f32 %v2015, %v2468
      %v2527 = vadd.f32 %v2020, %v2473
      %v2528 = vadd.f32 %v2023, %v2476
      %v2529 = vadd.f32 %v2028, %v2481
      %v2530 = vadd.f32 %v2031, %v2484
      %v2531 = vadd.f32 %v2036, %v2489
      %v2532 = vadd.f32 %v2039, %v2492
      %v2533 = vadd.f32 %v2044, %v2497
      %v2534 = vadd.f32 %v2047, %v2500
      %s2535 = sadd.s32 %s262, 1
      %s2536 = smul.u32 %s2535, 3
      %s2537 = smul.addr %s2536, 4
      %s2538 = scalar_lea.vmem [#allocation2], %s2537
      %v2539 = vld [vmem:[%s2538] sm:$0xf]
      %v2540 = vld [vmem:[%s2538 + $0x4] sm:$0xf]
      %v2541 = vld [vmem:[%s2538 + $0xc] sm:$0xf]
      %v2542 = vld [vmem:[%s2538 + $0x10] sm:$0xf]
      %v2543 = vld [vmem:[%s2538 + $0x18] sm:$0xf]
      %v2544 = vld [vmem:[%s2538 + $0x1c] sm:$0xf]
      %v2545 = vld [vmem:[%s2538 + $0x24] sm:$0xf]
      %v2546 = vld [vmem:[%s2538 + $0x28] sm:$0xf]
      %v2547 = vld [vmem:[%s2538 + $0x30] sm:$0xf]
      %v2548 = vld [vmem:[%s2538 + $0x34] sm:$0xf]
      %v2549 = vld [vmem:[%s2538 + $0x3c] sm:$0xf]
      %v2550 = vld [vmem:[%s2538 + $0x40] sm:$0xf]
      %v2551 = vld [vmem:[%s2538 + $0x48] sm:$0xf]
      %v2552 = vld [vmem:[%s2538 + $0x4c] sm:$0xf]
      %v2553 = vld [vmem:[%s2538 + $0x54] sm:$0xf]
      %v2554 = vld [vmem:[%s2538 + $0x58] sm:$0xf]
      %v2555 = vld [vmem:[%s2538 + $0x60] sm:$0xf]
      %v2556 = vld [vmem:[%s2538 + $0x64] sm:$0xf]
      %v2557 = vld [vmem:[%s2538 + $0x6c] sm:$0xf]
      %v2558 = vld [vmem:[%s2538 + $0x70] sm:$0xf]
      %v2559 = vld [vmem:[%s2538 + $0x78] sm:$0xf]
      %v2560 = vld [vmem:[%s2538 + $0x7c] sm:$0xf]
      %v2561 = vld [vmem:[%s2538 + $0x84] sm:$0xf]
      %v2562 = vld [vmem:[%s2538 + $0x88] sm:$0xf]
      %v2563 = vld [vmem:[%s2538 + $0x90] sm:$0xf]
      %v2564 = vld [vmem:[%s2538 + $0x94] sm:$0xf]
      %v2565 = vld [vmem:[%s2538 + $0x9c] sm:$0xf]
      %v2566 = vld [vmem:[%s2538 + $0xa0] sm:$0xf]
      %v2567 = vld [vmem:[%s2538 + $0xa8] sm:$0xf]
      %v2568 = vld [vmem:[%s2538 + $0xac] sm:$0xf]
      %v2569 = vld [vmem:[%s2538 + $0xb4] sm:$0xf]
      %v2570 = vld [vmem:[%s2538 + $0xb8] sm:$0xf]
      %s2571 = scalar_lea.vmem %s3, 192
      %v2572 = vld [vmem:[%s2571] sm:$0xf]
      %v2573 = vld [vmem:[%s2571 + $0x4] sm:$0xf]
      %v2574 = vld [vmem:[%s2571 + $0x8] sm:$0xf]
      %v2575 = vld [vmem:[%s2571 + $0xc] sm:$0xf]
      %v2576 = vld [vmem:[%s2571 + $0x10] sm:$0xf]
      %v2577 = vld [vmem:[%s2571 + $0x14] sm:$0xf]
      %v2578 = vld [vmem:[%s2571 + $0x18] sm:$0xf]
      %v2579 = vld [vmem:[%s2571 + $0x1c] sm:$0xf]
      %v2580 = vld [vmem:[%s2571 + $0x20] sm:$0xf]
      %v2581 = vld [vmem:[%s2571 + $0x24] sm:$0xf]
      %v2582 = vld [vmem:[%s2571 + $0x28] sm:$0xf]
      %v2583 = vld [vmem:[%s2571 + $0x2c] sm:$0xf]
      %v2584 = vld [vmem:[%s2571 + $0x30] sm:$0xf]
      %v2585 = vld [vmem:[%s2571 + $0x34] sm:$0xf]
      %v2586 = vld [vmem:[%s2571 + $0x38] sm:$0xf]
      %v2587 = vld [vmem:[%s2571 + $0x3c] sm:$0xf]
      %v2620 = vunpack.c.l.b16 %v2539
      %v2621 = vunpack.c.l.b16 %v2540
      %v2622 = vunpack.c.l.b16 %v2541
      %v2623 = vunpack.c.l.b16 %v2542
      %v2624 = vunpack.c.l.b16 %v2543
      %v2625 = vunpack.c.l.b16 %v2544
      %v2626 = vunpack.c.l.b16 %v2545
      %v2627 = vunpack.c.l.b16 %v2546
      %v2628 = vunpack.c.l.b16 %v2547
      %v2629 = vunpack.c.l.b16 %v2548
      %v2630 = vunpack.c.l.b16 %v2549
      %v2631 = vunpack.c.l.b16 %v2550
      %v2632 = vunpack.c.l.b16 %v2551
      %v2633 = vunpack.c.l.b16 %v2552
      %v2634 = vunpack.c.l.b16 %v2553
      %v2635 = vunpack.c.l.b16 %v2554
      %v2636 = vunpack.c.l.b16 %v2555
      %v2637 = vunpack.c.l.b16 %v2556
      %v2638 = vunpack.c.l.b16 %v2557
      %v2639 = vunpack.c.l.b16 %v2558
      %v2640 = vunpack.c.l.b16 %v2559
      %v2641 = vunpack.c.l.b16 %v2560
      %v2642 = vunpack.c.l.b16 %v2561
      %v2643 = vunpack.c.l.b16 %v2562
      %v2644 = vunpack.c.l.b16 %v2563
      %v2645 = vunpack.c.l.b16 %v2564
      %v2646 = vunpack.c.l.b16 %v2565
      %v2647 = vunpack.c.l.b16 %v2566
      %v2648 = vunpack.c.l.b16 %v2567
      %v2649 = vunpack.c.l.b16 %v2568
      %v2650 = vunpack.c.l.b16 %v2569
      %v2651 = vunpack.c.l.b16 %v2570
      %v2652 = vpack.c.b16 %v2621, %v2620
      %v2653 = vpack.c.b16 %v2623, %v2622
      %v2654 = vpack.c.b16 %v2625, %v2624
      %v2655 = vpack.c.b16 %v2627, %v2626
      %v2656 = vpack.c.b16 %v2629, %v2628
      %v2657 = vpack.c.b16 %v2631, %v2630
      %v2658 = vpack.c.b16 %v2633, %v2632
      %v2659 = vpack.c.b16 %v2635, %v2634
      %v2660 = vpack.c.b16 %v2637, %v2636
      %v2661 = vpack.c.b16 %v2639, %v2638
      %v2662 = vpack.c.b16 %v2641, %v2640
      %v2663 = vpack.c.b16 %v2643, %v2642
      %v2664 = vpack.c.b16 %v2645, %v2644
      %v2665 = vpack.c.b16 %v2647, %v2646
      %v2666 = vpack.c.b16 %v2649, %v2648
      %v2667 = vpack.c.b16 %v2651, %v2650
      %v2700 = vunpack.c.l.b16 %v2572
      %v2701 = vunpack.c.l.b16 %v2573
      %v2702 = vunpack.c.l.b16 %v2574
      %v2703 = vunpack.c.l.b16 %v2575
      %v2704 = vunpack.c.l.b16 %v2576
      %v2705 = vunpack.c.l.b16 %v2577
      %v2706 = vunpack.c.l.b16 %v2578
      %v2707 = vunpack.c.l.b16 %v2579
      %v2708 = vunpack.c.l.b16 %v2580
      %v2709 = vunpack.c.l.b16 %v2581
      %v2710 = vunpack.c.l.b16 %v2582
      %v2711 = vunpack.c.l.b16 %v2583
      %v2712 = vunpack.c.l.b16 %v2584
      %v2713 = vunpack.c.l.b16 %v2585
      %v2714 = vunpack.c.l.b16 %v2586
      %v2715 = vunpack.c.l.b16 %v2587
      %v2716 = vpack.c.b16 %v2701, %v2700
      %v2717 = vpack.c.b16 %v2703, %v2702
      %v2718 = vpack.c.b16 %v2705, %v2704
      %v2719 = vpack.c.b16 %v2707, %v2706
      %v2720 = vpack.c.b16 %v2709, %v2708
      %v2721 = vpack.c.b16 %v2711, %v2710
      %v2722 = vpack.c.b16 %v2713, %v2712
      %v2723 = vpack.c.b16 %v2715, %v2714
      %2732 = vmatprep.subr.bf16.mxu0 0
      %2733 = vmatpush1.bf16.msra.mxu0 %v2723
      %2734 = vmatprep.subr.bf16.mxu0 0
      %2735 = vmatpush1.bf16.msra.mxu0 %v2722
      %2736 = vmatprep.subr.bf16.mxu0 0
      %2737 = vmatpush1.bf16.msra.mxu0 %v2721
      %2738 = vmatprep.subr.bf16.mxu0 0
      %2739 = vmatpush1.bf16.msra.mxu0 %v2720
      %2740 = vmatprep.subr.bf16.mxu0 0
      %2741 = vmatpush1.bf16.msra.mxu0 %v2719
      %2742 = vmatprep.subr.bf16.mxu0 0
      %2743 = vmatpush1.bf16.msra.mxu0 %v2718
      %2744 = vmatprep.subr.bf16.mxu0 0
      %2745 = vmatpush1.bf16.msra.mxu0 %v2717
      %2746 = vmatprep.subr.bf16.mxu0 0
      %2747 = vmatpush1.bf16.msra.mxu0 %v2716
      %2748 = vmatprep.subr.bf16.mxu0 0
      %2749 = vmatpush2.bf16.msra.mxu0 0
      %2750 = vmatprep.subr.bf16.mxu0 0
      %2751 = vmatpush2.bf16.msra.mxu0 0
      %2752 = vmatprep.subr.bf16.mxu0 0
      %2753 = vmatpush2.bf16.msra.mxu0 0
      %2754 = vmatprep.subr.bf16.mxu0 0
      %2755 = vmatpush2.bf16.msra.mxu0 0
      %2756 = vmatprep.subr.bf16.mxu0 0
      %2757 = vmatpush2.bf16.msra.mxu0 0
      %2758 = vmatprep.subr.bf16.mxu0 0
      %2759 = vmatpush2.bf16.msra.mxu0 0
      %2760 = vmatprep.subr.bf16.mxu0 0
      %2761 = vmatpush2.bf16.msra.mxu0 0
      %2762 = vmatprep.subr.bf16.mxu0 0
      %2763 = vmatpush2.bf16.msra.mxu0 0
      %2764 = vmatprep.mubr.bf16.mxu0 0
      %2765 = vmatmul.mubr.bf16.gmra.mxu0 %v2652
      %v2766 = vpop.f32.mrf.mxu0
      %v2767 = vadd.f32 0.0, %v2766
      %v2768 = vpop.f32.mrf.mxu0
      %v2769 = vpop.f32.mrf.mxu0
      %v2770 = vadd.f32 0.0, %v2769
      %v2771 = vpop.f32.mrf.mxu0
      %2772 = vmatprep.mubr.bf16.mxu0 0
      %2773 = vmatmul.mubr.bf16.gmra.mxu0 %v2653
      %v2774 = vpop.f32.mrf.mxu0
      %v2775 = vadd.f32 0.0, %v2774
      %v2776 = vpop.f32.mrf.mxu0
      %v2777 = vpop.f32.mrf.mxu0
      %v2778 = vadd.f32 0.0, %v2777
      %v2779 = vpop.f32.mrf.mxu0
      %2780 = vmatprep.mubr.bf16.mxu0 0
      %2781 = vmatmul.mubr.bf16.gmra.mxu0 %v2654
      %v2782 = vpop.f32.mrf.mxu0
      %v2783 = vadd.f32 0.0, %v2782
      %v2784 = vpop.f32.mrf.mxu0
      %v2785 = vpop.f32.mrf.mxu0
      %v2786 = vadd.f32 0.0, %v2785
      %v2787 = vpop.f32.mrf.mxu0
      %2788 = vmatprep.mubr.bf16.mxu0 0
      %2789 = vmatmul.mubr.bf16.gmra.mxu0 %v2655
      %v2790 = vpop.f32.mrf.mxu0
      %v2791 = vadd.f32 0.0, %v2790
      %v2792 = vpop.f32.mrf.mxu0
      %v2793 = vpop.f32.mrf.mxu0
      %v2794 = vadd.f32 0.0, %v2793
      %v2795 = vpop.f32.mrf.mxu0
      %2796 = vmatprep.mubr.bf16.mxu0 0
      %2797 = vmatmul.mubr.bf16.gmra.mxu0 %v2656
      %v2798 = vpop.f32.mrf.mxu0
      %v2799 = vadd.f32 0.0, %v2798
      %v2800 = vpop.f32.mrf.mxu0
      %v2801 = vpop.f32.mrf.mxu0
      %v2802 = vadd.f32 0.0, %v2801
      %v2803 = vpop.f32.mrf.mxu0
      %2804 = vmatprep.mubr.bf16.mxu0 0
      %2805 = vmatmul.mubr.bf16.gmra.mxu0 %v2657
      %v2806 = vpop.f32.mrf.mxu0
      %v2807 = vadd.f32 0.0, %v2806
      %v2808 = vpop.f32.mrf.mxu0
      %v2809 = vpop.f32.mrf.mxu0
      %v2810 = vadd.f32 0.0, %v2809
      %v2811 = vpop.f32.mrf.mxu0
      %2812 = vmatprep.mubr.bf16.mxu0 0
      %2813 = vmatmul.mubr.bf16.gmra.mxu0 %v2658
      %v2814 = vpop.f32.mrf.mxu0
      %v2815 = vadd.f32 0.0, %v2814
      %v2816 = vpop.f32.mrf.mxu0
      %v2817 = vpop.f32.mrf.mxu0
      %v2818 = vadd.f32 0.0, %v2817
      %v2819 = vpop.f32.mrf.mxu0
      %2820 = vmatprep.mubr.bf16.mxu0 0
      %2821 = vmatmul.mubr.bf16.gmra.mxu0 %v2659
      %v2822 = vpop.f32.mrf.mxu0
      %v2823 = vadd.f32 0.0, %v2822
      %v2824 = vpop.f32.mrf.mxu0
      %v2825 = vpop.f32.mrf.mxu0
      %v2826 = vadd.f32 0.0, %v2825
      %v2827 = vpop.f32.mrf.mxu0
      %2828 = vmatprep.mubr.bf16.mxu0 0
      %2829 = vmatmul.mubr.bf16.gmra.mxu0 %v2660
      %v2830 = vpop.f32.mrf.mxu0
      %v2831 = vadd.f32 0.0, %v2830
      %v2832 = vpop.f32.mrf.mxu0
      %v2833 = vpop.f32.mrf.mxu0
      %v2834 = vadd.f32 0.0, %v2833
      %v2835 = vpop.f32.mrf.mxu0
      %2836 = vmatprep.mubr.bf16.mxu0 0
      %2837 = vmatmul.mubr.bf16.gmra.mxu0 %v2661
      %v2838 = vpop.f32.mrf.mxu0
      %v2839 = vadd.f32 0.0, %v2838
      %v2840 = vpop.f32.mrf.mxu0
      %v2841 = vpop.f32.mrf.mxu0
      %v2842 = vadd.f32 0.0, %v2841
      %v2843 = vpop.f32.mrf.mxu0
      %2844 = vmatprep.mubr.bf16.mxu0 0
      %2845 = vmatmul.mubr.bf16.gmra.mxu0 %v2662
      %v2846 = vpop.f32.mrf.mxu0
      %v2847 = vadd.f32 0.0, %v2846
      %v2848 = vpop.f32.mrf.mxu0
      %v2849 = vpop.f32.mrf.mxu0
      %v2850 = vadd.f32 0.0, %v2849
      %v2851 = vpop.f32.mrf.mxu0
      %2852 = vmatprep.mubr.bf16.mxu0 0
      %2853 = vmatmul.mubr.bf16.gmra.mxu0 %v2663
      %v2854 = vpop.f32.mrf.mxu0
      %v2855 = vadd.f32 0.0, %v2854
      %v2856 = vpop.f32.mrf.mxu0
      %v2857 = vpop.f32.mrf.mxu0
      %v2858 = vadd.f32 0.0, %v2857
      %v2859 = vpop.f32.mrf.mxu0
      %2860 = vmatprep.mubr.bf16.mxu0 0
      %2861 = vmatmul.mubr.bf16.gmra.mxu0 %v2664
      %v2862 = vpop.f32.mrf.mxu0
      %v2863 = vadd.f32 0.0, %v2862
      %v2864 = vpop.f32.mrf.mxu0
      %v2865 = vpop.f32.mrf.mxu0
      %v2866 = vadd.f32 0.0, %v2865
      %v2867 = vpop.f32.mrf.mxu0
      %2868 = vmatprep.mubr.bf16.mxu0 0
      %2869 = vmatmul.mubr.bf16.gmra.mxu0 %v2665
      %v2870 = vpop.f32.mrf.mxu0
      %v2871 = vadd.f32 0.0, %v2870
      %v2872 = vpop.f32.mrf.mxu0
      %v2873 = vpop.f32.mrf.mxu0
      %v2874 = vadd.f32 0.0, %v2873
      %v2875 = vpop.f32.mrf.mxu0
      %2876 = vmatprep.mubr.bf16.mxu0 0
      %2877 = vmatmul.mubr.bf16.gmra.mxu0 %v2666
      %v2878 = vpop.f32.mrf.mxu0
      %v2879 = vadd.f32 0.0, %v2878
      %v2880 = vpop.f32.mrf.mxu0
      %v2881 = vpop.f32.mrf.mxu0
      %v2882 = vadd.f32 0.0, %v2881
      %v2883 = vpop.f32.mrf.mxu0
      %2884 = vmatprep.mubr.bf16.mxu0 0
      %2885 = vmatmul.mubr.bf16.gmra.mxu0 %v2667
      %v2886 = vpop.f32.mrf.mxu0
      %v2887 = vadd.f32 0.0, %v2886
      %v2888 = vpop.f32.mrf.mxu0
      %v2889 = vpop.f32.mrf.mxu0
      %v2890 = vadd.f32 0.0, %v2889
      %v2891 = vpop.f32.mrf.mxu0
      %2892 = vdwg.mxu0
      %v2893 = vadd.f32 %v2503, %v2767
      %v2894 = vadd.f32 %v2504, %v2770
      %v2895 = vadd.f32 %v2505, %v2775
      %v2896 = vadd.f32 %v2506, %v2778
      %v2897 = vadd.f32 %v2507, %v2783
      %v2898 = vadd.f32 %v2508, %v2786
      %v2899 = vadd.f32 %v2509, %v2791
      %v2900 = vadd.f32 %v2510, %v2794
      %v2901 = vadd.f32 %v2511, %v2799
      %v2902 = vadd.f32 %v2512, %v2802
      %v2903 = vadd.f32 %v2513, %v2807
      %v2904 = vadd.f32 %v2514, %v2810
      %v2905 = vadd.f32 %v2515, %v2815
      %v2906 = vadd.f32 %v2516, %v2818
      %v2907 = vadd.f32 %v2517, %v2823
      %v2908 = vadd.f32 %v2518, %v2826
      %v2909 = vadd.f32 %v2519, %v2831
      %v2910 = vadd.f32 %v2520, %v2834
      %v2911 = vadd.f32 %v2521, %v2839
      %v2912 = vadd.f32 %v2522, %v2842
      %v2913 = vadd.f32 %v2523, %v2847
      %v2914 = vadd.f32 %v2524, %v2850
      %v2915 = vadd.f32 %v2525, %v2855
      %v2916 = vadd.f32 %v2526, %v2858
      %v2917 = vadd.f32 %v2527, %v2863
      %v2918 = vadd.f32 %v2528, %v2866
      %v2919 = vadd.f32 %v2529, %v2871
      %v2920 = vadd.f32 %v2530, %v2874
      %v2921 = vadd.f32 %v2531, %v2879
      %v2922 = vadd.f32 %v2532, %v2882
      %v2923 = vadd.f32 %v2533, %v2887
      %v2924 = vadd.f32 %v2534, %v2890
      %v2925 = vld [vmem:[%s2538] sm:$0xf]
      %v2926 = vld [vmem:[%s2538 + $0x4] sm:$0xf]
      %v2927 = vld [vmem:[%s2538 + $0x8] sm:$0x1]
      %v2928 = vld [vmem:[%s2538 + $0xc] sm:$0xf]
      %v2929 = vld [vmem:[%s2538 + $0x10] sm:$0xf]
      %v2930 = vld [vmem:[%s2538 + $0x14] sm:$0x1]
      %v2931 = vld [vmem:[%s2538 + $0x18] sm:$0xf]
      %v2932 = vld [vmem:[%s2538 + $0x1c] sm:$0xf]
      %v2933 = vld [vmem:[%s2538 + $0x20] sm:$0x1]
      %v2934 = vld [vmem:[%s2538 + $0x24] sm:$0xf]
      %v2935 = vld [vmem:[%s2538 + $0x28] sm:$0xf]
      %v2936 = vld [vmem:[%s2538 + $0x2c] sm:$0x1]
      %v2937 = vld [vmem:[%s2538 + $0x30] sm:$0xf]
      %v2938 = vld [vmem:[%s2538 + $0x34] sm:$0xf]
      %v2939 = vld [vmem:[%s2538 + $0x38] sm:$0x1]
      %v2940 = vld [vmem:[%s2538 + $0x3c] sm:$0xf]
      %v2941 = vld [vmem:[%s2538 + $0x40] sm:$0xf]
      %v2942 = vld [vmem:[%s2538 + $0x44] sm:$0x1]
      %v2943 = vld [vmem:[%s2538 + $0x48] sm:$0xf]
      %v2944 = vld [vmem:[%s2538 + $0x4c] sm:$0xf]
      %v2945 = vld [vmem:[%s2538 + $0x50] sm:$0x1]
      %v2946 = vld [vmem:[%s2538 + $0x54] sm:$0xf]
      %v2947 = vld [vmem:[%s2538 + $0x58] sm:$0xf]
      %v2948 = vld [vmem:[%s2538 + $0x5c] sm:$0x1]
      %v2949 = vld [vmem:[%s2538 + $0x60] sm:$0xf]
      %v2950 = vld [vmem:[%s2538 + $0x64] sm:$0xf]
      %v2951 = vld [vmem:[%s2538 + $0x68] sm:$0x1]
      %v2952 = vld [vmem:[%s2538 + $0x6c] sm:$0xf]
      %v2953 = vld [vmem:[%s2538 + $0x70] sm:$0xf]
      %v2954 = vld [vmem:[%s2538 + $0x74] sm:$0x1]
      %v2955 = vld [vmem:[%s2538 + $0x78] sm:$0xf]
      %v2956 = vld [vmem:[%s2538 + $0x7c] sm:$0xf]
      %v2957 = vld [vmem:[%s2538 + $0x80] sm:$0x1]
      %v2958 = vld [vmem:[%s2538 + $0x84] sm:$0xf]
      %v2959 = vld [vmem:[%s2538 + $0x88] sm:$0xf]
      %v2960 = vld [vmem:[%s2538 + $0x8c] sm:$0x1]
      %v2961 = vld [vmem:[%s2538 + $0x90] sm:$0xf]
      %v2962 = vld [vmem:[%s2538 + $0x94] sm:$0xf]
      %v2963 = vld [vmem:[%s2538 + $0x98] sm:$0x1]
      %v2964 = vld [vmem:[%s2538 + $0x9c] sm:$0xf]
      %v2965 = vld [vmem:[%s2538 + $0xa0] sm:$0xf]
      %v2966 = vld [vmem:[%s2538 + $0xa4] sm:$0x1]
      %v2967 = vld [vmem:[%s2538 + $0xa8] sm:$0xf]
      %v2968 = vld [vmem:[%s2538 + $0xac] sm:$0xf]
      %v2969 = vld [vmem:[%s2538 + $0xb0] sm:$0x1]
      %v2970 = vld [vmem:[%s2538 + $0xb4] sm:$0xf]
      %v2971 = vld [vmem:[%s2538 + $0xb8] sm:$0xf]
      %v2972 = vld [vmem:[%s2538 + $0xbc] sm:$0x1]
      %v2974 = vshrl.u32 %v2925, 16
      %v2976 = vrot.slane %v2974, 4
      %v2977 = vshll.u32 %v2925, 16
      %v2979 = vrot.slane %v2977, 5
      %v2980 = vor.u32 %v2976, %v2979
      %v2981 = vrot.slane %v2980, 4
      %v2983 = vshll.u32 %v2926, 16
      %v2985 = vrot.slane %v2983, 5
      %v2986 = vsel %vm1070, %v2981, %v2985
      %v2987 = vshrl.u32 %v2926, 16
      %v2989 = vrot.slane %v2987, 4
      %v2990 = vor.u32 %v2989, %v2985
      %v2991 = vrot.slane %v2990, 4
      %v2993 = vshll.u32 %v2927, 16
      %v2995 = vrot.slane %v2993, 5
      %v2996 = vsel %vm1070, %v2991, %v2995
      %v2998 = vshrl.u32 %v2928, 16
      %v3000 = vrot.slane %v2998, 4
      %v3001 = vshll.u32 %v2928, 16
      %v3003 = vrot.slane %v3001, 5
      %v3004 = vor.u32 %v3000, %v3003
      %v3005 = vrot.slane %v3004, 4
      %v3007 = vshll.u32 %v2929, 16
      %v3009 = vrot.slane %v3007, 5
      %v3010 = vsel %vm1070, %v3005, %v3009
      %v3011 = vshrl.u32 %v2929, 16
      %v3013 = vrot.slane %v3011, 4
      %v3014 = vor.u32 %v3013, %v3009
      %v3015 = vrot.slane %v3014, 4
      %v3017 = vshll.u32 %v2930, 16
      %v3019 = vrot.slane %v3017, 5
      %v3020 = vsel %vm1070, %v3015, %v3019
      %v3022 = vshrl.u32 %v2931, 16
      %v3024 = vrot.slane %v3022, 4
      %v3025 = vshll.u32 %v2931, 16
      %v3027 = vrot.slane %v3025, 5
      %v3028 = vor.u32 %v3024, %v3027
      %v3029 = vrot.slane %v3028, 4
      %v3031 = vshll.u32 %v2932, 16
      %v3033 = vrot.slane %v3031, 5
      %v3034 = vsel %vm1070, %v3029, %v3033
      %v3035 = vshrl.u32 %v2932, 16
      %v3037 = vrot.slane %v3035, 4
      %v3038 = vor.u32 %v3037, %v3033
      %v3039 = vrot.slane %v3038, 4
      %v3041 = vshll.u32 %v2933, 16
      %v3043 = vrot.slane %v3041, 5
      %v3044 = vsel %vm1070, %v3039, %v3043
      %v3046 = vshrl.u32 %v2934, 16
      %v3048 = vrot.slane %v3046, 4
      %v3049 = vshll.u32 %v2934, 16
      %v3051 = vrot.slane %v3049, 5
      %v3052 = vor.u32 %v3048, %v3051
      %v3053 = vrot.slane %v3052, 4
      %v3055 = vshll.u32 %v2935, 16
      %v3057 = vrot.slane %v3055, 5
      %v3058 = vsel %vm1070, %v3053, %v3057
      %v3059 = vshrl.u32 %v2935, 16
      %v3061 = vrot.slane %v3059, 4
      %v3062 = vor.u32 %v3061, %v3057
      %v3063 = vrot.slane %v3062, 4
      %v3065 = vshll.u32 %v2936, 16
      %v3067 = vrot.slane %v3065, 5
      %v3068 = vsel %vm1070, %v3063, %v3067
      %v3070 = vshrl.u32 %v2937, 16
      %v3072 = vrot.slane %v3070, 4
      %v3073 = vshll.u32 %v2937, 16
      %v3075 = vrot.slane %v3073, 5
      %v3076 = vor.u32 %v3072, %v3075
      %v3077 = vrot.slane %v3076, 4
      %v3079 = vshll.u32 %v2938, 16
      %v3081 = vrot.slane %v3079, 5
      %v3082 = vsel %vm1070, %v3077, %v3081
      %v3083 = vshrl.u32 %v2938, 16
      %v3085 = vrot.slane %v3083, 4
      %v3086 = vor.u32 %v3085, %v3081
      %v3087 = vrot.slane %v3086, 4
      %v3089 = vshll.u32 %v2939, 16
      %v3091 = vrot.slane %v3089, 5
      %v3092 = vsel %vm1070, %v3087, %v3091
      %v3094 = vshrl.u32 %v2940, 16
      %v3096 = vrot.slane %v3094, 4
      %v3097 = vshll.u32 %v2940, 16
      %v3099 = vrot.slane %v3097, 5
      %v3100 = vor.u32 %v3096, %v3099
      %v3101 = vrot.slane %v3100, 4
      %v3103 = vshll.u32 %v2941, 16
      %v3105 = vrot.slane %v3103, 5
      %v3106 = vsel %vm1070, %v3101, %v3105
      %v3107 = vshrl.u32 %v2941, 16
      %v3109 = vrot.slane %v3107, 4
      %v3110 = vor.u32 %v3109, %v3105
      %v3111 = vrot.slane %v3110, 4
      %v3113 = vshll.u32 %v2942, 16
      %v3115 = vrot.slane %v3113, 5
      %v3116 = vsel %vm1070, %v3111, %v3115
      %v3118 = vshrl.u32 %v2943, 16
      %v3120 = vrot.slane %v3118, 4
      %v3121 = vshll.u32 %v2943, 16
      %v3123 = vrot.slane %v3121, 5
      %v3124 = vor.u32 %v3120, %v3123
      %v3125 = vrot.slane %v3124, 4
      %v3127 = vshll.u32 %v2944, 16
      %v3129 = vrot.slane %v3127, 5
      %v3130 = vsel %vm1070, %v3125, %v3129
      %v3131 = vshrl.u32 %v2944, 16
      %v3133 = vrot.slane %v3131, 4
      %v3134 = vor.u32 %v3133, %v3129
      %v3135 = vrot.slane %v3134, 4
      %v3137 = vshll.u32 %v2945, 16
      %v3139 = vrot.slane %v3137, 5
      %v3140 = vsel %vm1070, %v3135, %v3139
      %v3142 = vshrl.u32 %v2946, 16
      %v3144 = vrot.slane %v3142, 4
      %v3145 = vshll.u32 %v2946, 16
      %v3147 = vrot.slane %v3145, 5
      %v3148 = vor.u32 %v3144, %v3147
      %v3149 = vrot.slane %v3148, 4
      %v3151 = vshll.u32 %v2947, 16
      %v3153 = vrot.slane %v3151, 5
      %v3154 = vsel %vm1070, %v3149, %v3153
      %v3155 = vshrl.u32 %v2947, 16
      %v3157 = vrot.slane %v3155, 4
      %v3158 = vor.u32 %v3157, %v3153
      %v3159 = vrot.slane %v3158, 4
      %v3161 = vshll.u32 %v2948, 16
      %v3163 = vrot.slane %v3161, 5
      %v3164 = vsel %vm1070, %v3159, %v3163
      %v3166 = vshrl.u32 %v2949, 16
      %v3168 = vrot.slane %v3166, 4
      %v3169 = vshll.u32 %v2949, 16
      %v3171 = vrot.slane %v3169, 5
      %v3172 = vor.u32 %v3168, %v3171
      %v3173 = vrot.slane %v3172, 4
      %v3175 = vshll.u32 %v2950, 16
      %v3177 = vrot.slane %v3175, 5
      %v3178 = vsel %vm1070, %v3173, %v3177
      %v3179 = vshrl.u32 %v2950, 16
      %v3181 = vrot.slane %v3179, 4
      %v3182 = vor.u32 %v3181, %v3177
      %v3183 = vrot.slane %v3182, 4
      %v3185 = vshll.u32 %v2951, 16
      %v3187 = vrot.slane %v3185, 5
      %v3188 = vsel %vm1070, %v3183, %v3187
      %v3190 = vshrl.u32 %v2952, 16
      %v3192 = vrot.slane %v3190, 4
      %v3193 = vshll.u32 %v2952, 16
      %v3195 = vrot.slane %v3193, 5
      %v3196 = vor.u32 %v3192, %v3195
      %v3197 = vrot.slane %v3196, 4
      %v3199 = vshll.u32 %v2953, 16
      %v3201 = vrot.slane %v3199, 5
      %v3202 = vsel %vm1070, %v3197, %v3201
      %v3203 = vshrl.u32 %v2953, 16
      %v3205 = vrot.slane %v3203, 4
      %v3206 = vor.u32 %v3205, %v3201
      %v3207 = vrot.slane %v3206, 4
      %v3209 = vshll.u32 %v2954, 16
      %v3211 = vrot.slane %v3209, 5
      %v3212 = vsel %vm1070, %v3207, %v3211
      %v3214 = vshrl.u32 %v2955, 16
      %v3216 = vrot.slane %v3214, 4
      %v3217 = vshll.u32 %v2955, 16
      %v3219 = vrot.slane %v3217, 5
      %v3220 = vor.u32 %v3216, %v3219
      %v3221 = vrot.slane %v3220, 4
      %v3223 = vshll.u32 %v2956, 16
      %v3225 = vrot.slane %v3223, 5
      %v3226 = vsel %vm1070, %v3221, %v3225
      %v3227 = vshrl.u32 %v2956, 16
      %v3229 = vrot.slane %v3227, 4
      %v3230 = vor.u32 %v3229, %v3225
      %v3231 = vrot.slane %v3230, 4
      %v3233 = vshll.u32 %v2957, 16
      %v3235 = vrot.slane %v3233, 5
      %v3236 = vsel %vm1070, %v3231, %v3235
      %v3238 = vshrl.u32 %v2958, 16
      %v3240 = vrot.slane %v3238, 4
      %v3241 = vshll.u32 %v2958, 16
      %v3243 = vrot.slane %v3241, 5
      %v3244 = vor.u32 %v3240, %v3243
      %v3245 = vrot.slane %v3244, 4
      %v3247 = vshll.u32 %v2959, 16
      %v3249 = vrot.slane %v3247, 5
      %v3250 = vsel %vm1070, %v3245, %v3249
      %v3251 = vshrl.u32 %v2959, 16
      %v3253 = vrot.slane %v3251, 4
      %v3254 = vor.u32 %v3253, %v3249
      %v3255 = vrot.slane %v3254, 4
      %v3257 = vshll.u32 %v2960, 16
      %v3259 = vrot.slane %v3257, 5
      %v3260 = vsel %vm1070, %v3255, %v3259
      %v3262 = vshrl.u32 %v2961, 16
      %v3264 = vrot.slane %v3262, 4
      %v3265 = vshll.u32 %v2961, 16
      %v3267 = vrot.slane %v3265, 5
      %v3268 = vor.u32 %v3264, %v3267
      %v3269 = vrot.slane %v3268, 4
      %v3271 = vshll.u32 %v2962, 16
      %v3273 = vrot.slane %v3271, 5
      %v3274 = vsel %vm1070, %v3269, %v3273
      %v3275 = vshrl.u32 %v2962, 16
      %v3277 = vrot.slane %v3275, 4
      %v3278 = vor.u32 %v3277, %v3273
      %v3279 = vrot.slane %v3278, 4
      %v3281 = vshll.u32 %v2963, 16
      %v3283 = vrot.slane %v3281, 5
      %v3284 = vsel %vm1070, %v3279, %v3283
      %v3286 = vshrl.u32 %v2964, 16
      %v3288 = vrot.slane %v3286, 4
      %v3289 = vshll.u32 %v2964, 16
      %v3291 = vrot.slane %v3289, 5
      %v3292 = vor.u32 %v3288, %v3291
      %v3293 = vrot.slane %v3292, 4
      %v3295 = vshll.u32 %v2965, 16
      %v3297 = vrot.slane %v3295, 5
      %v3298 = vsel %vm1070, %v3293, %v3297
      %v3299 = vshrl.u32 %v2965, 16
      %v3301 = vrot.slane %v3299, 4
      %v3302 = vor.u32 %v3301, %v3297
      %v3303 = vrot.slane %v3302, 4
      %v3305 = vshll.u32 %v2966, 16
      %v3307 = vrot.slane %v3305, 5
      %v3308 = vsel %vm1070, %v3303, %v3307
      %v3310 = vshrl.u32 %v2967, 16
      %v3312 = vrot.slane %v3310, 4
      %v3313 = vshll.u32 %v2967, 16
      %v3315 = vrot.slane %v3313, 5
      %v3316 = vor.u32 %v3312, %v3315
      %v3317 = vrot.slane %v3316, 4
      %v3319 = vshll.u32 %v2968, 16
      %v3321 = vrot.slane %v3319, 5
      %v3322 = vsel %vm1070, %v3317, %v3321
      %v3323 = vshrl.u32 %v2968, 16
      %v3325 = vrot.slane %v3323, 4
      %v3326 = vor.u32 %v3325, %v3321
      %v3327 = vrot.slane %v3326, 4
      %v3329 = vshll.u32 %v2969, 16
      %v3331 = vrot.slane %v3329, 5
      %v3332 = vsel %vm1070, %v3327, %v3331
      %v3334 = vshrl.u32 %v2970, 16
      %v3336 = vrot.slane %v3334, 4
      %v3337 = vshll.u32 %v2970, 16
      %v3339 = vrot.slane %v3337, 5
      %v3340 = vor.u32 %v3336, %v3339
      %v3341 = vrot.slane %v3340, 4
      %v3343 = vshll.u32 %v2971, 16
      %v3345 = vrot.slane %v3343, 5
      %v3346 = vsel %vm1070, %v3341, %v3345
      %v3347 = vshrl.u32 %v2971, 16
      %v3349 = vrot.slane %v3347, 4
      %v3350 = vor.u32 %v3349, %v3345
      %v3351 = vrot.slane %v3350, 4
      %v3353 = vshll.u32 %v2972, 16
      %v3355 = vrot.slane %v3353, 5
      %v3356 = vsel %vm1070, %v3351, %v3355
      %s3357 = scalar_lea.vmem %s3, 256
      %v3358 = vld [vmem:[%s3357] sm:$0xf]
      %v3359 = vld [vmem:[%s3357 + $0x4] sm:$0xf]
      %v3360 = vld [vmem:[%s3357 + $0x8] sm:$0xf]
      %v3361 = vld [vmem:[%s3357 + $0xc] sm:$0xf]
      %v3362 = vld [vmem:[%s3357 + $0x10] sm:$0xf]
      %v3363 = vld [vmem:[%s3357 + $0x14] sm:$0xf]
      %v3364 = vld [vmem:[%s3357 + $0x18] sm:$0xf]
      %v3365 = vld [vmem:[%s3357 + $0x1c] sm:$0xf]
      %v3366 = vld [vmem:[%s3357 + $0x20] sm:$0xf]
      %v3367 = vld [vmem:[%s3357 + $0x24] sm:$0xf]
      %v3368 = vld [vmem:[%s3357 + $0x28] sm:$0xf]
      %v3369 = vld [vmem:[%s3357 + $0x2c] sm:$0xf]
      %v3370 = vld [vmem:[%s3357 + $0x30] sm:$0xf]
      %v3371 = vld [vmem:[%s3357 + $0x34] sm:$0xf]
      %v3372 = vld [vmem:[%s3357 + $0x38] sm:$0xf]
      %v3373 = vld [vmem:[%s3357 + $0x3c] sm:$0xf]
      %v3374 = vunpack.c.l.b16 %v2986
      %v3375 = vunpack.c.l.b16 %v2996
      %v3376 = vunpack.c.l.b16 %v3010
      %v3377 = vunpack.c.l.b16 %v3020
      %v3378 = vunpack.c.l.b16 %v3034
      %v3379 = vunpack.c.l.b16 %v3044
      %v3380 = vunpack.c.l.b16 %v3058
      %v3381 = vunpack.c.l.b16 %v3068
      %v3382 = vunpack.c.l.b16 %v3082
      %v3383 = vunpack.c.l.b16 %v3092
      %v3384 = vunpack.c.l.b16 %v3106
      %v3385 = vunpack.c.l.b16 %v3116
      %v3386 = vunpack.c.l.b16 %v3130
      %v3387 = vunpack.c.l.b16 %v3140
      %v3388 = vunpack.c.l.b16 %v3154
      %v3389 = vunpack.c.l.b16 %v3164
      %v3390 = vunpack.c.l.b16 %v3178
      %v3391 = vunpack.c.l.b16 %v3188
      %v3392 = vunpack.c.l.b16 %v3202
      %v3393 = vunpack.c.l.b16 %v3212
      %v3394 = vunpack.c.l.b16 %v3226
      %v3395 = vunpack.c.l.b16 %v3236
      %v3396 = vunpack.c.l.b16 %v3250
      %v3397 = vunpack.c.l.b16 %v3260
      %v3398 = vunpack.c.l.b16 %v3274
      %v3399 = vunpack.c.l.b16 %v3284
      %v3400 = vunpack.c.l.b16 %v3298
      %v3401 = vunpack.c.l.b16 %v3308
      %v3402 = vunpack.c.l.b16 %v3322
      %v3403 = vunpack.c.l.b16 %v3332
      %v3404 = vunpack.c.l.b16 %v3346
      %v3405 = vunpack.c.l.b16 %v3356
      %v3406 = vpack.c.b16 %v3375, %v3374
      %v3407 = vpack.c.b16 %v3377, %v3376
      %v3408 = vpack.c.b16 %v3379, %v3378
      %v3409 = vpack.c.b16 %v3381, %v3380
      %v3410 = vpack.c.b16 %v3383, %v3382
      %v3411 = vpack.c.b16 %v3385, %v3384
      %v3412 = vpack.c.b16 %v3387, %v3386
      %v3413 = vpack.c.b16 %v3389, %v3388
      %v3414 = vpack.c.b16 %v3391, %v3390
      %v3415 = vpack.c.b16 %v3393, %v3392
      %v3416 = vpack.c.b16 %v3395, %v3394
      %v3417 = vpack.c.b16 %v3397, %v3396
      %v3418 = vpack.c.b16 %v3399, %v3398
      %v3419 = vpack.c.b16 %v3401, %v3400
      %v3420 = vpack.c.b16 %v3403, %v3402
      %v3421 = vpack.c.b16 %v3405, %v3404
      %v3454 = vunpack.c.l.b16 %v3358
      %v3455 = vunpack.c.l.b16 %v3359
      %v3456 = vunpack.c.l.b16 %v3360
      %v3457 = vunpack.c.l.b16 %v3361
      %v3458 = vunpack.c.l.b16 %v3362
      %v3459 = vunpack.c.l.b16 %v3363
      %v3460 = vunpack.c.l.b16 %v3364
      %v3461 = vunpack.c.l.b16 %v3365
      %v3462 = vunpack.c.l.b16 %v3366
      %v3463 = vunpack.c.l.b16 %v3367
      %v3464 = vunpack.c.l.b16 %v3368
      %v3465 = vunpack.c.l.b16 %v3369
      %v3466 = vunpack.c.l.b16 %v3370
      %v3467 = vunpack.c.l.b16 %v3371
      %v3468 = vunpack.c.l.b16 %v3372
      %v3469 = vunpack.c.l.b16 %v3373
      %v3470 = vpack.c.b16 %v3455, %v3454
      %v3471 = vpack.c.b16 %v3457, %v3456
      %v3472 = vpack.c.b16 %v3459, %v3458
      %v3473 = vpack.c.b16 %v3461, %v3460
      %v3474 = vpack.c.b16 %v3463, %v3462
      %v3475 = vpack.c.b16 %v3465, %v3464
      %v3476 = vpack.c.b16 %v3467, %v3466
      %v3477 = vpack.c.b16 %v3469, %v3468
      %3486 = vmatprep.subr.bf16.mxu0 0
      %3487 = vmatpush1.bf16.msra.mxu0 %v3477
      %3488 = vmatprep.subr.bf16.mxu0 0
      %3489 = vmatpush1.bf16.msra.mxu0 %v3476
      %3490 = vmatprep.subr.bf16.mxu0 0
      %3491 = vmatpush1.bf16.msra.mxu0 %v3475
      %3492 = vmatprep.subr.bf16.mxu0 0
      %3493 = vmatpush1.bf16.msra.mxu0 %v3474
      %3494 = vmatprep.subr.bf16.mxu0 0
      %3495 = vmatpush1.bf16.msra.mxu0 %v3473
      %3496 = vmatprep.subr.bf16.mxu0 0
      %3497 = vmatpush1.bf16.msra.mxu0 %v3472
      %3498 = vmatprep.subr.bf16.mxu0 0
      %3499 = vmatpush1.bf16.msra.mxu0 %v3471
      %3500 = vmatprep.subr.bf16.mxu0 0
      %3501 = vmatpush1.bf16.msra.mxu0 %v3470
      %3502 = vmatprep.subr.bf16.mxu0 0
      %3503 = vmatpush2.bf16.msra.mxu0 0
      %3504 = vmatprep.subr.bf16.mxu0 0
      %3505 = vmatpush2.bf16.msra.mxu0 0
      %3506 = vmatprep.subr.bf16.mxu0 0
      %3507 = vmatpush2.bf16.msra.mxu0 0
      %3508 = vmatprep.subr.bf16.mxu0 0
      %3509 = vmatpush2.bf16.msra.mxu0 0
      %3510 = vmatprep.subr.bf16.mxu0 0
      %3511 = vmatpush2.bf16.msra.mxu0 0
      %3512 = vmatprep.subr.bf16.mxu0 0
      %3513 = vmatpush2.bf16.msra.mxu0 0
      %3514 = vmatprep.subr.bf16.mxu0 0
      %3515 = vmatpush2.bf16.msra.mxu0 0
      %3516 = vmatprep.subr.bf16.mxu0 0
      %3517 = vmatpush2.bf16.msra.mxu0 0
      %3518 = vmatprep.mubr.bf16.mxu0 0
      %3519 = vmatmul.mubr.bf16.gmra.mxu0 %v3406
      %v3520 = vpop.f32.mrf.mxu0
      %v3521 = vadd.f32 0.0, %v3520
      %v3522 = vpop.f32.mrf.mxu0
      %v3523 = vpop.f32.mrf.mxu0
      %v3524 = vadd.f32 0.0, %v3523
      %v3525 = vpop.f32.mrf.mxu0
      %3526 = vmatprep.mubr.bf16.mxu0 0
      %3527 = vmatmul.mubr.bf16.gmra.mxu0 %v3407
      %v3528 = vpop.f32.mrf.mxu0
      %v3529 = vadd.f32 0.0, %v3528
      %v3530 = vpop.f32.mrf.mxu0
      %v3531 = vpop.f32.mrf.mxu0
      %v3532 = vadd.f32 0.0, %v3531
      %v3533 = vpop.f32.mrf.mxu0
      %3534 = vmatprep.mubr.bf16.mxu0 0
      %3535 = vmatmul.mubr.bf16.gmra.mxu0 %v3408
      %v3536 = vpop.f32.mrf.mxu0
      %v3537 = vadd.f32 0.0, %v3536
      %v3538 = vpop.f32.mrf.mxu0
      %v3539 = vpop.f32.mrf.mxu0
      %v3540 = vadd.f32 0.0, %v3539
      %v3541 = vpop.f32.mrf.mxu0
      %3542 = vmatprep.mubr.bf16.mxu0 0
      %3543 = vmatmul.mubr.bf16.gmra.mxu0 %v3409
      %v3544 = vpop.f32.mrf.mxu0
      %v3545 = vadd.f32 0.0, %v3544
      %v3546 = vpop.f32.mrf.mxu0
      %v3547 = vpop.f32.mrf.mxu0
      %v3548 = vadd.f32 0.0, %v3547
      %v3549 = vpop.f32.mrf.mxu0
      %3550 = vmatprep.mubr.bf16.mxu0 0
      %3551 = vmatmul.mubr.bf16.gmra.mxu0 %v3410
      %v3552 = vpop.f32.mrf.mxu0
      %v3553 = vadd.f32 0.0, %v3552
      %v3554 = vpop.f32.mrf.mxu0
      %v3555 = vpop.f32.mrf.mxu0
      %v3556 = vadd.f32 0.0, %v3555
      %v3557 = vpop.f32.mrf.mxu0
      %3558 = vmatprep.mubr.bf16.mxu0 0
      %3559 = vmatmul.mubr.bf16.gmra.mxu0 %v3411
      %v3560 = vpop.f32.mrf.mxu0
      %v3561 = vadd.f32 0.0, %v3560
      %v3562 = vpop.f32.mrf.mxu0
      %v3563 = vpop.f32.mrf.mxu0
      %v3564 = vadd.f32 0.0, %v3563
      %v3565 = vpop.f32.mrf.mxu0
      %3566 = vmatprep.mubr.bf16.mxu0 0
      %3567 = vmatmul.mubr.bf16.gmra.mxu0 %v3412
      %v3568 = vpop.f32.mrf.mxu0
      %v3569 = vadd.f32 0.0, %v3568
      %v3570 = vpop.f32.mrf.mxu0
      %v3571 = vpop.f32.mrf.mxu0
      %v3572 = vadd.f32 0.0, %v3571
      %v3573 = vpop.f32.mrf.mxu0
      %3574 = vmatprep.mubr.bf16.mxu0 0
      %3575 = vmatmul.mubr.bf16.gmra.mxu0 %v3413
      %v3576 = vpop.f32.mrf.mxu0
      %v3577 = vadd.f32 0.0, %v3576
      %v3578 = vpop.f32.mrf.mxu0
      %v3579 = vpop.f32.mrf.mxu0
      %v3580 = vadd.f32 0.0, %v3579
      %v3581 = vpop.f32.mrf.mxu0
      %3582 = vmatprep.mubr.bf16.mxu0 0
      %3583 = vmatmul.mubr.bf16.gmra.mxu0 %v3414
      %v3584 = vpop.f32.mrf.mxu0
      %v3585 = vadd.f32 0.0, %v3584
      %v3586 = vpop.f32.mrf.mxu0
      %v3587 = vpop.f32.mrf.mxu0
      %v3588 = vadd.f32 0.0, %v3587
      %v3589 = vpop.f32.mrf.mxu0
      %3590 = vmatprep.mubr.bf16.mxu0 0
      %3591 = vmatmul.mubr.bf16.gmra.mxu0 %v3415
      %v3592 = vpop.f32.mrf.mxu0
      %v3593 = vadd.f32 0.0, %v3592
      %v3594 = vpop.f32.mrf.mxu0
      %v3595 = vpop.f32.mrf.mxu0
      %v3596 = vadd.f32 0.0, %v3595
      %v3597 = vpop.f32.mrf.mxu0
      %3598 = vmatprep.mubr.bf16.mxu0 0
      %3599 = vmatmul.mubr.bf16.gmra.mxu0 %v3416
      %v3600 = vpop.f32.mrf.mxu0
      %v3601 = vadd.f32 0.0, %v3600
      %v3602 = vpop.f32.mrf.mxu0
      %v3603 = vpop.f32.mrf.mxu0
      %v3604 = vadd.f32 0.0, %v3603
      %v3605 = vpop.f32.mrf.mxu0
      %3606 = vmatprep.mubr.bf16.mxu0 0
      %3607 = vmatmul.mubr.bf16.gmra.mxu0 %v3417
      %v3608 = vpop.f32.mrf.mxu0
      %v3609 = vadd.f32 0.0, %v3608
      %v3610 = vpop.f32.mrf.mxu0
      %v3611 = vpop.f32.mrf.mxu0
      %v3612 = vadd.f32 0.0, %v3611
      %v3613 = vpop.f32.mrf.mxu0
      %3614 = vmatprep.mubr.bf16.mxu0 0
      %3615 = vmatmul.mubr.bf16.gmra.mxu0 %v3418
      %v3616 = vpop.f32.mrf.mxu0
      %v3617 = vadd.f32 0.0, %v3616
      %v3618 = vpop.f32.mrf.mxu0
      %v3619 = vpop.f32.mrf.mxu0
      %v3620 = vadd.f32 0.0, %v3619
      %v3621 = vpop.f32.mrf.mxu0
      %3622 = vmatprep.mubr.bf16.mxu0 0
      %3623 = vmatmul.mubr.bf16.gmra.mxu0 %v3419
      %v3624 = vpop.f32.mrf.mxu0
      %v3625 = vadd.f32 0.0, %v3624
      %v3626 = vpop.f32.mrf.mxu0
      %v3627 = vpop.f32.mrf.mxu0
      %v3628 = vadd.f32 0.0, %v3627
      %v3629 = vpop.f32.mrf.mxu0
      %3630 = vmatprep.mubr.bf16.mxu0 0
      %3631 = vmatmul.mubr.bf16.gmra.mxu0 %v3420
      %v3632 = vpop.f32.mrf.mxu0
      %v3633 = vadd.f32 0.0, %v3632
      %v3634 = vpop.f32.mrf.mxu0
      %v3635 = vpop.f32.mrf.mxu0
      %v3636 = vadd.f32 0.0, %v3635
      %v3637 = vpop.f32.mrf.mxu0
      %3638 = vmatprep.mubr.bf16.mxu0 0
      %3639 = vmatmul.mubr.bf16.gmra.mxu0 %v3421
      %v3640 = vpop.f32.mrf.mxu0
      %v3641 = vadd.f32 0.0, %v3640
      %v3642 = vpop.f32.mrf.mxu0
      %v3643 = vpop.f32.mrf.mxu0
      %v3644 = vadd.f32 0.0, %v3643
      %v3645 = vpop.f32.mrf.mxu0
      %3646 = vdwg.mxu0
      %v3647 = vadd.f32 %v2893, %v3521
      %v3648 = vadd.f32 %v2894, %v3524
      %v3649 = vadd.f32 %v2895, %v3529
      %v3650 = vadd.f32 %v2896, %v3532
      %v3651 = vadd.f32 %v2897, %v3537
      %v3652 = vadd.f32 %v2898, %v3540
      %v3653 = vadd.f32 %v2899, %v3545
      %v3654 = vadd.f32 %v2900, %v3548
      %v3655 = vadd.f32 %v2901, %v3553
      %v3656 = vadd.f32 %v2902, %v3556
      %v3657 = vadd.f32 %v2903, %v3561
      %v3658 = vadd.f32 %v2904, %v3564
      %v3659 = vadd.f32 %v2905, %v3569
      %v3660 = vadd.f32 %v2906, %v3572
      %v3661 = vadd.f32 %v2907, %v3577
      %v3662 = vadd.f32 %v2908, %v3580
      %v3663 = vadd.f32 %v2909, %v3585
      %v3664 = vadd.f32 %v2910, %v3588
      %v3665 = vadd.f32 %v2911, %v3593
      %v3666 = vadd.f32 %v2912, %v3596
      %v3667 = vadd.f32 %v2913, %v3601
      %v3668 = vadd.f32 %v2914, %v3604
      %v3669 = vadd.f32 %v2915, %v3609
      %v3670 = vadd.f32 %v2916, %v3612
      %v3671 = vadd.f32 %v2917, %v3617
      %v3672 = vadd.f32 %v2918, %v3620
      %v3673 = vadd.f32 %v2919, %v3625
      %v3674 = vadd.f32 %v2920, %v3628
      %v3675 = vadd.f32 %v2921, %v3633
      %v3676 = vadd.f32 %v2922, %v3636
      %v3677 = vadd.f32 %v2923, %v3641
      %v3678 = vadd.f32 %v2924, %v3644
      %v3679 = vld [vmem:[%s2538] sm:$0xe]
      %v3680 = vld [vmem:[%s2538 + $0xc] sm:$0xe]
      %v3681 = vld [vmem:[%s2538 + $0x18] sm:$0xe]
      %v3682 = vld [vmem:[%s2538 + $0x24] sm:$0xe]
      %v3683 = vld [vmem:[%s2538 + $0x30] sm:$0xe]
      %v3684 = vld [vmem:[%s2538 + $0x3c] sm:$0xe]
      %v3685 = vld [vmem:[%s2538 + $0x48] sm:$0xe]
      %v3686 = vld [vmem:[%s2538 + $0x54] sm:$0xe]
      %v3687 = vld [vmem:[%s2538 + $0x60] sm:$0xe]
      %v3688 = vld [vmem:[%s2538 + $0x6c] sm:$0xe]
      %v3689 = vld [vmem:[%s2538 + $0x78] sm:$0xe]
      %v3690 = vld [vmem:[%s2538 + $0x84] sm:$0xe]
      %v3691 = vld [vmem:[%s2538 + $0x90] sm:$0xe]
      %v3692 = vld [vmem:[%s2538 + $0x9c] sm:$0xe]
      %v3693 = vld [vmem:[%s2538 + $0xa8] sm:$0xe]
      %v3694 = vld [vmem:[%s2538 + $0xb4] sm:$0xe]
      %v3743 = vrot.slane %v3679, 5
      %v3744 = vrot.slane %v3743, 4
      %v3745 = vrot.slane %v2926, 5
      %v3746 = vsel %vm2100, %v3744, %v3745
      %v3747 = vrot.slane %v3745, 4
      %v3748 = vrot.slane %v2927, 5
      %v3749 = vsel %vm2100, %v3747, %v3748
      %v3750 = vrot.slane %v3680, 5
      %v3751 = vrot.slane %v3750, 4
      %v3752 = vrot.slane %v2929, 5
      %v3753 = vsel %vm2100, %v3751, %v3752
      %v3754 = vrot.slane %v3752, 4
      %v3755 = vrot.slane %v2930, 5
      %v3756 = vsel %vm2100, %v3754, %v3755
      %v3757 = vrot.slane %v3681, 5
      %v3758 = vrot.slane %v3757, 4
      %v3759 = vrot.slane %v2932, 5
      %v3760 = vsel %vm2100, %v3758, %v3759
      %v3761 = vrot.slane %v3759, 4
      %v3762 = vrot.slane %v2933, 5
      %v3763 = vsel %vm2100, %v3761, %v3762
      %v3764 = vrot.slane %v3682, 5
      %v3765 = vrot.slane %v3764, 4
      %v3766 = vrot.slane %v2935, 5
      %v3767 = vsel %vm2100, %v3765, %v3766
      %v3768 = vrot.slane %v3766, 4
      %v3769 = vrot.slane %v2936, 5
      %v3770 = vsel %vm2100, %v3768, %v3769
      %v3771 = vrot.slane %v3683, 5
      %v3772 = vrot.slane %v3771, 4
      %v3773 = vrot.slane %v2938, 5
      %v3774 = vsel %vm2100, %v3772, %v3773
      %v3775 = vrot.slane %v3773, 4
      %v3776 = vrot.slane %v2939, 5
      %v3777 = vsel %vm2100, %v3775, %v3776
      %v3778 = vrot.slane %v3684, 5
      %v3779 = vrot.slane %v3778, 4
      %v3780 = vrot.slane %v2941, 5
      %v3781 = vsel %vm2100, %v3779, %v3780
      %v3782 = vrot.slane %v3780, 4
      %v3783 = vrot.slane %v2942, 5
      %v3784 = vsel %vm2100, %v3782, %v3783
      %v3785 = vrot.slane %v3685, 5
      %v3786 = vrot.slane %v3785, 4
      %v3787 = vrot.slane %v2944, 5
      %v3788 = vsel %vm2100, %v3786, %v3787
      %v3789 = vrot.slane %v3787, 4
      %v3790 = vrot.slane %v2945, 5
      %v3791 = vsel %vm2100, %v3789, %v3790
      %v3792 = vrot.slane %v3686, 5
      %v3793 = vrot.slane %v3792, 4
      %v3794 = vrot.slane %v2947, 5
      %v3795 = vsel %vm2100, %v3793, %v3794
      %v3796 = vrot.slane %v3794, 4
      %v3797 = vrot.slane %v2948, 5
      %v3798 = vsel %vm2100, %v3796, %v3797
      %v3799 = vrot.slane %v3687, 5
      %v3800 = vrot.slane %v3799, 4
      %v3801 = vrot.slane %v2950, 5
      %v3802 = vsel %vm2100, %v3800, %v3801
      %v3803 = vrot.slane %v3801, 4
      %v3804 = vrot.slane %v2951, 5
      %v3805 = vsel %vm2100, %v3803, %v3804
      %v3806 = vrot.slane %v3688, 5
      %v3807 = vrot.slane %v3806, 4
      %v3808 = vrot.slane %v2953, 5
      %v3809 = vsel %vm2100, %v3807, %v3808
      %v3810 = vrot.slane %v3808, 4
      %v3811 = vrot.slane %v2954, 5
      %v3812 = vsel %vm2100, %v3810, %v3811
      %v3813 = vrot.slane %v3689, 5
      %v3814 = vrot.slane %v3813, 4
      %v3815 = vrot.slane %v2956, 5
      %v3816 = vsel %vm2100, %v3814, %v3815
      %v3817 = vrot.slane %v3815, 4
      %v3818 = vrot.slane %v2957, 5
      %v3819 = vsel %vm2100, %v3817, %v3818
      %v3820 = vrot.slane %v3690, 5
      %v3821 = vrot.slane %v3820, 4
      %v3822 = vrot.slane %v2959, 5
      %v3823 = vsel %vm2100, %v3821, %v3822
      %v3824 = vrot.slane %v3822, 4
      %v3825 = vrot.slane %v2960, 5
      %v3826 = vsel %vm2100, %v3824, %v3825
      %v3827 = vrot.slane %v3691, 5
      %v3828 = vrot.slane %v3827, 4
      %v3829 = vrot.slane %v2962, 5
      %v3830 = vsel %vm2100, %v3828, %v3829
      %v3831 = vrot.slane %v3829, 4
      %v3832 = vrot.slane %v2963, 5
      %v3833 = vsel %vm2100, %v3831, %v3832
      %v3834 = vrot.slane %v3692, 5
      %v3835 = vrot.slane %v3834, 4
      %v3836 = vrot.slane %v2965, 5
      %v3837 = vsel %vm2100, %v3835, %v3836
      %v3838 = vrot.slane %v3836, 4
      %v3839 = vrot.slane %v2966, 5
      %v3840 = vsel %vm2100, %v3838, %v3839
      %v3841 = vrot.slane %v3693, 5
      %v3842 = vrot.slane %v3841, 4
      %v3843 = vrot.slane %v2968, 5
      %v3844 = vsel %vm2100, %v3842, %v3843
      %v3845 = vrot.slane %v3843, 4
      %v3846 = vrot.slane %v2969, 5
      %v3847 = vsel %vm2100, %v3845, %v3846
      %v3848 = vrot.slane %v3694, 5
      %v3849 = vrot.slane %v3848, 4
      %v3850 = vrot.slane %v2971, 5
      %v3851 = vsel %vm2100, %v3849, %v3850
      %v3852 = vrot.slane %v3850, 4
      %v3853 = vrot.slane %v2972, 5
      %v3854 = vsel %vm2100, %v3852, %v3853
      %s3855 = scalar_lea.vmem %s3, 320
      %v3856 = vld [vmem:[%s3855] sm:$0xf]
      %v3857 = vld [vmem:[%s3855 + $0x4] sm:$0xf]
      %v3858 = vld [vmem:[%s3855 + $0x8] sm:$0xf]
      %v3859 = vld [vmem:[%s3855 + $0xc] sm:$0xf]
      %v3860 = vld [vmem:[%s3855 + $0x10] sm:$0xf]
      %v3861 = vld [vmem:[%s3855 + $0x14] sm:$0xf]
      %v3862 = vld [vmem:[%s3855 + $0x18] sm:$0xf]
      %v3863 = vld [vmem:[%s3855 + $0x1c] sm:$0xf]
      %v3864 = vld [vmem:[%s3855 + $0x20] sm:$0xf]
      %v3865 = vld [vmem:[%s3855 + $0x24] sm:$0xf]
      %v3866 = vld [vmem:[%s3855 + $0x28] sm:$0xf]
      %v3867 = vld [vmem:[%s3855 + $0x2c] sm:$0xf]
      %v3868 = vld [vmem:[%s3855 + $0x30] sm:$0xf]
      %v3869 = vld [vmem:[%s3855 + $0x34] sm:$0xf]
      %v3870 = vld [vmem:[%s3855 + $0x38] sm:$0xf]
      %v3871 = vld [vmem:[%s3855 + $0x3c] sm:$0xf]
      %v3872 = vunpack.c.l.b16 %v3746
      %v3873 = vunpack.c.l.b16 %v3749
      %v3874 = vunpack.c.l.b16 %v3753
      %v3875 = vunpack.c.l.b16 %v3756
      %v3876 = vunpack.c.l.b16 %v3760
      %v3877 = vunpack.c.l.b16 %v3763
      %v3878 = vunpack.c.l.b16 %v3767
      %v3879 = vunpack.c.l.b16 %v3770
      %v3880 = vunpack.c.l.b16 %v3774
      %v3881 = vunpack.c.l.b16 %v3777
      %v3882 = vunpack.c.l.b16 %v3781
      %v3883 = vunpack.c.l.b16 %v3784
      %v3884 = vunpack.c.l.b16 %v3788
      %v3885 = vunpack.c.l.b16 %v3791
      %v3886 = vunpack.c.l.b16 %v3795
      %v3887 = vunpack.c.l.b16 %v3798
      %v3888 = vunpack.c.l.b16 %v3802
      %v3889 = vunpack.c.l.b16 %v3805
      %v3890 = vunpack.c.l.b16 %v3809
      %v3891 = vunpack.c.l.b16 %v3812
      %v3892 = vunpack.c.l.b16 %v3816
      %v3893 = vunpack.c.l.b16 %v3819
      %v3894 = vunpack.c.l.b16 %v3823
      %v3895 = vunpack.c.l.b16 %v3826
      %v3896 = vunpack.c.l.b16 %v3830
      %v3897 = vunpack.c.l.b16 %v3833
      %v3898 = vunpack.c.l.b16 %v3837
      %v3899 = vunpack.c.l.b16 %v3840
      %v3900 = vunpack.c.l.b16 %v3844
      %v3901 = vunpack.c.l.b16 %v3847
      %v3902 = vunpack.c.l.b16 %v3851
      %v3903 = vunpack.c.l.b16 %v3854
      %v3904 = vpack.c.b16 %v3873, %v3872
      %v3905 = vpack.c.b16 %v3875, %v3874
      %v3906 = vpack.c.b16 %v3877, %v3876
      %v3907 = vpack.c.b16 %v3879, %v3878
      %v3908 = vpack.c.b16 %v3881, %v3880
      %v3909 = vpack.c.b16 %v3883, %v3882
      %v3910 = vpack.c.b16 %v3885, %v3884
      %v3911 = vpack.c.b16 %v3887, %v3886
      %v3912 = vpack.c.b16 %v3889, %v3888
      %v3913 = vpack.c.b16 %v3891, %v3890
      %v3914 = vpack.c.b16 %v3893, %v3892
      %v3915 = vpack.c.b16 %v3895, %v3894
      %v3916 = vpack.c.b16 %v3897, %v3896
      %v3917 = vpack.c.b16 %v3899, %v3898
      %v3918 = vpack.c.b16 %v3901, %v3900
      %v3919 = vpack.c.b16 %v3903, %v3902
      %v3952 = vunpack.c.l.b16 %v3856
      %v3953 = vunpack.c.l.b16 %v3857
      %v3954 = vunpack.c.l.b16 %v3858
      %v3955 = vunpack.c.l.b16 %v3859
      %v3956 = vunpack.c.l.b16 %v3860
      %v3957 = vunpack.c.l.b16 %v3861
      %v3958 = vunpack.c.l.b16 %v3862
      %v3959 = vunpack.c.l.b16 %v3863
      %v3960 = vunpack.c.l.b16 %v3864
      %v3961 = vunpack.c.l.b16 %v3865
      %v3962 = vunpack.c.l.b16 %v3866
      %v3963 = vunpack.c.l.b16 %v3867
      %v3964 = vunpack.c.l.b16 %v3868
      %v3965 = vunpack.c.l.b16 %v3869
      %v3966 = vunpack.c.l.b16 %v3870
      %v3967 = vunpack.c.l.b16 %v3871
      %v3968 = vpack.c.b16 %v3953, %v3952
      %v3969 = vpack.c.b16 %v3955, %v3954
      %v3970 = vpack.c.b16 %v3957, %v3956
      %v3971 = vpack.c.b16 %v3959, %v3958
      %v3972 = vpack.c.b16 %v3961, %v3960
      %v3973 = vpack.c.b16 %v3963, %v3962
      %v3974 = vpack.c.b16 %v3965, %v3964
      %v3975 = vpack.c.b16 %v3967, %v3966
      %3984 = vmatprep.subr.bf16.mxu0 0
      %3985 = vmatpush1.bf16.msra.mxu0 %v3975
      %3986 = vmatprep.subr.bf16.mxu0 0
      %3987 = vmatpush1.bf16.msra.mxu0 %v3974
      %3988 = vmatprep.subr.bf16.mxu0 0
      %3989 = vmatpush1.bf16.msra.mxu0 %v3973
      %3990 = vmatprep.subr.bf16.mxu0 0
      %3991 = vmatpush1.bf16.msra.mxu0 %v3972
      %3992 = vmatprep.subr.bf16.mxu0 0
      %3993 = vmatpush1.bf16.msra.mxu0 %v3971
      %3994 = vmatprep.subr.bf16.mxu0 0
      %3995 = vmatpush1.bf16.msra.mxu0 %v3970
      %3996 = vmatprep.subr.bf16.mxu0 0
      %3997 = vmatpush1.bf16.msra.mxu0 %v3969
      %3998 = vmatprep.subr.bf16.mxu0 0
      %3999 = vmatpush1.bf16.msra.mxu0 %v3968
      %4000 = vmatprep.subr.bf16.mxu0 0
      %4001 = vmatpush2.bf16.msra.mxu0 0
      %4002 = vmatprep.subr.bf16.mxu0 0
      %4003 = vmatpush2.bf16.msra.mxu0 0
      %4004 = vmatprep.subr.bf16.mxu0 0
      %4005 = vmatpush2.bf16.msra.mxu0 0
      %4006 = vmatprep.subr.bf16.mxu0 0
      %4007 = vmatpush2.bf16.msra.mxu0 0
      %4008 = vmatprep.subr.bf16.mxu0 0
      %4009 = vmatpush2.bf16.msra.mxu0 0
      %4010 = vmatprep.subr.bf16.mxu0 0
      %4011 = vmatpush2.bf16.msra.mxu0 0
      %4012 = vmatprep.subr.bf16.mxu0 0
      %4013 = vmatpush2.bf16.msra.mxu0 0
      %4014 = vmatprep.subr.bf16.mxu0 0
      %4015 = vmatpush2.bf16.msra.mxu0 0
      %4016 = vmatprep.mubr.bf16.mxu0 0
      %4017 = vmatmul.mubr.bf16.gmra.mxu0 %v3904
      %v4018 = vpop.f32.mrf.mxu0
      %v4019 = vadd.f32 0.0, %v4018
      %v4020 = vpop.f32.mrf.mxu0
      %v4021 = vpop.f32.mrf.mxu0
      %v4022 = vadd.f32 0.0, %v4021
      %v4023 = vpop.f32.mrf.mxu0
      %4024 = vmatprep.mubr.bf16.mxu0 0
      %4025 = vmatmul.mubr.bf16.gmra.mxu0 %v3905
      %v4026 = vpop.f32.mrf.mxu0
      %v4027 = vadd.f32 0.0, %v4026
      %v4028 = vpop.f32.mrf.mxu0
      %v4029 = vpop.f32.mrf.mxu0
      %v4030 = vadd.f32 0.0, %v4029
      %v4031 = vpop.f32.mrf.mxu0
      %4032 = vmatprep.mubr.bf16.mxu0 0
      %4033 = vmatmul.mubr.bf16.gmra.mxu0 %v3906
      %v4034 = vpop.f32.mrf.mxu0
      %v4035 = vadd.f32 0.0, %v4034
      %v4036 = vpop.f32.mrf.mxu0
      %v4037 = vpop.f32.mrf.mxu0
      %v4038 = vadd.f32 0.0, %v4037
      %v4039 = vpop.f32.mrf.mxu0
      %4040 = vmatprep.mubr.bf16.mxu0 0
      %4041 = vmatmul.mubr.bf16.gmra.mxu0 %v3907
      %v4042 = vpop.f32.mrf.mxu0
      %v4043 = vadd.f32 0.0, %v4042
      %v4044 = vpop.f32.mrf.mxu0
      %v4045 = vpop.f32.mrf.mxu0
      %v4046 = vadd.f32 0.0, %v4045
      %v4047 = vpop.f32.mrf.mxu0
      %4048 = vmatprep.mubr.bf16.mxu0 0
      %4049 = vmatmul.mubr.bf16.gmra.mxu0 %v3908
      %v4050 = vpop.f32.mrf.mxu0
      %v4051 = vadd.f32 0.0, %v4050
      %v4052 = vpop.f32.mrf.mxu0
      %v4053 = vpop.f32.mrf.mxu0
      %v4054 = vadd.f32 0.0, %v4053
      %v4055 = vpop.f32.mrf.mxu0
      %4056 = vmatprep.mubr.bf16.mxu0 0
      %4057 = vmatmul.mubr.bf16.gmra.mxu0 %v3909
      %v4058 = vpop.f32.mrf.mxu0
      %v4059 = vadd.f32 0.0, %v4058
      %v4060 = vpop.f32.mrf.mxu0
      %v4061 = vpop.f32.mrf.mxu0
      %v4062 = vadd.f32 0.0, %v4061
      %v4063 = vpop.f32.mrf.mxu0
      %4064 = vmatprep.mubr.bf16.mxu0 0
      %4065 = vmatmul.mubr.bf16.gmra.mxu0 %v3910
      %v4066 = vpop.f32.mrf.mxu0
      %v4067 = vadd.f32 0.0, %v4066
      %v4068 = vpop.f32.mrf.mxu0
      %v4069 = vpop.f32.mrf.mxu0
      %v4070 = vadd.f32 0.0, %v4069
      %v4071 = vpop.f32.mrf.mxu0
      %4072 = vmatprep.mubr.bf16.mxu0 0
      %4073 = vmatmul.mubr.bf16.gmra.mxu0 %v3911
      %v4074 = vpop.f32.mrf.mxu0
      %v4075 = vadd.f32 0.0, %v4074
      %v4076 = vpop.f32.mrf.mxu0
      %v4077 = vpop.f32.mrf.mxu0
      %v4078 = vadd.f32 0.0, %v4077
      %v4079 = vpop.f32.mrf.mxu0
      %4080 = vmatprep.mubr.bf16.mxu0 0
      %4081 = vmatmul.mubr.bf16.gmra.mxu0 %v3912
      %v4082 = vpop.f32.mrf.mxu0
      %v4083 = vadd.f32 0.0, %v4082
      %v4084 = vpop.f32.mrf.mxu0
      %v4085 = vpop.f32.mrf.mxu0
      %v4086 = vadd.f32 0.0, %v4085
      %v4087 = vpop.f32.mrf.mxu0
      %4088 = vmatprep.mubr.bf16.mxu0 0
      %4089 = vmatmul.mubr.bf16.gmra.mxu0 %v3913
      %v4090 = vpop.f32.mrf.mxu0
      %v4091 = vadd.f32 0.0, %v4090
      %v4092 = vpop.f32.mrf.mxu0
      %v4093 = vpop.f32.mrf.mxu0
      %v4094 = vadd.f32 0.0, %v4093
      %v4095 = vpop.f32.mrf.mxu0
      %4096 = vmatprep.mubr.bf16.mxu0 0
      %4097 = vmatmul.mubr.bf16.gmra.mxu0 %v3914
      %v4098 = vpop.f32.mrf.mxu0
      %v4099 = vadd.f32 0.0, %v4098
      %v4100 = vpop.f32.mrf.mxu0
      %v4101 = vpop.f32.mrf.mxu0
      %v4102 = vadd.f32 0.0, %v4101
      %v4103 = vpop.f32.mrf.mxu0
      %4104 = vmatprep.mubr.bf16.mxu0 0
      %4105 = vmatmul.mubr.bf16.gmra.mxu0 %v3915
      %v4106 = vpop.f32.mrf.mxu0
      %v4107 = vadd.f32 0.0, %v4106
      %v4108 = vpop.f32.mrf.mxu0
      %v4109 = vpop.f32.mrf.mxu0
      %v4110 = vadd.f32 0.0, %v4109
      %v4111 = vpop.f32.mrf.mxu0
      %4112 = vmatprep.mubr.bf16.mxu0 0
      %4113 = vmatmul.mubr.bf16.gmra.mxu0 %v3916
      %v4114 = vpop.f32.mrf.mxu0
      %v4115 = vadd.f32 0.0, %v4114
      %v4116 = vpop.f32.mrf.mxu0
      %v4117 = vpop.f32.mrf.mxu0
      %v4118 = vadd.f32 0.0, %v4117
      %v4119 = vpop.f32.mrf.mxu0
      %4120 = vmatprep.mubr.bf16.mxu0 0
      %4121 = vmatmul.mubr.bf16.gmra.mxu0 %v3917
      %v4122 = vpop.f32.mrf.mxu0
      %v4123 = vadd.f32 0.0, %v4122
      %v4124 = vpop.f32.mrf.mxu0
      %v4125 = vpop.f32.mrf.mxu0
      %v4126 = vadd.f32 0.0, %v4125
      %v4127 = vpop.f32.mrf.mxu0
      %4128 = vmatprep.mubr.bf16.mxu0 0
      %4129 = vmatmul.mubr.bf16.gmra.mxu0 %v3918
      %v4130 = vpop.f32.mrf.mxu0
      %v4131 = vadd.f32 0.0, %v4130
      %v4132 = vpop.f32.mrf.mxu0
      %v4133 = vpop.f32.mrf.mxu0
      %v4134 = vadd.f32 0.0, %v4133
      %v4135 = vpop.f32.mrf.mxu0
      %4136 = vmatprep.mubr.bf16.mxu0 0
      %4137 = vmatmul.mubr.bf16.gmra.mxu0 %v3919
      %v4138 = vpop.f32.mrf.mxu0
      %v4139 = vadd.f32 0.0, %v4138
      %v4140 = vpop.f32.mrf.mxu0
      %v4141 = vpop.f32.mrf.mxu0
      %v4142 = vadd.f32 0.0, %v4141
      %v4143 = vpop.f32.mrf.mxu0
      %4144 = vdwg.mxu0
      %v4145 = vadd.f32 %v3647, %v4019
      %v4146 = vadd.f32 %v3648, %v4022
      %v4147 = vadd.f32 %v3649, %v4027
      %v4148 = vadd.f32 %v3650, %v4030
      %v4149 = vadd.f32 %v3651, %v4035
      %v4150 = vadd.f32 %v3652, %v4038
      %v4151 = vadd.f32 %v3653, %v4043
      %v4152 = vadd.f32 %v3654, %v4046
      %v4153 = vadd.f32 %v3655, %v4051
      %v4154 = vadd.f32 %v3656, %v4054
      %v4155 = vadd.f32 %v3657, %v4059
      %v4156 = vadd.f32 %v3658, %v4062
      %v4157 = vadd.f32 %v3659, %v4067
      %v4158 = vadd.f32 %v3660, %v4070
      %v4159 = vadd.f32 %v3661, %v4075
      %v4160 = vadd.f32 %v3662, %v4078
      %v4161 = vadd.f32 %v3663, %v4083
      %v4162 = vadd.f32 %v3664, %v4086
      %v4163 = vadd.f32 %v3665, %v4091
      %v4164 = vadd.f32 %v3666, %v4094
      %v4165 = vadd.f32 %v3667, %v4099
      %v4166 = vadd.f32 %v3668, %v4102
      %v4167 = vadd.f32 %v3669, %v4107
      %v4168 = vadd.f32 %v3670, %v4110
      %v4169 = vadd.f32 %v3671, %v4115
      %v4170 = vadd.f32 %v3672, %v4118
      %v4171 = vadd.f32 %v3673, %v4123
      %v4172 = vadd.f32 %v3674, %v4126
      %v4173 = vadd.f32 %v3675, %v4131
      %v4174 = vadd.f32 %v3676, %v4134
      %v4175 = vadd.f32 %v3677, %v4139
      %v4176 = vadd.f32 %v3678, %v4142
      %s4177 = sadd.s32 %s262, 2
      %s4178 = smul.u32 %s4177, 3
      %s4179 = smul.addr %s4178, 4
      %s4180 = scalar_lea.vmem [#allocation2], %s4179
      %v4181 = vld [vmem:[%s4180] sm:$0xf]
      %v4182 = vld [vmem:[%s4180 + $0x4] sm:$0xf]
      %v4183 = vld [vmem:[%s4180 + $0xc] sm:$0xf]
      %v4184 = vld [vmem:[%s4180 + $0x10] sm:$0xf]
      %v4185 = vld [vmem:[%s4180 + $0x18] sm:$0xf]
      %v4186 = vld [vmem:[%s4180 + $0x1c] sm:$0xf]
      %v4187 = vld [vmem:[%s4180 + $0x24] sm:$0xf]
      %v4188 = vld [vmem:[%s4180 + $0x28] sm:$0xf]
      %v4189 = vld [vmem:[%s4180 + $0x30] sm:$0xf]
      %v4190 = vld [vmem:[%s4180 + $0x34] sm:$0xf]
      %v4191 = vld [vmem:[%s4180 + $0x3c] sm:$0xf]
      %v4192 = vld [vmem:[%s4180 + $0x40] sm:$0xf]
      %v4193 = vld [vmem:[%s4180 + $0x48] sm:$0xf]
      %v4194 = vld [vmem:[%s4180 + $0x4c] sm:$0xf]
      %v4195 = vld [vmem:[%s4180 + $0x54] sm:$0xf]
      %v4196 = vld [vmem:[%s4180 + $0x58] sm:$0xf]
      %v4197 = vld [vmem:[%s4180 + $0x60] sm:$0xf]
      %v4198 = vld [vmem:[%s4180 + $0x64] sm:$0xf]
      %v4199 = vld [vmem:[%s4180 + $0x6c] sm:$0xf]
      %v4200 = vld [vmem:[%s4180 + $0x70] sm:$0xf]
      %v4201 = vld [vmem:[%s4180 + $0x78] sm:$0xf]
      %v4202 = vld [vmem:[%s4180 + $0x7c] sm:$0xf]
      %v4203 = vld [vmem:[%s4180 + $0x84] sm:$0xf]
      %v4204 = vld [vmem:[%s4180 + $0x88] sm:$0xf]
      %v4205 = vld [vmem:[%s4180 + $0x90] sm:$0xf]
      %v4206 = vld [vmem:[%s4180 + $0x94] sm:$0xf]
      %v4207 = vld [vmem:[%s4180 + $0x9c] sm:$0xf]
      %v4208 = vld [vmem:[%s4180 + $0xa0] sm:$0xf]
      %v4209 = vld [vmem:[%s4180 + $0xa8] sm:$0xf]
      %v4210 = vld [vmem:[%s4180 + $0xac] sm:$0xf]
      %v4211 = vld [vmem:[%s4180 + $0xb4] sm:$0xf]
      %v4212 = vld [vmem:[%s4180 + $0xb8] sm:$0xf]
      %s4213 = scalar_lea.vmem %s3, 384
      %v4214 = vld [vmem:[%s4213] sm:$0xf]
      %v4215 = vld [vmem:[%s4213 + $0x4] sm:$0xf]
      %v4216 = vld [vmem:[%s4213 + $0x8] sm:$0xf]
      %v4217 = vld [vmem:[%s4213 + $0xc] sm:$0xf]
      %v4218 = vld [vmem:[%s4213 + $0x10] sm:$0xf]
      %v4219 = vld [vmem:[%s4213 + $0x14] sm:$0xf]
      %v4220 = vld [vmem:[%s4213 + $0x18] sm:$0xf]
      %v4221 = vld [vmem:[%s4213 + $0x1c] sm:$0xf]
      %v4222 = vld [vmem:[%s4213 + $0x20] sm:$0xf]
      %v4223 = vld [vmem:[%s4213 + $0x24] sm:$0xf]
      %v4224 = vld [vmem:[%s4213 + $0x28] sm:$0xf]
      %v4225 = vld [vmem:[%s4213 + $0x2c] sm:$0xf]
      %v4226 = vld [vmem:[%s4213 + $0x30] sm:$0xf]
      %v4227 = vld [vmem:[%s4213 + $0x34] sm:$0xf]
      %v4228 = vld [vmem:[%s4213 + $0x38] sm:$0xf]
      %v4229 = vld [vmem:[%s4213 + $0x3c] sm:$0xf]
      %v4262 = vunpack.c.l.b16 %v4181
      %v4263 = vunpack.c.l.b16 %v4182
      %v4264 = vunpack.c.l.b16 %v4183
      %v4265 = vunpack.c.l.b16 %v4184
      %v4266 = vunpack.c.l.b16 %v4185
      %v4267 = vunpack.c.l.b16 %v4186
      %v4268 = vunpack.c.l.b16 %v4187
      %v4269 = vunpack.c.l.b16 %v4188
      %v4270 = vunpack.c.l.b16 %v4189
      %v4271 = vunpack.c.l.b16 %v4190
      %v4272 = vunpack.c.l.b16 %v4191
      %v4273 = vunpack.c.l.b16 %v4192
      %v4274 = vunpack.c.l.b16 %v4193
      %v4275 = vunpack.c.l.b16 %v4194
      %v4276 = vunpack.c.l.b16 %v4195
      %v4277 = vunpack.c.l.b16 %v4196
      %v4278 = vunpack.c.l.b16 %v4197
      %v4279 = vunpack.c.l.b16 %v4198
      %v4280 = vunpack.c.l.b16 %v4199
      %v4281 = vunpack.c.l.b16 %v4200
      %v4282 = vunpack.c.l.b16 %v4201
      %v4283 = vunpack.c.l.b16 %v4202
      %v4284 = vunpack.c.l.b16 %v4203
      %v4285 = vunpack.c.l.b16 %v4204
      %v4286 = vunpack.c.l.b16 %v4205
      %v4287 = vunpack.c.l.b16 %v4206
      %v4288 = vunpack.c.l.b16 %v4207
      %v4289 = vunpack.c.l.b16 %v4208
      %v4290 = vunpack.c.l.b16 %v4209
      %v4291 = vunpack.c.l.b16 %v4210
      %v4292 = vunpack.c.l.b16 %v4211
      %v4293 = vunpack.c.l.b16 %v4212
      %v4294 = vpack.c.b16 %v4263, %v4262
      %v4295 = vpack.c.b16 %v4265, %v4264
      %v4296 = vpack.c.b16 %v4267, %v4266
      %v4297 = vpack.c.b16 %v4269, %v4268
      %v4298 = vpack.c.b16 %v4271, %v4270
      %v4299 = vpack.c.b16 %v4273, %v4272
      %v4300 = vpack.c.b16 %v4275, %v4274
      %v4301 = vpack.c.b16 %v4277, %v4276
      %v4302 = vpack.c.b16 %v4279, %v4278
      %v4303 = vpack.c.b16 %v4281, %v4280
      %v4304 = vpack.c.b16 %v4283, %v4282
      %v4305 = vpack.c.b16 %v4285, %v4284
      %v4306 = vpack.c.b16 %v4287, %v4286
      %v4307 = vpack.c.b16 %v4289, %v4288
      %v4308 = vpack.c.b16 %v4291, %v4290
      %v4309 = vpack.c.b16 %v4293, %v4292
      %v4342 = vunpack.c.l.b16 %v4214
      %v4343 = vunpack.c.l.b16 %v4215
      %v4344 = vunpack.c.l.b16 %v4216
      %v4345 = vunpack.c.l.b16 %v4217
      %v4346 = vunpack.c.l.b16 %v4218
      %v4347 = vunpack.c.l.b16 %v4219
      %v4348 = vunpack.c.l.b16 %v4220
      %v4349 = vunpack.c.l.b16 %v4221
      %v4350 = vunpack.c.l.b16 %v4222
      %v4351 = vunpack.c.l.b16 %v4223
      %v4352 = vunpack.c.l.b16 %v4224
      %v4353 = vunpack.c.l.b16 %v4225
      %v4354 = vunpack.c.l.b16 %v4226
      %v4355 = vunpack.c.l.b16 %v4227
      %v4356 = vunpack.c.l.b16 %v4228
      %v4357 = vunpack.c.l.b16 %v4229
      %v4358 = vpack.c.b16 %v4343, %v4342
      %v4359 = vpack.c.b16 %v4345, %v4344
      %v4360 = vpack.c.b16 %v4347, %v4346
      %v4361 = vpack.c.b16 %v4349, %v4348
      %v4362 = vpack.c.b16 %v4351, %v4350
      %v4363 = vpack.c.b16 %v4353, %v4352
      %v4364 = vpack.c.b16 %v4355, %v4354
      %v4365 = vpack.c.b16 %v4357, %v4356
      %4374 = vmatprep.subr.bf16.mxu0 0
      %4375 = vmatpush1.bf16.msra.mxu0 %v4365
      %4376 = vmatprep.subr.bf16.mxu0 0
      %4377 = vmatpush1.bf16.msra.mxu0 %v4364
      %4378 = vmatprep.subr.bf16.mxu0 0
      %4379 = vmatpush1.bf16.msra.mxu0 %v4363
      %4380 = vmatprep.subr.bf16.mxu0 0
      %4381 = vmatpush1.bf16.msra.mxu0 %v4362
      %4382 = vmatprep.subr.bf16.mxu0 0
      %4383 = vmatpush1.bf16.msra.mxu0 %v4361
      %4384 = vmatprep.subr.bf16.mxu0 0
      %4385 = vmatpush1.bf16.msra.mxu0 %v4360
      %4386 = vmatprep.subr.bf16.mxu0 0
      %4387 = vmatpush1.bf16.msra.mxu0 %v4359
      %4388 = vmatprep.subr.bf16.mxu0 0
      %4389 = vmatpush1.bf16.msra.mxu0 %v4358
      %4390 = vmatprep.subr.bf16.mxu0 0
      %4391 = vmatpush2.bf16.msra.mxu0 0
      %4392 = vmatprep.subr.bf16.mxu0 0
      %4393 = vmatpush2.bf16.msra.mxu0 0
      %4394 = vmatprep.subr.bf16.mxu0 0
      %4395 = vmatpush2.bf16.msra.mxu0 0
      %4396 = vmatprep.subr.bf16.mxu0 0
      %4397 = vmatpush2.bf16.msra.mxu0 0
      %4398 = vmatprep.subr.bf16.mxu0 0
      %4399 = vmatpush2.bf16.msra.mxu0 0
      %4400 = vmatprep.subr.bf16.mxu0 0
      %4401 = vmatpush2.bf16.msra.mxu0 0
      %4402 = vmatprep.subr.bf16.mxu0 0
      %4403 = vmatpush2.bf16.msra.mxu0 0
      %4404 = vmatprep.subr.bf16.mxu0 0
      %4405 = vmatpush2.bf16.msra.mxu0 0
      %4406 = vmatprep.mubr.bf16.mxu0 0
      %4407 = vmatmul.mubr.bf16.gmra.mxu0 %v4294
      %v4408 = vpop.f32.mrf.mxu0
      %v4409 = vadd.f32 0.0, %v4408
      %v4410 = vpop.f32.mrf.mxu0
      %v4411 = vpop.f32.mrf.mxu0
      %v4412 = vadd.f32 0.0, %v4411
      %v4413 = vpop.f32.mrf.mxu0
      %4414 = vmatprep.mubr.bf16.mxu0 0
      %4415 = vmatmul.mubr.bf16.gmra.mxu0 %v4295
      %v4416 = vpop.f32.mrf.mxu0
      %v4417 = vadd.f32 0.0, %v4416
      %v4418 = vpop.f32.mrf.mxu0
      %v4419 = vpop.f32.mrf.mxu0
      %v4420 = vadd.f32 0.0, %v4419
      %v4421 = vpop.f32.mrf.mxu0
      %4422 = vmatprep.mubr.bf16.mxu0 0
      %4423 = vmatmul.mubr.bf16.gmra.mxu0 %v4296
      %v4424 = vpop.f32.mrf.mxu0
      %v4425 = vadd.f32 0.0, %v4424
      %v4426 = vpop.f32.mrf.mxu0
      %v4427 = vpop.f32.mrf.mxu0
      %v4428 = vadd.f32 0.0, %v4427
      %v4429 = vpop.f32.mrf.mxu0
      %4430 = vmatprep.mubr.bf16.mxu0 0
      %4431 = vmatmul.mubr.bf16.gmra.mxu0 %v4297
      %v4432 = vpop.f32.mrf.mxu0
      %v4433 = vadd.f32 0.0, %v4432
      %v4434 = vpop.f32.mrf.mxu0
      %v4435 = vpop.f32.mrf.mxu0
      %v4436 = vadd.f32 0.0, %v4435
      %v4437 = vpop.f32.mrf.mxu0
      %4438 = vmatprep.mubr.bf16.mxu0 0
      %4439 = vmatmul.mubr.bf16.gmra.mxu0 %v4298
      %v4440 = vpop.f32.mrf.mxu0
      %v4441 = vadd.f32 0.0, %v4440
      %v4442 = vpop.f32.mrf.mxu0
      %v4443 = vpop.f32.mrf.mxu0
      %v4444 = vadd.f32 0.0, %v4443
      %v4445 = vpop.f32.mrf.mxu0
      %4446 = vmatprep.mubr.bf16.mxu0 0
      %4447 = vmatmul.mubr.bf16.gmra.mxu0 %v4299
      %v4448 = vpop.f32.mrf.mxu0
      %v4449 = vadd.f32 0.0, %v4448
      %v4450 = vpop.f32.mrf.mxu0
      %v4451 = vpop.f32.mrf.mxu0
      %v4452 = vadd.f32 0.0, %v4451
      %v4453 = vpop.f32.mrf.mxu0
      %4454 = vmatprep.mubr.bf16.mxu0 0
      %4455 = vmatmul.mubr.bf16.gmra.mxu0 %v4300
      %v4456 = vpop.f32.mrf.mxu0
      %v4457 = vadd.f32 0.0, %v4456
      %v4458 = vpop.f32.mrf.mxu0
      %v4459 = vpop.f32.mrf.mxu0
      %v4460 = vadd.f32 0.0, %v4459
      %v4461 = vpop.f32.mrf.mxu0
      %4462 = vmatprep.mubr.bf16.mxu0 0
      %4463 = vmatmul.mubr.bf16.gmra.mxu0 %v4301
      %v4464 = vpop.f32.mrf.mxu0
      %v4465 = vadd.f32 0.0, %v4464
      %v4466 = vpop.f32.mrf.mxu0
      %v4467 = vpop.f32.mrf.mxu0
      %v4468 = vadd.f32 0.0, %v4467
      %v4469 = vpop.f32.mrf.mxu0
      %4470 = vmatprep.mubr.bf16.mxu0 0
      %4471 = vmatmul.mubr.bf16.gmra.mxu0 %v4302
      %v4472 = vpop.f32.mrf.mxu0
      %v4473 = vadd.f32 0.0, %v4472
      %v4474 = vpop.f32.mrf.mxu0
      %v4475 = vpop.f32.mrf.mxu0
      %v4476 = vadd.f32 0.0, %v4475
      %v4477 = vpop.f32.mrf.mxu0
      %4478 = vmatprep.mubr.bf16.mxu0 0
      %4479 = vmatmul.mubr.bf16.gmra.mxu0 %v4303
      %v4480 = vpop.f32.mrf.mxu0
      %v4481 = vadd.f32 0.0, %v4480
      %v4482 = vpop.f32.mrf.mxu0
      %v4483 = vpop.f32.mrf.mxu0
      %v4484 = vadd.f32 0.0, %v4483
      %v4485 = vpop.f32.mrf.mxu0
      %4486 = vmatprep.mubr.bf16.mxu0 0
      %4487 = vmatmul.mubr.bf16.gmra.mxu0 %v4304
      %v4488 = vpop.f32.mrf.mxu0
      %v4489 = vadd.f32 0.0, %v4488
      %v4490 = vpop.f32.mrf.mxu0
      %v4491 = vpop.f32.mrf.mxu0
      %v4492 = vadd.f32 0.0, %v4491
      %v4493 = vpop.f32.mrf.mxu0
      %4494 = vmatprep.mubr.bf16.mxu0 0
      %4495 = vmatmul.mubr.bf16.gmra.mxu0 %v4305
      %v4496 = vpop.f32.mrf.mxu0
      %v4497 = vadd.f32 0.0, %v4496
      %v4498 = vpop.f32.mrf.mxu0
      %v4499 = vpop.f32.mrf.mxu0
      %v4500 = vadd.f32 0.0, %v4499
      %v4501 = vpop.f32.mrf.mxu0
      %4502 = vmatprep.mubr.bf16.mxu0 0
      %4503 = vmatmul.mubr.bf16.gmra.mxu0 %v4306
      %v4504 = vpop.f32.mrf.mxu0
      %v4505 = vadd.f32 0.0, %v4504
      %v4506 = vpop.f32.mrf.mxu0
      %v4507 = vpop.f32.mrf.mxu0
      %v4508 = vadd.f32 0.0, %v4507
      %v4509 = vpop.f32.mrf.mxu0
      %4510 = vmatprep.mubr.bf16.mxu0 0
      %4511 = vmatmul.mubr.bf16.gmra.mxu0 %v4307
      %v4512 = vpop.f32.mrf.mxu0
      %v4513 = vadd.f32 0.0, %v4512
      %v4514 = vpop.f32.mrf.mxu0
      %v4515 = vpop.f32.mrf.mxu0
      %v4516 = vadd.f32 0.0, %v4515
      %v4517 = vpop.f32.mrf.mxu0
      %4518 = vmatprep.mubr.bf16.mxu0 0
      %4519 = vmatmul.mubr.bf16.gmra.mxu0 %v4308
      %v4520 = vpop.f32.mrf.mxu0
      %v4521 = vadd.f32 0.0, %v4520
      %v4522 = vpop.f32.mrf.mxu0
      %v4523 = vpop.f32.mrf.mxu0
      %v4524 = vadd.f32 0.0, %v4523
      %v4525 = vpop.f32.mrf.mxu0
      %4526 = vmatprep.mubr.bf16.mxu0 0
      %4527 = vmatmul.mubr.bf16.gmra.mxu0 %v4309
      %v4528 = vpop.f32.mrf.mxu0
      %v4529 = vadd.f32 0.0, %v4528
      %v4530 = vpop.f32.mrf.mxu0
      %v4531 = vpop.f32.mrf.mxu0
      %v4532 = vadd.f32 0.0, %v4531
      %v4533 = vpop.f32.mrf.mxu0
      %4534 = vdwg.mxu0
      %v4535 = vadd.f32 %v4145, %v4409
      %v4536 = vadd.f32 %v4146, %v4412
      %v4537 = vadd.f32 %v4147, %v4417
      %v4538 = vadd.f32 %v4148, %v4420
      %v4539 = vadd.f32 %v4149, %v4425
      %v4540 = vadd.f32 %v4150, %v4428
      %v4541 = vadd.f32 %v4151, %v4433
      %v4542 = vadd.f32 %v4152, %v4436
      %v4543 = vadd.f32 %v4153, %v4441
      %v4544 = vadd.f32 %v4154, %v4444
      %v4545 = vadd.f32 %v4155, %v4449
      %v4546 = vadd.f32 %v4156, %v4452
      %v4547 = vadd.f32 %v4157, %v4457
      %v4548 = vadd.f32 %v4158, %v4460
      %v4549 = vadd.f32 %v4159, %v4465
      %v4550 = vadd.f32 %v4160, %v4468
      %v4551 = vadd.f32 %v4161, %v4473
      %v4552 = vadd.f32 %v4162, %v4476
      %v4553 = vadd.f32 %v4163, %v4481
      %v4554 = vadd.f32 %v4164, %v4484
      %v4555 = vadd.f32 %v4165, %v4489
      %v4556 = vadd.f32 %v4166, %v4492
      %v4557 = vadd.f32 %v4167, %v4497
      %v4558 = vadd.f32 %v4168, %v4500
      %v4559 = vadd.f32 %v4169, %v4505
      %v4560 = vadd.f32 %v4170, %v4508
      %v4561 = vadd.f32 %v4171, %v4513
      %v4562 = vadd.f32 %v4172, %v4516
      %v4563 = vadd.f32 %v4173, %v4521
      %v4564 = vadd.f32 %v4174, %v4524
      %v4565 = vadd.f32 %v4175, %v4529
      %v4566 = vadd.f32 %v4176, %v4532
      %v4567 = vld [vmem:[%s4180] sm:$0xf]
      %v4568 = vld [vmem:[%s4180 + $0x4] sm:$0xf]
      %v4569 = vld [vmem:[%s4180 + $0x8] sm:$0x1]
      %v4570 = vld [vmem:[%s4180 + $0xc] sm:$0xf]
      %v4571 = vld [vmem:[%s4180 + $0x10] sm:$0xf]
      %v4572 = vld [vmem:[%s4180 + $0x14] sm:$0x1]
      %v4573 = vld [vmem:[%s4180 + $0x18] sm:$0xf]
      %v4574 = vld [vmem:[%s4180 + $0x1c] sm:$0xf]
      %v4575 = vld [vmem:[%s4180 + $0x20] sm:$0x1]
      %v4576 = vld [vmem:[%s4180 + $0x24] sm:$0xf]
      %v4577 = vld [vmem:[%s4180 + $0x28] sm:$0xf]
      %v4578 = vld [vmem:[%s4180 + $0x2c] sm:$0x1]
      %v4579 = vld [vmem:[%s4180 + $0x30] sm:$0xf]
      %v4580 = vld [vmem:[%s4180 + $0x34] sm:$0xf]
      %v4581 = vld [vmem:[%s4180 + $0x38] sm:$0x1]
      %v4582 = vld [vmem:[%s4180 + $0x3c] sm:$0xf]
      %v4583 = vld [vmem:[%s4180 + $0x40] sm:$0xf]
      %v4584 = vld [vmem:[%s4180 + $0x44] sm:$0x1]
      %v4585 = vld [vmem:[%s4180 + $0x48] sm:$0xf]
      %v4586 = vld [vmem:[%s4180 + $0x4c] sm:$0xf]
      %v4587 = vld [vmem:[%s4180 + $0x50] sm:$0x1]
      %v4588 = vld [vmem:[%s4180 + $0x54] sm:$0xf]
      %v4589 = vld [vmem:[%s4180 + $0x58] sm:$0xf]
      %v4590 = vld [vmem:[%s4180 + $0x5c] sm:$0x1]
      %v4591 = vld [vmem:[%s4180 + $0x60] sm:$0xf]
      %v4592 = vld [vmem:[%s4180 + $0x64] sm:$0xf]
      %v4593 = vld [vmem:[%s4180 + $0x68] sm:$0x1]
      %v4594 = vld [vmem:[%s4180 + $0x6c] sm:$0xf]
      %v4595 = vld [vmem:[%s4180 + $0x70] sm:$0xf]
      %v4596 = vld [vmem:[%s4180 + $0x74] sm:$0x1]
      %v4597 = vld [vmem:[%s4180 + $0x78] sm:$0xf]
      %v4598 = vld [vmem:[%s4180 + $0x7c] sm:$0xf]
      %v4599 = vld [vmem:[%s4180 + $0x80] sm:$0x1]
      %v4600 = vld [vmem:[%s4180 + $0x84] sm:$0xf]
      %v4601 = vld [vmem:[%s4180 + $0x88] sm:$0xf]
      %v4602 = vld [vmem:[%s4180 + $0x8c] sm:$0x1]
      %v4603 = vld [vmem:[%s4180 + $0x90] sm:$0xf]
      %v4604 = vld [vmem:[%s4180 + $0x94] sm:$0xf]
      %v4605 = vld [vmem:[%s4180 + $0x98] sm:$0x1]
      %v4606 = vld [vmem:[%s4180 + $0x9c] sm:$0xf]
      %v4607 = vld [vmem:[%s4180 + $0xa0] sm:$0xf]
      %v4608 = vld [vmem:[%s4180 + $0xa4] sm:$0x1]
      %v4609 = vld [vmem:[%s4180 + $0xa8] sm:$0xf]
      %v4610 = vld [vmem:[%s4180 + $0xac] sm:$0xf]
      %v4611 = vld [vmem:[%s4180 + $0xb0] sm:$0x1]
      %v4612 = vld [vmem:[%s4180 + $0xb4] sm:$0xf]
      %v4613 = vld [vmem:[%s4180 + $0xb8] sm:$0xf]
      %v4614 = vld [vmem:[%s4180 + $0xbc] sm:$0x1]
      %v4616 = vshrl.u32 %v4567, 16
      %v4618 = vrot.slane %v4616, 4
      %v4619 = vshll.u32 %v4567, 16
      %v4621 = vrot.slane %v4619, 5
      %v4622 = vor.u32 %v4618, %v4621
      %v4623 = vrot.slane %v4622, 4
      %v4625 = vshll.u32 %v4568, 16
      %v4627 = vrot.slane %v4625, 5
      %v4628 = vsel %vm1070, %v4623, %v4627
      %v4629 = vshrl.u32 %v4568, 16
      %v4631 = vrot.slane %v4629, 4
      %v4632 = vor.u32 %v4631, %v4627
      %v4633 = vrot.slane %v4632, 4
      %v4635 = vshll.u32 %v4569, 16
      %v4637 = vrot.slane %v4635, 5
      %v4638 = vsel %vm1070, %v4633, %v4637
      %v4640 = vshrl.u32 %v4570, 16
      %v4642 = vrot.slane %v4640, 4
      %v4643 = vshll.u32 %v4570, 16
      %v4645 = vrot.slane %v4643, 5
      %v4646 = vor.u32 %v4642, %v4645
      %v4647 = vrot.slane %v4646, 4
      %v4649 = vshll.u32 %v4571, 16
      %v4651 = vrot.slane %v4649, 5
      %v4652 = vsel %vm1070, %v4647, %v4651
      %v4653 = vshrl.u32 %v4571, 16
      %v4655 = vrot.slane %v4653, 4
      %v4656 = vor.u32 %v4655, %v4651
      %v4657 = vrot.slane %v4656, 4
      %v4659 = vshll.u32 %v4572, 16
      %v4661 = vrot.slane %v4659, 5
      %v4662 = vsel %vm1070, %v4657, %v4661
      %v4664 = vshrl.u32 %v4573, 16
      %v4666 = vrot.slane %v4664, 4
      %v4667 = vshll.u32 %v4573, 16
      %v4669 = vrot.slane %v4667, 5
      %v4670 = vor.u32 %v4666, %v4669
      %v4671 = vrot.slane %v4670, 4
      %v4673 = vshll.u32 %v4574, 16
      %v4675 = vrot.slane %v4673, 5
      %v4676 = vsel %vm1070, %v4671, %v4675
      %v4677 = vshrl.u32 %v4574, 16
      %v4679 = vrot.slane %v4677, 4
      %v4680 = vor.u32 %v4679, %v4675
      %v4681 = vrot.slane %v4680, 4
      %v4683 = vshll.u32 %v4575, 16
      %v4685 = vrot.slane %v4683, 5
      %v4686 = vsel %vm1070, %v4681, %v4685
      %v4688 = vshrl.u32 %v4576, 16
      %v4690 = vrot.slane %v4688, 4
      %v4691 = vshll.u32 %v4576, 16
      %v4693 = vrot.slane %v4691, 5
      %v4694 = vor.u32 %v4690, %v4693
      %v4695 = vrot.slane %v4694, 4
      %v4697 = vshll.u32 %v4577, 16
      %v4699 = vrot.slane %v4697, 5
      %v4700 = vsel %vm1070, %v4695, %v4699
      %v4701 = vshrl.u32 %v4577, 16
      %v4703 = vrot.slane %v4701, 4
      %v4704 = vor.u32 %v4703, %v4699
      %v4705 = vrot.slane %v4704, 4
      %v4707 = vshll.u32 %v4578, 16
      %v4709 = vrot.slane %v4707, 5
      %v4710 = vsel %vm1070, %v4705, %v4709
      %v4712 = vshrl.u32 %v4579, 16
      %v4714 = vrot.slane %v4712, 4
      %v4715 = vshll.u32 %v4579, 16
      %v4717 = vrot.slane %v4715, 5
      %v4718 = vor.u32 %v4714, %v4717
      %v4719 = vrot.slane %v4718, 4
      %v4721 = vshll.u32 %v4580, 16
      %v4723 = vrot.slane %v4721, 5
      %v4724 = vsel %vm1070, %v4719, %v4723
      %v4725 = vshrl.u32 %v4580, 16
      %v4727 = vrot.slane %v4725, 4
      %v4728 = vor.u32 %v4727, %v4723
      %v4729 = vrot.slane %v4728, 4
      %v4731 = vshll.u32 %v4581, 16
      %v4733 = vrot.slane %v4731, 5
      %v4734 = vsel %vm1070, %v4729, %v4733
      %v4736 = vshrl.u32 %v4582, 16
      %v4738 = vrot.slane %v4736, 4
      %v4739 = vshll.u32 %v4582, 16
      %v4741 = vrot.slane %v4739, 5
      %v4742 = vor.u32 %v4738, %v4741
      %v4743 = vrot.slane %v4742, 4
      %v4745 = vshll.u32 %v4583, 16
      %v4747 = vrot.slane %v4745, 5
      %v4748 = vsel %vm1070, %v4743, %v4747
      %v4749 = vshrl.u32 %v4583, 16
      %v4751 = vrot.slane %v4749, 4
      %v4752 = vor.u32 %v4751, %v4747
      %v4753 = vrot.slane %v4752, 4
      %v4755 = vshll.u32 %v4584, 16
      %v4757 = vrot.slane %v4755, 5
      %v4758 = vsel %vm1070, %v4753, %v4757
      %v4760 = vshrl.u32 %v4585, 16
      %v4762 = vrot.slane %v4760, 4
      %v4763 = vshll.u32 %v4585, 16
      %v4765 = vrot.slane %v4763, 5
      %v4766 = vor.u32 %v4762, %v4765
      %v4767 = vrot.slane %v4766, 4
      %v4769 = vshll.u32 %v4586, 16
      %v4771 = vrot.slane %v4769, 5
      %v4772 = vsel %vm1070, %v4767, %v4771
      %v4773 = vshrl.u32 %v4586, 16
      %v4775 = vrot.slane %v4773, 4
      %v4776 = vor.u32 %v4775, %v4771
      %v4777 = vrot.slane %v4776, 4
      %v4779 = vshll.u32 %v4587, 16
      %v4781 = vrot.slane %v4779, 5
      %v4782 = vsel %vm1070, %v4777, %v4781
      %v4784 = vshrl.u32 %v4588, 16
      %v4786 = vrot.slane %v4784, 4
      %v4787 = vshll.u32 %v4588, 16
      %v4789 = vrot.slane %v4787, 5
      %v4790 = vor.u32 %v4786, %v4789
      %v4791 = vrot.slane %v4790, 4
      %v4793 = vshll.u32 %v4589, 16
      %v4795 = vrot.slane %v4793, 5
      %v4796 = vsel %vm1070, %v4791, %v4795
      %v4797 = vshrl.u32 %v4589, 16
      %v4799 = vrot.slane %v4797, 4
      %v4800 = vor.u32 %v4799, %v4795
      %v4801 = vrot.slane %v4800, 4
      %v4803 = vshll.u32 %v4590, 16
      %v4805 = vrot.slane %v4803, 5
      %v4806 = vsel %vm1070, %v4801, %v4805
      %v4808 = vshrl.u32 %v4591, 16
      %v4810 = vrot.slane %v4808, 4
      %v4811 = vshll.u32 %v4591, 16
      %v4813 = vrot.slane %v4811, 5
      %v4814 = vor.u32 %v4810, %v4813
      %v4815 = vrot.slane %v4814, 4
      %v4817 = vshll.u32 %v4592, 16
      %v4819 = vrot.slane %v4817, 5
      %v4820 = vsel %vm1070, %v4815, %v4819
      %v4821 = vshrl.u32 %v4592, 16
      %v4823 = vrot.slane %v4821, 4
      %v4824 = vor.u32 %v4823, %v4819
      %v4825 = vrot.slane %v4824, 4
      %v4827 = vshll.u32 %v4593, 16
      %v4829 = vrot.slane %v4827, 5
      %v4830 = vsel %vm1070, %v4825, %v4829
      %v4832 = vshrl.u32 %v4594, 16
      %v4834 = vrot.slane %v4832, 4
      %v4835 = vshll.u32 %v4594, 16
      %v4837 = vrot.slane %v4835, 5
      %v4838 = vor.u32 %v4834, %v4837
      %v4839 = vrot.slane %v4838, 4
      %v4841 = vshll.u32 %v4595, 16
      %v4843 = vrot.slane %v4841, 5
      %v4844 = vsel %vm1070, %v4839, %v4843
      %v4845 = vshrl.u32 %v4595, 16
      %v4847 = vrot.slane %v4845, 4
      %v4848 = vor.u32 %v4847, %v4843
      %v4849 = vrot.slane %v4848, 4
      %v4851 = vshll.u32 %v4596, 16
      %v4853 = vrot.slane %v4851, 5
      %v4854 = vsel %vm1070, %v4849, %v4853
      %v4856 = vshrl.u32 %v4597, 16
      %v4858 = vrot.slane %v4856, 4
      %v4859 = vshll.u32 %v4597, 16
      %v4861 = vrot.slane %v4859, 5
      %v4862 = vor.u32 %v4858, %v4861
      %v4863 = vrot.slane %v4862, 4
      %v4865 = vshll.u32 %v4598, 16
      %v4867 = vrot.slane %v4865, 5
      %v4868 = vsel %vm1070, %v4863, %v4867
      %v4869 = vshrl.u32 %v4598, 16
      %v4871 = vrot.slane %v4869, 4
      %v4872 = vor.u32 %v4871, %v4867
      %v4873 = vrot.slane %v4872, 4
      %v4875 = vshll.u32 %v4599, 16
      %v4877 = vrot.slane %v4875, 5
      %v4878 = vsel %vm1070, %v4873, %v4877
      %v4880 = vshrl.u32 %v4600, 16
      %v4882 = vrot.slane %v4880, 4
      %v4883 = vshll.u32 %v4600, 16
      %v4885 = vrot.slane %v4883, 5
      %v4886 = vor.u32 %v4882, %v4885
      %v4887 = vrot.slane %v4886, 4
      %v4889 = vshll.u32 %v4601, 16
      %v4891 = vrot.slane %v4889, 5
      %v4892 = vsel %vm1070, %v4887, %v4891
      %v4893 = vshrl.u32 %v4601, 16
      %v4895 = vrot.slane %v4893, 4
      %v4896 = vor.u32 %v4895, %v4891
      %v4897 = vrot.slane %v4896, 4
      %v4899 = vshll.u32 %v4602, 16
      %v4901 = vrot.slane %v4899, 5
      %v4902 = vsel %vm1070, %v4897, %v4901
      %v4904 = vshrl.u32 %v4603, 16
      %v4906 = vrot.slane %v4904, 4
      %v4907 = vshll.u32 %v4603, 16
      %v4909 = vrot.slane %v4907, 5
      %v4910 = vor.u32 %v4906, %v4909
      %v4911 = vrot.slane %v4910, 4
      %v4913 = vshll.u32 %v4604, 16
      %v4915 = vrot.slane %v4913, 5
      %v4916 = vsel %vm1070, %v4911, %v4915
      %v4917 = vshrl.u32 %v4604, 16
      %v4919 = vrot.slane %v4917, 4
      %v4920 = vor.u32 %v4919, %v4915
      %v4921 = vrot.slane %v4920, 4
      %v4923 = vshll.u32 %v4605, 16
      %v4925 = vrot.slane %v4923, 5
      %v4926 = vsel %vm1070, %v4921, %v4925
      %v4928 = vshrl.u32 %v4606, 16
      %v4930 = vrot.slane %v4928, 4
      %v4931 = vshll.u32 %v4606, 16
      %v4933 = vrot.slane %v4931, 5
      %v4934 = vor.u32 %v4930, %v4933
      %v4935 = vrot.slane %v4934, 4
      %v4937 = vshll.u32 %v4607, 16
      %v4939 = vrot.slane %v4937, 5
      %v4940 = vsel %vm1070, %v4935, %v4939
      %v4941 = vshrl.u32 %v4607, 16
      %v4943 = vrot.slane %v4941, 4
      %v4944 = vor.u32 %v4943, %v4939
      %v4945 = vrot.slane %v4944, 4
      %v4947 = vshll.u32 %v4608, 16
      %v4949 = vrot.slane %v4947, 5
      %v4950 = vsel %vm1070, %v4945, %v4949
      %v4952 = vshrl.u32 %v4609, 16
      %v4954 = vrot.slane %v4952, 4
      %v4955 = vshll.u32 %v4609, 16
      %v4957 = vrot.slane %v4955, 5
      %v4958 = vor.u32 %v4954, %v4957
      %v4959 = vrot.slane %v4958, 4
      %v4961 = vshll.u32 %v4610, 16
      %v4963 = vrot.slane %v4961, 5
      %v4964 = vsel %vm1070, %v4959, %v4963
      %v4965 = vshrl.u32 %v4610, 16
      %v4967 = vrot.slane %v4965, 4
      %v4968 = vor.u32 %v4967, %v4963
      %v4969 = vrot.slane %v4968, 4
      %v4971 = vshll.u32 %v4611, 16
      %v4973 = vrot.slane %v4971, 5
      %v4974 = vsel %vm1070, %v4969, %v4973
      %v4976 = vshrl.u32 %v4612, 16
      %v4978 = vrot.slane %v4976, 4
      %v4979 = vshll.u32 %v4612, 16
      %v4981 = vrot.slane %v4979, 5
      %v4982 = vor.u32 %v4978, %v4981
      %v4983 = vrot.slane %v4982, 4
      %v4985 = vshll.u32 %v4613, 16
      %v4987 = vrot.slane %v4985, 5
      %v4988 = vsel %vm1070, %v4983, %v4987
      %v4989 = vshrl.u32 %v4613, 16
      %v4991 = vrot.slane %v4989, 4
      %v4992 = vor.u32 %v4991, %v4987
      %v4993 = vrot.slane %v4992, 4
      %v4995 = vshll.u32 %v4614, 16
      %v4997 = vrot.slane %v4995, 5
      %v4998 = vsel %vm1070, %v4993, %v4997
      %s4999 = scalar_lea.vmem %s3, 448
      %v5000 = vld [vmem:[%s4999] sm:$0xf]
      %v5001 = vld [vmem:[%s4999 + $0x4] sm:$0xf]
      %v5002 = vld [vmem:[%s4999 + $0x8] sm:$0xf]
      %v5003 = vld [vmem:[%s4999 + $0xc] sm:$0xf]
      %v5004 = vld [vmem:[%s4999 + $0x10] sm:$0xf]
      %v5005 = vld [vmem:[%s4999 + $0x14] sm:$0xf]
      %v5006 = vld [vmem:[%s4999 + $0x18] sm:$0xf]
      %v5007 = vld [vmem:[%s4999 + $0x1c] sm:$0xf]
      %v5008 = vld [vmem:[%s4999 + $0x20] sm:$0xf]
      %v5009 = vld [vmem:[%s4999 + $0x24] sm:$0xf]
      %v5010 = vld [vmem:[%s4999 + $0x28] sm:$0xf]
      %v5011 = vld [vmem:[%s4999 + $0x2c] sm:$0xf]
      %v5012 = vld [vmem:[%s4999 + $0x30] sm:$0xf]
      %v5013 = vld [vmem:[%s4999 + $0x34] sm:$0xf]
      %v5014 = vld [vmem:[%s4999 + $0x38] sm:$0xf]
      %v5015 = vld [vmem:[%s4999 + $0x3c] sm:$0xf]
      %v5016 = vunpack.c.l.b16 %v4628
      %v5017 = vunpack.c.l.b16 %v4638
      %v5018 = vunpack.c.l.b16 %v4652
      %v5019 = vunpack.c.l.b16 %v4662
      %v5020 = vunpack.c.l.b16 %v4676
      %v5021 = vunpack.c.l.b16 %v4686
      %v5022 = vunpack.c.l.b16 %v4700
      %v5023 = vunpack.c.l.b16 %v4710
      %v5024 = vunpack.c.l.b16 %v4724
      %v5025 = vunpack.c.l.b16 %v4734
      %v5026 = vunpack.c.l.b16 %v4748
      %v5027 = vunpack.c.l.b16 %v4758
      %v5028 = vunpack.c.l.b16 %v4772
      %v5029 = vunpack.c.l.b16 %v4782
      %v5030 = vunpack.c.l.b16 %v4796
      %v5031 = vunpack.c.l.b16 %v4806
      %v5032 = vunpack.c.l.b16 %v4820
      %v5033 = vunpack.c.l.b16 %v4830
      %v5034 = vunpack.c.l.b16 %v4844
      %v5035 = vunpack.c.l.b16 %v4854
      %v5036 = vunpack.c.l.b16 %v4868
      %v5037 = vunpack.c.l.b16 %v4878
      %v5038 = vunpack.c.l.b16 %v4892
      %v5039 = vunpack.c.l.b16 %v4902
      %v5040 = vunpack.c.l.b16 %v4916
      %v5041 = vunpack.c.l.b16 %v4926
      %v5042 = vunpack.c.l.b16 %v4940
      %v5043 = vunpack.c.l.b16 %v4950
      %v5044 = vunpack.c.l.b16 %v4964
      %v5045 = vunpack.c.l.b16 %v4974
      %v5046 = vunpack.c.l.b16 %v4988
      %v5047 = vunpack.c.l.b16 %v4998
      %v5048 = vpack.c.b16 %v5017, %v5016
      %v5049 = vpack.c.b16 %v5019, %v5018
      %v5050 = vpack.c.b16 %v5021, %v5020
      %v5051 = vpack.c.b16 %v5023, %v5022
      %v5052 = vpack.c.b16 %v5025, %v5024
      %v5053 = vpack.c.b16 %v5027, %v5026
      %v5054 = vpack.c.b16 %v5029, %v5028
      %v5055 = vpack.c.b16 %v5031, %v5030
      %v5056 = vpack.c.b16 %v5033, %v5032
      %v5057 = vpack.c.b16 %v5035, %v5034
      %v5058 = vpack.c.b16 %v5037, %v5036
      %v5059 = vpack.c.b16 %v5039, %v5038
      %v5060 = vpack.c.b16 %v5041, %v5040
      %v5061 = vpack.c.b16 %v5043, %v5042
      %v5062 = vpack.c.b16 %v5045, %v5044
      %v5063 = vpack.c.b16 %v5047, %v5046
      %v5096 = vunpack.c.l.b16 %v5000
      %v5097 = vunpack.c.l.b16 %v5001
      %v5098 = vunpack.c.l.b16 %v5002
      %v5099 = vunpack.c.l.b16 %v5003
      %v5100 = vunpack.c.l.b16 %v5004
      %v5101 = vunpack.c.l.b16 %v5005
      %v5102 = vunpack.c.l.b16 %v5006
      %v5103 = vunpack.c.l.b16 %v5007
      %v5104 = vunpack.c.l.b16 %v5008
      %v5105 = vunpack.c.l.b16 %v5009
      %v5106 = vunpack.c.l.b16 %v5010
      %v5107 = vunpack.c.l.b16 %v5011
      %v5108 = vunpack.c.l.b16 %v5012
      %v5109 = vunpack.c.l.b16 %v5013
      %v5110 = vunpack.c.l.b16 %v5014
      %v5111 = vunpack.c.l.b16 %v5015
      %v5112 = vpack.c.b16 %v5097, %v5096
      %v5113 = vpack.c.b16 %v5099, %v5098
      %v5114 = vpack.c.b16 %v5101, %v5100
      %v5115 = vpack.c.b16 %v5103, %v5102
      %v5116 = vpack.c.b16 %v5105, %v5104
      %v5117 = vpack.c.b16 %v5107, %v5106
      %v5118 = vpack.c.b16 %v5109, %v5108
      %v5119 = vpack.c.b16 %v5111, %v5110
      %5128 = vmatprep.subr.bf16.mxu0 0
      %5129 = vmatpush1.bf16.msra.mxu0 %v5119
      %5130 = vmatprep.subr.bf16.mxu0 0
      %5131 = vmatpush1.bf16.msra.mxu0 %v5118
      %5132 = vmatprep.subr.bf16.mxu0 0
      %5133 = vmatpush1.bf16.msra.mxu0 %v5117
      %5134 = vmatprep.subr.bf16.mxu0 0
      %5135 = vmatpush1.bf16.msra.mxu0 %v5116
      %5136 = vmatprep.subr.bf16.mxu0 0
      %5137 = vmatpush1.bf16.msra.mxu0 %v5115
      %5138 = vmatprep.subr.bf16.mxu0 0
      %5139 = vmatpush1.bf16.msra.mxu0 %v5114
      %5140 = vmatprep.subr.bf16.mxu0 0
      %5141 = vmatpush1.bf16.msra.mxu0 %v5113
      %5142 = vmatprep.subr.bf16.mxu0 0
      %5143 = vmatpush1.bf16.msra.mxu0 %v5112
      %5144 = vmatprep.subr.bf16.mxu0 0
      %5145 = vmatpush2.bf16.msra.mxu0 0
      %5146 = vmatprep.subr.bf16.mxu0 0
      %5147 = vmatpush2.bf16.msra.mxu0 0
      %5148 = vmatprep.subr.bf16.mxu0 0
      %5149 = vmatpush2.bf16.msra.mxu0 0
      %5150 = vmatprep.subr.bf16.mxu0 0
      %5151 = vmatpush2.bf16.msra.mxu0 0
      %5152 = vmatprep.subr.bf16.mxu0 0
      %5153 = vmatpush2.bf16.msra.mxu0 0
      %5154 = vmatprep.subr.bf16.mxu0 0
      %5155 = vmatpush2.bf16.msra.mxu0 0
      %5156 = vmatprep.subr.bf16.mxu0 0
      %5157 = vmatpush2.bf16.msra.mxu0 0
      %5158 = vmatprep.subr.bf16.mxu0 0
      %5159 = vmatpush2.bf16.msra.mxu0 0
      %5160 = vmatprep.mubr.bf16.mxu0 0
      %5161 = vmatmul.mubr.bf16.gmra.mxu0 %v5048
      %v5162 = vpop.f32.mrf.mxu0
      %v5163 = vadd.f32 0.0, %v5162
      %v5164 = vpop.f32.mrf.mxu0
      %v5165 = vpop.f32.mrf.mxu0
      %v5166 = vadd.f32 0.0, %v5165
      %v5167 = vpop.f32.mrf.mxu0
      %5168 = vmatprep.mubr.bf16.mxu0 0
      %5169 = vmatmul.mubr.bf16.gmra.mxu0 %v5049
      %v5170 = vpop.f32.mrf.mxu0
      %v5171 = vadd.f32 0.0, %v5170
      %v5172 = vpop.f32.mrf.mxu0
      %v5173 = vpop.f32.mrf.mxu0
      %v5174 = vadd.f32 0.0, %v5173
      %v5175 = vpop.f32.mrf.mxu0
      %5176 = vmatprep.mubr.bf16.mxu0 0
      %5177 = vmatmul.mubr.bf16.gmra.mxu0 %v5050
      %v5178 = vpop.f32.mrf.mxu0
      %v5179 = vadd.f32 0.0, %v5178
      %v5180 = vpop.f32.mrf.mxu0
      %v5181 = vpop.f32.mrf.mxu0
      %v5182 = vadd.f32 0.0, %v5181
      %v5183 = vpop.f32.mrf.mxu0
      %5184 = vmatprep.mubr.bf16.mxu0 0
      %5185 = vmatmul.mubr.bf16.gmra.mxu0 %v5051
      %v5186 = vpop.f32.mrf.mxu0
      %v5187 = vadd.f32 0.0, %v5186
      %v5188 = vpop.f32.mrf.mxu0
      %v5189 = vpop.f32.mrf.mxu0
      %v5190 = vadd.f32 0.0, %v5189
      %v5191 = vpop.f32.mrf.mxu0
      %5192 = vmatprep.mubr.bf16.mxu0 0
      %5193 = vmatmul.mubr.bf16.gmra.mxu0 %v5052
      %v5194 = vpop.f32.mrf.mxu0
      %v5195 = vadd.f32 0.0, %v5194
      %v5196 = vpop.f32.mrf.mxu0
      %v5197 = vpop.f32.mrf.mxu0
      %v5198 = vadd.f32 0.0, %v5197
      %v5199 = vpop.f32.mrf.mxu0
      %5200 = vmatprep.mubr.bf16.mxu0 0
      %5201 = vmatmul.mubr.bf16.gmra.mxu0 %v5053
      %v5202 = vpop.f32.mrf.mxu0
      %v5203 = vadd.f32 0.0, %v5202
      %v5204 = vpop.f32.mrf.mxu0
      %v5205 = vpop.f32.mrf.mxu0
      %v5206 = vadd.f32 0.0, %v5205
      %v5207 = vpop.f32.mrf.mxu0
      %5208 = vmatprep.mubr.bf16.mxu0 0
      %5209 = vmatmul.mubr.bf16.gmra.mxu0 %v5054
      %v5210 = vpop.f32.mrf.mxu0
      %v5211 = vadd.f32 0.0, %v5210
      %v5212 = vpop.f32.mrf.mxu0
      %v5213 = vpop.f32.mrf.mxu0
      %v5214 = vadd.f32 0.0, %v5213
      %v5215 = vpop.f32.mrf.mxu0
      %5216 = vmatprep.mubr.bf16.mxu0 0
      %5217 = vmatmul.mubr.bf16.gmra.mxu0 %v5055
      %v5218 = vpop.f32.mrf.mxu0
      %v5219 = vadd.f32 0.0, %v5218
      %v5220 = vpop.f32.mrf.mxu0
      %v5221 = vpop.f32.mrf.mxu0
      %v5222 = vadd.f32 0.0, %v5221
      %v5223 = vpop.f32.mrf.mxu0
      %5224 = vmatprep.mubr.bf16.mxu0 0
      %5225 = vmatmul.mubr.bf16.gmra.mxu0 %v5056
      %v5226 = vpop.f32.mrf.mxu0
      %v5227 = vadd.f32 0.0, %v5226
      %v5228 = vpop.f32.mrf.mxu0
      %v5229 = vpop.f32.mrf.mxu0
      %v5230 = vadd.f32 0.0, %v5229
      %v5231 = vpop.f32.mrf.mxu0
      %5232 = vmatprep.mubr.bf16.mxu0 0
      %5233 = vmatmul.mubr.bf16.gmra.mxu0 %v5057
      %v5234 = vpop.f32.mrf.mxu0
      %v5235 = vadd.f32 0.0, %v5234
      %v5236 = vpop.f32.mrf.mxu0
      %v5237 = vpop.f32.mrf.mxu0
      %v5238 = vadd.f32 0.0, %v5237
      %v5239 = vpop.f32.mrf.mxu0
      %5240 = vmatprep.mubr.bf16.mxu0 0
      %5241 = vmatmul.mubr.bf16.gmra.mxu0 %v5058
      %v5242 = vpop.f32.mrf.mxu0
      %v5243 = vadd.f32 0.0, %v5242
      %v5244 = vpop.f32.mrf.mxu0
      %v5245 = vpop.f32.mrf.mxu0
      %v5246 = vadd.f32 0.0, %v5245
      %v5247 = vpop.f32.mrf.mxu0
      %5248 = vmatprep.mubr.bf16.mxu0 0
      %5249 = vmatmul.mubr.bf16.gmra.mxu0 %v5059
      %v5250 = vpop.f32.mrf.mxu0
      %v5251 = vadd.f32 0.0, %v5250
      %v5252 = vpop.f32.mrf.mxu0
      %v5253 = vpop.f32.mrf.mxu0
      %v5254 = vadd.f32 0.0, %v5253
      %v5255 = vpop.f32.mrf.mxu0
      %5256 = vmatprep.mubr.bf16.mxu0 0
      %5257 = vmatmul.mubr.bf16.gmra.mxu0 %v5060
      %v5258 = vpop.f32.mrf.mxu0
      %v5259 = vadd.f32 0.0, %v5258
      %v5260 = vpop.f32.mrf.mxu0
      %v5261 = vpop.f32.mrf.mxu0
      %v5262 = vadd.f32 0.0, %v5261
      %v5263 = vpop.f32.mrf.mxu0
      %5264 = vmatprep.mubr.bf16.mxu0 0
      %5265 = vmatmul.mubr.bf16.gmra.mxu0 %v5061
      %v5266 = vpop.f32.mrf.mxu0
      %v5267 = vadd.f32 0.0, %v5266
      %v5268 = vpop.f32.mrf.mxu0
      %v5269 = vpop.f32.mrf.mxu0
      %v5270 = vadd.f32 0.0, %v5269
      %v5271 = vpop.f32.mrf.mxu0
      %5272 = vmatprep.mubr.bf16.mxu0 0
      %5273 = vmatmul.mubr.bf16.gmra.mxu0 %v5062
      %v5274 = vpop.f32.mrf.mxu0
      %v5275 = vadd.f32 0.0, %v5274
      %v5276 = vpop.f32.mrf.mxu0
      %v5277 = vpop.f32.mrf.mxu0
      %v5278 = vadd.f32 0.0, %v5277
      %v5279 = vpop.f32.mrf.mxu0
      %5280 = vmatprep.mubr.bf16.mxu0 0
      %5281 = vmatmul.mubr.bf16.gmra.mxu0 %v5063
      %v5282 = vpop.f32.mrf.mxu0
      %v5283 = vadd.f32 0.0, %v5282
      %v5284 = vpop.f32.mrf.mxu0
      %v5285 = vpop.f32.mrf.mxu0
      %v5286 = vadd.f32 0.0, %v5285
      %v5287 = vpop.f32.mrf.mxu0
      %5288 = vdwg.mxu0
      %v5289 = vadd.f32 %v4535, %v5163
      %v5290 = vadd.f32 %v4536, %v5166
      %v5291 = vadd.f32 %v4537, %v5171
      %v5292 = vadd.f32 %v4538, %v5174
      %v5293 = vadd.f32 %v4539, %v5179
      %v5294 = vadd.f32 %v4540, %v5182
      %v5295 = vadd.f32 %v4541, %v5187
      %v5296 = vadd.f32 %v4542, %v5190
      %v5297 = vadd.f32 %v4543, %v5195
      %v5298 = vadd.f32 %v4544, %v5198
      %v5299 = vadd.f32 %v4545, %v5203
      %v5300 = vadd.f32 %v4546, %v5206
      %v5301 = vadd.f32 %v4547, %v5211
      %v5302 = vadd.f32 %v4548, %v5214
      %v5303 = vadd.f32 %v4549, %v5219
      %v5304 = vadd.f32 %v4550, %v5222
      %v5305 = vadd.f32 %v4551, %v5227
      %v5306 = vadd.f32 %v4552, %v5230
      %v5307 = vadd.f32 %v4553, %v5235
      %v5308 = vadd.f32 %v4554, %v5238
      %v5309 = vadd.f32 %v4555, %v5243
      %v5310 = vadd.f32 %v4556, %v5246
      %v5311 = vadd.f32 %v4557, %v5251
      %v5312 = vadd.f32 %v4558, %v5254
      %v5313 = vadd.f32 %v4559, %v5259
      %v5314 = vadd.f32 %v4560, %v5262
      %v5315 = vadd.f32 %v4561, %v5267
      %v5316 = vadd.f32 %v4562, %v5270
      %v5317 = vadd.f32 %v4563, %v5275
      %v5318 = vadd.f32 %v4564, %v5278
      %v5319 = vadd.f32 %v4565, %v5283
      %v5320 = vadd.f32 %v4566, %v5286
      %v5321 = vld [vmem:[%s4180] sm:$0xe]
      %v5322 = vld [vmem:[%s4180 + $0xc] sm:$0xe]
      %v5323 = vld [vmem:[%s4180 + $0x18] sm:$0xe]
      %v5324 = vld [vmem:[%s4180 + $0x24] sm:$0xe]
      %v5325 = vld [vmem:[%s4180 + $0x30] sm:$0xe]
      %v5326 = vld [vmem:[%s4180 + $0x3c] sm:$0xe]
      %v5327 = vld [vmem:[%s4180 + $0x48] sm:$0xe]
      %v5328 = vld [vmem:[%s4180 + $0x54] sm:$0xe]
      %v5329 = vld [vmem:[%s4180 + $0x60] sm:$0xe]
      %v5330 = vld [vmem:[%s4180 + $0x6c] sm:$0xe]
      %v5331 = vld [vmem:[%s4180 + $0x78] sm:$0xe]
      %v5332 = vld [vmem:[%s4180 + $0x84] sm:$0xe]
      %v5333 = vld [vmem:[%s4180 + $0x90] sm:$0xe]
      %v5334 = vld [vmem:[%s4180 + $0x9c] sm:$0xe]
      %v5335 = vld [vmem:[%s4180 + $0xa8] sm:$0xe]
      %v5336 = vld [vmem:[%s4180 + $0xb4] sm:$0xe]
      %v5385 = vrot.slane %v5321, 5
      %v5386 = vrot.slane %v5385, 4
      %v5387 = vrot.slane %v4568, 5
      %v5388 = vsel %vm2100, %v5386, %v5387
      %v5389 = vrot.slane %v5387, 4
      %v5390 = vrot.slane %v4569, 5
      %v5391 = vsel %vm2100, %v5389, %v5390
      %v5392 = vrot.slane %v5322, 5
      %v5393 = vrot.slane %v5392, 4
      %v5394 = vrot.slane %v4571, 5
      %v5395 = vsel %vm2100, %v5393, %v5394
      %v5396 = vrot.slane %v5394, 4
      %v5397 = vrot.slane %v4572, 5
      %v5398 = vsel %vm2100, %v5396, %v5397
      %v5399 = vrot.slane %v5323, 5
      %v5400 = vrot.slane %v5399, 4
      %v5401 = vrot.slane %v4574, 5
      %v5402 = vsel %vm2100, %v5400, %v5401
      %v5403 = vrot.slane %v5401, 4
      %v5404 = vrot.slane %v4575, 5
      %v5405 = vsel %vm2100, %v5403, %v5404
      %v5406 = vrot.slane %v5324, 5
      %v5407 = vrot.slane %v5406, 4
      %v5408 = vrot.slane %v4577, 5
      %v5409 = vsel %vm2100, %v5407, %v5408
      %v5410 = vrot.slane %v5408, 4
      %v5411 = vrot.slane %v4578, 5
      %v5412 = vsel %vm2100, %v5410, %v5411
      %v5413 = vrot.slane %v5325, 5
      %v5414 = vrot.slane %v5413, 4
      %v5415 = vrot.slane %v4580, 5
      %v5416 = vsel %vm2100, %v5414, %v5415
      %v5417 = vrot.slane %v5415, 4
      %v5418 = vrot.slane %v4581, 5
      %v5419 = vsel %vm2100, %v5417, %v5418
      %v5420 = vrot.slane %v5326, 5
      %v5421 = vrot.slane %v5420, 4
      %v5422 = vrot.slane %v4583, 5
      %v5423 = vsel %vm2100, %v5421, %v5422
      %v5424 = vrot.slane %v5422, 4
      %v5425 = vrot.slane %v4584, 5
      %v5426 = vsel %vm2100, %v5424, %v5425
      %v5427 = vrot.slane %v5327, 5
      %v5428 = vrot.slane %v5427, 4
      %v5429 = vrot.slane %v4586, 5
      %v5430 = vsel %vm2100, %v5428, %v5429
      %v5431 = vrot.slane %v5429, 4
      %v5432 = vrot.slane %v4587, 5
      %v5433 = vsel %vm2100, %v5431, %v5432
      %v5434 = vrot.slane %v5328, 5
      %v5435 = vrot.slane %v5434, 4
      %v5436 = vrot.slane %v4589, 5
      %v5437 = vsel %vm2100, %v5435, %v5436
      %v5438 = vrot.slane %v5436, 4
      %v5439 = vrot.slane %v4590, 5
      %v5440 = vsel %vm2100, %v5438, %v5439
      %v5441 = vrot.slane %v5329, 5
      %v5442 = vrot.slane %v5441, 4
      %v5443 = vrot.slane %v4592, 5
      %v5444 = vsel %vm2100, %v5442, %v5443
      %v5445 = vrot.slane %v5443, 4
      %v5446 = vrot.slane %v4593, 5
      %v5447 = vsel %vm2100, %v5445, %v5446
      %v5448 = vrot.slane %v5330, 5
      %v5449 = vrot.slane %v5448, 4
      %v5450 = vrot.slane %v4595, 5
      %v5451 = vsel %vm2100, %v5449, %v5450
      %v5452 = vrot.slane %v5450, 4
      %v5453 = vrot.slane %v4596, 5
      %v5454 = vsel %vm2100, %v5452, %v5453
      %v5455 = vrot.slane %v5331, 5
      %v5456 = vrot.slane %v5455, 4
      %v5457 = vrot.slane %v4598, 5
      %v5458 = vsel %vm2100, %v5456, %v5457
      %v5459 = vrot.slane %v5457, 4
      %v5460 = vrot.slane %v4599, 5
      %v5461 = vsel %vm2100, %v5459, %v5460
      %v5462 = vrot.slane %v5332, 5
      %v5463 = vrot.slane %v5462, 4
      %v5464 = vrot.slane %v4601, 5
      %v5465 = vsel %vm2100, %v5463, %v5464
      %v5466 = vrot.slane %v5464, 4
      %v5467 = vrot.slane %v4602, 5
      %v5468 = vsel %vm2100, %v5466, %v5467
      %v5469 = vrot.slane %v5333, 5
      %v5470 = vrot.slane %v5469, 4
      %v5471 = vrot.slane %v4604, 5
      %v5472 = vsel %vm2100, %v5470, %v5471
      %v5473 = vrot.slane %v5471, 4
      %v5474 = vrot.slane %v4605, 5
      %v5475 = vsel %vm2100, %v5473, %v5474
      %v5476 = vrot.slane %v5334, 5
      %v5477 = vrot.slane %v5476, 4
      %v5478 = vrot.slane %v4607, 5
      %v5479 = vsel %vm2100, %v5477, %v5478
      %v5480 = vrot.slane %v5478, 4
      %v5481 = vrot.slane %v4608, 5
      %v5482 = vsel %vm2100, %v5480, %v5481
      %v5483 = vrot.slane %v5335, 5
      %v5484 = vrot.slane %v5483, 4
      %v5485 = vrot.slane %v4610, 5
      %v5486 = vsel %vm2100, %v5484, %v5485
      %v5487 = vrot.slane %v5485, 4
      %v5488 = vrot.slane %v4611, 5
      %v5489 = vsel %vm2100, %v5487, %v5488
      %v5490 = vrot.slane %v5336, 5
      %v5491 = vrot.slane %v5490, 4
      %v5492 = vrot.slane %v4613, 5
      %v5493 = vsel %vm2100, %v5491, %v5492
      %v5494 = vrot.slane %v5492, 4
      %v5495 = vrot.slane %v4614, 5
      %v5496 = vsel %vm2100, %v5494, %v5495
      %s5497 = scalar_lea.vmem %s3, 512
      %v5498 = vld [vmem:[%s5497] sm:$0xf]
      %v5499 = vld [vmem:[%s5497 + $0x4] sm:$0xf]
      %v5500 = vld [vmem:[%s5497 + $0x8] sm:$0xf]
      %v5501 = vld [vmem:[%s5497 + $0xc] sm:$0xf]
      %v5502 = vld [vmem:[%s5497 + $0x10] sm:$0xf]
      %v5503 = vld [vmem:[%s5497 + $0x14] sm:$0xf]
      %v5504 = vld [vmem:[%s5497 + $0x18] sm:$0xf]
      %v5505 = vld [vmem:[%s5497 + $0x1c] sm:$0xf]
      %v5506 = vld [vmem:[%s5497 + $0x20] sm:$0xf]
      %v5507 = vld [vmem:[%s5497 + $0x24] sm:$0xf]
      %v5508 = vld [vmem:[%s5497 + $0x28] sm:$0xf]
      %v5509 = vld [vmem:[%s5497 + $0x2c] sm:$0xf]
      %v5510 = vld [vmem:[%s5497 + $0x30] sm:$0xf]
      %v5511 = vld [vmem:[%s5497 + $0x34] sm:$0xf]
      %v5512 = vld [vmem:[%s5497 + $0x38] sm:$0xf]
      %v5513 = vld [vmem:[%s5497 + $0x3c] sm:$0xf]
      %v5514 = vunpack.c.l.b16 %v5388
      %v5515 = vunpack.c.l.b16 %v5391
      %v5516 = vunpack.c.l.b16 %v5395
      %v5517 = vunpack.c.l.b16 %v5398
      %v5518 = vunpack.c.l.b16 %v5402
      %v5519 = vunpack.c.l.b16 %v5405
      %v5520 = vunpack.c.l.b16 %v5409
      %v5521 = vunpack.c.l.b16 %v5412
      %v5522 = vunpack.c.l.b16 %v5416
      %v5523 = vunpack.c.l.b16 %v5419
      %v5524 = vunpack.c.l.b16 %v5423
      %v5525 = vunpack.c.l.b16 %v5426
      %v5526 = vunpack.c.l.b16 %v5430
      %v5527 = vunpack.c.l.b16 %v5433
      %v5528 = vunpack.c.l.b16 %v5437
      %v5529 = vunpack.c.l.b16 %v5440
      %v5530 = vunpack.c.l.b16 %v5444
      %v5531 = vunpack.c.l.b16 %v5447
      %v5532 = vunpack.c.l.b16 %v5451
      %v5533 = vunpack.c.l.b16 %v5454
      %v5534 = vunpack.c.l.b16 %v5458
      %v5535 = vunpack.c.l.b16 %v5461
      %v5536 = vunpack.c.l.b16 %v5465
      %v5537 = vunpack.c.l.b16 %v5468
      %v5538 = vunpack.c.l.b16 %v5472
      %v5539 = vunpack.c.l.b16 %v5475
      %v5540 = vunpack.c.l.b16 %v5479
      %v5541 = vunpack.c.l.b16 %v5482
      %v5542 = vunpack.c.l.b16 %v5486
      %v5543 = vunpack.c.l.b16 %v5489
      %v5544 = vunpack.c.l.b16 %v5493
      %v5545 = vunpack.c.l.b16 %v5496
      %v5546 = vpack.c.b16 %v5515, %v5514
      %v5547 = vpack.c.b16 %v5517, %v5516
      %v5548 = vpack.c.b16 %v5519, %v5518
      %v5549 = vpack.c.b16 %v5521, %v5520
      %v5550 = vpack.c.b16 %v5523, %v5522
      %v5551 = vpack.c.b16 %v5525, %v5524
      %v5552 = vpack.c.b16 %v5527, %v5526
      %v5553 = vpack.c.b16 %v5529, %v5528
      %v5554 = vpack.c.b16 %v5531, %v5530
      %v5555 = vpack.c.b16 %v5533, %v5532
      %v5556 = vpack.c.b16 %v5535, %v5534
      %v5557 = vpack.c.b16 %v5537, %v5536
      %v5558 = vpack.c.b16 %v5539, %v5538
      %v5559 = vpack.c.b16 %v5541, %v5540
      %v5560 = vpack.c.b16 %v5543, %v5542
      %v5561 = vpack.c.b16 %v5545, %v5544
      %v5594 = vunpack.c.l.b16 %v5498
      %v5595 = vunpack.c.l.b16 %v5499
      %v5596 = vunpack.c.l.b16 %v5500
      %v5597 = vunpack.c.l.b16 %v5501
      %v5598 = vunpack.c.l.b16 %v5502
      %v5599 = vunpack.c.l.b16 %v5503
      %v5600 = vunpack.c.l.b16 %v5504
      %v5601 = vunpack.c.l.b16 %v5505
      %v5602 = vunpack.c.l.b16 %v5506
      %v5603 = vunpack.c.l.b16 %v5507
      %v5604 = vunpack.c.l.b16 %v5508
      %v5605 = vunpack.c.l.b16 %v5509
      %v5606 = vunpack.c.l.b16 %v5510
      %v5607 = vunpack.c.l.b16 %v5511
      %v5608 = vunpack.c.l.b16 %v5512
      %v5609 = vunpack.c.l.b16 %v5513
      %v5610 = vpack.c.b16 %v5595, %v5594
      %v5611 = vpack.c.b16 %v5597, %v5596
      %v5612 = vpack.c.b16 %v5599, %v5598
      %v5613 = vpack.c.b16 %v5601, %v5600
      %v5614 = vpack.c.b16 %v5603, %v5602
      %v5615 = vpack.c.b16 %v5605, %v5604
      %v5616 = vpack.c.b16 %v5607, %v5606
      %v5617 = vpack.c.b16 %v5609, %v5608
      %5626 = vmatprep.subr.bf16.mxu0 0
      %5627 = vmatpush1.bf16.msra.mxu0 %v5617
      %5628 = vmatprep.subr.bf16.mxu0 0
      %5629 = vmatpush1.bf16.msra.mxu0 %v5616
      %5630 = vmatprep.subr.bf16.mxu0 0
      %5631 = vmatpush1.bf16.msra.mxu0 %v5615
      %5632 = vmatprep.subr.bf16.mxu0 0
      %5633 = vmatpush1.bf16.msra.mxu0 %v5614
      %5634 = vmatprep.subr.bf16.mxu0 0
      %5635 = vmatpush1.bf16.msra.mxu0 %v5613
      %5636 = vmatprep.subr.bf16.mxu0 0
      %5637 = vmatpush1.bf16.msra.mxu0 %v5612
      %5638 = vmatprep.subr.bf16.mxu0 0
      %5639 = vmatpush1.bf16.msra.mxu0 %v5611
      %5640 = vmatprep.subr.bf16.mxu0 0
      %5641 = vmatpush1.bf16.msra.mxu0 %v5610
      %5642 = vmatprep.subr.bf16.mxu0 0
      %5643 = vmatpush2.bf16.msra.mxu0 0
      %5644 = vmatprep.subr.bf16.mxu0 0
      %5645 = vmatpush2.bf16.msra.mxu0 0
      %5646 = vmatprep.subr.bf16.mxu0 0
      %5647 = vmatpush2.bf16.msra.mxu0 0
      %5648 = vmatprep.subr.bf16.mxu0 0
      %5649 = vmatpush2.bf16.msra.mxu0 0
      %5650 = vmatprep.subr.bf16.mxu0 0
      %5651 = vmatpush2.bf16.msra.mxu0 0
      %5652 = vmatprep.subr.bf16.mxu0 0
      %5653 = vmatpush2.bf16.msra.mxu0 0
      %5654 = vmatprep.subr.bf16.mxu0 0
      %5655 = vmatpush2.bf16.msra.mxu0 0
      %5656 = vmatprep.subr.bf16.mxu0 0
      %5657 = vmatpush2.bf16.msra.mxu0 0
      %5658 = vmatprep.mubr.bf16.mxu0 0
      %5659 = vmatmul.mubr.bf16.gmra.mxu0 %v5546
      %v5660 = vpop.f32.mrf.mxu0
      %v5661 = vadd.f32 0.0, %v5660
      %v5662 = vpop.f32.mrf.mxu0
      %v5663 = vpop.f32.mrf.mxu0
      %v5664 = vadd.f32 0.0, %v5663
      %v5665 = vpop.f32.mrf.mxu0
      %5666 = vmatprep.mubr.bf16.mxu0 0
      %5667 = vmatmul.mubr.bf16.gmra.mxu0 %v5547
      %v5668 = vpop.f32.mrf.mxu0
      %v5669 = vadd.f32 0.0, %v5668
      %v5670 = vpop.f32.mrf.mxu0
      %v5671 = vpop.f32.mrf.mxu0
      %v5672 = vadd.f32 0.0, %v5671
      %v5673 = vpop.f32.mrf.mxu0
      %5674 = vmatprep.mubr.bf16.mxu0 0
      %5675 = vmatmul.mubr.bf16.gmra.mxu0 %v5548
      %v5676 = vpop.f32.mrf.mxu0
      %v5677 = vadd.f32 0.0, %v5676
      %v5678 = vpop.f32.mrf.mxu0
      %v5679 = vpop.f32.mrf.mxu0
      %v5680 = vadd.f32 0.0, %v5679
      %v5681 = vpop.f32.mrf.mxu0
      %5682 = vmatprep.mubr.bf16.mxu0 0
      %5683 = vmatmul.mubr.bf16.gmra.mxu0 %v5549
      %v5684 = vpop.f32.mrf.mxu0
      %v5685 = vadd.f32 0.0, %v5684
      %v5686 = vpop.f32.mrf.mxu0
      %v5687 = vpop.f32.mrf.mxu0
      %v5688 = vadd.f32 0.0, %v5687
      %v5689 = vpop.f32.mrf.mxu0
      %5690 = vmatprep.mubr.bf16.mxu0 0
      %5691 = vmatmul.mubr.bf16.gmra.mxu0 %v5550
      %v5692 = vpop.f32.mrf.mxu0
      %v5693 = vadd.f32 0.0, %v5692
      %v5694 = vpop.f32.mrf.mxu0
      %v5695 = vpop.f32.mrf.mxu0
      %v5696 = vadd.f32 0.0, %v5695
      %v5697 = vpop.f32.mrf.mxu0
      %5698 = vmatprep.mubr.bf16.mxu0 0
      %5699 = vmatmul.mubr.bf16.gmra.mxu0 %v5551
      %v5700 = vpop.f32.mrf.mxu0
      %v5701 = vadd.f32 0.0, %v5700
      %v5702 = vpop.f32.mrf.mxu0
      %v5703 = vpop.f32.mrf.mxu0
      %v5704 = vadd.f32 0.0, %v5703
      %v5705 = vpop.f32.mrf.mxu0
      %5706 = vmatprep.mubr.bf16.mxu0 0
      %5707 = vmatmul.mubr.bf16.gmra.mxu0 %v5552
      %v5708 = vpop.f32.mrf.mxu0
      %v5709 = vadd.f32 0.0, %v5708
      %v5710 = vpop.f32.mrf.mxu0
      %v5711 = vpop.f32.mrf.mxu0
      %v5712 = vadd.f32 0.0, %v5711
      %v5713 = vpop.f32.mrf.mxu0
      %5714 = vmatprep.mubr.bf16.mxu0 0
      %5715 = vmatmul.mubr.bf16.gmra.mxu0 %v5553
      %v5716 = vpop.f32.mrf.mxu0
      %v5717 = vadd.f32 0.0, %v5716
      %v5718 = vpop.f32.mrf.mxu0
      %v5719 = vpop.f32.mrf.mxu0
      %v5720 = vadd.f32 0.0, %v5719
      %v5721 = vpop.f32.mrf.mxu0
      %5722 = vmatprep.mubr.bf16.mxu0 0
      %5723 = vmatmul.mubr.bf16.gmra.mxu0 %v5554
      %v5724 = vpop.f32.mrf.mxu0
      %v5725 = vadd.f32 0.0, %v5724
      %v5726 = vpop.f32.mrf.mxu0
      %v5727 = vpop.f32.mrf.mxu0
      %v5728 = vadd.f32 0.0, %v5727
      %v5729 = vpop.f32.mrf.mxu0
      %5730 = vmatprep.mubr.bf16.mxu0 0
      %5731 = vmatmul.mubr.bf16.gmra.mxu0 %v5555
      %v5732 = vpop.f32.mrf.mxu0
      %v5733 = vadd.f32 0.0, %v5732
      %v5734 = vpop.f32.mrf.mxu0
      %v5735 = vpop.f32.mrf.mxu0
      %v5736 = vadd.f32 0.0, %v5735
      %v5737 = vpop.f32.mrf.mxu0
      %5738 = vmatprep.mubr.bf16.mxu0 0
      %5739 = vmatmul.mubr.bf16.gmra.mxu0 %v5556
      %v5740 = vpop.f32.mrf.mxu0
      %v5741 = vadd.f32 0.0, %v5740
      %v5742 = vpop.f32.mrf.mxu0
      %v5743 = vpop.f32.mrf.mxu0
      %v5744 = vadd.f32 0.0, %v5743
      %v5745 = vpop.f32.mrf.mxu0
      %5746 = vmatprep.mubr.bf16.mxu0 0
      %5747 = vmatmul.mubr.bf16.gmra.mxu0 %v5557
      %v5748 = vpop.f32.mrf.mxu0
      %v5749 = vadd.f32 0.0, %v5748
      %v5750 = vpop.f32.mrf.mxu0
      %v5751 = vpop.f32.mrf.mxu0
      %v5752 = vadd.f32 0.0, %v5751
      %v5753 = vpop.f32.mrf.mxu0
      %5754 = vmatprep.mubr.bf16.mxu0 0
      %5755 = vmatmul.mubr.bf16.gmra.mxu0 %v5558
      %v5756 = vpop.f32.mrf.mxu0
      %v5757 = vadd.f32 0.0, %v5756
      %v5758 = vpop.f32.mrf.mxu0
      %v5759 = vpop.f32.mrf.mxu0
      %v5760 = vadd.f32 0.0, %v5759
      %v5761 = vpop.f32.mrf.mxu0
      %5762 = vmatprep.mubr.bf16.mxu0 0
      %5763 = vmatmul.mubr.bf16.gmra.mxu0 %v5559
      %v5764 = vpop.f32.mrf.mxu0
      %v5765 = vadd.f32 0.0, %v5764
      %v5766 = vpop.f32.mrf.mxu0
      %v5767 = vpop.f32.mrf.mxu0
      %v5768 = vadd.f32 0.0, %v5767
      %v5769 = vpop.f32.mrf.mxu0
      %5770 = vmatprep.mubr.bf16.mxu0 0
      %5771 = vmatmul.mubr.bf16.gmra.mxu0 %v5560
      %v5772 = vpop.f32.mrf.mxu0
      %v5773 = vadd.f32 0.0, %v5772
      %v5774 = vpop.f32.mrf.mxu0
      %v5775 = vpop.f32.mrf.mxu0
      %v5776 = vadd.f32 0.0, %v5775
      %v5777 = vpop.f32.mrf.mxu0
      %5778 = vmatprep.mubr.bf16.mxu0 0
      %5779 = vmatmul.mubr.bf16.gmra.mxu0 %v5561
      %v5780 = vpop.f32.mrf.mxu0
      %v5781 = vadd.f32 0.0, %v5780
      %v5782 = vpop.f32.mrf.mxu0
      %v5783 = vpop.f32.mrf.mxu0
      %v5784 = vadd.f32 0.0, %v5783
      %v5785 = vpop.f32.mrf.mxu0
      %5786 = vdwg.mxu0
      %v5787 = vadd.f32 %v5289, %v5661
      %v5788 = vadd.f32 %v5290, %v5664
      %v5789 = vadd.f32 %v5291, %v5669
      %v5790 = vadd.f32 %v5292, %v5672
      %v5791 = vadd.f32 %v5293, %v5677
      %v5792 = vadd.f32 %v5294, %v5680
      %v5793 = vadd.f32 %v5295, %v5685
      %v5794 = vadd.f32 %v5296, %v5688
      %v5795 = vadd.f32 %v5297, %v5693
      %v5796 = vadd.f32 %v5298, %v5696
      %v5797 = vadd.f32 %v5299, %v5701
      %v5798 = vadd.f32 %v5300, %v5704
      %v5799 = vadd.f32 %v5301, %v5709
      %v5800 = vadd.f32 %v5302, %v5712
      %v5801 = vadd.f32 %v5303, %v5717
      %v5802 = vadd.f32 %v5304, %v5720
      %v5803 = vadd.f32 %v5305, %v5725
      %v5804 = vadd.f32 %v5306, %v5728
      %v5805 = vadd.f32 %v5307, %v5733
      %v5806 = vadd.f32 %v5308, %v5736
      %v5807 = vadd.f32 %v5309, %v5741
      %v5808 = vadd.f32 %v5310, %v5744
      %v5809 = vadd.f32 %v5311, %v5749
      %v5810 = vadd.f32 %v5312, %v5752
      %v5811 = vadd.f32 %v5313, %v5757
      %v5812 = vadd.f32 %v5314, %v5760
      %v5813 = vadd.f32 %v5315, %v5765
      %v5814 = vadd.f32 %v5316, %v5768
      %v5815 = vadd.f32 %v5317, %v5773
      %v5816 = vadd.f32 %v5318, %v5776
      %v5817 = vadd.f32 %v5319, %v5781
      %v5818 = vadd.f32 %v5320, %v5784
      %5819 = vst [vmem:[%s255] sm:$0xff] %v5787
      %5820 = vst [vmem:[%s255 + $0x8] sm:$0xff] %v5788
      %5821 = vst [vmem:[%s255 + $0x10] sm:$0xff] %v5789
      %5822 = vst [vmem:[%s255 + $0x18] sm:$0xff] %v5790
      %5823 = vst [vmem:[%s255 + $0x20] sm:$0xff] %v5791
      %5824 = vst [vmem:[%s255 + $0x28] sm:$0xff] %v5792
      %5825 = vst [vmem:[%s255 + $0x30] sm:$0xff] %v5793
      %5826 = vst [vmem:[%s255 + $0x38] sm:$0xff] %v5794
      %5827 = vst [vmem:[%s255 + $0x40] sm:$0xff] %v5795
      %5828 = vst [vmem:[%s255 + $0x48] sm:$0xff] %v5796
      %5829 = vst [vmem:[%s255 + $0x50] sm:$0xff] %v5797
      %5830 = vst [vmem:[%s255 + $0x58] sm:$0xff] %v5798
      %5831 = vst [vmem:[%s255 + $0x60] sm:$0xff] %v5799
      %5832 = vst [vmem:[%s255 + $0x68] sm:$0xff] %v5800
      %5833 = vst [vmem:[%s255 + $0x70] sm:$0xff] %v5801
      %5834 = vst [vmem:[%s255 + $0x78] sm:$0xff] %v5802
      %5835 = vst [vmem:[%s255 + $0x80] sm:$0xff] %v5803
      %5836 = vst [vmem:[%s255 + $0x88] sm:$0xff] %v5804
      %5837 = vst [vmem:[%s255 + $0x90] sm:$0xff] %v5805
      %5838 = vst [vmem:[%s255 + $0x98] sm:$0xff] %v5806
      %5839 = vst [vmem:[%s255 + $0xa0] sm:$0xff] %v5807
      %5840 = vst [vmem:[%s255 + $0xa8] sm:$0xff] %v5808
      %5841 = vst [vmem:[%s255 + $0xb0] sm:$0xff] %v5809
      %5842 = vst [vmem:[%s255 + $0xb8] sm:$0xff] %v5810
      %5843 = vst [vmem:[%s255 + $0xc0] sm:$0xff] %v5811
      %5844 = vst [vmem:[%s255 + $0xc8] sm:$0xff] %v5812
      %5845 = vst [vmem:[%s255 + $0xd0] sm:$0xff] %v5813
      %5846 = vst [vmem:[%s255 + $0xd8] sm:$0xff] %v5814
      %5847 = vst [vmem:[%s255 + $0xe0] sm:$0xff] %v5815
      %5848 = vst [vmem:[%s255 + $0xe8] sm:$0xff] %v5816
      %5849 = vst [vmem:[%s255 + $0xf0] sm:$0xff] %v5817
      %5850 = vst [vmem:[%s255 + $0xf8] sm:$0xff] %v5818
      %v5851 = vld [vmem:[%s260] sm:$0x1]
      %v5852 = vadd.f32 %v5787, %v5788
      %v5853 = vadd.f32 %v5852, %v5789
      %v5854 = vadd.f32 %v5853, %v5790
      %v5855 = vadd.f32 %v5854, %v5791
      %v5856 = vadd.f32 %v5855, %v5792
      %v5857 = vadd.f32 %v5856, %v5793
      %v5858 = vadd.f32 %v5857, %v5794
      %v5859 = vadd.f32 %v5858, %v5795
      %v5860 = vadd.f32 %v5859, %v5796
      %v5861 = vadd.f32 %v5860, %v5797
      %v5862 = vadd.f32 %v5861, %v5798
      %v5863 = vadd.f32 %v5862, %v5799
      %v5864 = vadd.f32 %v5863, %v5800
      %v5865 = vadd.f32 %v5864, %v5801
      %v5866 = vadd.f32 %v5865, %v5802
      %v5867 = vadd.f32 %v5866, %v5803
      %v5868 = vadd.f32 %v5867, %v5804
      %v5869 = vadd.f32 %v5868, %v5805
      %v5870 = vadd.f32 %v5869, %v5806
      %v5871 = vadd.f32 %v5870, %v5807
      %v5872 = vadd.f32 %v5871, %v5808
      %v5873 = vadd.f32 %v5872, %v5809
      %v5874 = vadd.f32 %v5873, %v5810
      %v5875 = vadd.f32 %v5874, %v5811
      %v5876 = vadd.f32 %v5875, %v5812
      %v5877 = vadd.f32 %v5876, %v5813
      %v5878 = vadd.f32 %v5877, %v5814
      %v5879 = vadd.f32 %v5878, %v5815
      %v5880 = vadd.f32 %v5879, %v5816
      %v5881 = vadd.f32 %v5880, %v5817
      %v5882 = vadd.f32 %v5881, %v5818
      %v5883 = vrot.slane %v5882, 4
      %v5884 = vadd.f32 %v5882, %v5883
      %v5885 = vrot.slane %v5884, 2
      %v5886 = vadd.f32 %v5884, %v5885
      %v5887 = vrot.slane %v5886, 1
      %v5888 = vadd.f32 %v5886, %v5887
      %v5889 = vadd.f32 %v5851, %v5888
      %5890 = vst [vmem:[%s260] sm:$0x1] %v5889
      %v5891 = vld [vmem:[%s260 + $0x1] sm:$0x1]
      %v5892 = vmul.f32 %v5787, %v5787
      %v5893 = vmul.f32 %v5788, %v5788
      %v5894 = vmul.f32 %v5789, %v5789
      %v5895 = vmul.f32 %v5790, %v5790
      %v5896 = vmul.f32 %v5791, %v5791
      %v5897 = vmul.f32 %v5792, %v5792
      %v5898 = vmul.f32 %v5793, %v5793
      %v5899 = vmul.f32 %v5794, %v5794
      %v5900 = vmul.f32 %v5795, %v5795
      %v5901 = vmul.f32 %v5796, %v5796
      %v5902 = vmul.f32 %v5797, %v5797
      %v5903 = vmul.f32 %v5798, %v5798
      %v5904 = vmul.f32 %v5799, %v5799
      %v5905 = vmul.f32 %v5800, %v5800
      %v5906 = vmul.f32 %v5801, %v5801
      %v5907 = vmul.f32 %v5802, %v5802
      %v5908 = vmul.f32 %v5803, %v5803
      %v5909 = vmul.f32 %v5804, %v5804
      %v5910 = vmul.f32 %v5805, %v5805
      %v5911 = vmul.f32 %v5806, %v5806
      %v5912 = vmul.f32 %v5807, %v5807
      %v5913 = vmul.f32 %v5808, %v5808
      %v5914 = vmul.f32 %v5809, %v5809
      %v5915 = vmul.f32 %v5810, %v5810
      %v5916 = vmul.f32 %v5811, %v5811
      %v5917 = vmul.f32 %v5812, %v5812
      %v5918 = vmul.f32 %v5813, %v5813
      %v5919 = vmul.f32 %v5814, %v5814
      %v5920 = vmul.f32 %v5815, %v5815
      %v5921 = vmul.f32 %v5816, %v5816
      %v5922 = vmul.f32 %v5817, %v5817
      %v5923 = vmul.f32 %v5818, %v5818
      %v5924 = vadd.f32 %v5892, %v5893
      %v5925 = vadd.f32 %v5924, %v5894
      %v5926 = vadd.f32 %v5925, %v5895
      %v5927 = vadd.f32 %v5926, %v5896
      %v5928 = vadd.f32 %v5927, %v5897
      %v5929 = vadd.f32 %v5928, %v5898
      %v5930 = vadd.f32 %v5929, %v5899
      %v5931 = vadd.f32 %v5930, %v5900
      %v5932 = vadd.f32 %v5931, %v5901
      %v5933 = vadd.f32 %v5932, %v5902
      %v5934 = vadd.f32 %v5933, %v5903
      %v5935 = vadd.f32 %v5934, %v5904
      %v5936 = vadd.f32 %v5935, %v5905
      %v5937 = vadd.f32 %v5936, %v5906
      %v5938 = vadd.f32 %v5937, %v5907
      %v5939 = vadd.f32 %v5938, %v5908
      %v5940 = vadd.f32 %v5939, %v5909
      %v5941 = vadd.f32 %v5940, %v5910
      %v5942 = vadd.f32 %v5941, %v5911
      %v5943 = vadd.f32 %v5942, %v5912
      %v5944 = vadd.f32 %v5943, %v5913
      %v5945 = vadd.f32 %v5944, %v5914
      %v5946 = vadd.f32 %v5945, %v5915
      %v5947 = vadd.f32 %v5946, %v5916
      %v5948 = vadd.f32 %v5947, %v5917
      %v5949 = vadd.f32 %v5948, %v5918
      %v5950 = vadd.f32 %v5949, %v5919
      %v5951 = vadd.f32 %v5950, %v5920
      %v5952 = vadd.f32 %v5951, %v5921
      %v5953 = vadd.f32 %v5952, %v5922
      %v5954 = vadd.f32 %v5953, %v5923
      %v5955 = vrot.slane %v5954, 4
      %v5956 = vadd.f32 %v5954, %v5955
      %v5957 = vrot.slane %v5956, 2
      %v5958 = vadd.f32 %v5956, %v5957
      %v5959 = vrot.slane %v5958, 1
      %v5960 = vadd.f32 %v5958, %v5959
      %v5961 = vadd.f32 %v5891, %v5960
      %5962 = vst [vmem:[%s260 + $0x1] sm:$0x1] %v5961
      %s5963 = smul.u32 16, %s22
      %p5964 = scmp.lt.s32.totalorder %s21, 1
      %s5965 = scalar_select %p5964, %s21, 1
      %p5966 = scmp.lt.s32.totalorder %s5963, 15
      %s5967 = scalar_select %p5966, %s5963, 15
      %s5968 = smul.addr %s5967, 2
      %s5969 = smul.addr %s5965, 32
      %s5970 = sadd.s32 %s5968, %s5969
      %s5971 = smul.addr %s5970, 8
      %s5972 = scalar_lea.vmem %s4, %s5971
      %p5973 = scmp.lt.s32.totalorder %s21, 1
      %s5974 = scalar_select %p5973, %s21, 1
      %s5975 = smul.addr %s5974, 2
      %s5976 = scalar_lea.vmem %s5, %s5975
      // Predicated region
      $region41: #{resblock_forward.4} parent=35 // pred_check
        %p5977 = pneg %p138
      $region42: #{resblock_forward.4} parent=35 // pred_check_branch
        %5979 = sbr.rel (%p5977) target = $region44
      $region43: #{resblock_forward.4} parent=35 // pred_region
        %s5980 = smul.u32 16, %s22
      $region44: #{resblock_forward.4} parent=35 // pred_fallthru
        _
      // Predicated region
      $region45: #{resblock_forward.4} parent=35 // pred_check
        %p5981 = pneg %p164
      $region46: #{resblock_forward.4} parent=35 // pred_check_branch
        %5983 = sbr.rel (%p5981) target = $region48
      $region47: #{resblock_forward.4} parent=35 // pred_region
        _
      $region48: #{resblock_forward.4} parent=35 // pred_fallthru
        _
    $region36: #{resblock_forward.4} parent=5 // pred_fallthru
      _
    %p5984 = scmp.le.s32.totalorder 2, %s12
    // Predicated region
    $region49: #{resblock_forward.4} parent=5 // pred_check
      %p5985 = pneg %p5984
    $region50: #{resblock_forward.4} parent=5 // pred_check_branch
      %5987 = sbr.rel (%p5985) target = $region52
    $region51: #{resblock_forward.4} parent=5 // pred_region
      %s5988 = ssub.s32 %s12, 2
      // Predicated region
      $region53: #{resblock_forward.4} parent=51 // pred_check
        %p5989 = pneg %p144
      $region54: #{resblock_forward.4} parent=51 // pred_check_branch
        %5991 = sbr.rel (%p5989) target = $region56
      $region55: #{resblock_forward.4} parent=51 // pred_region
        %s5992 = smul.u32 16, %s24
        %p5993 = scmp.lt.s32.totalorder %s23, 1
        %s5994 = scalar_select %p5993, %s23, 1
        %p5995 = scmp.lt.s32.totalorder %s5992, 15
        %s5996 = scalar_select %p5995, %s5992, 15
        %s5997 = smul.addr %s5996, 2
        %s5998 = smul.addr %s5994, 32
        %s5999 = sadd.s32 %s5997, %s5998
        %s6000 = smul.addr %s5999, 8
        %s6001 = scalar_lea.vmem %s4, %s6000
      $region56: #{resblock_forward.4} parent=51 // pred_fallthru
        _
      // Predicated region
      $region57: #{resblock_forward.4} parent=51 // pred_check
        %p6002 = pneg %p170
      $region58: #{resblock_forward.4} parent=51 // pred_check_branch
        %6004 = sbr.rel (%p6002) target = $region60
      $region59: #{resblock_forward.4} parent=51 // pred_region
        %p6005 = scmp.lt.s32.totalorder %s23, 1
        %s6006 = scalar_select %p6005, %s23, 1
        %s6007 = smul.addr %s6006, 2
        %s6008 = scalar_lea.vmem %s5, %s6007
      $region60: #{resblock_forward.4} parent=51 // pred_fallthru
        _
    $region52: #{resblock_forward.4} parent=5 // pred_fallthru
      _
  $region6: #{resblock_forward.4} parent=0 // loop_footer
    %s16 = sadd.s32 1, %s12
  $region7: #{resblock_forward.4} parent=0 // loop_footer_branch
    %11 = sbr.rel target = $region3
  $region8: #{resblock_forward.4} parent=0 // loop_exit
    _

</llo_original>
